<compile_context>
chip_gen: v5e
topology: v5e:2x2
jax: 0.10.0
libtpu: 0.0.40
codegen_flags: <defaults>
</compile_context>

<pallas_src>
import jax
import jax.numpy as jnp
import numpy as np
from jax.experimental import pallas as pl
from jax.experimental.pallas import tpu as pltpu

# ----------------------------- configuration ------------------------------
B = 2                      # batch
GRID_H = GRID_W = 8        # patch grid (PEG conv grid)
N_PATCH = GRID_H * GRID_W  # 64 patch tokens
PATCH_W = 32               # patches_width
N_LATENT = 8               # latent tokens
LATENT_W = 32              # latent_width
TIME_DIM = 16              # time embedding dim
HEADS = 2
DIM_HEAD = 16
HD = HEADS * DIM_HEAD      # 32
FF_MULT = 4
LATENT_SA_DEPTH = 1
PATCH_SA_DEPTH = 1
EPS = 1e-5


# ------------------------------ kernel wrapper ------------------------------
def build_forward(params):
    bf16 = jnp.bfloat16

    # ----- host-side parameter packing (operand-count / MXU-push reduction) ----
    attn_mods = ([params["lat_cross_attn"]]
                 + [pa for pa, _ in params["lat_self"]]
                 + [pa for pa, _ in params["pat_self"]]
                 + [params["pat_cross_attn"]])
    ff_mods = ([params["lat_cross_ff"]]
               + [pf for _, pf in params["lat_self"]]
               + [pf for _, pf in params["pat_self"]]
               + [params["pat_cross_ff"]])
    ff_has_time = ([True] + [True] * LATENT_SA_DEPTH
                   + [False] * PATCH_SA_DEPTH + [True])

    def stack_heads(w):          # (H, Din, dh) -> (Din, H*dh)
        return jnp.transpose(w, (1, 0, 2)).reshape(w.shape[1], HD)

    attn_wq = jnp.stack([stack_heads(p["wq"]) for p in attn_mods]).astype(bf16)
    attn_wkv = jnp.stack(
        [jnp.concatenate([stack_heads(p["wk"]), stack_heads(p["wv"])], axis=-1)
         for p in attn_mods]).astype(bf16)
    attn_wo = jnp.stack([p["wo"].reshape(HD, -1) for p in attn_mods]).astype(bf16)
    attn_gx = jnp.stack([p["gx"] for p in attn_mods])
    attn_gc = jnp.stack([p.get("gc", jnp.ones_like(p["gx"])) for p in attn_mods])

    ff_g = jnp.stack([p["g"] for p in ff_mods])
    ff_w1 = jnp.stack([p["w1"] for p in ff_mods]).astype(bf16)
    ff_b1 = jnp.stack([p["b1"] for p in ff_mods])
    ff_w2 = jnp.stack([p["w2"] for p in ff_mods]).astype(bf16)
    ff_b2 = jnp.stack([p["b2"] for p in ff_mods])

    # One fused AdaLN weight: every module's [scale|shift] stacked on lanes.
    tw, tb, attn_toff, ff_toff, off = [], [], [], [], 0
    for p in attn_mods:
        attn_toff.append(off)
        tw += [p["wt"][0], p["wt"][1]]
        tb += [p["bt"][0], p["bt"][1]]
        off += 2 * p["wt"].shape[-1]
    for p, use_t in zip(ff_mods, ff_has_time):
        if use_t:
            ff_toff.append(off)
            tw += [p["wt"][0], p["wt"][1]]
            tb += [p["bt"][0], p["bt"][1]]
            off += 2 * p["wt"].shape[-1]
        else:
            ff_toff.append(None)
    time_w = jnp.concatenate(tw, axis=-1).astype(bf16)   # (TIME_DIM, 7*2*32)
    time_b = jnp.concatenate(tb, axis=-1)                # (1,        7*2*32)

    # PEG: grid-edge / cross-batch validity masks folded into the depthwise
    # weights host-side; they also kill every row that a circular roll wraps.
    bn = B * N_PATCH
    p_idx = np.arange(bn) % N_PATCH
    row, col = p_idx // GRID_W, p_idx % GRID_W
    mask = np.zeros((9, bn, 1), np.float32)
    for dy in (-1, 0, 1):
        for dx in (-1, 0, 1):
            tap = (dy + 1) * 3 + (dx + 1)
            ok = ((row + dy >= 0) & (row + dy < GRID_H)
                  & (col + dx >= 0) & (col + dx < GRID_W))
            mask[tap, :, 0] = ok.astype(np.float32)
    peg_mw = jnp.asarray(mask) * params["peg_w"]          # (9, BN, PATCH_W) f32
    peg_b = params["peg_b"]

    final_g = jnp.stack([params["patch_final_g"], params["latent_final_g"]])

    # ------------------------------ fused kernel ------------------------------
    def kernel(patches_ref, latents_ref, t_ref,
               attn_gx_ref, attn_gc_ref, attn_wq_ref, attn_wkv_ref, attn_wo_ref,
               ff_g_ref, ff_w1_ref, ff_b1_ref, ff_w2_ref, ff_b2_ref,
               time_w_ref, time_b_ref, peg_mw_ref, peg_b_ref, final_g_ref,
               out_p_ref, out_l_ref):
        f32 = jnp.float32

        def mm(a, b):             # 2-D MXU matmul, bf16 operands, f32 accumulate
            return jnp.dot(a.astype(bf16), b.astype(bf16),
                           preferred_element_type=f32)

        def bdot(a, b, dims):     # batched (over B) dot_general on the MXU
            return jax.lax.dot_general(a.astype(bf16), b.astype(bf16), dims,
                                       preferred_element_type=f32)

        # flatten (B, N, D) -> (B*N, D): one tall operand per projection matmul
        patches = patches_ref[...].reshape(B * N_PATCH, PATCH_W)
        latents = latents_ref[...].reshape(B * N_LATENT, LATENT_W)

        # All AdaLN scale/shift pairs from a single SiLU(t) matmul.
        t = t_ref[...]
        silu_t = t * (1.0 / (1.0 + jnp.exp(-t)))                  # (B, TIME_DIM)
        ts_all = mm(silu_t, time_w_ref[...]) + time_b_ref[...]    # (B, 7*2*32)

        def layer_norm(x, g):
            mu = jnp.mean(x, axis=-1, keepdims=True)
            var = jnp.mean(jnp.square(x - mu), axis=-1, keepdims=True)
            return (x - mu) * jax.lax.rsqrt(var + EPS) * g

        def time_mod(x2d, n_tok, toff):
            d = x2d.shape[-1]
            scale = ts_all[:, toff:toff + d]                      # (B, D)
            shift = ts_all[:, toff + d:toff + 2 * d]
            x3 = x2d.reshape(B, n_tok, d)
            x3 = x3 * (scale[:, None, :] + 1.0) + shift[:, None, :]
            return x3.reshape(x2d.shape)

        def attention(x2d, ctx2d, n_x, n_ctx, idx, toff, self_attn, norm_context):
            xn = layer_norm(x2d, attn_gx_ref[idx])
            if self_attn:
                cn = xn
            elif norm_context:
                cn = layer_norm(ctx2d, attn_gc_ref[idx])
            else:
                cn = ctx2d
            xm = time_mod(xn, n_x, toff)
            # fused all-head projections: 1 matmul for Q, 1 for [K|V]
            q = mm(xm, attn_wq_ref[idx]) * (DIM_HEAD ** -0.5)     # (B*n_x, HD)
            kv = mm(cn, attn_wkv_ref[idx])                        # (B*n_ctx, 2HD)
            q3 = q.reshape(B, n_x, HD)
            kv3 = kv.reshape(B, n_ctx, 2 * HD)
            o_heads = []
            for h in range(HEADS):
                qh = q3[:, :, h * DIM_HEAD:(h + 1) * DIM_HEAD]
                kh = kv3[:, :, h * DIM_HEAD:(h + 1) * DIM_HEAD]
                vh = kv3[:, :, HD + h * DIM_HEAD:HD + (h + 1) * DIM_HEAD]
                # batched QK^T / PV (batch dim = B) so batches never mix
                sim = bdot(qh, kh, (((2,), (2,)), ((0,), (0,))))  # (B, n_x, n_ctx)
                sim = sim - jnp.max(sim, axis=-1, keepdims=True)
                e = jnp.exp(sim)
                pr = e * pl.reciprocal(jnp.sum(e, axis=-1, keepdims=True),
                                       approx=True)
                o_heads.append(bdot(pr, vh, (((2,), (1,)), ((0,), (0,)))))
            # concat-over-heads then W_o  ==  sum_h o_h @ W_o[h]  (one matmul)
            o_cat = jnp.concatenate(o_heads, axis=-1).reshape(B * n_x, HD)
            return x2d + mm(o_cat, attn_wo_ref[idx])

        def feed_forward(x2d, n_tok, idx, toff):
            xn = layer_norm(x2d, ff_g_ref[idx])
            if toff is not None:
                xn = time_mod(xn, n_tok, toff)
            h = mm(xn, ff_w1_ref[idx]) + ff_b1_ref[idx]
            # TODO(synk): PyTorch nn.GELU() defaults to the exact erf GELU; the
            # tanh approximation is used here (reference below uses the same).
            h = jax.nn.gelu(h, approximate=True)
            return x2d + mm(h, ff_w2_ref[idx]) + ff_b2_ref[idx]

        def peg(x2d):
            # Depthwise 3x3 conv (pad 1) over the 8x8 grid: nine XLU sublane
            # rolls; grid-edge + batch-boundary (and roll-wrap) rows are zeroed
            # by the precomputed mask*weight tensor.
            n_rows = x2d.shape[0]
            acc = jnp.zeros_like(x2d) + peg_b_ref[...]
            for dy in (-1, 0, 1):
                for dx in (-1, 0, 1):
                    off_ = dy * GRID_W + dx
                    tap = (dy + 1) * 3 + (dx + 1)
                    if off_ == 0:
                        shifted = x2d
                    else:
                        shifted = pltpu.roll(x2d, shift=(-off_) % n_rows, axis=0)
                    acc = acc + shifted * peg_mw_ref[tap]
            return x2d + acc

        # ---------------------------- RINBlock.forward ----------------------------
        patches = peg(patches)

        ai, fi = 0, 0
        latents = attention(latents, patches, N_LATENT, N_PATCH, ai, attn_toff[ai],
                            self_attn=False, norm_context=True)
        latents = feed_forward(latents, N_LATENT, fi, ff_toff[fi])
        ai += 1; fi += 1
        for _ in range(LATENT_SA_DEPTH):
            latents = attention(latents, latents, N_LATENT, N_LATENT, ai,
                                attn_toff[ai], self_attn=True, norm_context=False)
            latents = feed_forward(latents, N_LATENT, fi, ff_toff[fi])
            ai += 1; fi += 1
        for _ in range(PATCH_SA_DEPTH):
            patches = attention(patches, patches, N_PATCH, N_PATCH, ai,
                                attn_toff[ai], self_attn=True, norm_context=False)
            patches = feed_forward(patches, N_PATCH, fi, ff_toff[fi])
            ai += 1; fi += 1
        patches = attention(patches, latents, N_PATCH, N_LATENT, ai, attn_toff[ai],
                            self_attn=False, norm_context=True)
        patches = feed_forward(patches, N_PATCH, fi, ff_toff[fi])

        out_p_ref[...] = layer_norm(patches, final_g_ref[0]).reshape(
            B, N_PATCH, PATCH_W)
        out_l_ref[...] = layer_norm(latents, final_g_ref[1]).reshape(
            B, N_LATENT, LATENT_W)

    # Single no-grid pallas_call: every operand mapped whole into VMEM
    # (activations + packed weights < 1 MiB, far under VMEM on all generations).
    fused = pl.pallas_call(
        kernel,
        out_shape=(jax.ShapeDtypeStruct((B, N_PATCH, PATCH_W), jnp.float32),
                   jax.ShapeDtypeStruct((B, N_LATENT, LATENT_W), jnp.float32)),
    )

    @jax.jit
    def forward(patches, latents, t):
        return fused(patches, latents, t,
                     attn_gx, attn_gc, attn_wq, attn_wkv, attn_wo,
                     ff_g, ff_w1, ff_b1, ff_w2, ff_b2,
                     time_w, time_b, peg_mw, peg_b, final_g)

    return forward


# ------------------------------ parameter init ------------------------------
def init_attn_params(key, dim, dim_ctx, norm_context):
    ks = jax.random.split(key, 8)
    p = dict(
        gx=1.0 + 0.1 * jax.random.normal(ks[0], (1, dim), jnp.float32),
        wq=jax.random.normal(ks[1], (HEADS, dim, DIM_HEAD), jnp.float32) * (dim ** -0.5),
        wk=jax.random.normal(ks[2], (HEADS, dim_ctx, DIM_HEAD), jnp.float32) * (dim_ctx ** -0.5),
        wv=jax.random.normal(ks[3], (HEADS, dim_ctx, DIM_HEAD), jnp.float32) * (dim_ctx ** -0.5),
        wo=jax.random.normal(ks[4], (HEADS, DIM_HEAD, dim), jnp.float32) * (HD ** -0.5),
        wt=jax.random.normal(ks[5], (2, TIME_DIM, dim), jnp.float32) * 0.02,
        bt=jax.random.normal(ks[6], (2, 1, dim), jnp.float32) * 0.02,
    )
    if norm_context:
        p["gc"] = 1.0 + 0.1 * jax.random.normal(ks[7], (1, dim_ctx), jnp.float32)
    return p


def init_ff_params(key, dim, time):
    ks = jax.random.split(key, 7)
    inner = dim * FF_MULT
    p = dict(
        g=1.0 + 0.1 * jax.random.normal(ks[0], (1, dim), jnp.float32),
        w1=jax.random.normal(ks[1], (dim, inner), jnp.float32) * (dim ** -0.5),
        b1=jax.random.normal(ks[2], (1, inner), jnp.float32) * 0.02,
        w2=jax.random.normal(ks[3], (inner, dim), jnp.float32) * (inner ** -0.5),
        b2=jax.random.normal(ks[4], (1, dim), jnp.float32) * 0.02,
    )
    if time:
        p["wt"] = jax.random.normal(ks[5], (2, TIME_DIM, dim), jnp.float32) * 0.02
        p["bt"] = jax.random.normal(ks[6], (2, 1, dim), jnp.float32) * 0.02
    return p


def init_params(key):
    keys = iter(jax.random.split(key, 32))
    nk = lambda: next(keys)
    params = {}
    params["peg_w"] = jax.random.normal(nk(), (9, 1, PATCH_W), jnp.float32) / 3.0
    params["peg_b"] = jax.random.normal(nk(), (1, PATCH_W), jnp.float32) * 0.02
    params["lat_cross_attn"] = init_attn_params(nk(), LATENT_W, PATCH_W, norm_context=True)
    params["lat_cross_ff"] = init_ff_params(nk(), LATENT_W, time=True)
    params["lat_self"] = [(init_attn_params(nk(), LATENT_W, LATENT_W, norm_context=False),
                           init_ff_params(nk(), LATENT_W, time=True))
                          for _ in range(LATENT_SA_DEPTH)]
    params["pat_self"] = [(init_attn_params(nk(), PATCH_W, PATCH_W, norm_context=False),
                           init_ff_params(nk(), PATCH_W, time=False))
                          for _ in range(PATCH_SA_DEPTH)]
    params["pat_cross_attn"] = init_attn_params(nk(), PATCH_W, LATENT_W, norm_context=True)
    params["pat_cross_ff"] = init_ff_params(nk(), PATCH_W, time=True)
    params["patch_final_g"] = 1.0 + 0.1 * jax.random.normal(nk(), (1, PATCH_W), jnp.float32)
    params["latent_final_g"] = 1.0 + 0.1 * jax.random.normal(nk(), (1, LATENT_W), jnp.float32)
    return params


# ---------------------------- pure-JAX reference ----------------------------
def _ref_ln(x, g):
    mu = jnp.mean(x, axis=-1, keepdims=True)
    var = jnp.mean((x - mu) ** 2, axis=-1, keepdims=True)
    return (x - mu) * jax.lax.rsqrt(var + EPS) * g


def _ref_time_mod(x, t, p):
    st = jax.nn.silu(t)
    scale = st @ p["wt"][0] + p["bt"][0]
    shift = st @ p["wt"][1] + p["bt"][1]
    return x * (scale[:, None, :] + 1.0) + shift[:, None, :]


def _ref_attention(x, ctx, t, p, self_attn, norm_context):
    xn = _ref_ln(x, p["gx"])
    if self_attn:
        cn = xn
    elif norm_context:
        cn = _ref_ln(ctx, p["gc"])
    else:
        cn = ctx
    xm = _ref_time_mod(xn, t, p)
    out = jnp.zeros_like(x)
    for h in range(HEADS):
        q = (xm @ p["wq"][h]) * (DIM_HEAD ** -0.5)
        k = cn @ p["wk"][h]
        v = cn @ p["wv"][h]
        sim = jnp.einsum("bnd,bmd->bnm", q, k)
        attn = jax.nn.softmax(sim, axis=-1)
        o = jnp.einsum("bnm,bmd->bnd", attn, v)
        out = out + o @ p["wo"][h]
    return x + out


def _ref_feed_forward(x, t, p, use_time):
    xn = _ref_ln(x, p["g"])
    if use_time:
        xn = _ref_time_mod(xn, t, p)
    h = jax.nn.gelu(xn @ p["w1"] + p["b1"], approximate=True)
    return x + h @ p["w2"] + p["b2"]


def _ref_peg(x, w, b):
    bx, n, d = x.shape
    xg = x.reshape(bx, GRID_H, GRID_W, d)
    xp = jnp.pad(xg, ((0, 0), (1, 1), (1, 1), (0, 0)))
    acc = jnp.zeros_like(xg) + b
    for dy in (-1, 0, 1):
        for dx in (-1, 0, 1):
            tap = (dy + 1) * 3 + (dx + 1)
            acc = acc + xp[:, 1 + dy:1 + dy + GRID_H, 1 + dx:1 + dx + GRID_W, :] * w[tap]
    return x + acc.reshape(bx, n, d)


def ref_rin_block(params, patches, latents, t):
    patches = _ref_peg(patches, params["peg_w"], params["peg_b"])
    latents = _ref_attention(latents, patches, t, params["lat_cross_attn"], False, True)
    latents = _ref_feed_forward(latents, t, params["lat_cross_ff"], True)
    for pa, pf in params["lat_self"]:
        latents = _ref_attention(latents, latents, t, pa, True, False)
        latents = _ref_feed_forward(latents, t, pf, True)
    for pa, pf in params["pat_self"]:
        patches = _ref_attention(patches, patches, t, pa, True, False)
        patches = _ref_feed_forward(patches, None, pf, False)
    patches = _ref_attention(patches, latents, t, params["pat_cross_attn"], False, True)
    patches = _ref_feed_forward(patches, t, params["pat_cross_ff"], True)
    patches = _ref_ln(patches, params["patch_final_g"])
    latents = _ref_ln(latents, params["latent_final_g"])
    return patches, latents


# ----------------------------------- main ------------------------------------
if __name__ == "__main__":
    key = jax.random.PRNGKey(0)
    kp, kl, kt, kw = jax.random.split(key, 4)
    patches = jax.random.normal(kp, (B, N_PATCH, PATCH_W), jnp.float32)
    latents = jax.random.normal(kl, (B, N_LATENT, LATENT_W), jnp.float32)
    t = jax.random.normal(kt, (B, TIME_DIM), jnp.float32)
    params = init_params(kw)

    forward = build_forward(params)
    out_p, out_l = jax.block_until_ready(forward(patches, latents, t))

    # Tolerance relaxed vs. the pure-f32 reference: the kernel runs all matmuls
    # with bf16 operands (MXU-native, per perf review) + approx softmax recip.
    ref_p, ref_l = ref_rin_block(params, patches, latents, t)
    np.testing.assert_allclose(np.asarray(out_p), np.asarray(ref_p),
                               rtol=3e-2, atol=3e-2)
    np.testing.assert_allclose(np.asarray(out_l), np.asarray(ref_l),
                               rtol=3e-2, atol=3e-2)
    print("KERNEL_OK")
</pallas_src>

<mosaic_0001>
module attributes {stable_mosaic.version = 11 : i64} {
  func.func @kernel(%arg0: memref<2x64x32xf32, #tpu.memory_space<vmem>>, %arg1: memref<2x8x32xf32, #tpu.memory_space<vmem>>, %arg2: memref<2x16xf32, #tpu.memory_space<vmem>>, %arg3: memref<4x1x32xf32, #tpu.memory_space<vmem>>, %arg4: memref<4x1x32xf32, #tpu.memory_space<vmem>>, %arg5: memref<4x32x32xbf16, #tpu.memory_space<vmem>>, %arg6: memref<4x32x64xbf16, #tpu.memory_space<vmem>>, %arg7: memref<4x32x32xbf16, #tpu.memory_space<vmem>>, %arg8: memref<4x1x32xf32, #tpu.memory_space<vmem>>, %arg9: memref<4x32x128xbf16, #tpu.memory_space<vmem>>, %arg10: memref<4x1x128xf32, #tpu.memory_space<vmem>>, %arg11: memref<4x128x32xbf16, #tpu.memory_space<vmem>>, %arg12: memref<4x1x32xf32, #tpu.memory_space<vmem>>, %arg13: memref<16x448xbf16, #tpu.memory_space<vmem>>, %arg14: memref<1x448xf32, #tpu.memory_space<vmem>>, %arg15: memref<9x128x32xf32, #tpu.memory_space<vmem>>, %arg16: memref<1x32xf32, #tpu.memory_space<vmem>>, %arg17: memref<2x1x32xf32, #tpu.memory_space<vmem>>, %arg18: memref<2x64x32xf32, #tpu.memory_space<vmem>>, %arg19: memref<2x8x32xf32, #tpu.memory_space<vmem>>) attributes {dimension_semantics = [], scalar_prefetch = 0 : i64, scratch_operands = 0 : i64, tpu.core_type = #tpu.core_type<tc>} {
    %c0 = arith.constant 0 : index
    %c0_0 = arith.constant 0 : index
    %c0_1 = arith.constant 0 : index
    %0 = vector.load %arg0[%c0, %c0_0, %c0_1] : memref<2x64x32xf32, #tpu.memory_space<vmem>>, vector<2x64x32xf32>
    %1 = vector.shape_cast %0 : vector<2x64x32xf32> to vector<128x32xf32>
    %c0_2 = arith.constant 0 : index
    %c0_3 = arith.constant 0 : index
    %c0_4 = arith.constant 0 : index
    %2 = vector.load %arg1[%c0_2, %c0_3, %c0_4] : memref<2x8x32xf32, #tpu.memory_space<vmem>>, vector<2x8x32xf32>
    %3 = vector.shape_cast %2 : vector<2x8x32xf32> to vector<16x32xf32>
    %c0_5 = arith.constant 0 : index
    %c0_6 = arith.constant 0 : index
    %4 = vector.load %arg2[%c0_5, %c0_6] : memref<2x16xf32, #tpu.memory_space<vmem>>, vector<2x16xf32>
    %cst = arith.constant 0.000000e+00 : f32
    %5 = vector.broadcast %cst : f32 to vector<2x16xf32>
    %6 = arith.subf %5, %4 : vector<2x16xf32>
    %7 = math.exp %6 : vector<2x16xf32>
    %cst_7 = arith.constant 1.000000e+00 : f32
    %8 = vector.broadcast %cst_7 : f32 to vector<2x16xf32>
    %9 = arith.addf %8, %7 : vector<2x16xf32>
    %cst_8 = arith.constant 1.000000e+00 : f32
    %10 = vector.broadcast %cst_8 : f32 to vector<2x16xf32>
    %11 = arith.divf %10, %9 : vector<2x16xf32>
    %12 = arith.mulf %4, %11 : vector<2x16xf32>
    %c0_9 = arith.constant 0 : index
    %c0_10 = arith.constant 0 : index
    %13 = vector.load %arg13[%c0_9, %c0_10] : memref<16x448xbf16, #tpu.memory_space<vmem>>, vector<16x448xbf16>
    %14 = arith.truncf %12 : vector<2x16xf32> to vector<2x16xbf16>
    %cst_11 = arith.constant dense<0.000000e+00> : vector<2x448xf32>
    %15 = tpu.matmul %14, %13, %cst_11 {dimension_numbers = #tpu.dot_dimension_numbers<[1], [0], [0], [1], [0, 0, 1, 1], [], []>} : vector<2x16xbf16>, vector<16x448xbf16>, vector<2x448xf32> -> vector<2x448xf32>
    %c0_12 = arith.constant 0 : index
    %c0_13 = arith.constant 0 : index
    %16 = vector.load %arg14[%c0_12, %c0_13] : memref<1x448xf32, #tpu.memory_space<vmem>>, vector<1x448xf32>
    %17 = vector.broadcast %16 : vector<1x448xf32> to vector<2x448xf32>
    %18 = arith.addf %15, %17 : vector<2x448xf32>
    %cst_14 = arith.constant 0.000000e+00 : f32
    %19 = vector.broadcast %cst_14 : f32 to vector<128x32xf32>
    %c0_15 = arith.constant 0 : index
    %c0_16 = arith.constant 0 : index
    %20 = vector.load %arg16[%c0_15, %c0_16] : memref<1x32xf32, #tpu.memory_space<vmem>>, vector<1x32xf32>
    %21 = vector.broadcast %20 : vector<1x32xf32> to vector<128x32xf32>
    %22 = arith.addf %19, %21 : vector<128x32xf32>
    %c9_i32 = arith.constant 9 : i32
    %23 = tpu.dynamic_rotate %1 by %c9_i32 dim 0 : vector<128x32xf32>, i32 -> vector<128x32xf32>
    %c0_17 = arith.constant 0 : index
    %c0_18 = arith.constant 0 : index
    %c0_19 = arith.constant 0 : index
    %24 = vector.load %arg15[%c0_17, %c0_18, %c0_19] : memref<9x128x32xf32, #tpu.memory_space<vmem>>, vector<1x128x32xf32>
    %25 = vector.shape_cast %24 : vector<1x128x32xf32> to vector<128x32xf32>
    %26 = arith.mulf %23, %25 : vector<128x32xf32>
    %27 = arith.addf %22, %26 : vector<128x32xf32>
    %c8_i32 = arith.constant 8 : i32
    %28 = tpu.dynamic_rotate %1 by %c8_i32 dim 0 : vector<128x32xf32>, i32 -> vector<128x32xf32>
    %c1 = arith.constant 1 : index
    %c0_20 = arith.constant 0 : index
    %c0_21 = arith.constant 0 : index
    %29 = vector.load %arg15[%c1, %c0_20, %c0_21] : memref<9x128x32xf32, #tpu.memory_space<vmem>>, vector<1x128x32xf32>
    %30 = vector.shape_cast %29 : vector<1x128x32xf32> to vector<128x32xf32>
    %31 = arith.mulf %28, %30 : vector<128x32xf32>
    %32 = arith.addf %27, %31 : vector<128x32xf32>
    %c7_i32 = arith.constant 7 : i32
    %33 = tpu.dynamic_rotate %1 by %c7_i32 dim 0 : vector<128x32xf32>, i32 -> vector<128x32xf32>
    %c2 = arith.constant 2 : index
    %c0_22 = arith.constant 0 : index
    %c0_23 = arith.constant 0 : index
    %34 = vector.load %arg15[%c2, %c0_22, %c0_23] : memref<9x128x32xf32, #tpu.memory_space<vmem>>, vector<1x128x32xf32>
    %35 = vector.shape_cast %34 : vector<1x128x32xf32> to vector<128x32xf32>
    %36 = arith.mulf %33, %35 : vector<128x32xf32>
    %37 = arith.addf %32, %36 : vector<128x32xf32>
    %c1_i32 = arith.constant 1 : i32
    %38 = tpu.dynamic_rotate %1 by %c1_i32 dim 0 : vector<128x32xf32>, i32 -> vector<128x32xf32>
    %c3 = arith.constant 3 : index
    %c0_24 = arith.constant 0 : index
    %c0_25 = arith.constant 0 : index
    %39 = vector.load %arg15[%c3, %c0_24, %c0_25] : memref<9x128x32xf32, #tpu.memory_space<vmem>>, vector<1x128x32xf32>
    %40 = vector.shape_cast %39 : vector<1x128x32xf32> to vector<128x32xf32>
    %41 = arith.mulf %38, %40 : vector<128x32xf32>
    %42 = arith.addf %37, %41 : vector<128x32xf32>
    %c4 = arith.constant 4 : index
    %c0_26 = arith.constant 0 : index
    %c0_27 = arith.constant 0 : index
    %43 = vector.load %arg15[%c4, %c0_26, %c0_27] : memref<9x128x32xf32, #tpu.memory_space<vmem>>, vector<1x128x32xf32>
    %44 = vector.shape_cast %43 : vector<1x128x32xf32> to vector<128x32xf32>
    %45 = arith.mulf %1, %44 : vector<128x32xf32>
    %46 = arith.addf %42, %45 : vector<128x32xf32>
    %c127_i32 = arith.constant 127 : i32
    %47 = tpu.dynamic_rotate %1 by %c127_i32 dim 0 : vector<128x32xf32>, i32 -> vector<128x32xf32>
    %c5 = arith.constant 5 : index
    %c0_28 = arith.constant 0 : index
    %c0_29 = arith.constant 0 : index
    %48 = vector.load %arg15[%c5, %c0_28, %c0_29] : memref<9x128x32xf32, #tpu.memory_space<vmem>>, vector<1x128x32xf32>
    %49 = vector.shape_cast %48 : vector<1x128x32xf32> to vector<128x32xf32>
    %50 = arith.mulf %47, %49 : vector<128x32xf32>
    %51 = arith.addf %46, %50 : vector<128x32xf32>
    %c121_i32 = arith.constant 121 : i32
    %52 = tpu.dynamic_rotate %1 by %c121_i32 dim 0 : vector<128x32xf32>, i32 -> vector<128x32xf32>
    %c6 = arith.constant 6 : index
    %c0_30 = arith.constant 0 : index
    %c0_31 = arith.constant 0 : index
    %53 = vector.load %arg15[%c6, %c0_30, %c0_31] : memref<9x128x32xf32, #tpu.memory_space<vmem>>, vector<1x128x32xf32>
    %54 = vector.shape_cast %53 : vector<1x128x32xf32> to vector<128x32xf32>
    %55 = arith.mulf %52, %54 : vector<128x32xf32>
    %56 = arith.addf %51, %55 : vector<128x32xf32>
    %c120_i32 = arith.constant 120 : i32
    %57 = tpu.dynamic_rotate %1 by %c120_i32 dim 0 : vector<128x32xf32>, i32 -> vector<128x32xf32>
    %c7 = arith.constant 7 : index
    %c0_32 = arith.constant 0 : index
    %c0_33 = arith.constant 0 : index
    %58 = vector.load %arg15[%c7, %c0_32, %c0_33] : memref<9x128x32xf32, #tpu.memory_space<vmem>>, vector<1x128x32xf32>
    %59 = vector.shape_cast %58 : vector<1x128x32xf32> to vector<128x32xf32>
    %60 = arith.mulf %57, %59 : vector<128x32xf32>
    %61 = arith.addf %56, %60 : vector<128x32xf32>
    %c119_i32 = arith.constant 119 : i32
    %62 = tpu.dynamic_rotate %1 by %c119_i32 dim 0 : vector<128x32xf32>, i32 -> vector<128x32xf32>
    %c8 = arith.constant 8 : index
    %c0_34 = arith.constant 0 : index
    %c0_35 = arith.constant 0 : index
    %63 = vector.load %arg15[%c8, %c0_34, %c0_35] : memref<9x128x32xf32, #tpu.memory_space<vmem>>, vector<1x128x32xf32>
    %64 = vector.shape_cast %63 : vector<1x128x32xf32> to vector<128x32xf32>
    %65 = arith.mulf %62, %64 : vector<128x32xf32>
    %66 = arith.addf %61, %65 : vector<128x32xf32>
    %67 = arith.addf %1, %66 : vector<128x32xf32>
    %c0_36 = arith.constant 0 : index
    %c0_37 = arith.constant 0 : index
    %c0_38 = arith.constant 0 : index
    %68 = vector.load %arg3[%c0_36, %c0_37, %c0_38] : memref<4x1x32xf32, #tpu.memory_space<vmem>>, vector<1x1x32xf32>
    %69 = vector.shape_cast %68 : vector<1x1x32xf32> to vector<1x32xf32>
    %cst_39 = arith.constant dense<0.000000e+00> : vector<16xf32>
    %70 = vector.multi_reduction <add>, %3, %cst_39 [1] : vector<16x32xf32> to vector<16xf32>
    %71 = vector.shape_cast %70 : vector<16xf32> to vector<16x1xf32>
    %cst_40 = arith.constant 3.200000e+01 : f32
    %72 = vector.broadcast %cst_40 : f32 to vector<16x1xf32>
    %73 = arith.divf %71, %72 : vector<16x1xf32>
    %74 = vector.broadcast %73 : vector<16x1xf32> to vector<16x32xf32>
    %75 = arith.subf %3, %74 : vector<16x32xf32>
    %76 = arith.mulf %75, %75 : vector<16x32xf32>
    %cst_41 = arith.constant dense<0.000000e+00> : vector<16xf32>
    %77 = vector.multi_reduction <add>, %76, %cst_41 [1] : vector<16x32xf32> to vector<16xf32>
    %78 = vector.shape_cast %77 : vector<16xf32> to vector<16x1xf32>
    %cst_42 = arith.constant 3.200000e+01 : f32
    %79 = vector.broadcast %cst_42 : f32 to vector<16x1xf32>
    %80 = arith.divf %78, %79 : vector<16x1xf32>
    %81 = vector.broadcast %73 : vector<16x1xf32> to vector<16x32xf32>
    %82 = arith.subf %3, %81 : vector<16x32xf32>
    %cst_43 = arith.constant 9.99999974E-6 : f32
    %83 = vector.broadcast %cst_43 : f32 to vector<16x1xf32>
    %84 = arith.addf %80, %83 : vector<16x1xf32>
    %85 = math.rsqrt %84 : vector<16x1xf32>
    %86 = vector.broadcast %85 : vector<16x1xf32> to vector<16x32xf32>
    %87 = arith.mulf %82, %86 : vector<16x32xf32>
    %88 = vector.broadcast %69 : vector<1x32xf32> to vector<16x32xf32>
    %89 = arith.mulf %87, %88 : vector<16x32xf32>
    %c0_44 = arith.constant 0 : index
    %c0_45 = arith.constant 0 : index
    %c0_46 = arith.constant 0 : index
    %90 = vector.load %arg4[%c0_44, %c0_45, %c0_46] : memref<4x1x32xf32, #tpu.memory_space<vmem>>, vector<1x1x32xf32>
    %91 = vector.shape_cast %90 : vector<1x1x32xf32> to vector<1x32xf32>
    %cst_47 = arith.constant dense<0.000000e+00> : vector<128xf32>
    %92 = vector.multi_reduction <add>, %67, %cst_47 [1] : vector<128x32xf32> to vector<128xf32>
    %93 = vector.shape_cast %92 : vector<128xf32> to vector<128x1xf32>
    %cst_48 = arith.constant 3.200000e+01 : f32
    %94 = vector.broadcast %cst_48 : f32 to vector<128x1xf32>
    %95 = arith.divf %93, %94 : vector<128x1xf32>
    %96 = vector.broadcast %95 : vector<128x1xf32> to vector<128x32xf32>
    %97 = arith.subf %67, %96 : vector<128x32xf32>
    %98 = arith.mulf %97, %97 : vector<128x32xf32>
    %cst_49 = arith.constant dense<0.000000e+00> : vector<128xf32>
    %99 = vector.multi_reduction <add>, %98, %cst_49 [1] : vector<128x32xf32> to vector<128xf32>
    %100 = vector.shape_cast %99 : vector<128xf32> to vector<128x1xf32>
    %cst_50 = arith.constant 3.200000e+01 : f32
    %101 = vector.broadcast %cst_50 : f32 to vector<128x1xf32>
    %102 = arith.divf %100, %101 : vector<128x1xf32>
    %103 = vector.broadcast %95 : vector<128x1xf32> to vector<128x32xf32>
    %104 = arith.subf %67, %103 : vector<128x32xf32>
    %cst_51 = arith.constant 9.99999974E-6 : f32
    %105 = vector.broadcast %cst_51 : f32 to vector<128x1xf32>
    %106 = arith.addf %102, %105 : vector<128x1xf32>
    %107 = math.rsqrt %106 : vector<128x1xf32>
    %108 = vector.broadcast %107 : vector<128x1xf32> to vector<128x32xf32>
    %109 = arith.mulf %104, %108 : vector<128x32xf32>
    %110 = vector.broadcast %91 : vector<1x32xf32> to vector<128x32xf32>
    %111 = arith.mulf %109, %110 : vector<128x32xf32>
    %112 = vector.extract_strided_slice %18 {offsets = [0, 0], sizes = [2, 32], strides = [1, 1]} : vector<2x448xf32> to vector<2x32xf32>
    %113 = vector.extract_strided_slice %18 {offsets = [0, 32], sizes = [2, 32], strides = [1, 1]} : vector<2x448xf32> to vector<2x32xf32>
    %114 = vector.shape_cast %89 : vector<16x32xf32> to vector<2x8x32xf32>
    %115 = vector.shape_cast %112 : vector<2x32xf32> to vector<2x1x32xf32>
    %cst_52 = arith.constant 1.000000e+00 : f32
    %116 = vector.broadcast %cst_52 : f32 to vector<2x1x32xf32>
    %117 = arith.addf %115, %116 : vector<2x1x32xf32>
    %118 = vector.broadcast %117 : vector<2x1x32xf32> to vector<2x8x32xf32>
    %119 = arith.mulf %114, %118 : vector<2x8x32xf32>
    %120 = vector.shape_cast %113 : vector<2x32xf32> to vector<2x1x32xf32>
    %121 = vector.broadcast %120 : vector<2x1x32xf32> to vector<2x8x32xf32>
    %122 = arith.addf %119, %121 : vector<2x8x32xf32>
    %123 = vector.shape_cast %122 : vector<2x8x32xf32> to vector<16x32xf32>
    %c0_53 = arith.constant 0 : index
    %c0_54 = arith.constant 0 : index
    %c0_55 = arith.constant 0 : index
    %124 = vector.load %arg5[%c0_53, %c0_54, %c0_55] : memref<4x32x32xbf16, #tpu.memory_space<vmem>>, vector<1x32x32xbf16>
    %125 = vector.shape_cast %124 : vector<1x32x32xbf16> to vector<32x32xbf16>
    %126 = arith.truncf %123 : vector<16x32xf32> to vector<16x32xbf16>
    %cst_56 = arith.constant dense<0.000000e+00> : vector<16x32xf32>
    %127 = tpu.matmul %126, %125, %cst_56 {dimension_numbers = #tpu.dot_dimension_numbers<[1], [0], [0], [1], [0, 0, 1, 1], [], []>} : vector<16x32xbf16>, vector<32x32xbf16>, vector<16x32xf32> -> vector<16x32xf32>
    %cst_57 = arith.constant 2.500000e-01 : f32
    %128 = vector.broadcast %cst_57 : f32 to vector<16x32xf32>
    %129 = arith.mulf %127, %128 : vector<16x32xf32>
    %c0_58 = arith.constant 0 : index
    %c0_59 = arith.constant 0 : index
    %c0_60 = arith.constant 0 : index
    %130 = vector.load %arg6[%c0_58, %c0_59, %c0_60] : memref<4x32x64xbf16, #tpu.memory_space<vmem>>, vector<1x32x64xbf16>
    %131 = vector.shape_cast %130 : vector<1x32x64xbf16> to vector<32x64xbf16>
    %132 = arith.truncf %111 : vector<128x32xf32> to vector<128x32xbf16>
    %cst_61 = arith.constant dense<0.000000e+00> : vector<128x64xf32>
    %133 = tpu.matmul %132, %131, %cst_61 {dimension_numbers = #tpu.dot_dimension_numbers<[1], [0], [0], [1], [0, 0, 1, 1], [], []>} : vector<128x32xbf16>, vector<32x64xbf16>, vector<128x64xf32> -> vector<128x64xf32>
    %134 = vector.shape_cast %129 : vector<16x32xf32> to vector<2x8x32xf32>
    %135 = vector.shape_cast %133 : vector<128x64xf32> to vector<2x64x64xf32>
    %136 = vector.extract_strided_slice %134 {offsets = [0, 0, 0], sizes = [2, 8, 16], strides = [1, 1, 1]} : vector<2x8x32xf32> to vector<2x8x16xf32>
    %137 = vector.extract_strided_slice %135 {offsets = [0, 0, 0], sizes = [2, 64, 16], strides = [1, 1, 1]} : vector<2x64x64xf32> to vector<2x64x16xf32>
    %138 = vector.extract_strided_slice %135 {offsets = [0, 0, 32], sizes = [2, 64, 16], strides = [1, 1, 1]} : vector<2x64x64xf32> to vector<2x64x16xf32>
    %139 = arith.truncf %136 : vector<2x8x16xf32> to vector<2x8x16xbf16>
    %140 = arith.truncf %137 : vector<2x64x16xf32> to vector<2x64x16xbf16>
    %cst_62 = arith.constant dense<0.000000e+00> : vector<2x8x64xf32>
    %141 = tpu.matmul %139, %140, %cst_62 {dimension_numbers = #tpu.dot_dimension_numbers<[2], [2], [1], [1], [0, 0, 0, 1, 1, 1], [0], [0]>} : vector<2x8x16xbf16>, vector<2x64x16xbf16>, vector<2x8x64xf32> -> vector<2x8x64xf32>
    %cst_63 = arith.constant dense<0xFF800000> : vector<2x8xf32>
    %142 = vector.multi_reduction <maximumf>, %141, %cst_63 [2] : vector<2x8x64xf32> to vector<2x8xf32>
    %143 = vector.shape_cast %142 : vector<2x8xf32> to vector<2x8x1xf32>
    %144 = vector.broadcast %143 : vector<2x8x1xf32> to vector<2x8x64xf32>
    %145 = arith.subf %141, %144 : vector<2x8x64xf32>
    %146 = math.exp %145 : vector<2x8x64xf32>
    %cst_64 = arith.constant dense<0.000000e+00> : vector<2x8xf32>
    %147 = vector.multi_reduction <add>, %146, %cst_64 [2] : vector<2x8x64xf32> to vector<2x8xf32>
    %148 = vector.shape_cast %147 : vector<2x8xf32> to vector<2x8x1xf32>
    %149 = tpu.reciprocal %148 {approx = true} : vector<2x8x1xf32> -> vector<2x8x1xf32>
    %150 = vector.broadcast %149 : vector<2x8x1xf32> to vector<2x8x64xf32>
    %151 = arith.mulf %146, %150 : vector<2x8x64xf32>
    %152 = arith.truncf %151 : vector<2x8x64xf32> to vector<2x8x64xbf16>
    %153 = arith.truncf %138 : vector<2x64x16xf32> to vector<2x64x16xbf16>
    %cst_65 = arith.constant dense<0.000000e+00> : vector<2x8x16xf32>
    %154 = tpu.matmul %152, %153, %cst_65 {dimension_numbers = #tpu.dot_dimension_numbers<[2], [1], [1], [2], [0, 0, 0, 1, 1, 2], [0], [0]>} : vector<2x8x64xbf16>, vector<2x64x16xbf16>, vector<2x8x16xf32> -> vector<2x8x16xf32>
    %155 = vector.extract_strided_slice %134 {offsets = [0, 0, 16], sizes = [2, 8, 16], strides = [1, 1, 1]} : vector<2x8x32xf32> to vector<2x8x16xf32>
    %156 = vector.extract_strided_slice %135 {offsets = [0, 0, 16], sizes = [2, 64, 16], strides = [1, 1, 1]} : vector<2x64x64xf32> to vector<2x64x16xf32>
    %157 = vector.extract_strided_slice %135 {offsets = [0, 0, 48], sizes = [2, 64, 16], strides = [1, 1, 1]} : vector<2x64x64xf32> to vector<2x64x16xf32>
    %158 = arith.truncf %155 : vector<2x8x16xf32> to vector<2x8x16xbf16>
    %159 = arith.truncf %156 : vector<2x64x16xf32> to vector<2x64x16xbf16>
    %cst_66 = arith.constant dense<0.000000e+00> : vector<2x8x64xf32>
    %160 = tpu.matmul %158, %159, %cst_66 {dimension_numbers = #tpu.dot_dimension_numbers<[2], [2], [1], [1], [0, 0, 0, 1, 1, 1], [0], [0]>} : vector<2x8x16xbf16>, vector<2x64x16xbf16>, vector<2x8x64xf32> -> vector<2x8x64xf32>
    %cst_67 = arith.constant dense<0xFF800000> : vector<2x8xf32>
    %161 = vector.multi_reduction <maximumf>, %160, %cst_67 [2] : vector<2x8x64xf32> to vector<2x8xf32>
    %162 = vector.shape_cast %161 : vector<2x8xf32> to vector<2x8x1xf32>
    %163 = vector.broadcast %162 : vector<2x8x1xf32> to vector<2x8x64xf32>
    %164 = arith.subf %160, %163 : vector<2x8x64xf32>
    %165 = math.exp %164 : vector<2x8x64xf32>
    %cst_68 = arith.constant dense<0.000000e+00> : vector<2x8xf32>
    %166 = vector.multi_reduction <add>, %165, %cst_68 [2] : vector<2x8x64xf32> to vector<2x8xf32>
    %167 = vector.shape_cast %166 : vector<2x8xf32> to vector<2x8x1xf32>
    %168 = tpu.reciprocal %167 {approx = true} : vector<2x8x1xf32> -> vector<2x8x1xf32>
    %169 = vector.broadcast %168 : vector<2x8x1xf32> to vector<2x8x64xf32>
    %170 = arith.mulf %165, %169 : vector<2x8x64xf32>
    %171 = arith.truncf %170 : vector<2x8x64xf32> to vector<2x8x64xbf16>
    %172 = arith.truncf %157 : vector<2x64x16xf32> to vector<2x64x16xbf16>
    %cst_69 = arith.constant dense<0.000000e+00> : vector<2x8x16xf32>
    %173 = tpu.matmul %171, %172, %cst_69 {dimension_numbers = #tpu.dot_dimension_numbers<[2], [1], [1], [2], [0, 0, 0, 1, 1, 2], [0], [0]>} : vector<2x8x64xbf16>, vector<2x64x16xbf16>, vector<2x8x16xf32> -> vector<2x8x16xf32>
    %174 = tpu.concatenate %154, %173 in 2 : vector<2x8x16xf32>, vector<2x8x16xf32> -> vector<2x8x32xf32>
    %175 = vector.shape_cast %174 : vector<2x8x32xf32> to vector<16x32xf32>
    %c0_70 = arith.constant 0 : index
    %c0_71 = arith.constant 0 : index
    %c0_72 = arith.constant 0 : index
    %176 = vector.load %arg7[%c0_70, %c0_71, %c0_72] : memref<4x32x32xbf16, #tpu.memory_space<vmem>>, vector<1x32x32xbf16>
    %177 = vector.shape_cast %176 : vector<1x32x32xbf16> to vector<32x32xbf16>
    %178 = arith.truncf %175 : vector<16x32xf32> to vector<16x32xbf16>
    %cst_73 = arith.constant dense<0.000000e+00> : vector<16x32xf32>
    %179 = tpu.matmul %178, %177, %cst_73 {dimension_numbers = #tpu.dot_dimension_numbers<[1], [0], [0], [1], [0, 0, 1, 1], [], []>} : vector<16x32xbf16>, vector<32x32xbf16>, vector<16x32xf32> -> vector<16x32xf32>
    %180 = arith.addf %3, %179 : vector<16x32xf32>
    %c0_74 = arith.constant 0 : index
    %c0_75 = arith.constant 0 : index
    %c0_76 = arith.constant 0 : index
    %181 = vector.load %arg8[%c0_74, %c0_75, %c0_76] : memref<4x1x32xf32, #tpu.memory_space<vmem>>, vector<1x1x32xf32>
    %182 = vector.shape_cast %181 : vector<1x1x32xf32> to vector<1x32xf32>
    %cst_77 = arith.constant dense<0.000000e+00> : vector<16xf32>
    %183 = vector.multi_reduction <add>, %180, %cst_77 [1] : vector<16x32xf32> to vector<16xf32>
    %184 = vector.shape_cast %183 : vector<16xf32> to vector<16x1xf32>
    %cst_78 = arith.constant 3.200000e+01 : f32
    %185 = vector.broadcast %cst_78 : f32 to vector<16x1xf32>
    %186 = arith.divf %184, %185 : vector<16x1xf32>
    %187 = vector.broadcast %186 : vector<16x1xf32> to vector<16x32xf32>
    %188 = arith.subf %180, %187 : vector<16x32xf32>
    %189 = arith.mulf %188, %188 : vector<16x32xf32>
    %cst_79 = arith.constant dense<0.000000e+00> : vector<16xf32>
    %190 = vector.multi_reduction <add>, %189, %cst_79 [1] : vector<16x32xf32> to vector<16xf32>
    %191 = vector.shape_cast %190 : vector<16xf32> to vector<16x1xf32>
    %cst_80 = arith.constant 3.200000e+01 : f32
    %192 = vector.broadcast %cst_80 : f32 to vector<16x1xf32>
    %193 = arith.divf %191, %192 : vector<16x1xf32>
    %194 = vector.broadcast %186 : vector<16x1xf32> to vector<16x32xf32>
    %195 = arith.subf %180, %194 : vector<16x32xf32>
    %cst_81 = arith.constant 9.99999974E-6 : f32
    %196 = vector.broadcast %cst_81 : f32 to vector<16x1xf32>
    %197 = arith.addf %193, %196 : vector<16x1xf32>
    %198 = math.rsqrt %197 : vector<16x1xf32>
    %199 = vector.broadcast %198 : vector<16x1xf32> to vector<16x32xf32>
    %200 = arith.mulf %195, %199 : vector<16x32xf32>
    %201 = vector.broadcast %182 : vector<1x32xf32> to vector<16x32xf32>
    %202 = arith.mulf %200, %201 : vector<16x32xf32>
    %203 = vector.extract_strided_slice %18 {offsets = [0, 256], sizes = [2, 32], strides = [1, 1]} : vector<2x448xf32> to vector<2x32xf32>
    %204 = vector.extract_strided_slice %18 {offsets = [0, 288], sizes = [2, 32], strides = [1, 1]} : vector<2x448xf32> to vector<2x32xf32>
    %205 = vector.shape_cast %202 : vector<16x32xf32> to vector<2x8x32xf32>
    %206 = vector.shape_cast %203 : vector<2x32xf32> to vector<2x1x32xf32>
    %cst_82 = arith.constant 1.000000e+00 : f32
    %207 = vector.broadcast %cst_82 : f32 to vector<2x1x32xf32>
    %208 = arith.addf %206, %207 : vector<2x1x32xf32>
    %209 = vector.broadcast %208 : vector<2x1x32xf32> to vector<2x8x32xf32>
    %210 = arith.mulf %205, %209 : vector<2x8x32xf32>
    %211 = vector.shape_cast %204 : vector<2x32xf32> to vector<2x1x32xf32>
    %212 = vector.broadcast %211 : vector<2x1x32xf32> to vector<2x8x32xf32>
    %213 = arith.addf %210, %212 : vector<2x8x32xf32>
    %214 = vector.shape_cast %213 : vector<2x8x32xf32> to vector<16x32xf32>
    %c0_83 = arith.constant 0 : index
    %c0_84 = arith.constant 0 : index
    %c0_85 = arith.constant 0 : index
    %215 = vector.load %arg9[%c0_83, %c0_84, %c0_85] : memref<4x32x128xbf16, #tpu.memory_space<vmem>>, vector<1x32x128xbf16>
    %216 = vector.shape_cast %215 : vector<1x32x128xbf16> to vector<32x128xbf16>
    %217 = arith.truncf %214 : vector<16x32xf32> to vector<16x32xbf16>
    %cst_86 = arith.constant dense<0.000000e+00> : vector<16x128xf32>
    %218 = tpu.matmul %217, %216, %cst_86 {dimension_numbers = #tpu.dot_dimension_numbers<[1], [0], [0], [1], [0, 0, 1, 1], [], []>} : vector<16x32xbf16>, vector<32x128xbf16>, vector<16x128xf32> -> vector<16x128xf32>
    %c0_87 = arith.constant 0 : index
    %c0_88 = arith.constant 0 : index
    %c0_89 = arith.constant 0 : index
    %219 = vector.load %arg10[%c0_87, %c0_88, %c0_89] : memref<4x1x128xf32, #tpu.memory_space<vmem>>, vector<1x1x128xf32>
    %220 = vector.shape_cast %219 : vector<1x1x128xf32> to vector<1x128xf32>
    %221 = vector.broadcast %220 : vector<1x128xf32> to vector<16x128xf32>
    %222 = arith.addf %218, %221 : vector<16x128xf32>
    %223 = arith.mulf %222, %222 : vector<16x128xf32>
    %224 = arith.mulf %222, %223 : vector<16x128xf32>
    %cst_90 = arith.constant 4.471500e-02 : f32
    %225 = vector.broadcast %cst_90 : f32 to vector<16x128xf32>
    %226 = arith.mulf %225, %224 : vector<16x128xf32>
    %227 = arith.addf %222, %226 : vector<16x128xf32>
    %cst_91 = arith.constant 0.797884583 : f32
    %228 = vector.broadcast %cst_91 : f32 to vector<16x128xf32>
    %229 = arith.mulf %228, %227 : vector<16x128xf32>
    %230 = math.tanh %229 : vector<16x128xf32>
    %cst_92 = arith.constant 1.000000e+00 : f32
    %231 = vector.broadcast %cst_92 : f32 to vector<16x128xf32>
    %232 = arith.addf %231, %230 : vector<16x128xf32>
    %cst_93 = arith.constant 5.000000e-01 : f32
    %233 = vector.broadcast %cst_93 : f32 to vector<16x128xf32>
    %234 = arith.mulf %233, %232 : vector<16x128xf32>
    %235 = arith.mulf %222, %234 : vector<16x128xf32>
    %c0_94 = arith.constant 0 : index
    %c0_95 = arith.constant 0 : index
    %c0_96 = arith.constant 0 : index
    %236 = vector.load %arg11[%c0_94, %c0_95, %c0_96] : memref<4x128x32xbf16, #tpu.memory_space<vmem>>, vector<1x128x32xbf16>
    %237 = vector.shape_cast %236 : vector<1x128x32xbf16> to vector<128x32xbf16>
    %238 = arith.truncf %235 : vector<16x128xf32> to vector<16x128xbf16>
    %cst_97 = arith.constant dense<0.000000e+00> : vector<16x32xf32>
    %239 = tpu.matmul %238, %237, %cst_97 {dimension_numbers = #tpu.dot_dimension_numbers<[1], [0], [0], [1], [0, 0, 1, 1], [], []>} : vector<16x128xbf16>, vector<128x32xbf16>, vector<16x32xf32> -> vector<16x32xf32>
    %240 = arith.addf %180, %239 : vector<16x32xf32>
    %c0_98 = arith.constant 0 : index
    %c0_99 = arith.constant 0 : index
    %c0_100 = arith.constant 0 : index
    %241 = vector.load %arg12[%c0_98, %c0_99, %c0_100] : memref<4x1x32xf32, #tpu.memory_space<vmem>>, vector<1x1x32xf32>
    %242 = vector.shape_cast %241 : vector<1x1x32xf32> to vector<1x32xf32>
    %243 = vector.broadcast %242 : vector<1x32xf32> to vector<16x32xf32>
    %244 = arith.addf %240, %243 : vector<16x32xf32>
    %c1_101 = arith.constant 1 : index
    %c0_102 = arith.constant 0 : index
    %c0_103 = arith.constant 0 : index
    %245 = vector.load %arg3[%c1_101, %c0_102, %c0_103] : memref<4x1x32xf32, #tpu.memory_space<vmem>>, vector<1x1x32xf32>
    %246 = vector.shape_cast %245 : vector<1x1x32xf32> to vector<1x32xf32>
    %cst_104 = arith.constant dense<0.000000e+00> : vector<16xf32>
    %247 = vector.multi_reduction <add>, %244, %cst_104 [1] : vector<16x32xf32> to vector<16xf32>
    %248 = vector.shape_cast %247 : vector<16xf32> to vector<16x1xf32>
    %cst_105 = arith.constant 3.200000e+01 : f32
    %249 = vector.broadcast %cst_105 : f32 to vector<16x1xf32>
    %250 = arith.divf %248, %249 : vector<16x1xf32>
    %251 = vector.broadcast %250 : vector<16x1xf32> to vector<16x32xf32>
    %252 = arith.subf %244, %251 : vector<16x32xf32>
    %253 = arith.mulf %252, %252 : vector<16x32xf32>
    %cst_106 = arith.constant dense<0.000000e+00> : vector<16xf32>
    %254 = vector.multi_reduction <add>, %253, %cst_106 [1] : vector<16x32xf32> to vector<16xf32>
    %255 = vector.shape_cast %254 : vector<16xf32> to vector<16x1xf32>
    %cst_107 = arith.constant 3.200000e+01 : f32
    %256 = vector.broadcast %cst_107 : f32 to vector<16x1xf32>
    %257 = arith.divf %255, %256 : vector<16x1xf32>
    %258 = vector.broadcast %250 : vector<16x1xf32> to vector<16x32xf32>
    %259 = arith.subf %244, %258 : vector<16x32xf32>
    %cst_108 = arith.constant 9.99999974E-6 : f32
    %260 = vector.broadcast %cst_108 : f32 to vector<16x1xf32>
    %261 = arith.addf %257, %260 : vector<16x1xf32>
    %262 = math.rsqrt %261 : vector<16x1xf32>
    %263 = vector.broadcast %262 : vector<16x1xf32> to vector<16x32xf32>
    %264 = arith.mulf %259, %263 : vector<16x32xf32>
    %265 = vector.broadcast %246 : vector<1x32xf32> to vector<16x32xf32>
    %266 = arith.mulf %264, %265 : vector<16x32xf32>
    %267 = vector.extract_strided_slice %18 {offsets = [0, 64], sizes = [2, 32], strides = [1, 1]} : vector<2x448xf32> to vector<2x32xf32>
    %268 = vector.extract_strided_slice %18 {offsets = [0, 96], sizes = [2, 32], strides = [1, 1]} : vector<2x448xf32> to vector<2x32xf32>
    %269 = vector.shape_cast %266 : vector<16x32xf32> to vector<2x8x32xf32>
    %270 = vector.shape_cast %267 : vector<2x32xf32> to vector<2x1x32xf32>
    %cst_109 = arith.constant 1.000000e+00 : f32
    %271 = vector.broadcast %cst_109 : f32 to vector<2x1x32xf32>
    %272 = arith.addf %270, %271 : vector<2x1x32xf32>
    %273 = vector.broadcast %272 : vector<2x1x32xf32> to vector<2x8x32xf32>
    %274 = arith.mulf %269, %273 : vector<2x8x32xf32>
    %275 = vector.shape_cast %268 : vector<2x32xf32> to vector<2x1x32xf32>
    %276 = vector.broadcast %275 : vector<2x1x32xf32> to vector<2x8x32xf32>
    %277 = arith.addf %274, %276 : vector<2x8x32xf32>
    %278 = vector.shape_cast %277 : vector<2x8x32xf32> to vector<16x32xf32>
    %c1_110 = arith.constant 1 : index
    %c0_111 = arith.constant 0 : index
    %c0_112 = arith.constant 0 : index
    %279 = vector.load %arg5[%c1_110, %c0_111, %c0_112] : memref<4x32x32xbf16, #tpu.memory_space<vmem>>, vector<1x32x32xbf16>
    %280 = vector.shape_cast %279 : vector<1x32x32xbf16> to vector<32x32xbf16>
    %281 = arith.truncf %278 : vector<16x32xf32> to vector<16x32xbf16>
    %cst_113 = arith.constant dense<0.000000e+00> : vector<16x32xf32>
    %282 = tpu.matmul %281, %280, %cst_113 {dimension_numbers = #tpu.dot_dimension_numbers<[1], [0], [0], [1], [0, 0, 1, 1], [], []>} : vector<16x32xbf16>, vector<32x32xbf16>, vector<16x32xf32> -> vector<16x32xf32>
    %cst_114 = arith.constant 2.500000e-01 : f32
    %283 = vector.broadcast %cst_114 : f32 to vector<16x32xf32>
    %284 = arith.mulf %282, %283 : vector<16x32xf32>
    %c1_115 = arith.constant 1 : index
    %c0_116 = arith.constant 0 : index
    %c0_117 = arith.constant 0 : index
    %285 = vector.load %arg6[%c1_115, %c0_116, %c0_117] : memref<4x32x64xbf16, #tpu.memory_space<vmem>>, vector<1x32x64xbf16>
    %286 = vector.shape_cast %285 : vector<1x32x64xbf16> to vector<32x64xbf16>
    %287 = arith.truncf %266 : vector<16x32xf32> to vector<16x32xbf16>
    %cst_118 = arith.constant dense<0.000000e+00> : vector<16x64xf32>
    %288 = tpu.matmul %287, %286, %cst_118 {dimension_numbers = #tpu.dot_dimension_numbers<[1], [0], [0], [1], [0, 0, 1, 1], [], []>} : vector<16x32xbf16>, vector<32x64xbf16>, vector<16x64xf32> -> vector<16x64xf32>
    %289 = vector.shape_cast %284 : vector<16x32xf32> to vector<2x8x32xf32>
    %290 = vector.shape_cast %288 : vector<16x64xf32> to vector<2x8x64xf32>
    %291 = vector.extract_strided_slice %289 {offsets = [0, 0, 0], sizes = [2, 8, 16], strides = [1, 1, 1]} : vector<2x8x32xf32> to vector<2x8x16xf32>
    %292 = vector.extract_strided_slice %290 {offsets = [0, 0, 0], sizes = [2, 8, 16], strides = [1, 1, 1]} : vector<2x8x64xf32> to vector<2x8x16xf32>
    %293 = vector.extract_strided_slice %290 {offsets = [0, 0, 32], sizes = [2, 8, 16], strides = [1, 1, 1]} : vector<2x8x64xf32> to vector<2x8x16xf32>
    %294 = arith.truncf %291 : vector<2x8x16xf32> to vector<2x8x16xbf16>
    %295 = arith.truncf %292 : vector<2x8x16xf32> to vector<2x8x16xbf16>
    %cst_119 = arith.constant dense<0.000000e+00> : vector<2x8x8xf32>
    %296 = tpu.matmul %294, %295, %cst_119 {dimension_numbers = #tpu.dot_dimension_numbers<[2], [2], [1], [1], [0, 0, 0, 1, 1, 1], [0], [0]>} : vector<2x8x16xbf16>, vector<2x8x16xbf16>, vector<2x8x8xf32> -> vector<2x8x8xf32>
    %cst_120 = arith.constant dense<0xFF800000> : vector<2x8xf32>
    %297 = vector.multi_reduction <maximumf>, %296, %cst_120 [2] : vector<2x8x8xf32> to vector<2x8xf32>
    %298 = vector.shape_cast %297 : vector<2x8xf32> to vector<2x8x1xf32>
    %299 = vector.broadcast %298 : vector<2x8x1xf32> to vector<2x8x8xf32>
    %300 = arith.subf %296, %299 : vector<2x8x8xf32>
    %301 = math.exp %300 : vector<2x8x8xf32>
    %cst_121 = arith.constant dense<0.000000e+00> : vector<2x8xf32>
    %302 = vector.multi_reduction <add>, %301, %cst_121 [2] : vector<2x8x8xf32> to vector<2x8xf32>
    %303 = vector.shape_cast %302 : vector<2x8xf32> to vector<2x8x1xf32>
    %304 = tpu.reciprocal %303 {approx = true} : vector<2x8x1xf32> -> vector<2x8x1xf32>
    %305 = vector.broadcast %304 : vector<2x8x1xf32> to vector<2x8x8xf32>
    %306 = arith.mulf %301, %305 : vector<2x8x8xf32>
    %307 = arith.truncf %306 : vector<2x8x8xf32> to vector<2x8x8xbf16>
    %308 = arith.truncf %293 : vector<2x8x16xf32> to vector<2x8x16xbf16>
    %cst_122 = arith.constant dense<0.000000e+00> : vector<2x8x16xf32>
    %309 = tpu.matmul %307, %308, %cst_122 {dimension_numbers = #tpu.dot_dimension_numbers<[2], [1], [1], [2], [0, 0, 0, 1, 1, 2], [0], [0]>} : vector<2x8x8xbf16>, vector<2x8x16xbf16>, vector<2x8x16xf32> -> vector<2x8x16xf32>
    %310 = vector.extract_strided_slice %289 {offsets = [0, 0, 16], sizes = [2, 8, 16], strides = [1, 1, 1]} : vector<2x8x32xf32> to vector<2x8x16xf32>
    %311 = vector.extract_strided_slice %290 {offsets = [0, 0, 16], sizes = [2, 8, 16], strides = [1, 1, 1]} : vector<2x8x64xf32> to vector<2x8x16xf32>
    %312 = vector.extract_strided_slice %290 {offsets = [0, 0, 48], sizes = [2, 8, 16], strides = [1, 1, 1]} : vector<2x8x64xf32> to vector<2x8x16xf32>
    %313 = arith.truncf %310 : vector<2x8x16xf32> to vector<2x8x16xbf16>
    %314 = arith.truncf %311 : vector<2x8x16xf32> to vector<2x8x16xbf16>
    %cst_123 = arith.constant dense<0.000000e+00> : vector<2x8x8xf32>
    %315 = tpu.matmul %313, %314, %cst_123 {dimension_numbers = #tpu.dot_dimension_numbers<[2], [2], [1], [1], [0, 0, 0, 1, 1, 1], [0], [0]>} : vector<2x8x16xbf16>, vector<2x8x16xbf16>, vector<2x8x8xf32> -> vector<2x8x8xf32>
    %cst_124 = arith.constant dense<0xFF800000> : vector<2x8xf32>
    %316 = vector.multi_reduction <maximumf>, %315, %cst_124 [2] : vector<2x8x8xf32> to vector<2x8xf32>
    %317 = vector.shape_cast %316 : vector<2x8xf32> to vector<2x8x1xf32>
    %318 = vector.broadcast %317 : vector<2x8x1xf32> to vector<2x8x8xf32>
    %319 = arith.subf %315, %318 : vector<2x8x8xf32>
    %320 = math.exp %319 : vector<2x8x8xf32>
    %cst_125 = arith.constant dense<0.000000e+00> : vector<2x8xf32>
    %321 = vector.multi_reduction <add>, %320, %cst_125 [2] : vector<2x8x8xf32> to vector<2x8xf32>
    %322 = vector.shape_cast %321 : vector<2x8xf32> to vector<2x8x1xf32>
    %323 = tpu.reciprocal %322 {approx = true} : vector<2x8x1xf32> -> vector<2x8x1xf32>
    %324 = vector.broadcast %323 : vector<2x8x1xf32> to vector<2x8x8xf32>
    %325 = arith.mulf %320, %324 : vector<2x8x8xf32>
    %326 = arith.truncf %325 : vector<2x8x8xf32> to vector<2x8x8xbf16>
    %327 = arith.truncf %312 : vector<2x8x16xf32> to vector<2x8x16xbf16>
    %cst_126 = arith.constant dense<0.000000e+00> : vector<2x8x16xf32>
    %328 = tpu.matmul %326, %327, %cst_126 {dimension_numbers = #tpu.dot_dimension_numbers<[2], [1], [1], [2], [0, 0, 0, 1, 1, 2], [0], [0]>} : vector<2x8x8xbf16>, vector<2x8x16xbf16>, vector<2x8x16xf32> -> vector<2x8x16xf32>
    %329 = tpu.concatenate %309, %328 in 2 : vector<2x8x16xf32>, vector<2x8x16xf32> -> vector<2x8x32xf32>
    %330 = vector.shape_cast %329 : vector<2x8x32xf32> to vector<16x32xf32>
    %c1_127 = arith.constant 1 : index
    %c0_128 = arith.constant 0 : index
    %c0_129 = arith.constant 0 : index
    %331 = vector.load %arg7[%c1_127, %c0_128, %c0_129] : memref<4x32x32xbf16, #tpu.memory_space<vmem>>, vector<1x32x32xbf16>
    %332 = vector.shape_cast %331 : vector<1x32x32xbf16> to vector<32x32xbf16>
    %333 = arith.truncf %330 : vector<16x32xf32> to vector<16x32xbf16>
    %cst_130 = arith.constant dense<0.000000e+00> : vector<16x32xf32>
    %334 = tpu.matmul %333, %332, %cst_130 {dimension_numbers = #tpu.dot_dimension_numbers<[1], [0], [0], [1], [0, 0, 1, 1], [], []>} : vector<16x32xbf16>, vector<32x32xbf16>, vector<16x32xf32> -> vector<16x32xf32>
    %335 = arith.addf %244, %334 : vector<16x32xf32>
    %c1_131 = arith.constant 1 : index
    %c0_132 = arith.constant 0 : index
    %c0_133 = arith.constant 0 : index
    %336 = vector.load %arg8[%c1_131, %c0_132, %c0_133] : memref<4x1x32xf32, #tpu.memory_space<vmem>>, vector<1x1x32xf32>
    %337 = vector.shape_cast %336 : vector<1x1x32xf32> to vector<1x32xf32>
    %cst_134 = arith.constant dense<0.000000e+00> : vector<16xf32>
    %338 = vector.multi_reduction <add>, %335, %cst_134 [1] : vector<16x32xf32> to vector<16xf32>
    %339 = vector.shape_cast %338 : vector<16xf32> to vector<16x1xf32>
    %cst_135 = arith.constant 3.200000e+01 : f32
    %340 = vector.broadcast %cst_135 : f32 to vector<16x1xf32>
    %341 = arith.divf %339, %340 : vector<16x1xf32>
    %342 = vector.broadcast %341 : vector<16x1xf32> to vector<16x32xf32>
    %343 = arith.subf %335, %342 : vector<16x32xf32>
    %344 = arith.mulf %343, %343 : vector<16x32xf32>
    %cst_136 = arith.constant dense<0.000000e+00> : vector<16xf32>
    %345 = vector.multi_reduction <add>, %344, %cst_136 [1] : vector<16x32xf32> to vector<16xf32>
    %346 = vector.shape_cast %345 : vector<16xf32> to vector<16x1xf32>
    %cst_137 = arith.constant 3.200000e+01 : f32
    %347 = vector.broadcast %cst_137 : f32 to vector<16x1xf32>
    %348 = arith.divf %346, %347 : vector<16x1xf32>
    %349 = vector.broadcast %341 : vector<16x1xf32> to vector<16x32xf32>
    %350 = arith.subf %335, %349 : vector<16x32xf32>
    %cst_138 = arith.constant 9.99999974E-6 : f32
    %351 = vector.broadcast %cst_138 : f32 to vector<16x1xf32>
    %352 = arith.addf %348, %351 : vector<16x1xf32>
    %353 = math.rsqrt %352 : vector<16x1xf32>
    %354 = vector.broadcast %353 : vector<16x1xf32> to vector<16x32xf32>
    %355 = arith.mulf %350, %354 : vector<16x32xf32>
    %356 = vector.broadcast %337 : vector<1x32xf32> to vector<16x32xf32>
    %357 = arith.mulf %355, %356 : vector<16x32xf32>
    %358 = vector.extract_strided_slice %18 {offsets = [0, 320], sizes = [2, 32], strides = [1, 1]} : vector<2x448xf32> to vector<2x32xf32>
    %359 = vector.extract_strided_slice %18 {offsets = [0, 352], sizes = [2, 32], strides = [1, 1]} : vector<2x448xf32> to vector<2x32xf32>
    %360 = vector.shape_cast %357 : vector<16x32xf32> to vector<2x8x32xf32>
    %361 = vector.shape_cast %358 : vector<2x32xf32> to vector<2x1x32xf32>
    %cst_139 = arith.constant 1.000000e+00 : f32
    %362 = vector.broadcast %cst_139 : f32 to vector<2x1x32xf32>
    %363 = arith.addf %361, %362 : vector<2x1x32xf32>
    %364 = vector.broadcast %363 : vector<2x1x32xf32> to vector<2x8x32xf32>
    %365 = arith.mulf %360, %364 : vector<2x8x32xf32>
    %366 = vector.shape_cast %359 : vector<2x32xf32> to vector<2x1x32xf32>
    %367 = vector.broadcast %366 : vector<2x1x32xf32> to vector<2x8x32xf32>
    %368 = arith.addf %365, %367 : vector<2x8x32xf32>
    %369 = vector.shape_cast %368 : vector<2x8x32xf32> to vector<16x32xf32>
    %c1_140 = arith.constant 1 : index
    %c0_141 = arith.constant 0 : index
    %c0_142 = arith.constant 0 : index
    %370 = vector.load %arg9[%c1_140, %c0_141, %c0_142] : memref<4x32x128xbf16, #tpu.memory_space<vmem>>, vector<1x32x128xbf16>
    %371 = vector.shape_cast %370 : vector<1x32x128xbf16> to vector<32x128xbf16>
    %372 = arith.truncf %369 : vector<16x32xf32> to vector<16x32xbf16>
    %cst_143 = arith.constant dense<0.000000e+00> : vector<16x128xf32>
    %373 = tpu.matmul %372, %371, %cst_143 {dimension_numbers = #tpu.dot_dimension_numbers<[1], [0], [0], [1], [0, 0, 1, 1], [], []>} : vector<16x32xbf16>, vector<32x128xbf16>, vector<16x128xf32> -> vector<16x128xf32>
    %c1_144 = arith.constant 1 : index
    %c0_145 = arith.constant 0 : index
    %c0_146 = arith.constant 0 : index
    %374 = vector.load %arg10[%c1_144, %c0_145, %c0_146] : memref<4x1x128xf32, #tpu.memory_space<vmem>>, vector<1x1x128xf32>
    %375 = vector.shape_cast %374 : vector<1x1x128xf32> to vector<1x128xf32>
    %376 = vector.broadcast %375 : vector<1x128xf32> to vector<16x128xf32>
    %377 = arith.addf %373, %376 : vector<16x128xf32>
    %378 = arith.mulf %377, %377 : vector<16x128xf32>
    %379 = arith.mulf %377, %378 : vector<16x128xf32>
    %cst_147 = arith.constant 4.471500e-02 : f32
    %380 = vector.broadcast %cst_147 : f32 to vector<16x128xf32>
    %381 = arith.mulf %380, %379 : vector<16x128xf32>
    %382 = arith.addf %377, %381 : vector<16x128xf32>
    %cst_148 = arith.constant 0.797884583 : f32
    %383 = vector.broadcast %cst_148 : f32 to vector<16x128xf32>
    %384 = arith.mulf %383, %382 : vector<16x128xf32>
    %385 = math.tanh %384 : vector<16x128xf32>
    %cst_149 = arith.constant 1.000000e+00 : f32
    %386 = vector.broadcast %cst_149 : f32 to vector<16x128xf32>
    %387 = arith.addf %386, %385 : vector<16x128xf32>
    %cst_150 = arith.constant 5.000000e-01 : f32
    %388 = vector.broadcast %cst_150 : f32 to vector<16x128xf32>
    %389 = arith.mulf %388, %387 : vector<16x128xf32>
    %390 = arith.mulf %377, %389 : vector<16x128xf32>
    %c1_151 = arith.constant 1 : index
    %c0_152 = arith.constant 0 : index
    %c0_153 = arith.constant 0 : index
    %391 = vector.load %arg11[%c1_151, %c0_152, %c0_153] : memref<4x128x32xbf16, #tpu.memory_space<vmem>>, vector<1x128x32xbf16>
    %392 = vector.shape_cast %391 : vector<1x128x32xbf16> to vector<128x32xbf16>
    %393 = arith.truncf %390 : vector<16x128xf32> to vector<16x128xbf16>
    %cst_154 = arith.constant dense<0.000000e+00> : vector<16x32xf32>
    %394 = tpu.matmul %393, %392, %cst_154 {dimension_numbers = #tpu.dot_dimension_numbers<[1], [0], [0], [1], [0, 0, 1, 1], [], []>} : vector<16x128xbf16>, vector<128x32xbf16>, vector<16x32xf32> -> vector<16x32xf32>
    %395 = arith.addf %335, %394 : vector<16x32xf32>
    %c1_155 = arith.constant 1 : index
    %c0_156 = arith.constant 0 : index
    %c0_157 = arith.constant 0 : index
    %396 = vector.load %arg12[%c1_155, %c0_156, %c0_157] : memref<4x1x32xf32, #tpu.memory_space<vmem>>, vector<1x1x32xf32>
    %397 = vector.shape_cast %396 : vector<1x1x32xf32> to vector<1x32xf32>
    %398 = vector.broadcast %397 : vector<1x32xf32> to vector<16x32xf32>
    %399 = arith.addf %395, %398 : vector<16x32xf32>
    %c2_158 = arith.constant 2 : index
    %c0_159 = arith.constant 0 : index
    %c0_160 = arith.constant 0 : index
    %400 = vector.load %arg3[%c2_158, %c0_159, %c0_160] : memref<4x1x32xf32, #tpu.memory_space<vmem>>, vector<1x1x32xf32>
    %401 = vector.shape_cast %400 : vector<1x1x32xf32> to vector<1x32xf32>
    %cst_161 = arith.constant dense<0.000000e+00> : vector<128xf32>
    %402 = vector.multi_reduction <add>, %67, %cst_161 [1] : vector<128x32xf32> to vector<128xf32>
    %403 = vector.shape_cast %402 : vector<128xf32> to vector<128x1xf32>
    %cst_162 = arith.constant 3.200000e+01 : f32
    %404 = vector.broadcast %cst_162 : f32 to vector<128x1xf32>
    %405 = arith.divf %403, %404 : vector<128x1xf32>
    %406 = vector.broadcast %405 : vector<128x1xf32> to vector<128x32xf32>
    %407 = arith.subf %67, %406 : vector<128x32xf32>
    %408 = arith.mulf %407, %407 : vector<128x32xf32>
    %cst_163 = arith.constant dense<0.000000e+00> : vector<128xf32>
    %409 = vector.multi_reduction <add>, %408, %cst_163 [1] : vector<128x32xf32> to vector<128xf32>
    %410 = vector.shape_cast %409 : vector<128xf32> to vector<128x1xf32>
    %cst_164 = arith.constant 3.200000e+01 : f32
    %411 = vector.broadcast %cst_164 : f32 to vector<128x1xf32>
    %412 = arith.divf %410, %411 : vector<128x1xf32>
    %413 = vector.broadcast %405 : vector<128x1xf32> to vector<128x32xf32>
    %414 = arith.subf %67, %413 : vector<128x32xf32>
    %cst_165 = arith.constant 9.99999974E-6 : f32
    %415 = vector.broadcast %cst_165 : f32 to vector<128x1xf32>
    %416 = arith.addf %412, %415 : vector<128x1xf32>
    %417 = math.rsqrt %416 : vector<128x1xf32>
    %418 = vector.broadcast %417 : vector<128x1xf32> to vector<128x32xf32>
    %419 = arith.mulf %414, %418 : vector<128x32xf32>
    %420 = vector.broadcast %401 : vector<1x32xf32> to vector<128x32xf32>
    %421 = arith.mulf %419, %420 : vector<128x32xf32>
    %422 = vector.extract_strided_slice %18 {offsets = [0, 128], sizes = [2, 32], strides = [1, 1]} : vector<2x448xf32> to vector<2x32xf32>
    %423 = vector.extract_strided_slice %18 {offsets = [0, 160], sizes = [2, 32], strides = [1, 1]} : vector<2x448xf32> to vector<2x32xf32>
    %424 = vector.shape_cast %421 : vector<128x32xf32> to vector<2x64x32xf32>
    %425 = vector.shape_cast %422 : vector<2x32xf32> to vector<2x1x32xf32>
    %cst_166 = arith.constant 1.000000e+00 : f32
    %426 = vector.broadcast %cst_166 : f32 to vector<2x1x32xf32>
    %427 = arith.addf %425, %426 : vector<2x1x32xf32>
    %428 = vector.broadcast %427 : vector<2x1x32xf32> to vector<2x64x32xf32>
    %429 = arith.mulf %424, %428 : vector<2x64x32xf32>
    %430 = vector.shape_cast %423 : vector<2x32xf32> to vector<2x1x32xf32>
    %431 = vector.broadcast %430 : vector<2x1x32xf32> to vector<2x64x32xf32>
    %432 = arith.addf %429, %431 : vector<2x64x32xf32>
    %433 = vector.shape_cast %432 : vector<2x64x32xf32> to vector<128x32xf32>
    %c2_167 = arith.constant 2 : index
    %c0_168 = arith.constant 0 : index
    %c0_169 = arith.constant 0 : index
    %434 = vector.load %arg5[%c2_167, %c0_168, %c0_169] : memref<4x32x32xbf16, #tpu.memory_space<vmem>>, vector<1x32x32xbf16>
    %435 = vector.shape_cast %434 : vector<1x32x32xbf16> to vector<32x32xbf16>
    %436 = arith.truncf %433 : vector<128x32xf32> to vector<128x32xbf16>
    %cst_170 = arith.constant dense<0.000000e+00> : vector<128x32xf32>
    %437 = tpu.matmul %436, %435, %cst_170 {dimension_numbers = #tpu.dot_dimension_numbers<[1], [0], [0], [1], [0, 0, 1, 1], [], []>} : vector<128x32xbf16>, vector<32x32xbf16>, vector<128x32xf32> -> vector<128x32xf32>
    %cst_171 = arith.constant 2.500000e-01 : f32
    %438 = vector.broadcast %cst_171 : f32 to vector<128x32xf32>
    %439 = arith.mulf %437, %438 : vector<128x32xf32>
    %c2_172 = arith.constant 2 : index
    %c0_173 = arith.constant 0 : index
    %c0_174 = arith.constant 0 : index
    %440 = vector.load %arg6[%c2_172, %c0_173, %c0_174] : memref<4x32x64xbf16, #tpu.memory_space<vmem>>, vector<1x32x64xbf16>
    %441 = vector.shape_cast %440 : vector<1x32x64xbf16> to vector<32x64xbf16>
    %442 = arith.truncf %421 : vector<128x32xf32> to vector<128x32xbf16>
    %cst_175 = arith.constant dense<0.000000e+00> : vector<128x64xf32>
    %443 = tpu.matmul %442, %441, %cst_175 {dimension_numbers = #tpu.dot_dimension_numbers<[1], [0], [0], [1], [0, 0, 1, 1], [], []>} : vector<128x32xbf16>, vector<32x64xbf16>, vector<128x64xf32> -> vector<128x64xf32>
    %444 = vector.shape_cast %439 : vector<128x32xf32> to vector<2x64x32xf32>
    %445 = vector.shape_cast %443 : vector<128x64xf32> to vector<2x64x64xf32>
    %446 = vector.extract_strided_slice %444 {offsets = [0, 0, 0], sizes = [2, 64, 16], strides = [1, 1, 1]} : vector<2x64x32xf32> to vector<2x64x16xf32>
    %447 = vector.extract_strided_slice %445 {offsets = [0, 0, 0], sizes = [2, 64, 16], strides = [1, 1, 1]} : vector<2x64x64xf32> to vector<2x64x16xf32>
    %448 = vector.extract_strided_slice %445 {offsets = [0, 0, 32], sizes = [2, 64, 16], strides = [1, 1, 1]} : vector<2x64x64xf32> to vector<2x64x16xf32>
    %449 = arith.truncf %446 : vector<2x64x16xf32> to vector<2x64x16xbf16>
    %450 = arith.truncf %447 : vector<2x64x16xf32> to vector<2x64x16xbf16>
    %cst_176 = arith.constant dense<0.000000e+00> : vector<2x64x64xf32>
    %451 = tpu.matmul %449, %450, %cst_176 {dimension_numbers = #tpu.dot_dimension_numbers<[2], [2], [1], [1], [0, 0, 0, 1, 1, 1], [0], [0]>} : vector<2x64x16xbf16>, vector<2x64x16xbf16>, vector<2x64x64xf32> -> vector<2x64x64xf32>
    %cst_177 = arith.constant dense<0xFF800000> : vector<2x64xf32>
    %452 = vector.multi_reduction <maximumf>, %451, %cst_177 [2] : vector<2x64x64xf32> to vector<2x64xf32>
    %453 = vector.shape_cast %452 : vector<2x64xf32> to vector<2x64x1xf32>
    %454 = vector.broadcast %453 : vector<2x64x1xf32> to vector<2x64x64xf32>
    %455 = arith.subf %451, %454 : vector<2x64x64xf32>
    %456 = math.exp %455 : vector<2x64x64xf32>
    %cst_178 = arith.constant dense<0.000000e+00> : vector<2x64xf32>
    %457 = vector.multi_reduction <add>, %456, %cst_178 [2] : vector<2x64x64xf32> to vector<2x64xf32>
    %458 = vector.shape_cast %457 : vector<2x64xf32> to vector<2x64x1xf32>
    %459 = tpu.reciprocal %458 {approx = true} : vector<2x64x1xf32> -> vector<2x64x1xf32>
    %460 = vector.broadcast %459 : vector<2x64x1xf32> to vector<2x64x64xf32>
    %461 = arith.mulf %456, %460 : vector<2x64x64xf32>
    %462 = arith.truncf %461 : vector<2x64x64xf32> to vector<2x64x64xbf16>
    %463 = arith.truncf %448 : vector<2x64x16xf32> to vector<2x64x16xbf16>
    %cst_179 = arith.constant dense<0.000000e+00> : vector<2x64x16xf32>
    %464 = tpu.matmul %462, %463, %cst_179 {dimension_numbers = #tpu.dot_dimension_numbers<[2], [1], [1], [2], [0, 0, 0, 1, 1, 2], [0], [0]>} : vector<2x64x64xbf16>, vector<2x64x16xbf16>, vector<2x64x16xf32> -> vector<2x64x16xf32>
    %465 = vector.extract_strided_slice %444 {offsets = [0, 0, 16], sizes = [2, 64, 16], strides = [1, 1, 1]} : vector<2x64x32xf32> to vector<2x64x16xf32>
    %466 = vector.extract_strided_slice %445 {offsets = [0, 0, 16], sizes = [2, 64, 16], strides = [1, 1, 1]} : vector<2x64x64xf32> to vector<2x64x16xf32>
    %467 = vector.extract_strided_slice %445 {offsets = [0, 0, 48], sizes = [2, 64, 16], strides = [1, 1, 1]} : vector<2x64x64xf32> to vector<2x64x16xf32>
    %468 = arith.truncf %465 : vector<2x64x16xf32> to vector<2x64x16xbf16>
    %469 = arith.truncf %466 : vector<2x64x16xf32> to vector<2x64x16xbf16>
    %cst_180 = arith.constant dense<0.000000e+00> : vector<2x64x64xf32>
    %470 = tpu.matmul %468, %469, %cst_180 {dimension_numbers = #tpu.dot_dimension_numbers<[2], [2], [1], [1], [0, 0, 0, 1, 1, 1], [0], [0]>} : vector<2x64x16xbf16>, vector<2x64x16xbf16>, vector<2x64x64xf32> -> vector<2x64x64xf32>
    %cst_181 = arith.constant dense<0xFF800000> : vector<2x64xf32>
    %471 = vector.multi_reduction <maximumf>, %470, %cst_181 [2] : vector<2x64x64xf32> to vector<2x64xf32>
    %472 = vector.shape_cast %471 : vector<2x64xf32> to vector<2x64x1xf32>
    %473 = vector.broadcast %472 : vector<2x64x1xf32> to vector<2x64x64xf32>
    %474 = arith.subf %470, %473 : vector<2x64x64xf32>
    %475 = math.exp %474 : vector<2x64x64xf32>
    %cst_182 = arith.constant dense<0.000000e+00> : vector<2x64xf32>
    %476 = vector.multi_reduction <add>, %475, %cst_182 [2] : vector<2x64x64xf32> to vector<2x64xf32>
    %477 = vector.shape_cast %476 : vector<2x64xf32> to vector<2x64x1xf32>
    %478 = tpu.reciprocal %477 {approx = true} : vector<2x64x1xf32> -> vector<2x64x1xf32>
    %479 = vector.broadcast %478 : vector<2x64x1xf32> to vector<2x64x64xf32>
    %480 = arith.mulf %475, %479 : vector<2x64x64xf32>
    %481 = arith.truncf %480 : vector<2x64x64xf32> to vector<2x64x64xbf16>
    %482 = arith.truncf %467 : vector<2x64x16xf32> to vector<2x64x16xbf16>
    %cst_183 = arith.constant dense<0.000000e+00> : vector<2x64x16xf32>
    %483 = tpu.matmul %481, %482, %cst_183 {dimension_numbers = #tpu.dot_dimension_numbers<[2], [1], [1], [2], [0, 0, 0, 1, 1, 2], [0], [0]>} : vector<2x64x64xbf16>, vector<2x64x16xbf16>, vector<2x64x16xf32> -> vector<2x64x16xf32>
    %484 = tpu.concatenate %464, %483 in 2 : vector<2x64x16xf32>, vector<2x64x16xf32> -> vector<2x64x32xf32>
    %485 = vector.shape_cast %484 : vector<2x64x32xf32> to vector<128x32xf32>
    %c2_184 = arith.constant 2 : index
    %c0_185 = arith.constant 0 : index
    %c0_186 = arith.constant 0 : index
    %486 = vector.load %arg7[%c2_184, %c0_185, %c0_186] : memref<4x32x32xbf16, #tpu.memory_space<vmem>>, vector<1x32x32xbf16>
    %487 = vector.shape_cast %486 : vector<1x32x32xbf16> to vector<32x32xbf16>
    %488 = arith.truncf %485 : vector<128x32xf32> to vector<128x32xbf16>
    %cst_187 = arith.constant dense<0.000000e+00> : vector<128x32xf32>
    %489 = tpu.matmul %488, %487, %cst_187 {dimension_numbers = #tpu.dot_dimension_numbers<[1], [0], [0], [1], [0, 0, 1, 1], [], []>} : vector<128x32xbf16>, vector<32x32xbf16>, vector<128x32xf32> -> vector<128x32xf32>
    %490 = arith.addf %67, %489 : vector<128x32xf32>
    %c2_188 = arith.constant 2 : index
    %c0_189 = arith.constant 0 : index
    %c0_190 = arith.constant 0 : index
    %491 = vector.load %arg8[%c2_188, %c0_189, %c0_190] : memref<4x1x32xf32, #tpu.memory_space<vmem>>, vector<1x1x32xf32>
    %492 = vector.shape_cast %491 : vector<1x1x32xf32> to vector<1x32xf32>
    %cst_191 = arith.constant dense<0.000000e+00> : vector<128xf32>
    %493 = vector.multi_reduction <add>, %490, %cst_191 [1] : vector<128x32xf32> to vector<128xf32>
    %494 = vector.shape_cast %493 : vector<128xf32> to vector<128x1xf32>
    %cst_192 = arith.constant 3.200000e+01 : f32
    %495 = vector.broadcast %cst_192 : f32 to vector<128x1xf32>
    %496 = arith.divf %494, %495 : vector<128x1xf32>
    %497 = vector.broadcast %496 : vector<128x1xf32> to vector<128x32xf32>
    %498 = arith.subf %490, %497 : vector<128x32xf32>
    %499 = arith.mulf %498, %498 : vector<128x32xf32>
    %cst_193 = arith.constant dense<0.000000e+00> : vector<128xf32>
    %500 = vector.multi_reduction <add>, %499, %cst_193 [1] : vector<128x32xf32> to vector<128xf32>
    %501 = vector.shape_cast %500 : vector<128xf32> to vector<128x1xf32>
    %cst_194 = arith.constant 3.200000e+01 : f32
    %502 = vector.broadcast %cst_194 : f32 to vector<128x1xf32>
    %503 = arith.divf %501, %502 : vector<128x1xf32>
    %504 = vector.broadcast %496 : vector<128x1xf32> to vector<128x32xf32>
    %505 = arith.subf %490, %504 : vector<128x32xf32>
    %cst_195 = arith.constant 9.99999974E-6 : f32
    %506 = vector.broadcast %cst_195 : f32 to vector<128x1xf32>
    %507 = arith.addf %503, %506 : vector<128x1xf32>
    %508 = math.rsqrt %507 : vector<128x1xf32>
    %509 = vector.broadcast %508 : vector<128x1xf32> to vector<128x32xf32>
    %510 = arith.mulf %505, %509 : vector<128x32xf32>
    %511 = vector.broadcast %492 : vector<1x32xf32> to vector<128x32xf32>
    %512 = arith.mulf %510, %511 : vector<128x32xf32>
    %c2_196 = arith.constant 2 : index
    %c0_197 = arith.constant 0 : index
    %c0_198 = arith.constant 0 : index
    %513 = vector.load %arg9[%c2_196, %c0_197, %c0_198] : memref<4x32x128xbf16, #tpu.memory_space<vmem>>, vector<1x32x128xbf16>
    %514 = vector.shape_cast %513 : vector<1x32x128xbf16> to vector<32x128xbf16>
    %515 = arith.truncf %512 : vector<128x32xf32> to vector<128x32xbf16>
    %cst_199 = arith.constant dense<0.000000e+00> : vector<128x128xf32>
    %516 = tpu.matmul %515, %514, %cst_199 {dimension_numbers = #tpu.dot_dimension_numbers<[1], [0], [0], [1], [0, 0, 1, 1], [], []>} : vector<128x32xbf16>, vector<32x128xbf16>, vector<128x128xf32> -> vector<128x128xf32>
    %c2_200 = arith.constant 2 : index
    %c0_201 = arith.constant 0 : index
    %c0_202 = arith.constant 0 : index
    %517 = vector.load %arg10[%c2_200, %c0_201, %c0_202] : memref<4x1x128xf32, #tpu.memory_space<vmem>>, vector<1x1x128xf32>
    %518 = vector.shape_cast %517 : vector<1x1x128xf32> to vector<1x128xf32>
    %519 = vector.broadcast %518 : vector<1x128xf32> to vector<128x128xf32>
    %520 = arith.addf %516, %519 : vector<128x128xf32>
    %521 = arith.mulf %520, %520 : vector<128x128xf32>
    %522 = arith.mulf %520, %521 : vector<128x128xf32>
    %cst_203 = arith.constant 4.471500e-02 : f32
    %523 = vector.broadcast %cst_203 : f32 to vector<128x128xf32>
    %524 = arith.mulf %523, %522 : vector<128x128xf32>
    %525 = arith.addf %520, %524 : vector<128x128xf32>
    %cst_204 = arith.constant 0.797884583 : f32
    %526 = vector.broadcast %cst_204 : f32 to vector<128x128xf32>
    %527 = arith.mulf %526, %525 : vector<128x128xf32>
    %528 = math.tanh %527 : vector<128x128xf32>
    %cst_205 = arith.constant 1.000000e+00 : f32
    %529 = vector.broadcast %cst_205 : f32 to vector<128x128xf32>
    %530 = arith.addf %529, %528 : vector<128x128xf32>
    %cst_206 = arith.constant 5.000000e-01 : f32
    %531 = vector.broadcast %cst_206 : f32 to vector<128x128xf32>
    %532 = arith.mulf %531, %530 : vector<128x128xf32>
    %533 = arith.mulf %520, %532 : vector<128x128xf32>
    %c2_207 = arith.constant 2 : index
    %c0_208 = arith.constant 0 : index
    %c0_209 = arith.constant 0 : index
    %534 = vector.load %arg11[%c2_207, %c0_208, %c0_209] : memref<4x128x32xbf16, #tpu.memory_space<vmem>>, vector<1x128x32xbf16>
    %535 = vector.shape_cast %534 : vector<1x128x32xbf16> to vector<128x32xbf16>
    %536 = arith.truncf %533 : vector<128x128xf32> to vector<128x128xbf16>
    %cst_210 = arith.constant dense<0.000000e+00> : vector<128x32xf32>
    %537 = tpu.matmul %536, %535, %cst_210 {dimension_numbers = #tpu.dot_dimension_numbers<[1], [0], [0], [1], [0, 0, 1, 1], [], []>} : vector<128x128xbf16>, vector<128x32xbf16>, vector<128x32xf32> -> vector<128x32xf32>
    %538 = arith.addf %490, %537 : vector<128x32xf32>
    %c2_211 = arith.constant 2 : index
    %c0_212 = arith.constant 0 : index
    %c0_213 = arith.constant 0 : index
    %539 = vector.load %arg12[%c2_211, %c0_212, %c0_213] : memref<4x1x32xf32, #tpu.memory_space<vmem>>, vector<1x1x32xf32>
    %540 = vector.shape_cast %539 : vector<1x1x32xf32> to vector<1x32xf32>
    %541 = vector.broadcast %540 : vector<1x32xf32> to vector<128x32xf32>
    %542 = arith.addf %538, %541 : vector<128x32xf32>
    %c3_214 = arith.constant 3 : index
    %c0_215 = arith.constant 0 : index
    %c0_216 = arith.constant 0 : index
    %543 = vector.load %arg3[%c3_214, %c0_215, %c0_216] : memref<4x1x32xf32, #tpu.memory_space<vmem>>, vector<1x1x32xf32>
    %544 = vector.shape_cast %543 : vector<1x1x32xf32> to vector<1x32xf32>
    %cst_217 = arith.constant dense<0.000000e+00> : vector<128xf32>
    %545 = vector.multi_reduction <add>, %542, %cst_217 [1] : vector<128x32xf32> to vector<128xf32>
    %546 = vector.shape_cast %545 : vector<128xf32> to vector<128x1xf32>
    %cst_218 = arith.constant 3.200000e+01 : f32
    %547 = vector.broadcast %cst_218 : f32 to vector<128x1xf32>
    %548 = arith.divf %546, %547 : vector<128x1xf32>
    %549 = vector.broadcast %548 : vector<128x1xf32> to vector<128x32xf32>
    %550 = arith.subf %542, %549 : vector<128x32xf32>
    %551 = arith.mulf %550, %550 : vector<128x32xf32>
    %cst_219 = arith.constant dense<0.000000e+00> : vector<128xf32>
    %552 = vector.multi_reduction <add>, %551, %cst_219 [1] : vector<128x32xf32> to vector<128xf32>
    %553 = vector.shape_cast %552 : vector<128xf32> to vector<128x1xf32>
    %cst_220 = arith.constant 3.200000e+01 : f32
    %554 = vector.broadcast %cst_220 : f32 to vector<128x1xf32>
    %555 = arith.divf %553, %554 : vector<128x1xf32>
    %556 = vector.broadcast %548 : vector<128x1xf32> to vector<128x32xf32>
    %557 = arith.subf %542, %556 : vector<128x32xf32>
    %cst_221 = arith.constant 9.99999974E-6 : f32
    %558 = vector.broadcast %cst_221 : f32 to vector<128x1xf32>
    %559 = arith.addf %555, %558 : vector<128x1xf32>
    %560 = math.rsqrt %559 : vector<128x1xf32>
    %561 = vector.broadcast %560 : vector<128x1xf32> to vector<128x32xf32>
    %562 = arith.mulf %557, %561 : vector<128x32xf32>
    %563 = vector.broadcast %544 : vector<1x32xf32> to vector<128x32xf32>
    %564 = arith.mulf %562, %563 : vector<128x32xf32>
    %c3_222 = arith.constant 3 : index
    %c0_223 = arith.constant 0 : index
    %c0_224 = arith.constant 0 : index
    %565 = vector.load %arg4[%c3_222, %c0_223, %c0_224] : memref<4x1x32xf32, #tpu.memory_space<vmem>>, vector<1x1x32xf32>
    %566 = vector.shape_cast %565 : vector<1x1x32xf32> to vector<1x32xf32>
    %cst_225 = arith.constant dense<0.000000e+00> : vector<16xf32>
    %567 = vector.multi_reduction <add>, %399, %cst_225 [1] : vector<16x32xf32> to vector<16xf32>
    %568 = vector.shape_cast %567 : vector<16xf32> to vector<16x1xf32>
    %cst_226 = arith.constant 3.200000e+01 : f32
    %569 = vector.broadcast %cst_226 : f32 to vector<16x1xf32>
    %570 = arith.divf %568, %569 : vector<16x1xf32>
    %571 = vector.broadcast %570 : vector<16x1xf32> to vector<16x32xf32>
    %572 = arith.subf %399, %571 : vector<16x32xf32>
    %573 = arith.mulf %572, %572 : vector<16x32xf32>
    %cst_227 = arith.constant dense<0.000000e+00> : vector<16xf32>
    %574 = vector.multi_reduction <add>, %573, %cst_227 [1] : vector<16x32xf32> to vector<16xf32>
    %575 = vector.shape_cast %574 : vector<16xf32> to vector<16x1xf32>
    %cst_228 = arith.constant 3.200000e+01 : f32
    %576 = vector.broadcast %cst_228 : f32 to vector<16x1xf32>
    %577 = arith.divf %575, %576 : vector<16x1xf32>
    %578 = vector.broadcast %570 : vector<16x1xf32> to vector<16x32xf32>
    %579 = arith.subf %399, %578 : vector<16x32xf32>
    %cst_229 = arith.constant 9.99999974E-6 : f32
    %580 = vector.broadcast %cst_229 : f32 to vector<16x1xf32>
    %581 = arith.addf %577, %580 : vector<16x1xf32>
    %582 = math.rsqrt %581 : vector<16x1xf32>
    %583 = vector.broadcast %582 : vector<16x1xf32> to vector<16x32xf32>
    %584 = arith.mulf %579, %583 : vector<16x32xf32>
    %585 = vector.broadcast %566 : vector<1x32xf32> to vector<16x32xf32>
    %586 = arith.mulf %584, %585 : vector<16x32xf32>
    %587 = vector.extract_strided_slice %18 {offsets = [0, 192], sizes = [2, 32], strides = [1, 1]} : vector<2x448xf32> to vector<2x32xf32>
    %588 = vector.extract_strided_slice %18 {offsets = [0, 224], sizes = [2, 32], strides = [1, 1]} : vector<2x448xf32> to vector<2x32xf32>
    %589 = vector.shape_cast %564 : vector<128x32xf32> to vector<2x64x32xf32>
    %590 = vector.shape_cast %587 : vector<2x32xf32> to vector<2x1x32xf32>
    %cst_230 = arith.constant 1.000000e+00 : f32
    %591 = vector.broadcast %cst_230 : f32 to vector<2x1x32xf32>
    %592 = arith.addf %590, %591 : vector<2x1x32xf32>
    %593 = vector.broadcast %592 : vector<2x1x32xf32> to vector<2x64x32xf32>
    %594 = arith.mulf %589, %593 : vector<2x64x32xf32>
    %595 = vector.shape_cast %588 : vector<2x32xf32> to vector<2x1x32xf32>
    %596 = vector.broadcast %595 : vector<2x1x32xf32> to vector<2x64x32xf32>
    %597 = arith.addf %594, %596 : vector<2x64x32xf32>
    %598 = vector.shape_cast %597 : vector<2x64x32xf32> to vector<128x32xf32>
    %c3_231 = arith.constant 3 : index
    %c0_232 = arith.constant 0 : index
    %c0_233 = arith.constant 0 : index
    %599 = vector.load %arg5[%c3_231, %c0_232, %c0_233] : memref<4x32x32xbf16, #tpu.memory_space<vmem>>, vector<1x32x32xbf16>
    %600 = vector.shape_cast %599 : vector<1x32x32xbf16> to vector<32x32xbf16>
    %601 = arith.truncf %598 : vector<128x32xf32> to vector<128x32xbf16>
    %cst_234 = arith.constant dense<0.000000e+00> : vector<128x32xf32>
    %602 = tpu.matmul %601, %600, %cst_234 {dimension_numbers = #tpu.dot_dimension_numbers<[1], [0], [0], [1], [0, 0, 1, 1], [], []>} : vector<128x32xbf16>, vector<32x32xbf16>, vector<128x32xf32> -> vector<128x32xf32>
    %cst_235 = arith.constant 2.500000e-01 : f32
    %603 = vector.broadcast %cst_235 : f32 to vector<128x32xf32>
    %604 = arith.mulf %602, %603 : vector<128x32xf32>
    %c3_236 = arith.constant 3 : index
    %c0_237 = arith.constant 0 : index
    %c0_238 = arith.constant 0 : index
    %605 = vector.load %arg6[%c3_236, %c0_237, %c0_238] : memref<4x32x64xbf16, #tpu.memory_space<vmem>>, vector<1x32x64xbf16>
    %606 = vector.shape_cast %605 : vector<1x32x64xbf16> to vector<32x64xbf16>
    %607 = arith.truncf %586 : vector<16x32xf32> to vector<16x32xbf16>
    %cst_239 = arith.constant dense<0.000000e+00> : vector<16x64xf32>
    %608 = tpu.matmul %607, %606, %cst_239 {dimension_numbers = #tpu.dot_dimension_numbers<[1], [0], [0], [1], [0, 0, 1, 1], [], []>} : vector<16x32xbf16>, vector<32x64xbf16>, vector<16x64xf32> -> vector<16x64xf32>
    %609 = vector.shape_cast %604 : vector<128x32xf32> to vector<2x64x32xf32>
    %610 = vector.shape_cast %608 : vector<16x64xf32> to vector<2x8x64xf32>
    %611 = vector.extract_strided_slice %609 {offsets = [0, 0, 0], sizes = [2, 64, 16], strides = [1, 1, 1]} : vector<2x64x32xf32> to vector<2x64x16xf32>
    %612 = vector.extract_strided_slice %610 {offsets = [0, 0, 0], sizes = [2, 8, 16], strides = [1, 1, 1]} : vector<2x8x64xf32> to vector<2x8x16xf32>
    %613 = vector.extract_strided_slice %610 {offsets = [0, 0, 32], sizes = [2, 8, 16], strides = [1, 1, 1]} : vector<2x8x64xf32> to vector<2x8x16xf32>
    %614 = arith.truncf %611 : vector<2x64x16xf32> to vector<2x64x16xbf16>
    %615 = arith.truncf %612 : vector<2x8x16xf32> to vector<2x8x16xbf16>
    %cst_240 = arith.constant dense<0.000000e+00> : vector<2x64x8xf32>
    %616 = tpu.matmul %614, %615, %cst_240 {dimension_numbers = #tpu.dot_dimension_numbers<[2], [2], [1], [1], [0, 0, 0, 1, 1, 1], [0], [0]>} : vector<2x64x16xbf16>, vector<2x8x16xbf16>, vector<2x64x8xf32> -> vector<2x64x8xf32>
    %cst_241 = arith.constant dense<0xFF800000> : vector<2x64xf32>
    %617 = vector.multi_reduction <maximumf>, %616, %cst_241 [2] : vector<2x64x8xf32> to vector<2x64xf32>
    %618 = vector.shape_cast %617 : vector<2x64xf32> to vector<2x64x1xf32>
    %619 = vector.broadcast %618 : vector<2x64x1xf32> to vector<2x64x8xf32>
    %620 = arith.subf %616, %619 : vector<2x64x8xf32>
    %621 = math.exp %620 : vector<2x64x8xf32>
    %cst_242 = arith.constant dense<0.000000e+00> : vector<2x64xf32>
    %622 = vector.multi_reduction <add>, %621, %cst_242 [2] : vector<2x64x8xf32> to vector<2x64xf32>
    %623 = vector.shape_cast %622 : vector<2x64xf32> to vector<2x64x1xf32>
    %624 = tpu.reciprocal %623 {approx = true} : vector<2x64x1xf32> -> vector<2x64x1xf32>
    %625 = vector.broadcast %624 : vector<2x64x1xf32> to vector<2x64x8xf32>
    %626 = arith.mulf %621, %625 : vector<2x64x8xf32>
    %627 = arith.truncf %626 : vector<2x64x8xf32> to vector<2x64x8xbf16>
    %628 = arith.truncf %613 : vector<2x8x16xf32> to vector<2x8x16xbf16>
    %cst_243 = arith.constant dense<0.000000e+00> : vector<2x64x16xf32>
    %629 = tpu.matmul %627, %628, %cst_243 {dimension_numbers = #tpu.dot_dimension_numbers<[2], [1], [1], [2], [0, 0, 0, 1, 1, 2], [0], [0]>} : vector<2x64x8xbf16>, vector<2x8x16xbf16>, vector<2x64x16xf32> -> vector<2x64x16xf32>
    %630 = vector.extract_strided_slice %609 {offsets = [0, 0, 16], sizes = [2, 64, 16], strides = [1, 1, 1]} : vector<2x64x32xf32> to vector<2x64x16xf32>
    %631 = vector.extract_strided_slice %610 {offsets = [0, 0, 16], sizes = [2, 8, 16], strides = [1, 1, 1]} : vector<2x8x64xf32> to vector<2x8x16xf32>
    %632 = vector.extract_strided_slice %610 {offsets = [0, 0, 48], sizes = [2, 8, 16], strides = [1, 1, 1]} : vector<2x8x64xf32> to vector<2x8x16xf32>
    %633 = arith.truncf %630 : vector<2x64x16xf32> to vector<2x64x16xbf16>
    %634 = arith.truncf %631 : vector<2x8x16xf32> to vector<2x8x16xbf16>
    %cst_244 = arith.constant dense<0.000000e+00> : vector<2x64x8xf32>
    %635 = tpu.matmul %633, %634, %cst_244 {dimension_numbers = #tpu.dot_dimension_numbers<[2], [2], [1], [1], [0, 0, 0, 1, 1, 1], [0], [0]>} : vector<2x64x16xbf16>, vector<2x8x16xbf16>, vector<2x64x8xf32> -> vector<2x64x8xf32>
    %cst_245 = arith.constant dense<0xFF800000> : vector<2x64xf32>
    %636 = vector.multi_reduction <maximumf>, %635, %cst_245 [2] : vector<2x64x8xf32> to vector<2x64xf32>
    %637 = vector.shape_cast %636 : vector<2x64xf32> to vector<2x64x1xf32>
    %638 = vector.broadcast %637 : vector<2x64x1xf32> to vector<2x64x8xf32>
    %639 = arith.subf %635, %638 : vector<2x64x8xf32>
    %640 = math.exp %639 : vector<2x64x8xf32>
    %cst_246 = arith.constant dense<0.000000e+00> : vector<2x64xf32>
    %641 = vector.multi_reduction <add>, %640, %cst_246 [2] : vector<2x64x8xf32> to vector<2x64xf32>
    %642 = vector.shape_cast %641 : vector<2x64xf32> to vector<2x64x1xf32>
    %643 = tpu.reciprocal %642 {approx = true} : vector<2x64x1xf32> -> vector<2x64x1xf32>
    %644 = vector.broadcast %643 : vector<2x64x1xf32> to vector<2x64x8xf32>
    %645 = arith.mulf %640, %644 : vector<2x64x8xf32>
    %646 = arith.truncf %645 : vector<2x64x8xf32> to vector<2x64x8xbf16>
    %647 = arith.truncf %632 : vector<2x8x16xf32> to vector<2x8x16xbf16>
    %cst_247 = arith.constant dense<0.000000e+00> : vector<2x64x16xf32>
    %648 = tpu.matmul %646, %647, %cst_247 {dimension_numbers = #tpu.dot_dimension_numbers<[2], [1], [1], [2], [0, 0, 0, 1, 1, 2], [0], [0]>} : vector<2x64x8xbf16>, vector<2x8x16xbf16>, vector<2x64x16xf32> -> vector<2x64x16xf32>
    %649 = tpu.concatenate %629, %648 in 2 : vector<2x64x16xf32>, vector<2x64x16xf32> -> vector<2x64x32xf32>
    %650 = vector.shape_cast %649 : vector<2x64x32xf32> to vector<128x32xf32>
    %c3_248 = arith.constant 3 : index
    %c0_249 = arith.constant 0 : index
    %c0_250 = arith.constant 0 : index
    %651 = vector.load %arg7[%c3_248, %c0_249, %c0_250] : memref<4x32x32xbf16, #tpu.memory_space<vmem>>, vector<1x32x32xbf16>
    %652 = vector.shape_cast %651 : vector<1x32x32xbf16> to vector<32x32xbf16>
    %653 = arith.truncf %650 : vector<128x32xf32> to vector<128x32xbf16>
    %cst_251 = arith.constant dense<0.000000e+00> : vector<128x32xf32>
    %654 = tpu.matmul %653, %652, %cst_251 {dimension_numbers = #tpu.dot_dimension_numbers<[1], [0], [0], [1], [0, 0, 1, 1], [], []>} : vector<128x32xbf16>, vector<32x32xbf16>, vector<128x32xf32> -> vector<128x32xf32>
    %655 = arith.addf %542, %654 : vector<128x32xf32>
    %c3_252 = arith.constant 3 : index
    %c0_253 = arith.constant 0 : index
    %c0_254 = arith.constant 0 : index
    %656 = vector.load %arg8[%c3_252, %c0_253, %c0_254] : memref<4x1x32xf32, #tpu.memory_space<vmem>>, vector<1x1x32xf32>
    %657 = vector.shape_cast %656 : vector<1x1x32xf32> to vector<1x32xf32>
    %cst_255 = arith.constant dense<0.000000e+00> : vector<128xf32>
    %658 = vector.multi_reduction <add>, %655, %cst_255 [1] : vector<128x32xf32> to vector<128xf32>
    %659 = vector.shape_cast %658 : vector<128xf32> to vector<128x1xf32>
    %cst_256 = arith.constant 3.200000e+01 : f32
    %660 = vector.broadcast %cst_256 : f32 to vector<128x1xf32>
    %661 = arith.divf %659, %660 : vector<128x1xf32>
    %662 = vector.broadcast %661 : vector<128x1xf32> to vector<128x32xf32>
    %663 = arith.subf %655, %662 : vector<128x32xf32>
    %664 = arith.mulf %663, %663 : vector<128x32xf32>
    %cst_257 = arith.constant dense<0.000000e+00> : vector<128xf32>
    %665 = vector.multi_reduction <add>, %664, %cst_257 [1] : vector<128x32xf32> to vector<128xf32>
    %666 = vector.shape_cast %665 : vector<128xf32> to vector<128x1xf32>
    %cst_258 = arith.constant 3.200000e+01 : f32
    %667 = vector.broadcast %cst_258 : f32 to vector<128x1xf32>
    %668 = arith.divf %666, %667 : vector<128x1xf32>
    %669 = vector.broadcast %661 : vector<128x1xf32> to vector<128x32xf32>
    %670 = arith.subf %655, %669 : vector<128x32xf32>
    %cst_259 = arith.constant 9.99999974E-6 : f32
    %671 = vector.broadcast %cst_259 : f32 to vector<128x1xf32>
    %672 = arith.addf %668, %671 : vector<128x1xf32>
    %673 = math.rsqrt %672 : vector<128x1xf32>
    %674 = vector.broadcast %673 : vector<128x1xf32> to vector<128x32xf32>
    %675 = arith.mulf %670, %674 : vector<128x32xf32>
    %676 = vector.broadcast %657 : vector<1x32xf32> to vector<128x32xf32>
    %677 = arith.mulf %675, %676 : vector<128x32xf32>
    %678 = vector.extract_strided_slice %18 {offsets = [0, 384], sizes = [2, 32], strides = [1, 1]} : vector<2x448xf32> to vector<2x32xf32>
    %679 = vector.extract_strided_slice %18 {offsets = [0, 416], sizes = [2, 32], strides = [1, 1]} : vector<2x448xf32> to vector<2x32xf32>
    %680 = vector.shape_cast %677 : vector<128x32xf32> to vector<2x64x32xf32>
    %681 = vector.shape_cast %678 : vector<2x32xf32> to vector<2x1x32xf32>
    %cst_260 = arith.constant 1.000000e+00 : f32
    %682 = vector.broadcast %cst_260 : f32 to vector<2x1x32xf32>
    %683 = arith.addf %681, %682 : vector<2x1x32xf32>
    %684 = vector.broadcast %683 : vector<2x1x32xf32> to vector<2x64x32xf32>
    %685 = arith.mulf %680, %684 : vector<2x64x32xf32>
    %686 = vector.shape_cast %679 : vector<2x32xf32> to vector<2x1x32xf32>
    %687 = vector.broadcast %686 : vector<2x1x32xf32> to vector<2x64x32xf32>
    %688 = arith.addf %685, %687 : vector<2x64x32xf32>
    %689 = vector.shape_cast %688 : vector<2x64x32xf32> to vector<128x32xf32>
    %c3_261 = arith.constant 3 : index
    %c0_262 = arith.constant 0 : index
    %c0_263 = arith.constant 0 : index
    %690 = vector.load %arg9[%c3_261, %c0_262, %c0_263] : memref<4x32x128xbf16, #tpu.memory_space<vmem>>, vector<1x32x128xbf16>
    %691 = vector.shape_cast %690 : vector<1x32x128xbf16> to vector<32x128xbf16>
    %692 = arith.truncf %689 : vector<128x32xf32> to vector<128x32xbf16>
    %cst_264 = arith.constant dense<0.000000e+00> : vector<128x128xf32>
    %693 = tpu.matmul %692, %691, %cst_264 {dimension_numbers = #tpu.dot_dimension_numbers<[1], [0], [0], [1], [0, 0, 1, 1], [], []>} : vector<128x32xbf16>, vector<32x128xbf16>, vector<128x128xf32> -> vector<128x128xf32>
    %c3_265 = arith.constant 3 : index
    %c0_266 = arith.constant 0 : index
    %c0_267 = arith.constant 0 : index
    %694 = vector.load %arg10[%c3_265, %c0_266, %c0_267] : memref<4x1x128xf32, #tpu.memory_space<vmem>>, vector<1x1x128xf32>
    %695 = vector.shape_cast %694 : vector<1x1x128xf32> to vector<1x128xf32>
    %696 = vector.broadcast %695 : vector<1x128xf32> to vector<128x128xf32>
    %697 = arith.addf %693, %696 : vector<128x128xf32>
    %698 = arith.mulf %697, %697 : vector<128x128xf32>
    %699 = arith.mulf %697, %698 : vector<128x128xf32>
    %cst_268 = arith.constant 4.471500e-02 : f32
    %700 = vector.broadcast %cst_268 : f32 to vector<128x128xf32>
    %701 = arith.mulf %700, %699 : vector<128x128xf32>
    %702 = arith.addf %697, %701 : vector<128x128xf32>
    %cst_269 = arith.constant 0.797884583 : f32
    %703 = vector.broadcast %cst_269 : f32 to vector<128x128xf32>
    %704 = arith.mulf %703, %702 : vector<128x128xf32>
    %705 = math.tanh %704 : vector<128x128xf32>
    %cst_270 = arith.constant 1.000000e+00 : f32
    %706 = vector.broadcast %cst_270 : f32 to vector<128x128xf32>
    %707 = arith.addf %706, %705 : vector<128x128xf32>
    %cst_271 = arith.constant 5.000000e-01 : f32
    %708 = vector.broadcast %cst_271 : f32 to vector<128x128xf32>
    %709 = arith.mulf %708, %707 : vector<128x128xf32>
    %710 = arith.mulf %697, %709 : vector<128x128xf32>
    %c3_272 = arith.constant 3 : index
    %c0_273 = arith.constant 0 : index
    %c0_274 = arith.constant 0 : index
    %711 = vector.load %arg11[%c3_272, %c0_273, %c0_274] : memref<4x128x32xbf16, #tpu.memory_space<vmem>>, vector<1x128x32xbf16>
    %712 = vector.shape_cast %711 : vector<1x128x32xbf16> to vector<128x32xbf16>
    %713 = arith.truncf %710 : vector<128x128xf32> to vector<128x128xbf16>
    %cst_275 = arith.constant dense<0.000000e+00> : vector<128x32xf32>
    %714 = tpu.matmul %713, %712, %cst_275 {dimension_numbers = #tpu.dot_dimension_numbers<[1], [0], [0], [1], [0, 0, 1, 1], [], []>} : vector<128x128xbf16>, vector<128x32xbf16>, vector<128x32xf32> -> vector<128x32xf32>
    %715 = arith.addf %655, %714 : vector<128x32xf32>
    %c3_276 = arith.constant 3 : index
    %c0_277 = arith.constant 0 : index
    %c0_278 = arith.constant 0 : index
    %716 = vector.load %arg12[%c3_276, %c0_277, %c0_278] : memref<4x1x32xf32, #tpu.memory_space<vmem>>, vector<1x1x32xf32>
    %717 = vector.shape_cast %716 : vector<1x1x32xf32> to vector<1x32xf32>
    %718 = vector.broadcast %717 : vector<1x32xf32> to vector<128x32xf32>
    %719 = arith.addf %715, %718 : vector<128x32xf32>
    %c0_279 = arith.constant 0 : index
    %c0_280 = arith.constant 0 : index
    %c0_281 = arith.constant 0 : index
    %720 = vector.load %arg17[%c0_279, %c0_280, %c0_281] : memref<2x1x32xf32, #tpu.memory_space<vmem>>, vector<1x1x32xf32>
    %721 = vector.shape_cast %720 : vector<1x1x32xf32> to vector<1x32xf32>
    %cst_282 = arith.constant dense<0.000000e+00> : vector<128xf32>
    %722 = vector.multi_reduction <add>, %719, %cst_282 [1] : vector<128x32xf32> to vector<128xf32>
    %723 = vector.shape_cast %722 : vector<128xf32> to vector<128x1xf32>
    %cst_283 = arith.constant 3.200000e+01 : f32
    %724 = vector.broadcast %cst_283 : f32 to vector<128x1xf32>
    %725 = arith.divf %723, %724 : vector<128x1xf32>
    %726 = vector.broadcast %725 : vector<128x1xf32> to vector<128x32xf32>
    %727 = arith.subf %719, %726 : vector<128x32xf32>
    %728 = arith.mulf %727, %727 : vector<128x32xf32>
    %cst_284 = arith.constant dense<0.000000e+00> : vector<128xf32>
    %729 = vector.multi_reduction <add>, %728, %cst_284 [1] : vector<128x32xf32> to vector<128xf32>
    %730 = vector.shape_cast %729 : vector<128xf32> to vector<128x1xf32>
    %cst_285 = arith.constant 3.200000e+01 : f32
    %731 = vector.broadcast %cst_285 : f32 to vector<128x1xf32>
    %732 = arith.divf %730, %731 : vector<128x1xf32>
    %733 = vector.broadcast %725 : vector<128x1xf32> to vector<128x32xf32>
    %734 = arith.subf %719, %733 : vector<128x32xf32>
    %cst_286 = arith.constant 9.99999974E-6 : f32
    %735 = vector.broadcast %cst_286 : f32 to vector<128x1xf32>
    %736 = arith.addf %732, %735 : vector<128x1xf32>
    %737 = math.rsqrt %736 : vector<128x1xf32>
    %738 = vector.broadcast %737 : vector<128x1xf32> to vector<128x32xf32>
    %739 = arith.mulf %734, %738 : vector<128x32xf32>
    %740 = vector.broadcast %721 : vector<1x32xf32> to vector<128x32xf32>
    %741 = arith.mulf %739, %740 : vector<128x32xf32>
    %742 = vector.shape_cast %741 : vector<128x32xf32> to vector<2x64x32xf32>
    %c0_287 = arith.constant 0 : index
    %c0_288 = arith.constant 0 : index
    %c0_289 = arith.constant 0 : index
    %743 = vector.load %arg18[%c0_287, %c0_288, %c0_289] : memref<2x64x32xf32, #tpu.memory_space<vmem>>, vector<2x64x32xf32>
    tpu.vector_store %arg18[%c0_287, %c0_288, %c0_289], %742 {strides = array<i32>} : memref<2x64x32xf32, #tpu.memory_space<vmem>>, vector<2x64x32xf32>,
    %c1_290 = arith.constant 1 : index
    %c0_291 = arith.constant 0 : index
    %c0_292 = arith.constant 0 : index
    %744 = vector.load %arg17[%c1_290, %c0_291, %c0_292] : memref<2x1x32xf32, #tpu.memory_space<vmem>>, vector<1x1x32xf32>
    %745 = vector.shape_cast %744 : vector<1x1x32xf32> to vector<1x32xf32>
    %cst_293 = arith.constant dense<0.000000e+00> : vector<16xf32>
    %746 = vector.multi_reduction <add>, %399, %cst_293 [1] : vector<16x32xf32> to vector<16xf32>
    %747 = vector.shape_cast %746 : vector<16xf32> to vector<16x1xf32>
    %cst_294 = arith.constant 3.200000e+01 : f32
    %748 = vector.broadcast %cst_294 : f32 to vector<16x1xf32>
    %749 = arith.divf %747, %748 : vector<16x1xf32>
    %750 = vector.broadcast %749 : vector<16x1xf32> to vector<16x32xf32>
    %751 = arith.subf %399, %750 : vector<16x32xf32>
    %752 = arith.mulf %751, %751 : vector<16x32xf32>
    %cst_295 = arith.constant dense<0.000000e+00> : vector<16xf32>
    %753 = vector.multi_reduction <add>, %752, %cst_295 [1] : vector<16x32xf32> to vector<16xf32>
    %754 = vector.shape_cast %753 : vector<16xf32> to vector<16x1xf32>
    %cst_296 = arith.constant 3.200000e+01 : f32
    %755 = vector.broadcast %cst_296 : f32 to vector<16x1xf32>
    %756 = arith.divf %754, %755 : vector<16x1xf32>
    %757 = vector.broadcast %749 : vector<16x1xf32> to vector<16x32xf32>
    %758 = arith.subf %399, %757 : vector<16x32xf32>
    %cst_297 = arith.constant 9.99999974E-6 : f32
    %759 = vector.broadcast %cst_297 : f32 to vector<16x1xf32>
    %760 = arith.addf %756, %759 : vector<16x1xf32>
    %761 = math.rsqrt %760 : vector<16x1xf32>
    %762 = vector.broadcast %761 : vector<16x1xf32> to vector<16x32xf32>
    %763 = arith.mulf %758, %762 : vector<16x32xf32>
    %764 = vector.broadcast %745 : vector<1x32xf32> to vector<16x32xf32>
    %765 = arith.mulf %763, %764 : vector<16x32xf32>
    %766 = vector.shape_cast %765 : vector<16x32xf32> to vector<2x8x32xf32>
    %c0_298 = arith.constant 0 : index
    %c0_299 = arith.constant 0 : index
    %c0_300 = arith.constant 0 : index
    %767 = vector.load %arg19[%c0_298, %c0_299, %c0_300] : memref<2x8x32xf32, #tpu.memory_space<vmem>>, vector<2x8x32xf32>
    tpu.vector_store %arg19[%c0_298, %c0_299, %c0_300], %766 {strides = array<i32>} : memref<2x8x32xf32, #tpu.memory_space<vmem>>, vector<2x8x32xf32>,
    return
  }
}

</mosaic_0001>

<llo_original>
// kernel: forward.1
$region0: #{forward.1}
  #allocation0 [shape = 'u32[]', space=smem, size = 0x4, offset = 0x4, fixed_abs, tag = 'smem constant byte address 0x4 - core index']
  #allocation1 [shape = 'u32[72,128]{1,0:T(1,128)}', space=vmem, size = 0x9000, scoped, tag = 'internal scratch']
  %s0 = inlined_call_operand.vmem [shape: f32[2,64,32], index: 0, kind: input, shape index: {}]
  %s1 = inlined_call_operand.hbm [shape: f32[2,8,32], index: 1, kind: input, shape index: {}]
  %s2 = inlined_call_operand.hbm [shape: f32[2,16], index: 2, kind: input, shape index: {}]
  %s3 = inlined_call_operand.hbm [shape: f32[4,1,32], index: 3, kind: input, shape index: {}]
  %s4 = inlined_call_operand.hbm [shape: f32[4,1,32], index: 4, kind: input, shape index: {}]
  %s5 = inlined_call_operand.hbm [shape: bf16[4,32,32], index: 5, kind: input, shape index: {}]
  %s6 = inlined_call_operand.vmem [shape: bf16[4,32,64], index: 6, kind: input, shape index: {}]
  %s7 = inlined_call_operand.vmem [shape: bf16[4,32,32], index: 7, kind: input, shape index: {}]
  %s8 = inlined_call_operand.hbm [shape: f32[4,1,32], index: 8, kind: input, shape index: {}]
  %s9 = inlined_call_operand.vmem [shape: bf16[4,32,128], index: 9, kind: input, shape index: {}]
  %s10 = inlined_call_operand.hbm [shape: f32[4,1,128], index: 10, kind: input, shape index: {}]
  %s11 = inlined_call_operand.hbm [shape: bf16[4,128,32], index: 11, kind: input, shape index: {}]
  %s12 = inlined_call_operand.vmem [shape: f32[4,1,32], index: 12, kind: input, shape index: {}]
  %s13 = inlined_call_operand.hbm [shape: bf16[16,448], index: 13, kind: input, shape index: {}]
  %s14 = inlined_call_operand.vmem [shape: f32[1,448], index: 14, kind: input, shape index: {}]
  %s15 = inlined_call_operand.hbm [shape: f32[9,128,32], index: 15, kind: input, shape index: {}]
  %s16 = inlined_call_operand.vmem [shape: f32[1,32], index: 16, kind: input, shape index: {}]
  %s17 = inlined_call_operand.vmem [shape: f32[2,1,32], index: 17, kind: input, shape index: {}]
  %s18 = inlined_call_operand.vmem [shape: f32[2,64,32], index: 18, kind: output, shape index: {0}]
  %s19 = inlined_call_operand.hbm [shape: f32[2,8,32], index: 19, kind: output, shape index: {1}]
  %20 = xla_tuple %s18, %s19
  %s21 = sld [smem:[#allocation0]]
  $region130: #{forward.1} parent=0
    _
  %s23 = ssub.s32 1, %s21
  %s24 = scalar_select 0, %s23, %s21
  $region1: #{forward.1} parent=0
    #allocation2 [shape = 'u8[8192]{0}', space=vmem, size = 0x2000, scoped, tag = 'input window, operand 1, single buffered']
    #allocation3 [shape = 's32[1]{0}', space=sflag, size = 0x4, scoped, tag = 'scoped memory for forward.1']
    #allocation4 [shape = 's32[1]{0}', space=sflag, size = 0x4, scoped, tag = 'scoped memory for forward.1']
    #allocation5 [shape = 'u8[1024]{0}', space=vmem, size = 0x400, scoped, tag = 'input window, operand 2, single buffered']
    #allocation6 [shape = 's32[1]{0}', space=sflag, size = 0x4, scoped, tag = 'scoped memory for forward.1']
    #allocation7 [shape = 'u8[2048]{0}', space=vmem, size = 0x800, scoped, tag = 'input window, operand 3, single buffered']
    #allocation8 [shape = 'u8[2048]{0}', space=vmem, size = 0x800, scoped, tag = 'input window, operand 4, single buffered']
    #allocation9 [shape = 's32[1]{0}', space=sflag, size = 0x4, scoped, tag = 'scoped memory for forward.1']
    #allocation10 [shape = 'u8[32768]{0}', space=vmem, size = 0x8000, scoped, tag = 'input window, operand 5, single buffered']
    #allocation11 [shape = 'u8[2048]{0}', space=vmem, size = 0x800, scoped, tag = 'input window, operand 8, single buffered']
    #allocation12 [shape = 's32[1]{0}', space=sflag, size = 0x4, scoped, tag = 'scoped memory for forward.1']
    #allocation13 [shape = 'u8[2048]{0}', space=vmem, size = 0x800, scoped, tag = 'input window, operand 10, single buffered']
    #allocation14 [shape = 'u8[131072]{0}', space=vmem, size = 0x20000, scoped, tag = 'input window, operand 11, single buffered']
    #allocation15 [shape = 's32[1]{0}', space=sflag, size = 0x4, scoped, tag = 'scoped memory for forward.1']
    #allocation16 [shape = 'u8[16384]{0}', space=vmem, size = 0x4000, scoped, tag = 'input window, operand 13, single buffered']
    #allocation17 [shape = 'u8[589824]{0}', space=vmem, size = 0x90000, scoped, tag = 'input window, operand 15, single buffered']
    #allocation18 [shape = 's32[1]{0}', space=sflag, size = 0x4, scoped, tag = 'scoped memory for forward.1']
    #allocation19 [shape = 'u8[8192]{0}', space=vmem, size = 0x2000, scoped, tag = 'output window, operand 1, single buffered']
    %25 = vsyncpa [#allocation3], 0
    %26 = vsyncpa [#allocation6], 0
    %27 = vsyncpa [#allocation9], 0
    %28 = vsyncpa [#allocation12], 0
    %29 = vsyncpa [#allocation15], 0
    %30 = vsyncpa [#allocation18], 0
    %31 = vsyncpa [#allocation4], 0
    // Predicated region
    $region2: #{forward.1} parent=1 // pred_check
      _
    $region3: #{forward.1} parent=1 // pred_check_branch
      %33 = sbr.rel (0) target = $region5
    $region4: #{forward.1} parent=1 // pred_region
      _
    $region5: #{forward.1} parent=1 // pred_fallthru
      _
    // Predicated region
    $region6: #{forward.1} parent=1 // pred_check
      _
    $region7: #{forward.1} parent=1 // pred_check_branch
      %35 = sbr.rel (0) target = $region9
    $region8: #{forward.1} parent=1 // pred_region
      %37 = vsyncadd [#allocation3], 0
      %s38 = sshll.u32 %s1, 4
      %s39 = int_to_ptr.hbm [resolvable:$true] %s38
      %s40 = sshll.u32 [#allocation2], 4
      %s41 = int_to_ptr.vmem [resolvable:$true] %s40
      %46 = dma.hbm_to_vmem [thread:$0]  %s39, 256, %s41, [#allocation3], 128, 128, 8
    $region9: #{forward.1} parent=1 // pred_fallthru
      _
    // Predicated region
    $region10: #{forward.1} parent=1 // pred_check
      _
    $region11: #{forward.1} parent=1 // pred_check_branch
      %48 = sbr.rel (0) target = $region13
    $region12: #{forward.1} parent=1 // pred_region
      %50 = vsyncadd [#allocation6], 0
      %s52 = sshll.u32 %s2, 4
      %s53 = int_to_ptr.hbm [resolvable:$true] %s52
      %s54 = sshll.u32 [#allocation5], 4
      %s55 = int_to_ptr.vmem [resolvable:$true] %s54
      %57 = dma.hbm_to_vmem [thread:$0]  %s53, 32, %s55, [#allocation6]
    $region13: #{forward.1} parent=1 // pred_fallthru
      _
    // Predicated region
    $region14: #{forward.1} parent=1 // pred_check
      _
    $region15: #{forward.1} parent=1 // pred_check_branch
      %59 = sbr.rel (0) target = $region17
    $region16: #{forward.1} parent=1 // pred_region
      %61 = vsyncadd [#allocation6], 0
      %s62 = sshll.u32 %s3, 4
      %s63 = int_to_ptr.hbm [resolvable:$true] %s62
      %s64 = sshll.u32 [#allocation7], 4
      %s65 = int_to_ptr.vmem [resolvable:$true] %s64
      %70 = dma.hbm_to_vmem [thread:$0]  %s63, 64, %s65, [#allocation6], 16, 16, 1
    $region17: #{forward.1} parent=1 // pred_fallthru
      _
    // Predicated region
    $region18: #{forward.1} parent=1 // pred_check
      _
    $region19: #{forward.1} parent=1 // pred_check_branch
      %72 = sbr.rel (0) target = $region21
    $region20: #{forward.1} parent=1 // pred_region
      %74 = vsyncadd [#allocation9], 0
      %s75 = sshll.u32 %s4, 4
      %s76 = int_to_ptr.hbm [resolvable:$true] %s75
      %s77 = sshll.u32 [#allocation8], 4
      %s78 = int_to_ptr.vmem [resolvable:$true] %s77
      %83 = dma.hbm_to_vmem [thread:$0]  %s76, 64, %s78, [#allocation9], 16, 16, 1
    $region21: #{forward.1} parent=1 // pred_fallthru
      _
    // Predicated region
    $region22: #{forward.1} parent=1 // pred_check
      _
    $region23: #{forward.1} parent=1 // pred_check_branch
      %85 = sbr.rel (0) target = $region25
    $region24: #{forward.1} parent=1 // pred_region
      %87 = vsyncadd [#allocation9], 0
      %s88 = sshll.u32 %s5, 4
      %s89 = int_to_ptr.hbm [resolvable:$true] %s88
      %s90 = sshll.u32 [#allocation10], 4
      %s91 = int_to_ptr.vmem [resolvable:$true] %s90
      %96 = dma.hbm_to_vmem [thread:$0]  %s89, 1024, %s91, [#allocation9], 64, 64, 4
    $region25: #{forward.1} parent=1 // pred_fallthru
      _
    // Predicated region
    $region26: #{forward.1} parent=1 // pred_check
      _
    $region27: #{forward.1} parent=1 // pred_check_branch
      %98 = sbr.rel (0) target = $region29
    $region28: #{forward.1} parent=1 // pred_region
      _
    $region29: #{forward.1} parent=1 // pred_fallthru
      _
    // Predicated region
    $region30: #{forward.1} parent=1 // pred_check
      _
    $region31: #{forward.1} parent=1 // pred_check_branch
      %100 = sbr.rel (0) target = $region33
    $region32: #{forward.1} parent=1 // pred_region
      _
    $region33: #{forward.1} parent=1 // pred_fallthru
      _
    // Predicated region
    $region34: #{forward.1} parent=1 // pred_check
      _
    $region35: #{forward.1} parent=1 // pred_check_branch
      %102 = sbr.rel (0) target = $region37
    $region36: #{forward.1} parent=1 // pred_region
      %104 = vsyncadd [#allocation12], 0
      %s105 = sshll.u32 %s8, 4
      %s106 = int_to_ptr.hbm [resolvable:$true] %s105
      %s107 = sshll.u32 [#allocation11], 4
      %s108 = int_to_ptr.vmem [resolvable:$true] %s107
      %113 = dma.hbm_to_vmem [thread:$0]  %s106, 64, %s108, [#allocation12], 16, 16, 1
    $region37: #{forward.1} parent=1 // pred_fallthru
      _
    // Predicated region
    $region38: #{forward.1} parent=1 // pred_check
      _
    $region39: #{forward.1} parent=1 // pred_check_branch
      %115 = sbr.rel (0) target = $region41
    $region40: #{forward.1} parent=1 // pred_region
      _
    $region41: #{forward.1} parent=1 // pred_fallthru
      _
    // Predicated region
    $region42: #{forward.1} parent=1 // pred_check
      _
    $region43: #{forward.1} parent=1 // pred_check_branch
      %117 = sbr.rel (0) target = $region45
    $region44: #{forward.1} parent=1 // pred_region
      %119 = vsyncadd [#allocation12], 0
      %s120 = sshll.u32 %s10, 4
      %s121 = int_to_ptr.hbm [resolvable:$true] %s120
      %s122 = sshll.u32 [#allocation13], 4
      %s123 = int_to_ptr.vmem [resolvable:$true] %s122
      %128 = dma.hbm_to_vmem [thread:$0]  %s121, 64, %s123, [#allocation12], 16, 16, 1
    $region45: #{forward.1} parent=1 // pred_fallthru
      _
    // Predicated region
    $region46: #{forward.1} parent=1 // pred_check
      _
    $region47: #{forward.1} parent=1 // pred_check_branch
      %130 = sbr.rel (0) target = $region49
    $region48: #{forward.1} parent=1 // pred_region
      %132 = vsyncadd [#allocation15], 0
      %s133 = sshll.u32 %s11, 4
      %s134 = int_to_ptr.hbm [resolvable:$true] %s133
      %s135 = sshll.u32 [#allocation14], 4
      %s136 = int_to_ptr.vmem [resolvable:$true] %s135
      %141 = dma.hbm_to_vmem [thread:$0]  %s134, 4096, %s136, [#allocation15], 64, 64, 4
    $region49: #{forward.1} parent=1 // pred_fallthru
      _
    // Predicated region
    $region50: #{forward.1} parent=1 // pred_check
      _
    $region51: #{forward.1} parent=1 // pred_check_branch
      %143 = sbr.rel (0) target = $region53
    $region52: #{forward.1} parent=1 // pred_region
      _
    $region53: #{forward.1} parent=1 // pred_fallthru
      _
    // Predicated region
    $region54: #{forward.1} parent=1 // pred_check
      _
    $region55: #{forward.1} parent=1 // pred_check_branch
      %145 = sbr.rel (0) target = $region57
    $region56: #{forward.1} parent=1 // pred_region
      %147 = vsyncadd [#allocation15], 0
      %s148 = sshll.u32 %s13, 4
      %s149 = int_to_ptr.hbm [resolvable:$true] %s148
      %s150 = sshll.u32 [#allocation16], 4
      %s151 = int_to_ptr.vmem [resolvable:$true] %s150
      %156 = dma.hbm_to_vmem [thread:$0]  %s149, 512, %s151, [#allocation15], 256, 256, 16
    $region57: #{forward.1} parent=1 // pred_fallthru
      _
    // Predicated region
    $region58: #{forward.1} parent=1 // pred_check
      _
    $region59: #{forward.1} parent=1 // pred_check_branch
      %158 = sbr.rel (0) target = $region61
    $region60: #{forward.1} parent=1 // pred_region
      _
    $region61: #{forward.1} parent=1 // pred_fallthru
      _
    // Predicated region
    $region62: #{forward.1} parent=1 // pred_check
      _
    $region63: #{forward.1} parent=1 // pred_check_branch
      %160 = sbr.rel (0) target = $region65
    $region64: #{forward.1} parent=1 // pred_region
      %162 = vsyncadd [#allocation18], 0
      %s163 = sshll.u32 %s15, 4
      %s164 = int_to_ptr.hbm [resolvable:$true] %s163
      %s165 = sshll.u32 [#allocation17], 4
      %s166 = int_to_ptr.vmem [resolvable:$true] %s165
      %171 = dma.hbm_to_vmem [thread:$0]  %s164, 18432, %s166, [#allocation18], 128, 128, 8
    $region65: #{forward.1} parent=1 // pred_fallthru
      _
    // Predicated region
    $region66: #{forward.1} parent=1 // pred_check
      _
    $region67: #{forward.1} parent=1 // pred_check_branch
      %173 = sbr.rel (0) target = $region69
    $region68: #{forward.1} parent=1 // pred_region
      _
    $region69: #{forward.1} parent=1 // pred_fallthru
      _
    // Predicated region
    $region70: #{forward.1} parent=1 // pred_check
      _
    $region71: #{forward.1} parent=1 // pred_check_branch
      %175 = sbr.rel (0) target = $region73
    $region72: #{forward.1} parent=1 // pred_region
      _
    $region73: #{forward.1} parent=1 // pred_fallthru
      _
    // Predicated region
    $region74: #{forward.1} parent=1 // pred_check
      _
    $region75: #{forward.1} parent=1 // pred_check_branch
      %177 = sbr.rel (0) target = $region77
    $region76: #{forward.1} parent=1 // pred_region
      %179 = dma.done [#allocation3], 256
    $region77: #{forward.1} parent=1 // pred_fallthru
      _
    // Predicated region
    $region78: #{forward.1} parent=1 // pred_check
      _
    $region79: #{forward.1} parent=1 // pred_check_branch
      %181 = sbr.rel (0) target = $region81
    $region80: #{forward.1} parent=1 // pred_region
      %183 = dma.done [#allocation6], 32
    $region81: #{forward.1} parent=1 // pred_fallthru
      _
    // Predicated region
    $region82: #{forward.1} parent=1 // pred_check
      _
    $region83: #{forward.1} parent=1 // pred_check_branch
      %185 = sbr.rel (0) target = $region85
    $region84: #{forward.1} parent=1 // pred_region
      %187 = dma.done [#allocation6], 64
    $region85: #{forward.1} parent=1 // pred_fallthru
      _
    // Predicated region
    $region86: #{forward.1} parent=1 // pred_check
      _
    $region87: #{forward.1} parent=1 // pred_check_branch
      %189 = sbr.rel (0) target = $region89
    $region88: #{forward.1} parent=1 // pred_region
      %191 = dma.done [#allocation9], 64
    $region89: #{forward.1} parent=1 // pred_fallthru
      _
    // Predicated region
    $region90: #{forward.1} parent=1 // pred_check
      _
    $region91: #{forward.1} parent=1 // pred_check_branch
      %193 = sbr.rel (0) target = $region93
    $region92: #{forward.1} parent=1 // pred_region
      %195 = dma.done [#allocation9], 1024
    $region93: #{forward.1} parent=1 // pred_fallthru
      _
    // Predicated region
    $region94: #{forward.1} parent=1 // pred_check
      _
    $region95: #{forward.1} parent=1 // pred_check_branch
      %197 = sbr.rel (0) target = $region97
    $region96: #{forward.1} parent=1 // pred_region
      %199 = dma.done [#allocation12], 64
    $region97: #{forward.1} parent=1 // pred_fallthru
      _
    // Predicated region
    $region98: #{forward.1} parent=1 // pred_check
      _
    $region99: #{forward.1} parent=1 // pred_check_branch
      %201 = sbr.rel (0) target = $region101
    $region100: #{forward.1} parent=1 // pred_region
      %203 = dma.done [#allocation12], 64
    $region101: #{forward.1} parent=1 // pred_fallthru
      _
    // Predicated region
    $region102: #{forward.1} parent=1 // pred_check
      _
    $region103: #{forward.1} parent=1 // pred_check_branch
      %205 = sbr.rel (0) target = $region105
    $region104: #{forward.1} parent=1 // pred_region
      %207 = dma.done [#allocation15], 4096
    $region105: #{forward.1} parent=1 // pred_fallthru
      _
    // Predicated region
    $region106: #{forward.1} parent=1 // pred_check
      _
    $region107: #{forward.1} parent=1 // pred_check_branch
      %209 = sbr.rel (0) target = $region109
    $region108: #{forward.1} parent=1 // pred_region
      %211 = dma.done [#allocation15], 512
    $region109: #{forward.1} parent=1 // pred_fallthru
      _
    // Predicated region
    $region110: #{forward.1} parent=1 // pred_check
      _
    $region111: #{forward.1} parent=1 // pred_check_branch
      %213 = sbr.rel (0) target = $region113
    $region112: #{forward.1} parent=1 // pred_region
      %215 = dma.done [#allocation18], 18432
    $region113: #{forward.1} parent=1 // pred_fallthru
      _
    %v217 = vld [vmem:[%s0] sm:$0xff]
    %v218 = vld [vmem:[%s0 + $0x8] sm:$0xff]
    %v219 = vld [vmem:[%s0 + $0x10] sm:$0xff]
    %v220 = vld [vmem:[%s0 + $0x18] sm:$0xff]
    %v221 = vld [vmem:[%s0 + $0x20] sm:$0xff]
    %v222 = vld [vmem:[%s0 + $0x28] sm:$0xff]
    %v223 = vld [vmem:[%s0 + $0x30] sm:$0xff]
    %v224 = vld [vmem:[%s0 + $0x38] sm:$0xff]
    %v225 = vld [vmem:[%s0 + $0x40] sm:$0xff]
    %v226 = vld [vmem:[%s0 + $0x48] sm:$0xff]
    %v227 = vld [vmem:[%s0 + $0x50] sm:$0xff]
    %v228 = vld [vmem:[%s0 + $0x58] sm:$0xff]
    %v229 = vld [vmem:[%s0 + $0x60] sm:$0xff]
    %v230 = vld [vmem:[%s0 + $0x68] sm:$0xff]
    %v231 = vld [vmem:[%s0 + $0x70] sm:$0xff]
    %v232 = vld [vmem:[%s0 + $0x78] sm:$0xff]
    %v233 = vld [vmem:[#allocation2] sm:$0xff]
    %v234 = vld [vmem:[#allocation2 + $0x8] sm:$0xff]
    %v235 = vld [vmem:[#allocation5] sm:$0x3]
    %v236 = vsub.f32 0.0, %v235
    %v237 = vmul.f32 %v236, 1.442695
    %v238 = vpow.pop %v237
    %v239 = vadd.f32 %v238, 1.0
    %v240 = vrcp.pop %v239
    %v241 = vmul.f32 %v239, %v240
    %v242 = vsub.f32 1.0, %v241
    %v243 = vmul.f32 %v240, %v242
    %v244 = vadd.f32 %v240, %v243
    %vm245 = vweird.f32 %v239
    %vm246 = vweird.f32 %v240
    %vm247 = vmor %vm245, %vm246
    %v248 = vsel %vm247, %v240, %v244
    %v249 = vand.u32 2147483647, %v239
    %vm250 = vcmp.eq.f32.partialorder %v249, 8.507059e+37
    %v251 = vand.u32 %v239, 2147483648
    %v252 = vor.u32 1.1754944e-38, %v251
    %v253 = vsel %vm250, %v252, %v248
    %v254 = vmul.f32 1.0, %v253
    %v255 = vmul.f32 %v235, %v254
    %v256 = vld [vmem:[#allocation16] sm:$0xff]
    %v257 = vld [vmem:[#allocation16 + $0x8] sm:$0xff]
    %v258 = vld [vmem:[#allocation16 + $0x10] sm:$0xff]
    %v259 = vld [vmem:[#allocation16 + $0x18] sm:$0xff]
    %v260 = vpack.c.bf16 %v255, %v255
    %v261 = vld [vmem:[%s14] sm:$0xf]
    %v263 = vperm.slane %v261, 0
    %v264 = vperm.slane %v261, 1
    %v265 = vperm.slane %v261, 2
    %v266 = vperm.slane %v261, 3
    %v275 = vunpack.c.l.b16 %v256
    %v276 = vunpack.c.h.b16 %v256
    %v277 = vunpack.c.l.b16 %v257
    %v278 = vunpack.c.h.b16 %v257
    %v279 = vunpack.c.l.b16 %v258
    %v280 = vunpack.c.h.b16 %v258
    %v281 = vunpack.c.l.b16 %v259
    %v282 = vunpack.c.h.b16 %v259
    %v283 = vpack.c.b16 %v279, %v275
    %v284 = vpack.c.b16 %v280, %v276
    %v285 = vpack.c.b16 %v281, %v277
    %v286 = vpack.c.b16 %v282, %v278
    %vm291 = vcmask 130048
    %v293 = vsel %vm291, %v260, 0
    %295 = vmatpush.bf16.msra.mxu0 0
    %296 = vmatpush.bf16.msra.mxu0 0
    %297 = vmatpush.bf16.msra.mxu0 0
    %298 = vmatpush.bf16.msra.mxu0 0
    %299 = vmatpush.bf16.msra.mxu0 0
    %300 = vmatpush.bf16.msra.mxu0 0
    %301 = vmatpush.bf16.msra.mxu0 0
    %302 = vmatpush.bf16.msra.mxu0 %v283
    %303 = vmatmul.bf16.gmra.mxu0 %v293
    %v304 = vpop.f32.mrf.mxu0
    %v305 = vadd.f32 %v263, %v304
    %v306 = vpop.f32.mrf.mxu0
    %307 = vdwg.mxu0
    %308 = vmatpush.bf16.msra.mxu0 0
    %309 = vmatpush.bf16.msra.mxu0 0
    %310 = vmatpush.bf16.msra.mxu0 0
    %311 = vmatpush.bf16.msra.mxu0 0
    %312 = vmatpush.bf16.msra.mxu0 0
    %313 = vmatpush.bf16.msra.mxu0 0
    %314 = vmatpush.bf16.msra.mxu0 0
    %315 = vmatpush.bf16.msra.mxu0 %v284
    %316 = vmatmul.bf16.gmra.mxu0 %v293
    %v317 = vpop.f32.mrf.mxu0
    %v318 = vadd.f32 %v264, %v317
    %v319 = vpop.f32.mrf.mxu0
    %320 = vdwg.mxu0
    %321 = vmatpush.bf16.msra.mxu0 0
    %322 = vmatpush.bf16.msra.mxu0 0
    %323 = vmatpush.bf16.msra.mxu0 0
    %324 = vmatpush.bf16.msra.mxu0 0
    %325 = vmatpush.bf16.msra.mxu0 0
    %326 = vmatpush.bf16.msra.mxu0 0
    %327 = vmatpush.bf16.msra.mxu0 0
    %328 = vmatpush.bf16.msra.mxu0 %v285
    %329 = vmatmul.bf16.gmra.mxu0 %v293
    %v330 = vpop.f32.mrf.mxu0
    %v331 = vadd.f32 %v265, %v330
    %v332 = vpop.f32.mrf.mxu0
    %333 = vdwg.mxu0
    %334 = vmatpush.bf16.msra.mxu0 0
    %335 = vmatpush.bf16.msra.mxu0 0
    %336 = vmatpush.bf16.msra.mxu0 0
    %337 = vmatpush.bf16.msra.mxu0 0
    %338 = vmatpush.bf16.msra.mxu0 0
    %339 = vmatpush.bf16.msra.mxu0 0
    %340 = vmatpush.bf16.msra.mxu0 0
    %341 = vmatpush.bf16.msra.mxu0 %v286
    %342 = vmatmul.bf16.gmra.mxu0 %v293
    %v343 = vpop.f32.mrf.mxu0
    %v344 = vadd.f32 %v266, %v343
    %v345 = vpop.f32.mrf.mxu0
    %346 = vdwg.mxu0
    %v347 = vld [vmem:[%s16] sm:$0x1]
    %v349 = vperm.slane %v347, 0
    %v351 = vadd.f32 %v349, 0.0
    %v352 = vrot.slane %v217, 7
    %v353 = vrot.slane %v218, 7
    %v354 = vrot.slane %v219, 7
    %v355 = vrot.slane %v220, 7
    %v356 = vrot.slane %v221, 7
    %v357 = vrot.slane %v222, 7
    %v358 = vrot.slane %v223, 7
    %v359 = vrot.slane %v224, 7
    %v360 = vrot.slane %v225, 7
    %v361 = vrot.slane %v226, 7
    %v362 = vrot.slane %v227, 7
    %v363 = vrot.slane %v228, 7
    %v364 = vrot.slane %v229, 7
    %v365 = vrot.slane %v230, 7
    %v366 = vrot.slane %v231, 7
    %v367 = vrot.slane %v232, 7
    %v368 = vlaneseq
    %v369 = vshrl.u32 %v368, 7
    %vm370 = vcmp.lt.s32.totalorder %v369, 1
    %v371 = vsel %vm370, %v366, %v367
    %v372 = vsel %vm370, %v365, %v366
    %v373 = vsel %vm370, %v364, %v365
    %v374 = vsel %vm370, %v363, %v364
    %v375 = vsel %vm370, %v362, %v363
    %v376 = vsel %vm370, %v361, %v362
    %v377 = vsel %vm370, %v360, %v361
    %v378 = vsel %vm370, %v359, %v360
    %v379 = vsel %vm370, %v358, %v359
    %v380 = vsel %vm370, %v357, %v358
    %v381 = vsel %vm370, %v356, %v357
    %v382 = vsel %vm370, %v355, %v356
    %v383 = vsel %vm370, %v354, %v355
    %v384 = vsel %vm370, %v353, %v354
    %v385 = vsel %vm370, %v352, %v353
    %v386 = vsel %vm370, %v367, %v352
    %v387 = vld [vmem:[#allocation17] sm:$0xff]
    %v388 = vld [vmem:[#allocation17 + $0x8] sm:$0xff]
    %v389 = vld [vmem:[#allocation17 + $0x10] sm:$0xff]
    %v390 = vld [vmem:[#allocation17 + $0x18] sm:$0xff]
    %v391 = vld [vmem:[#allocation17 + $0x20] sm:$0xff]
    %v392 = vld [vmem:[#allocation17 + $0x28] sm:$0xff]
    %v393 = vld [vmem:[#allocation17 + $0x30] sm:$0xff]
    %v394 = vld [vmem:[#allocation17 + $0x38] sm:$0xff]
    %v395 = vld [vmem:[#allocation17 + $0x40] sm:$0xff]
    %v396 = vld [vmem:[#allocation17 + $0x48] sm:$0xff]
    %v397 = vld [vmem:[#allocation17 + $0x50] sm:$0xff]
    %v398 = vld [vmem:[#allocation17 + $0x58] sm:$0xff]
    %v399 = vld [vmem:[#allocation17 + $0x60] sm:$0xff]
    %v400 = vld [vmem:[#allocation17 + $0x68] sm:$0xff]
    %v401 = vld [vmem:[#allocation17 + $0x70] sm:$0xff]
    %v402 = vld [vmem:[#allocation17 + $0x78] sm:$0xff]
    %v403 = vmul.f32 %v371, %v387
    %v404 = vmul.f32 %v386, %v388
    %v405 = vmul.f32 %v385, %v389
    %v406 = vmul.f32 %v384, %v390
    %v407 = vmul.f32 %v383, %v391
    %v408 = vmul.f32 %v382, %v392
    %v409 = vmul.f32 %v381, %v393
    %v410 = vmul.f32 %v380, %v394
    %v411 = vmul.f32 %v379, %v395
    %v412 = vmul.f32 %v378, %v396
    %v413 = vmul.f32 %v377, %v397
    %v414 = vmul.f32 %v376, %v398
    %v415 = vmul.f32 %v375, %v399
    %v416 = vmul.f32 %v374, %v400
    %v417 = vmul.f32 %v373, %v401
    %v418 = vmul.f32 %v372, %v402
    %v419 = vadd.f32 %v351, %v403
    %v420 = vadd.f32 %v351, %v404
    %v421 = vadd.f32 %v351, %v405
    %v422 = vadd.f32 %v351, %v406
    %v423 = vadd.f32 %v351, %v407
    %v424 = vadd.f32 %v351, %v408
    %v425 = vadd.f32 %v351, %v409
    %v426 = vadd.f32 %v351, %v410
    %v427 = vadd.f32 %v351, %v411
    %v428 = vadd.f32 %v351, %v412
    %v429 = vadd.f32 %v351, %v413
    %v430 = vadd.f32 %v351, %v414
    %v431 = vadd.f32 %v351, %v415
    %v432 = vadd.f32 %v351, %v416
    %v433 = vadd.f32 %v351, %v417
    %v434 = vadd.f32 %v351, %v418
    %s435 = scalar_lea.vmem [#allocation17], 128
    %v436 = vld [vmem:[%s435] sm:$0xff]
    %v437 = vld [vmem:[%s435 + $0x8] sm:$0xff]
    %v438 = vld [vmem:[%s435 + $0x10] sm:$0xff]
    %v439 = vld [vmem:[%s435 + $0x18] sm:$0xff]
    %v440 = vld [vmem:[%s435 + $0x20] sm:$0xff]
    %v441 = vld [vmem:[%s435 + $0x28] sm:$0xff]
    %v442 = vld [vmem:[%s435 + $0x30] sm:$0xff]
    %v443 = vld [vmem:[%s435 + $0x38] sm:$0xff]
    %v444 = vld [vmem:[%s435 + $0x40] sm:$0xff]
    %v445 = vld [vmem:[%s435 + $0x48] sm:$0xff]
    %v446 = vld [vmem:[%s435 + $0x50] sm:$0xff]
    %v447 = vld [vmem:[%s435 + $0x58] sm:$0xff]
    %v448 = vld [vmem:[%s435 + $0x60] sm:$0xff]
    %v449 = vld [vmem:[%s435 + $0x68] sm:$0xff]
    %v450 = vld [vmem:[%s435 + $0x70] sm:$0xff]
    %v451 = vld [vmem:[%s435 + $0x78] sm:$0xff]
    %v452 = vmul.f32 %v232, %v436
    %v453 = vmul.f32 %v217, %v437
    %v454 = vmul.f32 %v218, %v438
    %v455 = vmul.f32 %v219, %v439
    %v456 = vmul.f32 %v220, %v440
    %v457 = vmul.f32 %v221, %v441
    %v458 = vmul.f32 %v222, %v442
    %v459 = vmul.f32 %v223, %v443
    %v460 = vmul.f32 %v224, %v444
    %v461 = vmul.f32 %v225, %v445
    %v462 = vmul.f32 %v226, %v446
    %v463 = vmul.f32 %v227, %v447
    %v464 = vmul.f32 %v228, %v448
    %v465 = vmul.f32 %v229, %v449
    %v466 = vmul.f32 %v230, %v450
    %v467 = vmul.f32 %v231, %v451
    %v468 = vadd.f32 %v419, %v452
    %v469 = vadd.f32 %v420, %v453
    %v470 = vadd.f32 %v421, %v454
    %v471 = vadd.f32 %v422, %v455
    %v472 = vadd.f32 %v423, %v456
    %v473 = vadd.f32 %v424, %v457
    %v474 = vadd.f32 %v425, %v458
    %v475 = vadd.f32 %v426, %v459
    %v476 = vadd.f32 %v427, %v460
    %v477 = vadd.f32 %v428, %v461
    %v478 = vadd.f32 %v429, %v462
    %v479 = vadd.f32 %v430, %v463
    %v480 = vadd.f32 %v431, %v464
    %v481 = vadd.f32 %v432, %v465
    %v482 = vadd.f32 %v433, %v466
    %v483 = vadd.f32 %v434, %v467
    %v484 = vrot.slane %v217, 1
    %v485 = vrot.slane %v218, 1
    %v486 = vrot.slane %v219, 1
    %v487 = vrot.slane %v220, 1
    %v488 = vrot.slane %v221, 1
    %v489 = vrot.slane %v222, 1
    %v490 = vrot.slane %v223, 1
    %v491 = vrot.slane %v224, 1
    %v492 = vrot.slane %v225, 1
    %v493 = vrot.slane %v226, 1
    %v494 = vrot.slane %v227, 1
    %v495 = vrot.slane %v228, 1
    %v496 = vrot.slane %v229, 1
    %v497 = vrot.slane %v230, 1
    %v498 = vrot.slane %v231, 1
    %v499 = vrot.slane %v232, 1
    %vm500 = vcmp.lt.s32.totalorder %v369, 7
    %v501 = vsel %vm500, %v498, %v499
    %v502 = vsel %vm500, %v497, %v498
    %v503 = vsel %vm500, %v496, %v497
    %v504 = vsel %vm500, %v495, %v496
    %v505 = vsel %vm500, %v494, %v495
    %v506 = vsel %vm500, %v493, %v494
    %v507 = vsel %vm500, %v492, %v493
    %v508 = vsel %vm500, %v491, %v492
    %v509 = vsel %vm500, %v490, %v491
    %v510 = vsel %vm500, %v489, %v490
    %v511 = vsel %vm500, %v488, %v489
    %v512 = vsel %vm500, %v487, %v488
    %v513 = vsel %vm500, %v486, %v487
    %v514 = vsel %vm500, %v485, %v486
    %v515 = vsel %vm500, %v484, %v485
    %v516 = vsel %vm500, %v499, %v484
    %s517 = scalar_lea.vmem [#allocation17], 256
    %v518 = vld [vmem:[%s517] sm:$0xff]
    %v519 = vld [vmem:[%s517 + $0x8] sm:$0xff]
    %v520 = vld [vmem:[%s517 + $0x10] sm:$0xff]
    %v521 = vld [vmem:[%s517 + $0x18] sm:$0xff]
    %v522 = vld [vmem:[%s517 + $0x20] sm:$0xff]
    %v523 = vld [vmem:[%s517 + $0x28] sm:$0xff]
    %v524 = vld [vmem:[%s517 + $0x30] sm:$0xff]
    %v525 = vld [vmem:[%s517 + $0x38] sm:$0xff]
    %v526 = vld [vmem:[%s517 + $0x40] sm:$0xff]
    %v527 = vld [vmem:[%s517 + $0x48] sm:$0xff]
    %v528 = vld [vmem:[%s517 + $0x50] sm:$0xff]
    %v529 = vld [vmem:[%s517 + $0x58] sm:$0xff]
    %v530 = vld [vmem:[%s517 + $0x60] sm:$0xff]
    %v531 = vld [vmem:[%s517 + $0x68] sm:$0xff]
    %v532 = vld [vmem:[%s517 + $0x70] sm:$0xff]
    %v533 = vld [vmem:[%s517 + $0x78] sm:$0xff]
    %v534 = vmul.f32 %v516, %v518
    %v535 = vmul.f32 %v515, %v519
    %v536 = vmul.f32 %v514, %v520
    %v537 = vmul.f32 %v513, %v521
    %v538 = vmul.f32 %v512, %v522
    %v539 = vmul.f32 %v511, %v523
    %v540 = vmul.f32 %v510, %v524
    %v541 = vmul.f32 %v509, %v525
    %v542 = vmul.f32 %v508, %v526
    %v543 = vmul.f32 %v507, %v527
    %v544 = vmul.f32 %v506, %v528
    %v545 = vmul.f32 %v505, %v529
    %v546 = vmul.f32 %v504, %v530
    %v547 = vmul.f32 %v503, %v531
    %v548 = vmul.f32 %v502, %v532
    %v549 = vmul.f32 %v501, %v533
    %v550 = vadd.f32 %v468, %v534
    %v551 = vadd.f32 %v469, %v535
    %v552 = vadd.f32 %v470, %v536
    %v553 = vadd.f32 %v471, %v537
    %v554 = vadd.f32 %v472, %v538
    %v555 = vadd.f32 %v473, %v539
    %v556 = vadd.f32 %v474, %v540
    %v557 = vadd.f32 %v475, %v541
    %v558 = vadd.f32 %v476, %v542
    %v559 = vadd.f32 %v477, %v543
    %v560 = vadd.f32 %v478, %v544
    %v561 = vadd.f32 %v479, %v545
    %v562 = vadd.f32 %v480, %v546
    %v563 = vadd.f32 %v481, %v547
    %v564 = vadd.f32 %v482, %v548
    %v565 = vadd.f32 %v483, %v549
    %s566 = scalar_lea.vmem [#allocation17], 384
    %v567 = vld [vmem:[%s566] sm:$0xff]
    %v568 = vld [vmem:[%s566 + $0x8] sm:$0xff]
    %v569 = vld [vmem:[%s566 + $0x10] sm:$0xff]
    %v570 = vld [vmem:[%s566 + $0x18] sm:$0xff]
    %v571 = vld [vmem:[%s566 + $0x20] sm:$0xff]
    %v572 = vld [vmem:[%s566 + $0x28] sm:$0xff]
    %v573 = vld [vmem:[%s566 + $0x30] sm:$0xff]
    %v574 = vld [vmem:[%s566 + $0x38] sm:$0xff]
    %v575 = vld [vmem:[%s566 + $0x40] sm:$0xff]
    %v576 = vld [vmem:[%s566 + $0x48] sm:$0xff]
    %v577 = vld [vmem:[%s566 + $0x50] sm:$0xff]
    %v578 = vld [vmem:[%s566 + $0x58] sm:$0xff]
    %v579 = vld [vmem:[%s566 + $0x60] sm:$0xff]
    %v580 = vld [vmem:[%s566 + $0x68] sm:$0xff]
    %v581 = vld [vmem:[%s566 + $0x70] sm:$0xff]
    %v582 = vld [vmem:[%s566 + $0x78] sm:$0xff]
    %v583 = vmul.f32 %v386, %v567
    %v584 = vmul.f32 %v385, %v568
    %v585 = vmul.f32 %v384, %v569
    %v586 = vmul.f32 %v383, %v570
    %v587 = vmul.f32 %v382, %v571
    %v588 = vmul.f32 %v381, %v572
    %v589 = vmul.f32 %v380, %v573
    %v590 = vmul.f32 %v379, %v574
    %v591 = vmul.f32 %v378, %v575
    %v592 = vmul.f32 %v377, %v576
    %v593 = vmul.f32 %v376, %v577
    %v594 = vmul.f32 %v375, %v578
    %v595 = vmul.f32 %v374, %v579
    %v596 = vmul.f32 %v373, %v580
    %v597 = vmul.f32 %v372, %v581
    %v598 = vmul.f32 %v371, %v582
    %v599 = vadd.f32 %v550, %v583
    %v600 = vadd.f32 %v551, %v584
    %v601 = vadd.f32 %v552, %v585
    %v602 = vadd.f32 %v553, %v586
    %v603 = vadd.f32 %v554, %v587
    %v604 = vadd.f32 %v555, %v588
    %v605 = vadd.f32 %v556, %v589
    %v606 = vadd.f32 %v557, %v590
    %v607 = vadd.f32 %v558, %v591
    %v608 = vadd.f32 %v559, %v592
    %v609 = vadd.f32 %v560, %v593
    %v610 = vadd.f32 %v561, %v594
    %v611 = vadd.f32 %v562, %v595
    %v612 = vadd.f32 %v563, %v596
    %v613 = vadd.f32 %v564, %v597
    %v614 = vadd.f32 %v565, %v598
    %s615 = scalar_lea.vmem [#allocation17], 512
    %v616 = vld [vmem:[%s615] sm:$0xff]
    %v617 = vld [vmem:[%s615 + $0x8] sm:$0xff]
    %v618 = vld [vmem:[%s615 + $0x10] sm:$0xff]
    %v619 = vld [vmem:[%s615 + $0x18] sm:$0xff]
    %v620 = vld [vmem:[%s615 + $0x20] sm:$0xff]
    %v621 = vld [vmem:[%s615 + $0x28] sm:$0xff]
    %v622 = vld [vmem:[%s615 + $0x30] sm:$0xff]
    %v623 = vld [vmem:[%s615 + $0x38] sm:$0xff]
    %v624 = vld [vmem:[%s615 + $0x40] sm:$0xff]
    %v625 = vld [vmem:[%s615 + $0x48] sm:$0xff]
    %v626 = vld [vmem:[%s615 + $0x50] sm:$0xff]
    %v627 = vld [vmem:[%s615 + $0x58] sm:$0xff]
    %v628 = vld [vmem:[%s615 + $0x60] sm:$0xff]
    %v629 = vld [vmem:[%s615 + $0x68] sm:$0xff]
    %v630 = vld [vmem:[%s615 + $0x70] sm:$0xff]
    %v631 = vld [vmem:[%s615 + $0x78] sm:$0xff]
    %v632 = vmul.f32 %v217, %v616
    %v633 = vmul.f32 %v218, %v617
    %v634 = vmul.f32 %v219, %v618
    %v635 = vmul.f32 %v220, %v619
    %v636 = vmul.f32 %v221, %v620
    %v637 = vmul.f32 %v222, %v621
    %v638 = vmul.f32 %v223, %v622
    %v639 = vmul.f32 %v224, %v623
    %v640 = vmul.f32 %v225, %v624
    %v641 = vmul.f32 %v226, %v625
    %v642 = vmul.f32 %v227, %v626
    %v643 = vmul.f32 %v228, %v627
    %v644 = vmul.f32 %v229, %v628
    %v645 = vmul.f32 %v230, %v629
    %v646 = vmul.f32 %v231, %v630
    %v647 = vmul.f32 %v232, %v631
    %v648 = vadd.f32 %v599, %v632
    %v649 = vadd.f32 %v600, %v633
    %v650 = vadd.f32 %v601, %v634
    %v651 = vadd.f32 %v602, %v635
    %v652 = vadd.f32 %v603, %v636
    %v653 = vadd.f32 %v604, %v637
    %v654 = vadd.f32 %v605, %v638
    %v655 = vadd.f32 %v606, %v639
    %v656 = vadd.f32 %v607, %v640
    %v657 = vadd.f32 %v608, %v641
    %v658 = vadd.f32 %v609, %v642
    %v659 = vadd.f32 %v610, %v643
    %v660 = vadd.f32 %v611, %v644
    %v661 = vadd.f32 %v612, %v645
    %v662 = vadd.f32 %v613, %v646
    %v663 = vadd.f32 %v614, %v647
    %s664 = scalar_lea.vmem [#allocation17], 640
    %v665 = vld [vmem:[%s664] sm:$0xff]
    %v666 = vld [vmem:[%s664 + $0x8] sm:$0xff]
    %v667 = vld [vmem:[%s664 + $0x10] sm:$0xff]
    %v668 = vld [vmem:[%s664 + $0x18] sm:$0xff]
    %v669 = vld [vmem:[%s664 + $0x20] sm:$0xff]
    %v670 = vld [vmem:[%s664 + $0x28] sm:$0xff]
    %v671 = vld [vmem:[%s664 + $0x30] sm:$0xff]
    %v672 = vld [vmem:[%s664 + $0x38] sm:$0xff]
    %v673 = vld [vmem:[%s664 + $0x40] sm:$0xff]
    %v674 = vld [vmem:[%s664 + $0x48] sm:$0xff]
    %v675 = vld [vmem:[%s664 + $0x50] sm:$0xff]
    %v676 = vld [vmem:[%s664 + $0x58] sm:$0xff]
    %v677 = vld [vmem:[%s664 + $0x60] sm:$0xff]
    %v678 = vld [vmem:[%s664 + $0x68] sm:$0xff]
    %v679 = vld [vmem:[%s664 + $0x70] sm:$0xff]
    %v680 = vld [vmem:[%s664 + $0x78] sm:$0xff]
    %v681 = vmul.f32 %v515, %v665
    %v682 = vmul.f32 %v514, %v666
    %v683 = vmul.f32 %v513, %v667
    %v684 = vmul.f32 %v512, %v668
    %v685 = vmul.f32 %v511, %v669
    %v686 = vmul.f32 %v510, %v670
    %v687 = vmul.f32 %v509, %v671
    %v688 = vmul.f32 %v508, %v672
    %v689 = vmul.f32 %v507, %v673
    %v690 = vmul.f32 %v506, %v674
    %v691 = vmul.f32 %v505, %v675
    %v692 = vmul.f32 %v504, %v676
    %v693 = vmul.f32 %v503, %v677
    %v694 = vmul.f32 %v502, %v678
    %v695 = vmul.f32 %v501, %v679
    %v696 = vmul.f32 %v516, %v680
    %v697 = vadd.f32 %v648, %v681
    %v698 = vadd.f32 %v649, %v682
    %v699 = vadd.f32 %v650, %v683
    %v700 = vadd.f32 %v651, %v684
    %v701 = vadd.f32 %v652, %v685
    %v702 = vadd.f32 %v653, %v686
    %v703 = vadd.f32 %v654, %v687
    %v704 = vadd.f32 %v655, %v688
    %v705 = vadd.f32 %v656, %v689
    %v706 = vadd.f32 %v657, %v690
    %v707 = vadd.f32 %v658, %v691
    %v708 = vadd.f32 %v659, %v692
    %v709 = vadd.f32 %v660, %v693
    %v710 = vadd.f32 %v661, %v694
    %v711 = vadd.f32 %v662, %v695
    %v712 = vadd.f32 %v663, %v696
    %s713 = scalar_lea.vmem [#allocation17], 768
    %v714 = vld [vmem:[%s713] sm:$0xff]
    %v715 = vld [vmem:[%s713 + $0x8] sm:$0xff]
    %v716 = vld [vmem:[%s713 + $0x10] sm:$0xff]
    %v717 = vld [vmem:[%s713 + $0x18] sm:$0xff]
    %v718 = vld [vmem:[%s713 + $0x20] sm:$0xff]
    %v719 = vld [vmem:[%s713 + $0x28] sm:$0xff]
    %v720 = vld [vmem:[%s713 + $0x30] sm:$0xff]
    %v721 = vld [vmem:[%s713 + $0x38] sm:$0xff]
    %v722 = vld [vmem:[%s713 + $0x40] sm:$0xff]
    %v723 = vld [vmem:[%s713 + $0x48] sm:$0xff]
    %v724 = vld [vmem:[%s713 + $0x50] sm:$0xff]
    %v725 = vld [vmem:[%s713 + $0x58] sm:$0xff]
    %v726 = vld [vmem:[%s713 + $0x60] sm:$0xff]
    %v727 = vld [vmem:[%s713 + $0x68] sm:$0xff]
    %v728 = vld [vmem:[%s713 + $0x70] sm:$0xff]
    %v729 = vld [vmem:[%s713 + $0x78] sm:$0xff]
    %v730 = vmul.f32 %v385, %v714
    %v731 = vmul.f32 %v384, %v715
    %v732 = vmul.f32 %v383, %v716
    %v733 = vmul.f32 %v382, %v717
    %v734 = vmul.f32 %v381, %v718
    %v735 = vmul.f32 %v380, %v719
    %v736 = vmul.f32 %v379, %v720
    %v737 = vmul.f32 %v378, %v721
    %v738 = vmul.f32 %v377, %v722
    %v739 = vmul.f32 %v376, %v723
    %v740 = vmul.f32 %v375, %v724
    %v741 = vmul.f32 %v374, %v725
    %v742 = vmul.f32 %v373, %v726
    %v743 = vmul.f32 %v372, %v727
    %v744 = vmul.f32 %v371, %v728
    %v745 = vmul.f32 %v386, %v729
    %v746 = vadd.f32 %v697, %v730
    %v747 = vadd.f32 %v698, %v731
    %v748 = vadd.f32 %v699, %v732
    %v749 = vadd.f32 %v700, %v733
    %v750 = vadd.f32 %v701, %v734
    %v751 = vadd.f32 %v702, %v735
    %v752 = vadd.f32 %v703, %v736
    %v753 = vadd.f32 %v704, %v737
    %v754 = vadd.f32 %v705, %v738
    %v755 = vadd.f32 %v706, %v739
    %v756 = vadd.f32 %v707, %v740
    %v757 = vadd.f32 %v708, %v741
    %v758 = vadd.f32 %v709, %v742
    %v759 = vadd.f32 %v710, %v743
    %v760 = vadd.f32 %v711, %v744
    %v761 = vadd.f32 %v712, %v745
    %s762 = scalar_lea.vmem [#allocation17], 896
    %v763 = vld [vmem:[%s762] sm:$0xff]
    %v764 = vld [vmem:[%s762 + $0x8] sm:$0xff]
    %v765 = vld [vmem:[%s762 + $0x10] sm:$0xff]
    %v766 = vld [vmem:[%s762 + $0x18] sm:$0xff]
    %v767 = vld [vmem:[%s762 + $0x20] sm:$0xff]
    %v768 = vld [vmem:[%s762 + $0x28] sm:$0xff]
    %v769 = vld [vmem:[%s762 + $0x30] sm:$0xff]
    %v770 = vld [vmem:[%s762 + $0x38] sm:$0xff]
    %v771 = vld [vmem:[%s762 + $0x40] sm:$0xff]
    %v772 = vld [vmem:[%s762 + $0x48] sm:$0xff]
    %v773 = vld [vmem:[%s762 + $0x50] sm:$0xff]
    %v774 = vld [vmem:[%s762 + $0x58] sm:$0xff]
    %v775 = vld [vmem:[%s762 + $0x60] sm:$0xff]
    %v776 = vld [vmem:[%s762 + $0x68] sm:$0xff]
    %v777 = vld [vmem:[%s762 + $0x70] sm:$0xff]
    %v778 = vld [vmem:[%s762 + $0x78] sm:$0xff]
    %v779 = vmul.f32 %v218, %v763
    %v780 = vmul.f32 %v219, %v764
    %v781 = vmul.f32 %v220, %v765
    %v782 = vmul.f32 %v221, %v766
    %v783 = vmul.f32 %v222, %v767
    %v784 = vmul.f32 %v223, %v768
    %v785 = vmul.f32 %v224, %v769
    %v786 = vmul.f32 %v225, %v770
    %v787 = vmul.f32 %v226, %v771
    %v788 = vmul.f32 %v227, %v772
    %v789 = vmul.f32 %v228, %v773
    %v790 = vmul.f32 %v229, %v774
    %v791 = vmul.f32 %v230, %v775
    %v792 = vmul.f32 %v231, %v776
    %v793 = vmul.f32 %v232, %v777
    %v794 = vmul.f32 %v217, %v778
    %v795 = vadd.f32 %v746, %v779
    %v796 = vadd.f32 %v747, %v780
    %v797 = vadd.f32 %v748, %v781
    %v798 = vadd.f32 %v749, %v782
    %v799 = vadd.f32 %v750, %v783
    %v800 = vadd.f32 %v751, %v784
    %v801 = vadd.f32 %v752, %v785
    %v802 = vadd.f32 %v753, %v786
    %v803 = vadd.f32 %v754, %v787
    %v804 = vadd.f32 %v755, %v788
    %v805 = vadd.f32 %v756, %v789
    %v806 = vadd.f32 %v757, %v790
    %v807 = vadd.f32 %v758, %v791
    %v808 = vadd.f32 %v759, %v792
    %v809 = vadd.f32 %v760, %v793
    %v810 = vadd.f32 %v761, %v794
    %s811 = scalar_lea.vmem [#allocation17], 1024
    %v812 = vld [vmem:[%s811] sm:$0xff]
    %v813 = vld [vmem:[%s811 + $0x8] sm:$0xff]
    %v814 = vld [vmem:[%s811 + $0x10] sm:$0xff]
    %v815 = vld [vmem:[%s811 + $0x18] sm:$0xff]
    %v816 = vld [vmem:[%s811 + $0x20] sm:$0xff]
    %v817 = vld [vmem:[%s811 + $0x28] sm:$0xff]
    %v818 = vld [vmem:[%s811 + $0x30] sm:$0xff]
    %v819 = vld [vmem:[%s811 + $0x38] sm:$0xff]
    %v820 = vld [vmem:[%s811 + $0x40] sm:$0xff]
    %v821 = vld [vmem:[%s811 + $0x48] sm:$0xff]
    %v822 = vld [vmem:[%s811 + $0x50] sm:$0xff]
    %v823 = vld [vmem:[%s811 + $0x58] sm:$0xff]
    %v824 = vld [vmem:[%s811 + $0x60] sm:$0xff]
    %v825 = vld [vmem:[%s811 + $0x68] sm:$0xff]
    %v826 = vld [vmem:[%s811 + $0x70] sm:$0xff]
    %v827 = vld [vmem:[%s811 + $0x78] sm:$0xff]
    %v828 = vmul.f32 %v514, %v812
    %v829 = vmul.f32 %v513, %v813
    %v830 = vmul.f32 %v512, %v814
    %v831 = vmul.f32 %v511, %v815
    %v832 = vmul.f32 %v510, %v816
    %v833 = vmul.f32 %v509, %v817
    %v834 = vmul.f32 %v508, %v818
    %v835 = vmul.f32 %v507, %v819
    %v836 = vmul.f32 %v506, %v820
    %v837 = vmul.f32 %v505, %v821
    %v838 = vmul.f32 %v504, %v822
    %v839 = vmul.f32 %v503, %v823
    %v840 = vmul.f32 %v502, %v824
    %v841 = vmul.f32 %v501, %v825
    %v842 = vmul.f32 %v516, %v826
    %v843 = vmul.f32 %v515, %v827
    %v844 = vadd.f32 %v795, %v828
    %v845 = vadd.f32 %v796, %v829
    %v846 = vadd.f32 %v797, %v830
    %v847 = vadd.f32 %v798, %v831
    %v848 = vadd.f32 %v799, %v832
    %v849 = vadd.f32 %v800, %v833
    %v850 = vadd.f32 %v801, %v834
    %v851 = vadd.f32 %v802, %v835
    %v852 = vadd.f32 %v803, %v836
    %v853 = vadd.f32 %v804, %v837
    %v854 = vadd.f32 %v805, %v838
    %v855 = vadd.f32 %v806, %v839
    %v856 = vadd.f32 %v807, %v840
    %v857 = vadd.f32 %v808, %v841
    %v858 = vadd.f32 %v809, %v842
    %v859 = vadd.f32 %v810, %v843
    %v860 = vadd.f32 %v217, %v844
    %v861 = vadd.f32 %v218, %v845
    %v862 = vadd.f32 %v219, %v846
    %v863 = vadd.f32 %v220, %v847
    %v864 = vadd.f32 %v221, %v848
    %v865 = vadd.f32 %v222, %v849
    %v866 = vadd.f32 %v223, %v850
    %v867 = vadd.f32 %v224, %v851
    %v868 = vadd.f32 %v225, %v852
    %v869 = vadd.f32 %v226, %v853
    %v870 = vadd.f32 %v227, %v854
    %v871 = vadd.f32 %v228, %v855
    %v872 = vadd.f32 %v229, %v856
    %v873 = vadd.f32 %v230, %v857
    %v874 = vadd.f32 %v231, %v858
    %v875 = vadd.f32 %v232, %v859
    %v876 = vld [vmem:[#allocation7] sm:$0x1]
    %vm877 = vcmask 261120
    %v878 = vsel %vm877, %v233, 0.0
    %879 = vadd.xlane.f32.xlu0 %v878
    %v880 = vpop.xlane.xlu0 %879
    %v881 = vsel %vm877, %v234, 0.0
    %882 = vadd.xlane.f32.xlu0 %v881
    %v883 = vpop.xlane.xlu0 %882
    %v884 = vrcp.pop 32.0
    %v885 = vmul.f32 32.0, %v884
    %v886 = vsub.f32 1.0, %v885
    %v887 = vmul.f32 %v884, %v886
    %v888 = vadd.f32 %v884, %v887
    %vm889 = vweird.f32 %v884
    %v890 = vsel %vm889, %v884, %v888
    %v891 = vmul.f32 %v880, %v890
    %v892 = vmul.f32 %v883, %v890
    %v893 = vsub.f32 %v233, %v891
    %v894 = vsub.f32 %v234, %v892
    %v895 = vmul.f32 %v893, %v893
    %v896 = vmul.f32 %v894, %v894
    %v897 = vsel %vm877, %v895, 0.0
    %898 = vadd.xlane.f32.xlu0 %v897
    %v899 = vpop.xlane.xlu0 %898
    %v900 = vsel %vm877, %v896, 0.0
    %901 = vadd.xlane.f32.xlu0 %v900
    %v902 = vpop.xlane.xlu0 %901
    %v903 = vmul.f32 %v899, %v890
    %v904 = vmul.f32 %v902, %v890
    %v905 = vadd.f32 %v903, 1e-05
    %v906 = vadd.f32 %v904, 1e-05
    %v907 = vrsqrt.pop %v905
    %v908 = vmul.f32 %v907, %v905
    %v909 = vmul.f32 %v908, %v907
    %v910 = vmul.f32 0.5, %v909
    %v911 = vsub.f32 1.5, %v910
    %v912 = vmul.f32 %v907, %v911
    %vm913 = vweird.f32 %v905
    %vm914 = vweird.f32 %v907
    %vm915 = vmor %vm913, %vm914
    %v916 = vsel %vm915, %v907, %v912
    %v917 = vrsqrt.pop %v906
    %v918 = vmul.f32 %v917, %v906
    %v919 = vmul.f32 %v918, %v917
    %v920 = vmul.f32 0.5, %v919
    %v921 = vsub.f32 1.5, %v920
    %v922 = vmul.f32 %v917, %v921
    %vm923 = vweird.f32 %v906
    %vm924 = vweird.f32 %v917
    %vm925 = vmor %vm923, %vm924
    %v926 = vsel %vm925, %v917, %v922
    %v927 = vmul.f32 %v893, %v916
    %v928 = vmul.f32 %v894, %v926
    %v930 = vperm.slane %v876, 0
    %v932 = vmul.f32 %v927, %v930
    %v933 = vmul.f32 %v928, %v930
    %v934 = vld [vmem:[#allocation8] sm:$0x1]
    %v935 = vsel %vm877, %v860, 0.0
    %936 = vadd.xlane.f32.xlu0 %v935
    %v937 = vpop.xlane.xlu0 %936
    %v938 = vsel %vm877, %v861, 0.0
    %939 = vadd.xlane.f32.xlu0 %v938
    %v940 = vpop.xlane.xlu0 %939
    %v941 = vsel %vm877, %v862, 0.0
    %942 = vadd.xlane.f32.xlu0 %v941
    %v943 = vpop.xlane.xlu0 %942
    %v944 = vsel %vm877, %v863, 0.0
    %945 = vadd.xlane.f32.xlu0 %v944
    %v946 = vpop.xlane.xlu0 %945
    %v947 = vsel %vm877, %v864, 0.0
    %948 = vadd.xlane.f32.xlu0 %v947
    %v949 = vpop.xlane.xlu0 %948
    %v950 = vsel %vm877, %v865, 0.0
    %951 = vadd.xlane.f32.xlu0 %v950
    %v952 = vpop.xlane.xlu0 %951
    %v953 = vsel %vm877, %v866, 0.0
    %954 = vadd.xlane.f32.xlu0 %v953
    %v955 = vpop.xlane.xlu0 %954
    %v956 = vsel %vm877, %v867, 0.0
    %957 = vadd.xlane.f32.xlu0 %v956
    %v958 = vpop.xlane.xlu0 %957
    %v959 = vsel %vm877, %v868, 0.0
    %960 = vadd.xlane.f32.xlu0 %v959
    %v961 = vpop.xlane.xlu0 %960
    %v962 = vsel %vm877, %v869, 0.0
    %963 = vadd.xlane.f32.xlu0 %v962
    %v964 = vpop.xlane.xlu0 %963
    %v965 = vsel %vm877, %v870, 0.0
    %966 = vadd.xlane.f32.xlu0 %v965
    %v967 = vpop.xlane.xlu0 %966
    %v968 = vsel %vm877, %v871, 0.0
    %969 = vadd.xlane.f32.xlu0 %v968
    %v970 = vpop.xlane.xlu0 %969
    %v971 = vsel %vm877, %v872, 0.0
    %972 = vadd.xlane.f32.xlu0 %v971
    %v973 = vpop.xlane.xlu0 %972
    %v974 = vsel %vm877, %v873, 0.0
    %975 = vadd.xlane.f32.xlu0 %v974
    %v976 = vpop.xlane.xlu0 %975
    %v977 = vsel %vm877, %v874, 0.0
    %978 = vadd.xlane.f32.xlu0 %v977
    %v979 = vpop.xlane.xlu0 %978
    %v980 = vsel %vm877, %v875, 0.0
    %981 = vadd.xlane.f32.xlu0 %v980
    %v982 = vpop.xlane.xlu0 %981
    %v983 = vmul.f32 %v937, %v890
    %v984 = vmul.f32 %v940, %v890
    %v985 = vmul.f32 %v943, %v890
    %v986 = vmul.f32 %v946, %v890
    %v987 = vmul.f32 %v949, %v890
    %v988 = vmul.f32 %v952, %v890
    %v989 = vmul.f32 %v955, %v890
    %v990 = vmul.f32 %v958, %v890
    %v991 = vmul.f32 %v961, %v890
    %v992 = vmul.f32 %v964, %v890
    %v993 = vmul.f32 %v967, %v890
    %v994 = vmul.f32 %v970, %v890
    %v995 = vmul.f32 %v973, %v890
    %v996 = vmul.f32 %v976, %v890
    %v997 = vmul.f32 %v979, %v890
    %v998 = vmul.f32 %v982, %v890
    %v999 = vsub.f32 %v860, %v983
    %v1000 = vsub.f32 %v861, %v984
    %v1001 = vsub.f32 %v862, %v985
    %v1002 = vsub.f32 %v863, %v986
    %v1003 = vsub.f32 %v864, %v987
    %v1004 = vsub.f32 %v865, %v988
    %v1005 = vsub.f32 %v866, %v989
    %v1006 = vsub.f32 %v867, %v990
    %v1007 = vsub.f32 %v868, %v991
    %v1008 = vsub.f32 %v869, %v992
    %v1009 = vsub.f32 %v870, %v993
    %v1010 = vsub.f32 %v871, %v994
    %v1011 = vsub.f32 %v872, %v995
    %v1012 = vsub.f32 %v873, %v996
    %v1013 = vsub.f32 %v874, %v997
    %v1014 = vsub.f32 %v875, %v998
    %v1015 = vmul.f32 %v999, %v999
    %v1016 = vmul.f32 %v1000, %v1000
    %v1017 = vmul.f32 %v1001, %v1001
    %v1018 = vmul.f32 %v1002, %v1002
    %v1019 = vmul.f32 %v1003, %v1003
    %v1020 = vmul.f32 %v1004, %v1004
    %v1021 = vmul.f32 %v1005, %v1005
    %v1022 = vmul.f32 %v1006, %v1006
    %v1023 = vmul.f32 %v1007, %v1007
    %v1024 = vmul.f32 %v1008, %v1008
    %v1025 = vmul.f32 %v1009, %v1009
    %v1026 = vmul.f32 %v1010, %v1010
    %v1027 = vmul.f32 %v1011, %v1011
    %v1028 = vmul.f32 %v1012, %v1012
    %v1029 = vmul.f32 %v1013, %v1013
    %v1030 = vmul.f32 %v1014, %v1014
    %v1031 = vsel %vm877, %v1015, 0.0
    %1032 = vadd.xlane.f32.xlu0 %v1031
    %v1033 = vpop.xlane.xlu0 %1032
    %v1034 = vsel %vm877, %v1016, 0.0
    %1035 = vadd.xlane.f32.xlu0 %v1034
    %v1036 = vpop.xlane.xlu0 %1035
    %v1037 = vsel %vm877, %v1017, 0.0
    %1038 = vadd.xlane.f32.xlu0 %v1037
    %v1039 = vpop.xlane.xlu0 %1038
    %v1040 = vsel %vm877, %v1018, 0.0
    %1041 = vadd.xlane.f32.xlu0 %v1040
    %v1042 = vpop.xlane.xlu0 %1041
    %v1043 = vsel %vm877, %v1019, 0.0
    %1044 = vadd.xlane.f32.xlu0 %v1043
    %v1045 = vpop.xlane.xlu0 %1044
    %v1046 = vsel %vm877, %v1020, 0.0
    %1047 = vadd.xlane.f32.xlu0 %v1046
    %v1048 = vpop.xlane.xlu0 %1047
    %v1049 = vsel %vm877, %v1021, 0.0
    %1050 = vadd.xlane.f32.xlu0 %v1049
    %v1051 = vpop.xlane.xlu0 %1050
    %v1052 = vsel %vm877, %v1022, 0.0
    %1053 = vadd.xlane.f32.xlu0 %v1052
    %v1054 = vpop.xlane.xlu0 %1053
    %v1055 = vsel %vm877, %v1023, 0.0
    %1056 = vadd.xlane.f32.xlu0 %v1055
    %v1057 = vpop.xlane.xlu0 %1056
    %v1058 = vsel %vm877, %v1024, 0.0
    %1059 = vadd.xlane.f32.xlu0 %v1058
    %v1060 = vpop.xlane.xlu0 %1059
    %v1061 = vsel %vm877, %v1025, 0.0
    %1062 = vadd.xlane.f32.xlu0 %v1061
    %v1063 = vpop.xlane.xlu0 %1062
    %v1064 = vsel %vm877, %v1026, 0.0
    %1065 = vadd.xlane.f32.xlu0 %v1064
    %v1066 = vpop.xlane.xlu0 %1065
    %v1067 = vsel %vm877, %v1027, 0.0
    %1068 = vadd.xlane.f32.xlu0 %v1067
    %v1069 = vpop.xlane.xlu0 %1068
    %v1070 = vsel %vm877, %v1028, 0.0
    %1071 = vadd.xlane.f32.xlu0 %v1070
    %v1072 = vpop.xlane.xlu0 %1071
    %v1073 = vsel %vm877, %v1029, 0.0
    %1074 = vadd.xlane.f32.xlu0 %v1073
    %v1075 = vpop.xlane.xlu0 %1074
    %v1076 = vsel %vm877, %v1030, 0.0
    %1077 = vadd.xlane.f32.xlu0 %v1076
    %v1078 = vpop.xlane.xlu0 %1077
    %v1079 = vmul.f32 %v1033, %v890
    %v1080 = vmul.f32 %v1036, %v890
    %v1081 = vmul.f32 %v1039, %v890
    %v1082 = vmul.f32 %v1042, %v890
    %v1083 = vmul.f32 %v1045, %v890
    %v1084 = vmul.f32 %v1048, %v890
    %v1085 = vmul.f32 %v1051, %v890
    %v1086 = vmul.f32 %v1054, %v890
    %v1087 = vmul.f32 %v1057, %v890
    %v1088 = vmul.f32 %v1060, %v890
    %v1089 = vmul.f32 %v1063, %v890
    %v1090 = vmul.f32 %v1066, %v890
    %v1091 = vmul.f32 %v1069, %v890
    %v1092 = vmul.f32 %v1072, %v890
    %v1093 = vmul.f32 %v1075, %v890
    %v1094 = vmul.f32 %v1078, %v890
    %v1095 = vadd.f32 %v1079, 1e-05
    %v1096 = vadd.f32 %v1080, 1e-05
    %v1097 = vadd.f32 %v1081, 1e-05
    %v1098 = vadd.f32 %v1082, 1e-05
    %v1099 = vadd.f32 %v1083, 1e-05
    %v1100 = vadd.f32 %v1084, 1e-05
    %v1101 = vadd.f32 %v1085, 1e-05
    %v1102 = vadd.f32 %v1086, 1e-05
    %v1103 = vadd.f32 %v1087, 1e-05
    %v1104 = vadd.f32 %v1088, 1e-05
    %v1105 = vadd.f32 %v1089, 1e-05
    %v1106 = vadd.f32 %v1090, 1e-05
    %v1107 = vadd.f32 %v1091, 1e-05
    %v1108 = vadd.f32 %v1092, 1e-05
    %v1109 = vadd.f32 %v1093, 1e-05
    %v1110 = vadd.f32 %v1094, 1e-05
    %v1111 = vrsqrt.pop %v1095
    %v1112 = vmul.f32 %v1111, %v1095
    %v1113 = vmul.f32 %v1112, %v1111
    %v1114 = vmul.f32 0.5, %v1113
    %v1115 = vsub.f32 1.5, %v1114
    %v1116 = vmul.f32 %v1111, %v1115
    %vm1117 = vweird.f32 %v1095
    %vm1118 = vweird.f32 %v1111
    %vm1119 = vmor %vm1117, %vm1118
    %v1120 = vsel %vm1119, %v1111, %v1116
    %v1121 = vrsqrt.pop %v1096
    %v1122 = vmul.f32 %v1121, %v1096
    %v1123 = vmul.f32 %v1122, %v1121
    %v1124 = vmul.f32 0.5, %v1123
    %v1125 = vsub.f32 1.5, %v1124
    %v1126 = vmul.f32 %v1121, %v1125
    %vm1127 = vweird.f32 %v1096
    %vm1128 = vweird.f32 %v1121
    %vm1129 = vmor %vm1127, %vm1128
    %v1130 = vsel %vm1129, %v1121, %v1126
    %v1131 = vrsqrt.pop %v1097
    %v1132 = vmul.f32 %v1131, %v1097
    %v1133 = vmul.f32 %v1132, %v1131
    %v1134 = vmul.f32 0.5, %v1133
    %v1135 = vsub.f32 1.5, %v1134
    %v1136 = vmul.f32 %v1131, %v1135
    %vm1137 = vweird.f32 %v1097
    %vm1138 = vweird.f32 %v1131
    %vm1139 = vmor %vm1137, %vm1138
    %v1140 = vsel %vm1139, %v1131, %v1136
    %v1141 = vrsqrt.pop %v1098
    %v1142 = vmul.f32 %v1141, %v1098
    %v1143 = vmul.f32 %v1142, %v1141
    %v1144 = vmul.f32 0.5, %v1143
    %v1145 = vsub.f32 1.5, %v1144
    %v1146 = vmul.f32 %v1141, %v1145
    %vm1147 = vweird.f32 %v1098
    %vm1148 = vweird.f32 %v1141
    %vm1149 = vmor %vm1147, %vm1148
    %v1150 = vsel %vm1149, %v1141, %v1146
    %v1151 = vrsqrt.pop %v1099
    %v1152 = vmul.f32 %v1151, %v1099
    %v1153 = vmul.f32 %v1152, %v1151
    %v1154 = vmul.f32 0.5, %v1153
    %v1155 = vsub.f32 1.5, %v1154
    %v1156 = vmul.f32 %v1151, %v1155
    %vm1157 = vweird.f32 %v1099
    %vm1158 = vweird.f32 %v1151
    %vm1159 = vmor %vm1157, %vm1158
    %v1160 = vsel %vm1159, %v1151, %v1156
    %v1161 = vrsqrt.pop %v1100
    %v1162 = vmul.f32 %v1161, %v1100
    %v1163 = vmul.f32 %v1162, %v1161
    %v1164 = vmul.f32 0.5, %v1163
    %v1165 = vsub.f32 1.5, %v1164
    %v1166 = vmul.f32 %v1161, %v1165
    %vm1167 = vweird.f32 %v1100
    %vm1168 = vweird.f32 %v1161
    %vm1169 = vmor %vm1167, %vm1168
    %v1170 = vsel %vm1169, %v1161, %v1166
    %v1171 = vrsqrt.pop %v1101
    %v1172 = vmul.f32 %v1171, %v1101
    %v1173 = vmul.f32 %v1172, %v1171
    %v1174 = vmul.f32 0.5, %v1173
    %v1175 = vsub.f32 1.5, %v1174
    %v1176 = vmul.f32 %v1171, %v1175
    %vm1177 = vweird.f32 %v1101
    %vm1178 = vweird.f32 %v1171
    %vm1179 = vmor %vm1177, %vm1178
    %v1180 = vsel %vm1179, %v1171, %v1176
    %v1181 = vrsqrt.pop %v1102
    %v1182 = vmul.f32 %v1181, %v1102
    %v1183 = vmul.f32 %v1182, %v1181
    %v1184 = vmul.f32 0.5, %v1183
    %v1185 = vsub.f32 1.5, %v1184
    %v1186 = vmul.f32 %v1181, %v1185
    %vm1187 = vweird.f32 %v1102
    %vm1188 = vweird.f32 %v1181
    %vm1189 = vmor %vm1187, %vm1188
    %v1190 = vsel %vm1189, %v1181, %v1186
    %v1191 = vrsqrt.pop %v1103
    %v1192 = vmul.f32 %v1191, %v1103
    %v1193 = vmul.f32 %v1192, %v1191
    %v1194 = vmul.f32 0.5, %v1193
    %v1195 = vsub.f32 1.5, %v1194
    %v1196 = vmul.f32 %v1191, %v1195
    %vm1197 = vweird.f32 %v1103
    %vm1198 = vweird.f32 %v1191
    %vm1199 = vmor %vm1197, %vm1198
    %v1200 = vsel %vm1199, %v1191, %v1196
    %v1201 = vrsqrt.pop %v1104
    %v1202 = vmul.f32 %v1201, %v1104
    %v1203 = vmul.f32 %v1202, %v1201
    %v1204 = vmul.f32 0.5, %v1203
    %v1205 = vsub.f32 1.5, %v1204
    %v1206 = vmul.f32 %v1201, %v1205
    %vm1207 = vweird.f32 %v1104
    %vm1208 = vweird.f32 %v1201
    %vm1209 = vmor %vm1207, %vm1208
    %v1210 = vsel %vm1209, %v1201, %v1206
    %v1211 = vrsqrt.pop %v1105
    %v1212 = vmul.f32 %v1211, %v1105
    %v1213 = vmul.f32 %v1212, %v1211
    %v1214 = vmul.f32 0.5, %v1213
    %v1215 = vsub.f32 1.5, %v1214
    %v1216 = vmul.f32 %v1211, %v1215
    %vm1217 = vweird.f32 %v1105
    %vm1218 = vweird.f32 %v1211
    %vm1219 = vmor %vm1217, %vm1218
    %v1220 = vsel %vm1219, %v1211, %v1216
    %v1221 = vrsqrt.pop %v1106
    %v1222 = vmul.f32 %v1221, %v1106
    %v1223 = vmul.f32 %v1222, %v1221
    %v1224 = vmul.f32 0.5, %v1223
    %v1225 = vsub.f32 1.5, %v1224
    %v1226 = vmul.f32 %v1221, %v1225
    %vm1227 = vweird.f32 %v1106
    %vm1228 = vweird.f32 %v1221
    %vm1229 = vmor %vm1227, %vm1228
    %v1230 = vsel %vm1229, %v1221, %v1226
    %v1231 = vrsqrt.pop %v1107
    %v1232 = vmul.f32 %v1231, %v1107
    %v1233 = vmul.f32 %v1232, %v1231
    %v1234 = vmul.f32 0.5, %v1233
    %v1235 = vsub.f32 1.5, %v1234
    %v1236 = vmul.f32 %v1231, %v1235
    %vm1237 = vweird.f32 %v1107
    %vm1238 = vweird.f32 %v1231
    %vm1239 = vmor %vm1237, %vm1238
    %v1240 = vsel %vm1239, %v1231, %v1236
    %v1241 = vrsqrt.pop %v1108
    %v1242 = vmul.f32 %v1241, %v1108
    %v1243 = vmul.f32 %v1242, %v1241
    %v1244 = vmul.f32 0.5, %v1243
    %v1245 = vsub.f32 1.5, %v1244
    %v1246 = vmul.f32 %v1241, %v1245
    %vm1247 = vweird.f32 %v1108
    %vm1248 = vweird.f32 %v1241
    %vm1249 = vmor %vm1247, %vm1248
    %v1250 = vsel %vm1249, %v1241, %v1246
    %v1251 = vrsqrt.pop %v1109
    %v1252 = vmul.f32 %v1251, %v1109
    %v1253 = vmul.f32 %v1252, %v1251
    %v1254 = vmul.f32 0.5, %v1253
    %v1255 = vsub.f32 1.5, %v1254
    %v1256 = vmul.f32 %v1251, %v1255
    %vm1257 = vweird.f32 %v1109
    %vm1258 = vweird.f32 %v1251
    %vm1259 = vmor %vm1257, %vm1258
    %v1260 = vsel %vm1259, %v1251, %v1256
    %v1261 = vrsqrt.pop %v1110
    %v1262 = vmul.f32 %v1261, %v1110
    %v1263 = vmul.f32 %v1262, %v1261
    %v1264 = vmul.f32 0.5, %v1263
    %v1265 = vsub.f32 1.5, %v1264
    %v1266 = vmul.f32 %v1261, %v1265
    %vm1267 = vweird.f32 %v1110
    %vm1268 = vweird.f32 %v1261
    %vm1269 = vmor %vm1267, %vm1268
    %v1270 = vsel %vm1269, %v1261, %v1266
    %v1271 = vmul.f32 %v999, %v1120
    %v1272 = vmul.f32 %v1000, %v1130
    %v1273 = vmul.f32 %v1001, %v1140
    %v1274 = vmul.f32 %v1002, %v1150
    %v1275 = vmul.f32 %v1003, %v1160
    %v1276 = vmul.f32 %v1004, %v1170
    %v1277 = vmul.f32 %v1005, %v1180
    %v1278 = vmul.f32 %v1006, %v1190
    %v1279 = vmul.f32 %v1007, %v1200
    %v1280 = vmul.f32 %v1008, %v1210
    %v1281 = vmul.f32 %v1009, %v1220
    %v1282 = vmul.f32 %v1010, %v1230
    %v1283 = vmul.f32 %v1011, %v1240
    %v1284 = vmul.f32 %v1012, %v1250
    %v1285 = vmul.f32 %v1013, %v1260
    %v1286 = vmul.f32 %v1014, %v1270
    %v1288 = vperm.slane %v934, 0
    %v1290 = vmul.f32 %v1271, %v1288
    %v1291 = vmul.f32 %v1272, %v1288
    %v1292 = vmul.f32 %v1273, %v1288
    %v1293 = vmul.f32 %v1274, %v1288
    %v1294 = vmul.f32 %v1275, %v1288
    %v1295 = vmul.f32 %v1276, %v1288
    %v1296 = vmul.f32 %v1277, %v1288
    %v1297 = vmul.f32 %v1278, %v1288
    %v1298 = vmul.f32 %v1279, %v1288
    %v1299 = vmul.f32 %v1280, %v1288
    %v1300 = vmul.f32 %v1281, %v1288
    %v1301 = vmul.f32 %v1282, %v1288
    %v1302 = vmul.f32 %v1283, %v1288
    %v1303 = vmul.f32 %v1284, %v1288
    %v1304 = vmul.f32 %v1285, %v1288
    %v1305 = vmul.f32 %v1286, %v1288
    %v1307 = vrot.slane %v305, 1
    %v1309 = vadd.f32 %v305, 1.0
    %v1310 = vadd.f32 %v1307, 1.0
    %v1313 = vperm.slane %v1309, 0
    %v1314 = vperm.slane %v1310, 0
    %v1317 = vmul.f32 %v932, %v1313
    %v1318 = vmul.f32 %v933, %v1314
    %v1319 = vperm.slane %v305, 0
    %v1320 = vperm.slane %v1307, 0
    %1321 = vrot.lane.b32.xlu0 %v1319, 96
    %v1322 = vpop.permute.xlu0 %1321
    %1323 = vrot.lane.b32.xlu0 %v1320, 96
    %v1324 = vpop.permute.xlu0 %1323
    %v1327 = vadd.f32 %v1317, %v1322
    %v1328 = vadd.f32 %v1318, %v1324
    %v1329 = vld [vmem:[#allocation10] sm:$0xf]
    %v1330 = vld [vmem:[#allocation10 + $0x4] sm:$0xf]
    %v1331 = vld [vmem:[#allocation10 + $0x8] sm:$0xf]
    %v1332 = vld [vmem:[#allocation10 + $0xc] sm:$0xf]
    %v1333 = vpack.c.bf16 %v1328, %v1327
    %v1338 = vunpack.c.l.b16 %v1329
    %v1339 = vunpack.c.l.b16 %v1330
    %v1340 = vunpack.c.l.b16 %v1331
    %v1341 = vunpack.c.l.b16 %v1332
    %v1342 = vpack.c.b16 %v1339, %v1338
    %v1343 = vpack.c.b16 %v1341, %v1340
    %v1347 = vsel %vm877, %v1333, 0
    %1349 = vmatpush.bf16.msra.mxu0 0
    %1350 = vmatpush.bf16.msra.mxu0 0
    %1351 = vmatpush.bf16.msra.mxu0 0
    %1352 = vmatpush.bf16.msra.mxu0 0
    %1353 = vmatpush.bf16.msra.mxu0 0
    %1354 = vmatpush.bf16.msra.mxu0 0
    %1355 = vmatpush.bf16.msra.mxu0 %v1343
    %1356 = vmatpush.bf16.msra.mxu0 %v1342
    %1357 = vmatmul.bf16.gmra.mxu0 %v1347
    %v1358 = vpop.f32.mrf.mxu0
    %v1359 = vadd.f32 0.0, %v1358
    %v1360 = vpop.f32.mrf.mxu0
    %v1361 = vadd.f32 0.0, %v1360
    %1362 = vdwg.mxu0
    %v1363 = vmul.f32 %v1359, 0.25
    %v1364 = vmul.f32 %v1361, 0.25
    %v1365 = vld [vmem:[%s6] sm:$0xf]
    %v1366 = vld [vmem:[%s6 + $0x4] sm:$0xf]
    %v1367 = vld [vmem:[%s6 + $0x8] sm:$0xf]
    %v1368 = vld [vmem:[%s6 + $0xc] sm:$0xf]
    %v1369 = vpack.c.bf16 %v1291, %v1290
    %v1370 = vpack.c.bf16 %v1293, %v1292
    %v1371 = vpack.c.bf16 %v1295, %v1294
    %v1372 = vpack.c.bf16 %v1297, %v1296
    %v1373 = vpack.c.bf16 %v1299, %v1298
    %v1374 = vpack.c.bf16 %v1301, %v1300
    %v1375 = vpack.c.bf16 %v1303, %v1302
    %v1376 = vpack.c.bf16 %v1305, %v1304
    %v1381 = vunpack.c.l.b16 %v1365
    %v1382 = vunpack.c.l.b16 %v1366
    %v1383 = vunpack.c.l.b16 %v1367
    %v1384 = vunpack.c.l.b16 %v1368
    %v1385 = vpack.c.b16 %v1382, %v1381
    %v1386 = vpack.c.b16 %v1384, %v1383
    %v1390 = vsel %vm877, %v1369, 0
    %v1393 = vsel %vm877, %v1370, 0
    %v1396 = vsel %vm877, %v1371, 0
    %v1399 = vsel %vm877, %v1372, 0
    %v1402 = vsel %vm877, %v1373, 0
    %v1405 = vsel %vm877, %v1374, 0
    %v1408 = vsel %vm877, %v1375, 0
    %v1411 = vsel %vm877, %v1376, 0
    %1413 = vmatpush.bf16.msra.mxu0 0
    %1414 = vmatpush.bf16.msra.mxu0 0
    %1415 = vmatpush.bf16.msra.mxu0 0
    %1416 = vmatpush.bf16.msra.mxu0 0
    %1417 = vmatpush.bf16.msra.mxu0 0
    %1418 = vmatpush.bf16.msra.mxu0 0
    %1419 = vmatpush.bf16.msra.mxu0 %v1386
    %1420 = vmatpush.bf16.msra.mxu0 %v1385
    %1421 = vmatmul.bf16.gmra.mxu0 %v1390
    %v1422 = vpop.f32.mrf.mxu0
    %v1423 = vadd.f32 0.0, %v1422
    %v1424 = vpop.f32.mrf.mxu0
    %v1425 = vadd.f32 0.0, %v1424
    %1426 = vmatmul.bf16.gmra.mxu0 %v1393
    %v1427 = vpop.f32.mrf.mxu0
    %v1428 = vadd.f32 0.0, %v1427
    %v1429 = vpop.f32.mrf.mxu0
    %v1430 = vadd.f32 0.0, %v1429
    %1431 = vmatmul.bf16.gmra.mxu0 %v1396
    %v1432 = vpop.f32.mrf.mxu0
    %v1433 = vadd.f32 0.0, %v1432
    %v1434 = vpop.f32.mrf.mxu0
    %v1435 = vadd.f32 0.0, %v1434
    %1436 = vmatmul.bf16.gmra.mxu0 %v1399
    %v1437 = vpop.f32.mrf.mxu0
    %v1438 = vadd.f32 0.0, %v1437
    %v1439 = vpop.f32.mrf.mxu0
    %v1440 = vadd.f32 0.0, %v1439
    %1441 = vmatmul.bf16.gmra.mxu0 %v1402
    %v1442 = vpop.f32.mrf.mxu0
    %v1443 = vadd.f32 0.0, %v1442
    %v1444 = vpop.f32.mrf.mxu0
    %v1445 = vadd.f32 0.0, %v1444
    %1446 = vmatmul.bf16.gmra.mxu0 %v1405
    %v1447 = vpop.f32.mrf.mxu0
    %v1448 = vadd.f32 0.0, %v1447
    %v1449 = vpop.f32.mrf.mxu0
    %v1450 = vadd.f32 0.0, %v1449
    %1451 = vmatmul.bf16.gmra.mxu0 %v1408
    %v1452 = vpop.f32.mrf.mxu0
    %v1453 = vadd.f32 0.0, %v1452
    %v1454 = vpop.f32.mrf.mxu0
    %v1455 = vadd.f32 0.0, %v1454
    %1456 = vmatmul.bf16.gmra.mxu0 %v1411
    %v1457 = vpop.f32.mrf.mxu0
    %v1458 = vadd.f32 0.0, %v1457
    %v1459 = vpop.f32.mrf.mxu0
    %v1460 = vadd.f32 0.0, %v1459
    %1461 = vdwg.mxu0
    %v1462 = vpack.c.bf16 %v1363, %v1363
    %v1463 = vpack.c.bf16 %v1364, %v1364
    %v1464 = vpack.c.bf16 %v1423, %v1423
    %v1465 = vpack.c.bf16 %v1425, %v1425
    %v1466 = vpack.c.bf16 %v1428, %v1428
    %v1467 = vpack.c.bf16 %v1430, %v1430
    %v1468 = vpack.c.bf16 %v1433, %v1433
    %v1469 = vpack.c.bf16 %v1435, %v1435
    %v1470 = vpack.c.bf16 %v1438, %v1438
    %v1471 = vpack.c.bf16 %v1440, %v1440
    %v1472 = vpack.c.bf16 %v1443, %v1443
    %v1473 = vpack.c.bf16 %v1445, %v1445
    %v1474 = vpack.c.bf16 %v1448, %v1448
    %v1475 = vpack.c.bf16 %v1450, %v1450
    %v1476 = vpack.c.bf16 %v1453, %v1453
    %v1477 = vpack.c.bf16 %v1455, %v1455
    %v1478 = vpack.c.bf16 %v1458, %v1458
    %v1479 = vpack.c.bf16 %v1460, %v1460
    %v1488 = vunpack.c.l.b16 %v1464
    %v1489 = vunpack.c.l.b16 %v1465
    %v1490 = vunpack.c.l.b16 %v1466
    %v1491 = vunpack.c.l.b16 %v1467
    %v1492 = vunpack.c.l.b16 %v1468
    %v1493 = vunpack.c.l.b16 %v1469
    %v1494 = vunpack.c.l.b16 %v1470
    %v1495 = vunpack.c.l.b16 %v1471
    %v1496 = vpack.c.b16 %v1489, %v1488
    %v1497 = vpack.c.b16 %v1491, %v1490
    %v1498 = vpack.c.b16 %v1493, %v1492
    %v1499 = vpack.c.b16 %v1495, %v1494
    %v1501 = vsel %vm291, %v1462, 0
    %v1504 = vsel %vm291, %v1496, 0
    %v1507 = vsel %vm291, %v1497, 0
    %v1510 = vsel %vm291, %v1498, 0
    %v1513 = vsel %vm291, %v1499, 0
    %1515 = vmatpush.bf16.xpose.msra.mxu0 0
    %1516 = vmatpush.bf16.xpose.msra.mxu0 0
    %1517 = vmatpush.bf16.xpose.msra.mxu0 0
    %1518 = vmatpush.bf16.xpose.msra.mxu0 0
    %1519 = vmatpush.bf16.xpose.msra.mxu0 %v1513
    %1520 = vmatpush.bf16.xpose.msra.mxu0 %v1510
    %1521 = vmatpush.bf16.xpose.msra.mxu0 %v1507
    %1522 = vmatpush.bf16.xpose.msra.mxu0 %v1504
    %1523 = vmatmul.bf16.gmra.mxu0 %v1501
    %v1524 = vpop.f32.mrf.mxu0
    %v1525 = vadd.f32 0.0, %v1524
    %v1526 = vpop.f32.mrf.mxu0
    %1527 = vdwg.mxu0
    %v1536 = vunpack.c.l.b16 %v1472
    %v1537 = vunpack.c.l.b16 %v1473
    %v1538 = vunpack.c.l.b16 %v1474
    %v1539 = vunpack.c.l.b16 %v1475
    %v1540 = vunpack.c.l.b16 %v1476
    %v1541 = vunpack.c.l.b16 %v1477
    %v1542 = vunpack.c.l.b16 %v1478
    %v1543 = vunpack.c.l.b16 %v1479
    %v1544 = vpack.c.b16 %v1537, %v1536
    %v1545 = vpack.c.b16 %v1539, %v1538
    %v1546 = vpack.c.b16 %v1541, %v1540
    %v1547 = vpack.c.b16 %v1543, %v1542
    %v1549 = vsel %vm291, %v1463, 0
    %v1552 = vsel %vm291, %v1544, 0
    %v1555 = vsel %vm291, %v1545, 0
    %v1558 = vsel %vm291, %v1546, 0
    %v1561 = vsel %vm291, %v1547, 0
    %1563 = vmatpush.bf16.xpose.msra.mxu0 0
    %1564 = vmatpush.bf16.xpose.msra.mxu0 0
    %1565 = vmatpush.bf16.xpose.msra.mxu0 0
    %1566 = vmatpush.bf16.xpose.msra.mxu0 0
    %1567 = vmatpush.bf16.xpose.msra.mxu0 %v1561
    %1568 = vmatpush.bf16.xpose.msra.mxu0 %v1558
    %1569 = vmatpush.bf16.xpose.msra.mxu0 %v1555
    %1570 = vmatpush.bf16.xpose.msra.mxu0 %v1552
    %1571 = vmatmul.bf16.gmra.mxu0 %v1549
    %v1572 = vpop.f32.mrf.mxu0
    %v1573 = vadd.f32 0.0, %v1572
    %v1574 = vpop.f32.mrf.mxu0
    %1575 = vdwg.mxu0
    %vm1576 = vcmask 523264
    %v1577 = vsel %vm1576, %v1525, -inf
    %1578 = vmax.xlane.f32.xlu0 %v1577
    %v1579 = vpop.xlane.xlu0 %1578
    %v1580 = vsel %vm1576, %v1573, -inf
    %1581 = vmax.xlane.f32.xlu0 %v1580
    %v1582 = vpop.xlane.xlu0 %1581
    %v1583 = vsub.f32 %v1525, %v1579
    %v1584 = vsub.f32 %v1573, %v1582
    %v1585 = vmul.f32 %v1583, 1.442695
    %v1586 = vpow.pop %v1585
    %v1587 = vmul.f32 %v1584, 1.442695
    %v1588 = vpow.pop %v1587
    %v1589 = vsel %vm1576, %v1586, 0.0
    %1590 = vadd.xlane.f32.xlu0 %v1589
    %v1591 = vpop.xlane.xlu0 %1590
    %v1592 = vsel %vm1576, %v1588, 0.0
    %1593 = vadd.xlane.f32.xlu0 %v1592
    %v1594 = vpop.xlane.xlu0 %1593
    %v1595 = vrcp.pop %v1591
    %v1596 = vrcp.pop %v1594
    %v1597 = vmul.f32 %v1586, %v1595
    %v1598 = vmul.f32 %v1588, %v1596
    %v1599 = vpack.c.bf16 %v1597, %v1597
    %v1600 = vpack.c.bf16 %v1598, %v1598
    %1601 = vrot.lane.b32.xlu0 %v1496, 96
    %v1602 = vpop.permute.xlu0 %1601
    %1603 = vrot.lane.b32.xlu0 %v1497, 96
    %v1604 = vpop.permute.xlu0 %1603
    %1605 = vrot.lane.b32.xlu0 %v1498, 96
    %v1606 = vpop.permute.xlu0 %1605
    %1607 = vrot.lane.b32.xlu0 %v1499, 96
    %v1608 = vpop.permute.xlu0 %1607
    %v1614 = vsel %vm1576, %v1599, 0
    %1616 = vmatpush.bf16.msra.mxu0 0
    %1617 = vmatpush.bf16.msra.mxu0 0
    %1618 = vmatpush.bf16.msra.mxu0 0
    %1619 = vmatpush.bf16.msra.mxu0 0
    %1620 = vmatpush.bf16.msra.mxu0 %v1608
    %1621 = vmatpush.bf16.msra.mxu0 %v1606
    %1622 = vmatpush.bf16.msra.mxu0 %v1604
    %1623 = vmatpush.bf16.msra.mxu0 %v1602
    %1624 = vmatmul.bf16.gmra.mxu0 %v1614
    %v1625 = vpop.f32.mrf.mxu0
    %v1626 = vadd.f32 0.0, %v1625
    %v1627 = vpop.f32.mrf.mxu0
    %1628 = vdwg.mxu0
    %1629 = vrot.lane.b32.xlu0 %v1544, 96
    %v1630 = vpop.permute.xlu0 %1629
    %1631 = vrot.lane.b32.xlu0 %v1545, 96
    %v1632 = vpop.permute.xlu0 %1631
    %1633 = vrot.lane.b32.xlu0 %v1546, 96
    %v1634 = vpop.permute.xlu0 %1633
    %1635 = vrot.lane.b32.xlu0 %v1547, 96
    %v1636 = vpop.permute.xlu0 %1635
    %v1642 = vsel %vm1576, %v1600, 0
    %1644 = vmatpush.bf16.msra.mxu0 0
    %1645 = vmatpush.bf16.msra.mxu0 0
    %1646 = vmatpush.bf16.msra.mxu0 0
    %1647 = vmatpush.bf16.msra.mxu0 0
    %1648 = vmatpush.bf16.msra.mxu0 %v1636
    %1649 = vmatpush.bf16.msra.mxu0 %v1634
    %1650 = vmatpush.bf16.msra.mxu0 %v1632
    %1651 = vmatpush.bf16.msra.mxu0 %v1630
    %1652 = vmatmul.bf16.gmra.mxu0 %v1642
    %v1653 = vpop.f32.mrf.mxu0
    %v1654 = vadd.f32 0.0, %v1653
    %v1655 = vpop.f32.mrf.mxu0
    %1656 = vdwg.mxu0
    %v1658 = vunpack.c.l.b16 %v1462
    %v1659 = vpack.c.b16 %v1658, %v1658
    %1660 = vrot.lane.b32.xlu0 %v1659, 112
    %v1661 = vpop.permute.xlu0 %1660
    %1662 = vrot.lane.b32.xlu0 %v1496, 112
    %v1663 = vpop.permute.xlu0 %1662
    %1664 = vrot.lane.b32.xlu0 %v1497, 112
    %v1665 = vpop.permute.xlu0 %1664
    %1666 = vrot.lane.b32.xlu0 %v1498, 112
    %v1667 = vpop.permute.xlu0 %1666
    %1668 = vrot.lane.b32.xlu0 %v1499, 112
    %v1669 = vpop.permute.xlu0 %1668
    %v1671 = vsel %vm291, %v1661, 0
    %v1674 = vsel %vm291, %v1663, 0
    %v1677 = vsel %vm291, %v1665, 0
    %v1680 = vsel %vm291, %v1667, 0
    %v1683 = vsel %vm291, %v1669, 0
    %1685 = vmatpush.bf16.xpose.msra.mxu0 0
    %1686 = vmatpush.bf16.xpose.msra.mxu0 0
    %1687 = vmatpush.bf16.xpose.msra.mxu0 0
    %1688 = vmatpush.bf16.xpose.msra.mxu0 0
    %1689 = vmatpush.bf16.xpose.msra.mxu0 %v1683
    %1690 = vmatpush.bf16.xpose.msra.mxu0 %v1680
    %1691 = vmatpush.bf16.xpose.msra.mxu0 %v1677
    %1692 = vmatpush.bf16.xpose.msra.mxu0 %v1674
    %1693 = vmatmul.bf16.gmra.mxu0 %v1671
    %v1694 = vpop.f32.mrf.mxu0
    %v1695 = vadd.f32 0.0, %v1694
    %v1696 = vpop.f32.mrf.mxu0
    %1697 = vdwg.mxu0
    %v1699 = vunpack.c.l.b16 %v1463
    %v1700 = vpack.c.b16 %v1699, %v1699
    %1701 = vrot.lane.b32.xlu0 %v1700, 112
    %v1702 = vpop.permute.xlu0 %1701
    %1703 = vrot.lane.b32.xlu0 %v1544, 112
    %v1704 = vpop.permute.xlu0 %1703
    %1705 = vrot.lane.b32.xlu0 %v1545, 112
    %v1706 = vpop.permute.xlu0 %1705
    %1707 = vrot.lane.b32.xlu0 %v1546, 112
    %v1708 = vpop.permute.xlu0 %1707
    %1709 = vrot.lane.b32.xlu0 %v1547, 112
    %v1710 = vpop.permute.xlu0 %1709
    %v1712 = vsel %vm291, %v1702, 0
    %v1715 = vsel %vm291, %v1704, 0
    %v1718 = vsel %vm291, %v1706, 0
    %v1721 = vsel %vm291, %v1708, 0
    %v1724 = vsel %vm291, %v1710, 0
    %1726 = vmatpush.bf16.xpose.msra.mxu0 0
    %1727 = vmatpush.bf16.xpose.msra.mxu0 0
    %1728 = vmatpush.bf16.xpose.msra.mxu0 0
    %1729 = vmatpush.bf16.xpose.msra.mxu0 0
    %1730 = vmatpush.bf16.xpose.msra.mxu0 %v1724
    %1731 = vmatpush.bf16.xpose.msra.mxu0 %v1721
    %1732 = vmatpush.bf16.xpose.msra.mxu0 %v1718
    %1733 = vmatpush.bf16.xpose.msra.mxu0 %v1715
    %1734 = vmatmul.bf16.gmra.mxu0 %v1712
    %v1735 = vpop.f32.mrf.mxu0
    %v1736 = vadd.f32 0.0, %v1735
    %v1737 = vpop.f32.mrf.mxu0
    %1738 = vdwg.mxu0
    %v1739 = vsel %vm1576, %v1695, -inf
    %1740 = vmax.xlane.f32.xlu0 %v1739
    %v1741 = vpop.xlane.xlu0 %1740
    %v1742 = vsel %vm1576, %v1736, -inf
    %1743 = vmax.xlane.f32.xlu0 %v1742
    %v1744 = vpop.xlane.xlu0 %1743
    %v1745 = vsub.f32 %v1695, %v1741
    %v1746 = vsub.f32 %v1736, %v1744
    %v1747 = vmul.f32 %v1745, 1.442695
    %v1748 = vpow.pop %v1747
    %v1749 = vmul.f32 %v1746, 1.442695
    %v1750 = vpow.pop %v1749
    %v1751 = vsel %vm1576, %v1748, 0.0
    %1752 = vadd.xlane.f32.xlu0 %v1751
    %v1753 = vpop.xlane.xlu0 %1752
    %v1754 = vsel %vm1576, %v1750, 0.0
    %1755 = vadd.xlane.f32.xlu0 %v1754
    %v1756 = vpop.xlane.xlu0 %1755
    %v1757 = vrcp.pop %v1753
    %v1758 = vrcp.pop %v1756
    %v1759 = vmul.f32 %v1748, %v1757
    %v1760 = vmul.f32 %v1750, %v1758
    %v1761 = vpack.c.bf16 %v1759, %v1759
    %v1762 = vpack.c.bf16 %v1760, %v1760
    %1763 = vrot.lane.b32.xlu0 %v1496, 80
    %v1764 = vpop.permute.xlu0 %1763
    %1765 = vrot.lane.b32.xlu0 %v1497, 80
    %v1766 = vpop.permute.xlu0 %1765
    %1767 = vrot.lane.b32.xlu0 %v1498, 80
    %v1768 = vpop.permute.xlu0 %1767
    %1769 = vrot.lane.b32.xlu0 %v1499, 80
    %v1770 = vpop.permute.xlu0 %1769
    %v1776 = vsel %vm1576, %v1761, 0
    %1778 = vmatpush.bf16.msra.mxu0 0
    %1779 = vmatpush.bf16.msra.mxu0 0
    %1780 = vmatpush.bf16.msra.mxu0 0
    %1781 = vmatpush.bf16.msra.mxu0 0
    %1782 = vmatpush.bf16.msra.mxu0 %v1770
    %1783 = vmatpush.bf16.msra.mxu0 %v1768
    %1784 = vmatpush.bf16.msra.mxu0 %v1766
    %1785 = vmatpush.bf16.msra.mxu0 %v1764
    %1786 = vmatmul.bf16.gmra.mxu0 %v1776
    %v1787 = vpop.f32.mrf.mxu0
    %v1788 = vadd.f32 0.0, %v1787
    %v1789 = vpop.f32.mrf.mxu0
    %1790 = vdwg.mxu0
    %1791 = vrot.lane.b32.xlu0 %v1544, 80
    %v1792 = vpop.permute.xlu0 %1791
    %1793 = vrot.lane.b32.xlu0 %v1545, 80
    %v1794 = vpop.permute.xlu0 %1793
    %1795 = vrot.lane.b32.xlu0 %v1546, 80
    %v1796 = vpop.permute.xlu0 %1795
    %1797 = vrot.lane.b32.xlu0 %v1547, 80
    %v1798 = vpop.permute.xlu0 %1797
    %v1804 = vsel %vm1576, %v1762, 0
    %1806 = vmatpush.bf16.msra.mxu0 0
    %1807 = vmatpush.bf16.msra.mxu0 0
    %1808 = vmatpush.bf16.msra.mxu0 0
    %1809 = vmatpush.bf16.msra.mxu0 0
    %1810 = vmatpush.bf16.msra.mxu0 %v1798
    %1811 = vmatpush.bf16.msra.mxu0 %v1796
    %1812 = vmatpush.bf16.msra.mxu0 %v1794
    %1813 = vmatpush.bf16.msra.mxu0 %v1792
    %1814 = vmatmul.bf16.gmra.mxu0 %v1804
    %v1815 = vpop.f32.mrf.mxu0
    %v1816 = vadd.f32 0.0, %v1815
    %v1817 = vpop.f32.mrf.mxu0
    %1818 = vdwg.mxu0
    %1821 = vrot.lane.b32.xlu0 %v1788, 16
    %v1822 = vpop.permute.xlu0 %1821
    %1823 = vrot.lane.b32.xlu0 %v1816, 16
    %v1824 = vpop.permute.xlu0 %1823
    %v1827 = vsel %vm291, %v1626, %v1822
    %v1828 = vsel %vm291, %v1654, %v1824
    %v1829 = vld [vmem:[%s7] sm:$0xf]
    %v1830 = vld [vmem:[%s7 + $0x4] sm:$0xf]
    %v1831 = vld [vmem:[%s7 + $0x8] sm:$0xf]
    %v1832 = vld [vmem:[%s7 + $0xc] sm:$0xf]
    %v1833 = vpack.c.bf16 %v1828, %v1827
    %v1838 = vunpack.c.l.b16 %v1829
    %v1839 = vunpack.c.l.b16 %v1830
    %v1840 = vunpack.c.l.b16 %v1831
    %v1841 = vunpack.c.l.b16 %v1832
    %v1842 = vpack.c.b16 %v1839, %v1838
    %v1843 = vpack.c.b16 %v1841, %v1840
    %v1847 = vsel %vm877, %v1833, 0
    %1849 = vmatpush.bf16.msra.mxu0 0
    %1850 = vmatpush.bf16.msra.mxu0 0
    %1851 = vmatpush.bf16.msra.mxu0 0
    %1852 = vmatpush.bf16.msra.mxu0 0
    %1853 = vmatpush.bf16.msra.mxu0 0
    %1854 = vmatpush.bf16.msra.mxu0 0
    %1855 = vmatpush.bf16.msra.mxu0 %v1843
    %1856 = vmatpush.bf16.msra.mxu0 %v1842
    %1857 = vmatmul.bf16.gmra.mxu0 %v1847
    %v1858 = vpop.f32.mrf.mxu0
    %v1859 = vadd.f32 0.0, %v1858
    %v1860 = vpop.f32.mrf.mxu0
    %v1861 = vadd.f32 0.0, %v1860
    %1862 = vdwg.mxu0
    %v1863 = vadd.f32 %v233, %v1859
    %v1864 = vadd.f32 %v234, %v1861
    %v1865 = vld [vmem:[#allocation11] sm:$0x1]
    %v1866 = vsel %vm877, %v1863, 0.0
    %1867 = vadd.xlane.f32.xlu0 %v1866
    %v1868 = vpop.xlane.xlu0 %1867
    %v1869 = vsel %vm877, %v1864, 0.0
    %1870 = vadd.xlane.f32.xlu0 %v1869
    %v1871 = vpop.xlane.xlu0 %1870
    %v1872 = vmul.f32 %v1868, %v890
    %v1873 = vmul.f32 %v1871, %v890
    %v1874 = vsub.f32 %v1863, %v1872
    %v1875 = vsub.f32 %v1864, %v1873
    %v1876 = vmul.f32 %v1874, %v1874
    %v1877 = vmul.f32 %v1875, %v1875
    %v1878 = vsel %vm877, %v1876, 0.0
    %1879 = vadd.xlane.f32.xlu0 %v1878
    %v1880 = vpop.xlane.xlu0 %1879
    %v1881 = vsel %vm877, %v1877, 0.0
    %1882 = vadd.xlane.f32.xlu0 %v1881
    %v1883 = vpop.xlane.xlu0 %1882
    %v1884 = vmul.f32 %v1880, %v890
    %v1885 = vmul.f32 %v1883, %v890
    %v1886 = vadd.f32 %v1884, 1e-05
    %v1887 = vadd.f32 %v1885, 1e-05
    %v1888 = vrsqrt.pop %v1886
    %v1889 = vmul.f32 %v1888, %v1886
    %v1890 = vmul.f32 %v1889, %v1888
    %v1891 = vmul.f32 0.5, %v1890
    %v1892 = vsub.f32 1.5, %v1891
    %v1893 = vmul.f32 %v1888, %v1892
    %vm1894 = vweird.f32 %v1886
    %vm1895 = vweird.f32 %v1888
    %vm1896 = vmor %vm1894, %vm1895
    %v1897 = vsel %vm1896, %v1888, %v1893
    %v1898 = vrsqrt.pop %v1887
    %v1899 = vmul.f32 %v1898, %v1887
    %v1900 = vmul.f32 %v1899, %v1898
    %v1901 = vmul.f32 0.5, %v1900
    %v1902 = vsub.f32 1.5, %v1901
    %v1903 = vmul.f32 %v1898, %v1902
    %vm1904 = vweird.f32 %v1887
    %vm1905 = vweird.f32 %v1898
    %vm1906 = vmor %vm1904, %vm1905
    %v1907 = vsel %vm1906, %v1898, %v1903
    %v1908 = vmul.f32 %v1874, %v1897
    %v1909 = vmul.f32 %v1875, %v1907
    %v1911 = vperm.slane %v1865, 0
    %v1913 = vmul.f32 %v1908, %v1911
    %v1914 = vmul.f32 %v1909, %v1911
    %v1916 = vrot.slane %v331, 1
    %v1918 = vadd.f32 %v331, 1.0
    %v1919 = vadd.f32 %v1916, 1.0
    %v1922 = vperm.slane %v1918, 0
    %v1923 = vperm.slane %v1919, 0
    %v1926 = vmul.f32 %v1913, %v1922
    %v1927 = vmul.f32 %v1914, %v1923
    %v1928 = vperm.slane %v331, 0
    %v1929 = vperm.slane %v1916, 0
    %1930 = vrot.lane.b32.xlu0 %v1928, 96
    %v1931 = vpop.permute.xlu0 %1930
    %1932 = vrot.lane.b32.xlu0 %v1929, 96
    %v1933 = vpop.permute.xlu0 %1932
    %v1936 = vadd.f32 %v1926, %v1931
    %v1937 = vadd.f32 %v1927, %v1933
    %v1938 = vld [vmem:[%s9] sm:$0xf]
    %v1939 = vld [vmem:[%s9 + $0x4] sm:$0xf]
    %v1940 = vld [vmem:[%s9 + $0x8] sm:$0xf]
    %v1941 = vld [vmem:[%s9 + $0xc] sm:$0xf]
    %v1942 = vpack.c.bf16 %v1937, %v1936
    %v1943 = vld [vmem:[#allocation13] sm:$0x1]
    %v1945 = vperm.slane %v1943, 0
    %v1951 = vunpack.c.l.b16 %v1938
    %v1952 = vunpack.c.l.b16 %v1939
    %v1953 = vunpack.c.l.b16 %v1940
    %v1954 = vunpack.c.l.b16 %v1941
    %v1955 = vpack.c.b16 %v1952, %v1951
    %v1956 = vpack.c.b16 %v1954, %v1953
    %v1960 = vsel %vm877, %v1942, 0
    %1962 = vmatpush.bf16.msra.mxu0 0
    %1963 = vmatpush.bf16.msra.mxu0 0
    %1964 = vmatpush.bf16.msra.mxu0 0
    %1965 = vmatpush.bf16.msra.mxu0 0
    %1966 = vmatpush.bf16.msra.mxu0 0
    %1967 = vmatpush.bf16.msra.mxu0 0
    %1968 = vmatpush.bf16.msra.mxu0 %v1956
    %1969 = vmatpush.bf16.msra.mxu0 %v1955
    %1970 = vmatmul.bf16.gmra.mxu0 %v1960
    %v1971 = vpop.f32.mrf.mxu0
    %v1972 = vadd.f32 %v1945, %v1971
    %v1973 = vpop.f32.mrf.mxu0
    %v1974 = vadd.f32 %v1945, %v1973
    %1975 = vdwg.mxu0
    %v1976 = vmul.f32 %v1972, %v1972
    %v1977 = vmul.f32 %v1974, %v1974
    %v1978 = vmul.f32 %v1972, %v1976
    %v1979 = vmul.f32 %v1974, %v1977
    %v1980 = vmul.f32 %v1978, 0.044715
    %v1981 = vmul.f32 %v1979, 0.044715
    %v1982 = vadd.f32 %v1972, %v1980
    %v1983 = vadd.f32 %v1974, %v1981
    %v1984 = vmul.f32 %v1982, 0.7978846
    %v1985 = vmul.f32 %v1983, 0.7978846
    %v1986 = vtanh.pop %v1984
    %v1987 = vtanh.pop %v1985
    %v1988 = vadd.f32 %v1986, 1.0
    %v1989 = vadd.f32 %v1987, 1.0
    %v1990 = vmul.f32 %v1988, 0.5
    %v1991 = vmul.f32 %v1989, 0.5
    %v1992 = vmul.f32 %v1972, %v1990
    %v1993 = vmul.f32 %v1974, %v1991
    %v1994 = vld [vmem:[#allocation14] sm:$0xf]
    %v1995 = vld [vmem:[#allocation14 + $0x4] sm:$0xf]
    %v1996 = vld [vmem:[#allocation14 + $0x8] sm:$0xf]
    %v1997 = vld [vmem:[#allocation14 + $0xc] sm:$0xf]
    %v1998 = vld [vmem:[#allocation14 + $0x10] sm:$0xf]
    %v1999 = vld [vmem:[#allocation14 + $0x14] sm:$0xf]
    %v2000 = vld [vmem:[#allocation14 + $0x18] sm:$0xf]
    %v2001 = vld [vmem:[#allocation14 + $0x1c] sm:$0xf]
    %v2002 = vld [vmem:[#allocation14 + $0x20] sm:$0xf]
    %v2003 = vld [vmem:[#allocation14 + $0x24] sm:$0xf]
    %v2004 = vld [vmem:[#allocation14 + $0x28] sm:$0xf]
    %v2005 = vld [vmem:[#allocation14 + $0x2c] sm:$0xf]
    %v2006 = vld [vmem:[#allocation14 + $0x30] sm:$0xf]
    %v2007 = vld [vmem:[#allocation14 + $0x34] sm:$0xf]
    %v2008 = vld [vmem:[#allocation14 + $0x38] sm:$0xf]
    %v2009 = vld [vmem:[#allocation14 + $0x3c] sm:$0xf]
    %v2010 = vpack.c.bf16 %v1993, %v1992
    %v2027 = vunpack.c.l.b16 %v1994
    %v2028 = vunpack.c.l.b16 %v1995
    %v2029 = vunpack.c.l.b16 %v1996
    %v2030 = vunpack.c.l.b16 %v1997
    %v2031 = vunpack.c.l.b16 %v1998
    %v2032 = vunpack.c.l.b16 %v1999
    %v2033 = vunpack.c.l.b16 %v2000
    %v2034 = vunpack.c.l.b16 %v2001
    %v2035 = vunpack.c.l.b16 %v2002
    %v2036 = vunpack.c.l.b16 %v2003
    %v2037 = vunpack.c.l.b16 %v2004
    %v2038 = vunpack.c.l.b16 %v2005
    %v2039 = vunpack.c.l.b16 %v2006
    %v2040 = vunpack.c.l.b16 %v2007
    %v2041 = vunpack.c.l.b16 %v2008
    %v2042 = vunpack.c.l.b16 %v2009
    %v2043 = vpack.c.b16 %v2028, %v2027
    %v2044 = vpack.c.b16 %v2030, %v2029
    %v2045 = vpack.c.b16 %v2032, %v2031
    %v2046 = vpack.c.b16 %v2034, %v2033
    %v2047 = vpack.c.b16 %v2036, %v2035
    %v2048 = vpack.c.b16 %v2038, %v2037
    %v2049 = vpack.c.b16 %v2040, %v2039
    %v2050 = vpack.c.b16 %v2042, %v2041
    %2059 = vmatpush.bf16.msra.mxu0 %v2050
    %2060 = vmatpush.bf16.msra.mxu0 %v2049
    %2061 = vmatpush.bf16.msra.mxu0 %v2048
    %2062 = vmatpush.bf16.msra.mxu0 %v2047
    %2063 = vmatpush.bf16.msra.mxu0 %v2046
    %2064 = vmatpush.bf16.msra.mxu0 %v2045
    %2065 = vmatpush.bf16.msra.mxu0 %v2044
    %2066 = vmatpush.bf16.msra.mxu0 %v2043
    %2067 = vmatmul.bf16.gmra.mxu0 %v2010
    %v2068 = vpop.f32.mrf.mxu0
    %v2069 = vadd.f32 0.0, %v2068
    %v2070 = vpop.f32.mrf.mxu0
    %v2071 = vadd.f32 0.0, %v2070
    %2072 = vdwg.mxu0
    %v2073 = vadd.f32 %v1863, %v2069
    %v2074 = vadd.f32 %v1864, %v2071
    %v2075 = vld [vmem:[%s12] sm:$0x1]
    %v2077 = vperm.slane %v2075, 0
    %v2079 = vadd.f32 %v2073, %v2077
    %v2080 = vadd.f32 %v2074, %v2077
    %s2081 = scalar_lea.vmem [#allocation7], 1
    %v2082 = vld [vmem:[%s2081] sm:$0x1]
    %v2083 = vsel %vm877, %v2079, 0.0
    %2084 = vadd.xlane.f32.xlu0 %v2083
    %v2085 = vpop.xlane.xlu0 %2084
    %v2086 = vsel %vm877, %v2080, 0.0
    %2087 = vadd.xlane.f32.xlu0 %v2086
    %v2088 = vpop.xlane.xlu0 %2087
    %v2089 = vmul.f32 %v2085, %v890
    %v2090 = vmul.f32 %v2088, %v890
    %v2091 = vsub.f32 %v2079, %v2089
    %v2092 = vsub.f32 %v2080, %v2090
    %v2093 = vmul.f32 %v2091, %v2091
    %v2094 = vmul.f32 %v2092, %v2092
    %v2095 = vsel %vm877, %v2093, 0.0
    %2096 = vadd.xlane.f32.xlu0 %v2095
    %v2097 = vpop.xlane.xlu0 %2096
    %v2098 = vsel %vm877, %v2094, 0.0
    %2099 = vadd.xlane.f32.xlu0 %v2098
    %v2100 = vpop.xlane.xlu0 %2099
    %v2101 = vmul.f32 %v2097, %v890
    %v2102 = vmul.f32 %v2100, %v890
    %v2103 = vadd.f32 %v2101, 1e-05
    %v2104 = vadd.f32 %v2102, 1e-05
    %v2105 = vrsqrt.pop %v2103
    %v2106 = vmul.f32 %v2105, %v2103
    %v2107 = vmul.f32 %v2106, %v2105
    %v2108 = vmul.f32 0.5, %v2107
    %v2109 = vsub.f32 1.5, %v2108
    %v2110 = vmul.f32 %v2105, %v2109
    %vm2111 = vweird.f32 %v2103
    %vm2112 = vweird.f32 %v2105
    %vm2113 = vmor %vm2111, %vm2112
    %v2114 = vsel %vm2113, %v2105, %v2110
    %v2115 = vrsqrt.pop %v2104
    %v2116 = vmul.f32 %v2115, %v2104
    %v2117 = vmul.f32 %v2116, %v2115
    %v2118 = vmul.f32 0.5, %v2117
    %v2119 = vsub.f32 1.5, %v2118
    %v2120 = vmul.f32 %v2115, %v2119
    %vm2121 = vweird.f32 %v2104
    %vm2122 = vweird.f32 %v2115
    %vm2123 = vmor %vm2121, %vm2122
    %v2124 = vsel %vm2123, %v2115, %v2120
    %v2125 = vmul.f32 %v2091, %v2114
    %v2126 = vmul.f32 %v2092, %v2124
    %v2128 = vperm.slane %v2082, 0
    %v2130 = vmul.f32 %v2125, %v2128
    %v2131 = vmul.f32 %v2126, %v2128
    %2132 = vrot.lane.b32.xlu0 %v1313, 64
    %v2133 = vpop.permute.xlu0 %2132
    %2134 = vrot.lane.b32.xlu0 %v1314, 64
    %v2135 = vpop.permute.xlu0 %2134
    %v2138 = vmul.f32 %v2130, %v2133
    %v2139 = vmul.f32 %v2131, %v2135
    %2140 = vrot.lane.b32.xlu0 %v1319, 32
    %v2141 = vpop.permute.xlu0 %2140
    %2142 = vrot.lane.b32.xlu0 %v1320, 32
    %v2143 = vpop.permute.xlu0 %2142
    %v2146 = vadd.f32 %v2138, %v2141
    %v2147 = vadd.f32 %v2139, %v2143
    %s2148 = scalar_lea.vmem [#allocation10], 16
    %v2149 = vld [vmem:[%s2148] sm:$0xf]
    %v2150 = vld [vmem:[%s2148 + $0x4] sm:$0xf]
    %v2151 = vld [vmem:[%s2148 + $0x8] sm:$0xf]
    %v2152 = vld [vmem:[%s2148 + $0xc] sm:$0xf]
    %v2153 = vpack.c.bf16 %v2147, %v2146
    %v2158 = vunpack.c.l.b16 %v2149
    %v2159 = vunpack.c.l.b16 %v2150
    %v2160 = vunpack.c.l.b16 %v2151
    %v2161 = vunpack.c.l.b16 %v2152
    %v2162 = vpack.c.b16 %v2159, %v2158
    %v2163 = vpack.c.b16 %v2161, %v2160
    %v2167 = vsel %vm877, %v2153, 0
    %2169 = vmatpush.bf16.msra.mxu0 0
    %2170 = vmatpush.bf16.msra.mxu0 0
    %2171 = vmatpush.bf16.msra.mxu0 0
    %2172 = vmatpush.bf16.msra.mxu0 0
    %2173 = vmatpush.bf16.msra.mxu0 0
    %2174 = vmatpush.bf16.msra.mxu0 0
    %2175 = vmatpush.bf16.msra.mxu0 %v2163
    %2176 = vmatpush.bf16.msra.mxu0 %v2162
    %2177 = vmatmul.bf16.gmra.mxu0 %v2167
    %v2178 = vpop.f32.mrf.mxu0
    %v2179 = vadd.f32 0.0, %v2178
    %v2180 = vpop.f32.mrf.mxu0
    %v2181 = vadd.f32 0.0, %v2180
    %2182 = vdwg.mxu0
    %v2183 = vmul.f32 %v2179, 0.25
    %v2184 = vmul.f32 %v2181, 0.25
    %s2185 = scalar_lea.vmem %s6, 16
    %v2186 = vld [vmem:[%s2185] sm:$0xf]
    %v2187 = vld [vmem:[%s2185 + $0x4] sm:$0xf]
    %v2188 = vld [vmem:[%s2185 + $0x8] sm:$0xf]
    %v2189 = vld [vmem:[%s2185 + $0xc] sm:$0xf]
    %v2190 = vpack.c.bf16 %v2131, %v2130
    %v2195 = vunpack.c.l.b16 %v2186
    %v2196 = vunpack.c.l.b16 %v2187
    %v2197 = vunpack.c.l.b16 %v2188
    %v2198 = vunpack.c.l.b16 %v2189
    %v2199 = vpack.c.b16 %v2196, %v2195
    %v2200 = vpack.c.b16 %v2198, %v2197
    %v2204 = vsel %vm877, %v2190, 0
    %2206 = vmatpush.bf16.msra.mxu0 0
    %2207 = vmatpush.bf16.msra.mxu0 0
    %2208 = vmatpush.bf16.msra.mxu0 0
    %2209 = vmatpush.bf16.msra.mxu0 0
    %2210 = vmatpush.bf16.msra.mxu0 0
    %2211 = vmatpush.bf16.msra.mxu0 0
    %2212 = vmatpush.bf16.msra.mxu0 %v2200
    %2213 = vmatpush.bf16.msra.mxu0 %v2199
    %2214 = vmatmul.bf16.gmra.mxu0 %v2204
    %v2215 = vpop.f32.mrf.mxu0
    %v2216 = vadd.f32 0.0, %v2215
    %v2217 = vpop.f32.mrf.mxu0
    %v2218 = vadd.f32 0.0, %v2217
    %2219 = vdwg.mxu0
    %v2220 = vpack.c.bf16 %v2183, %v2183
    %v2221 = vpack.c.bf16 %v2184, %v2184
    %v2222 = vpack.c.bf16 %v2216, %v2216
    %v2223 = vpack.c.bf16 %v2218, %v2218
    %v2225 = vsel %vm291, %v2220, 0
    %v2228 = vsel %vm291, %v2222, 0
    %2230 = vmatpush.bf16.xpose.msra.mxu0 0
    %2231 = vmatpush.bf16.xpose.msra.mxu0 0
    %2232 = vmatpush.bf16.xpose.msra.mxu0 0
    %2233 = vmatpush.bf16.xpose.msra.mxu0 0
    %2234 = vmatpush.bf16.xpose.msra.mxu0 0
    %2235 = vmatpush.bf16.xpose.msra.mxu0 0
    %2236 = vmatpush.bf16.xpose.msra.mxu0 0
    %2237 = vmatpush.bf16.xpose.msra.mxu0 %v2228
    %2238 = vmatmul.bf16.gmra.mxu0 %v2225
    %v2239 = vpop.f32.mrf.mxu0
    %v2240 = vadd.f32 0.0, %v2239
    %v2241 = vpop.f32.mrf.mxu0
    %2242 = vdwg.mxu0
    %v2244 = vsel %vm291, %v2221, 0
    %v2247 = vsel %vm291, %v2223, 0
    %2249 = vmatpush.bf16.xpose.msra.mxu0 0
    %2250 = vmatpush.bf16.xpose.msra.mxu0 0
    %2251 = vmatpush.bf16.xpose.msra.mxu0 0
    %2252 = vmatpush.bf16.xpose.msra.mxu0 0
    %2253 = vmatpush.bf16.xpose.msra.mxu0 0
    %2254 = vmatpush.bf16.xpose.msra.mxu0 0
    %2255 = vmatpush.bf16.xpose.msra.mxu0 0
    %2256 = vmatpush.bf16.xpose.msra.mxu0 %v2247
    %2257 = vmatmul.bf16.gmra.mxu0 %v2244
    %v2258 = vpop.f32.mrf.mxu0
    %v2259 = vadd.f32 0.0, %v2258
    %v2260 = vpop.f32.mrf.mxu0
    %2261 = vdwg.mxu0
    %vm2262 = vcmask 64512
    %v2263 = vsel %vm2262, %v2240, -inf
    %2264 = vmax.xlane.f32.xlu0 %v2263
    %v2265 = vpop.xlane.xlu0 %2264
    %v2266 = vsel %vm2262, %v2259, -inf
    %2267 = vmax.xlane.f32.xlu0 %v2266
    %v2268 = vpop.xlane.xlu0 %2267
    %v2269 = vsub.f32 %v2240, %v2265
    %v2270 = vsub.f32 %v2259, %v2268
    %v2271 = vmul.f32 %v2269, 1.442695
    %v2272 = vpow.pop %v2271
    %v2273 = vmul.f32 %v2270, 1.442695
    %v2274 = vpow.pop %v2273
    %v2275 = vsel %vm2262, %v2272, 0.0
    %2276 = vadd.xlane.f32.xlu0 %v2275
    %v2277 = vpop.xlane.xlu0 %2276
    %v2278 = vsel %vm2262, %v2274, 0.0
    %2279 = vadd.xlane.f32.xlu0 %v2278
    %v2280 = vpop.xlane.xlu0 %2279
    %v2281 = vrcp.pop %v2277
    %v2282 = vrcp.pop %v2280
    %v2283 = vmul.f32 %v2272, %v2281
    %v2284 = vmul.f32 %v2274, %v2282
    %v2285 = vpack.c.bf16 %v2283, %v2283
    %v2286 = vpack.c.bf16 %v2284, %v2284
    %v2288 = vunpack.c.l.b16 %v2222
    %v2289 = vpack.c.b16 %v2288, %v2288
    %2290 = vrot.lane.b32.xlu0 %v2289, 96
    %v2291 = vpop.permute.xlu0 %2290
    %v2293 = vsel %vm2262, %v2285, 0
    %vm2295 = vcmask 1043456
    %v2297 = vsel %vm2295, %v2291, 0
    %2299 = vmatpush.bf16.msra.mxu0 0
    %2300 = vmatpush.bf16.msra.mxu0 0
    %2301 = vmatpush.bf16.msra.mxu0 0
    %2302 = vmatpush.bf16.msra.mxu0 0
    %2303 = vmatpush.bf16.msra.mxu0 0
    %2304 = vmatpush.bf16.msra.mxu0 0
    %2305 = vmatpush.bf16.msra.mxu0 0
    %2306 = vmatpush.bf16.msra.mxu0 %v2297
    %2307 = vmatmul.bf16.gmra.mxu0 %v2293
    %v2308 = vpop.f32.mrf.mxu0
    %v2309 = vadd.f32 0.0, %v2308
    %v2310 = vpop.f32.mrf.mxu0
    %2311 = vdwg.mxu0
    %v2313 = vunpack.c.l.b16 %v2223
    %v2314 = vpack.c.b16 %v2313, %v2313
    %2315 = vrot.lane.b32.xlu0 %v2314, 96
    %v2316 = vpop.permute.xlu0 %2315
    %v2318 = vsel %vm2262, %v2286, 0
    %v2321 = vsel %vm2295, %v2316, 0
    %2323 = vmatpush.bf16.msra.mxu0 0
    %2324 = vmatpush.bf16.msra.mxu0 0
    %2325 = vmatpush.bf16.msra.mxu0 0
    %2326 = vmatpush.bf16.msra.mxu0 0
    %2327 = vmatpush.bf16.msra.mxu0 0
    %2328 = vmatpush.bf16.msra.mxu0 0
    %2329 = vmatpush.bf16.msra.mxu0 0
    %2330 = vmatpush.bf16.msra.mxu0 %v2321
    %2331 = vmatmul.bf16.gmra.mxu0 %v2318
    %v2332 = vpop.f32.mrf.mxu0
    %v2333 = vadd.f32 0.0, %v2332
    %v2334 = vpop.f32.mrf.mxu0
    %2335 = vdwg.mxu0
    %v2337 = vunpack.c.l.b16 %v2220
    %v2338 = vpack.c.b16 %v2337, %v2337
    %2339 = vrot.lane.b32.xlu0 %v2338, 112
    %v2340 = vpop.permute.xlu0 %2339
    %2341 = vrot.lane.b32.xlu0 %v2289, 112
    %v2342 = vpop.permute.xlu0 %2341
    %v2344 = vsel %vm291, %v2340, 0
    %v2347 = vsel %vm291, %v2342, 0
    %2349 = vmatpush.bf16.xpose.msra.mxu0 0
    %2350 = vmatpush.bf16.xpose.msra.mxu0 0
    %2351 = vmatpush.bf16.xpose.msra.mxu0 0
    %2352 = vmatpush.bf16.xpose.msra.mxu0 0
    %2353 = vmatpush.bf16.xpose.msra.mxu0 0
    %2354 = vmatpush.bf16.xpose.msra.mxu0 0
    %2355 = vmatpush.bf16.xpose.msra.mxu0 0
    %2356 = vmatpush.bf16.xpose.msra.mxu0 %v2347
    %2357 = vmatmul.bf16.gmra.mxu0 %v2344
    %v2358 = vpop.f32.mrf.mxu0
    %v2359 = vadd.f32 0.0, %v2358
    %v2360 = vpop.f32.mrf.mxu0
    %2361 = vdwg.mxu0
    %v2363 = vunpack.c.l.b16 %v2221
    %v2364 = vpack.c.b16 %v2363, %v2363
    %2365 = vrot.lane.b32.xlu0 %v2364, 112
    %v2366 = vpop.permute.xlu0 %2365
    %2367 = vrot.lane.b32.xlu0 %v2314, 112
    %v2368 = vpop.permute.xlu0 %2367
    %v2370 = vsel %vm291, %v2366, 0
    %v2373 = vsel %vm291, %v2368, 0
    %2375 = vmatpush.bf16.xpose.msra.mxu0 0
    %2376 = vmatpush.bf16.xpose.msra.mxu0 0
    %2377 = vmatpush.bf16.xpose.msra.mxu0 0
    %2378 = vmatpush.bf16.xpose.msra.mxu0 0
    %2379 = vmatpush.bf16.xpose.msra.mxu0 0
    %2380 = vmatpush.bf16.xpose.msra.mxu0 0
    %2381 = vmatpush.bf16.xpose.msra.mxu0 0
    %2382 = vmatpush.bf16.xpose.msra.mxu0 %v2373
    %2383 = vmatmul.bf16.gmra.mxu0 %v2370
    %v2384 = vpop.f32.mrf.mxu0
    %v2385 = vadd.f32 0.0, %v2384
    %v2386 = vpop.f32.mrf.mxu0
    %2387 = vdwg.mxu0
    %v2388 = vsel %vm2262, %v2359, -inf
    %2389 = vmax.xlane.f32.xlu0 %v2388
    %v2390 = vpop.xlane.xlu0 %2389
    %v2391 = vsel %vm2262, %v2385, -inf
    %2392 = vmax.xlane.f32.xlu0 %v2391
    %v2393 = vpop.xlane.xlu0 %2392
    %v2394 = vsub.f32 %v2359, %v2390
    %v2395 = vsub.f32 %v2385, %v2393
    %v2396 = vmul.f32 %v2394, 1.442695
    %v2397 = vpow.pop %v2396
    %v2398 = vmul.f32 %v2395, 1.442695
    %v2399 = vpow.pop %v2398
    %v2400 = vsel %vm2262, %v2397, 0.0
    %2401 = vadd.xlane.f32.xlu0 %v2400
    %v2402 = vpop.xlane.xlu0 %2401
    %v2403 = vsel %vm2262, %v2399, 0.0
    %2404 = vadd.xlane.f32.xlu0 %v2403
    %v2405 = vpop.xlane.xlu0 %2404
    %v2406 = vrcp.pop %v2402
    %v2407 = vrcp.pop %v2405
    %v2408 = vmul.f32 %v2397, %v2406
    %v2409 = vmul.f32 %v2399, %v2407
    %v2410 = vpack.c.bf16 %v2408, %v2408
    %v2411 = vpack.c.bf16 %v2409, %v2409
    %2412 = vrot.lane.b32.xlu0 %v2289, 80
    %v2413 = vpop.permute.xlu0 %2412
    %v2415 = vsel %vm2262, %v2410, 0
    %v2418 = vsel %vm2295, %v2413, 0
    %2420 = vmatpush.bf16.msra.mxu0 0
    %2421 = vmatpush.bf16.msra.mxu0 0
    %2422 = vmatpush.bf16.msra.mxu0 0
    %2423 = vmatpush.bf16.msra.mxu0 0
    %2424 = vmatpush.bf16.msra.mxu0 0
    %2425 = vmatpush.bf16.msra.mxu0 0
    %2426 = vmatpush.bf16.msra.mxu0 0
    %2427 = vmatpush.bf16.msra.mxu0 %v2418
    %2428 = vmatmul.bf16.gmra.mxu0 %v2415
    %v2429 = vpop.f32.mrf.mxu0
    %v2430 = vadd.f32 0.0, %v2429
    %v2431 = vpop.f32.mrf.mxu0
    %2432 = vdwg.mxu0
    %2433 = vrot.lane.b32.xlu0 %v2314, 80
    %v2434 = vpop.permute.xlu0 %2433
    %v2436 = vsel %vm2262, %v2411, 0
    %v2439 = vsel %vm2295, %v2434, 0
    %2441 = vmatpush.bf16.msra.mxu0 0
    %2442 = vmatpush.bf16.msra.mxu0 0
    %2443 = vmatpush.bf16.msra.mxu0 0
    %2444 = vmatpush.bf16.msra.mxu0 0
    %2445 = vmatpush.bf16.msra.mxu0 0
    %2446 = vmatpush.bf16.msra.mxu0 0
    %2447 = vmatpush.bf16.msra.mxu0 0
    %2448 = vmatpush.bf16.msra.mxu0 %v2439
    %2449 = vmatmul.bf16.gmra.mxu0 %v2436
    %v2450 = vpop.f32.mrf.mxu0
    %v2451 = vadd.f32 0.0, %v2450
    %v2452 = vpop.f32.mrf.mxu0
    %2453 = vdwg.mxu0
    %2456 = vrot.lane.b32.xlu0 %v2430, 16
    %v2457 = vpop.permute.xlu0 %2456
    %2458 = vrot.lane.b32.xlu0 %v2451, 16
    %v2459 = vpop.permute.xlu0 %2458
    %v2462 = vsel %vm291, %v2309, %v2457
    %v2463 = vsel %vm291, %v2333, %v2459
    %s2464 = scalar_lea.vmem %s7, 16
    %v2465 = vld [vmem:[%s2464] sm:$0xf]
    %v2466 = vld [vmem:[%s2464 + $0x4] sm:$0xf]
    %v2467 = vld [vmem:[%s2464 + $0x8] sm:$0xf]
    %v2468 = vld [vmem:[%s2464 + $0xc] sm:$0xf]
    %v2469 = vpack.c.bf16 %v2463, %v2462
    %v2474 = vunpack.c.l.b16 %v2465
    %v2475 = vunpack.c.l.b16 %v2466
    %v2476 = vunpack.c.l.b16 %v2467
    %v2477 = vunpack.c.l.b16 %v2468
    %v2478 = vpack.c.b16 %v2475, %v2474
    %v2479 = vpack.c.b16 %v2477, %v2476
    %v2483 = vsel %vm877, %v2469, 0
    %2485 = vmatpush.bf16.msra.mxu0 0
    %2486 = vmatpush.bf16.msra.mxu0 0
    %2487 = vmatpush.bf16.msra.mxu0 0
    %2488 = vmatpush.bf16.msra.mxu0 0
    %2489 = vmatpush.bf16.msra.mxu0 0
    %2490 = vmatpush.bf16.msra.mxu0 0
    %2491 = vmatpush.bf16.msra.mxu0 %v2479
    %2492 = vmatpush.bf16.msra.mxu0 %v2478
    %2493 = vmatmul.bf16.gmra.mxu0 %v2483
    %v2494 = vpop.f32.mrf.mxu0
    %v2495 = vadd.f32 0.0, %v2494
    %v2496 = vpop.f32.mrf.mxu0
    %v2497 = vadd.f32 0.0, %v2496
    %2498 = vdwg.mxu0
    %v2499 = vadd.f32 %v2079, %v2495
    %v2500 = vadd.f32 %v2080, %v2497
    %s2501 = scalar_lea.vmem [#allocation11], 1
    %v2502 = vld [vmem:[%s2501] sm:$0x1]
    %v2503 = vsel %vm877, %v2499, 0.0
    %2504 = vadd.xlane.f32.xlu0 %v2503
    %v2505 = vpop.xlane.xlu0 %2504
    %v2506 = vsel %vm877, %v2500, 0.0
    %2507 = vadd.xlane.f32.xlu0 %v2506
    %v2508 = vpop.xlane.xlu0 %2507
    %v2509 = vmul.f32 %v2505, %v890
    %v2510 = vmul.f32 %v2508, %v890
    %v2511 = vsub.f32 %v2499, %v2509
    %v2512 = vsub.f32 %v2500, %v2510
    %v2513 = vmul.f32 %v2511, %v2511
    %v2514 = vmul.f32 %v2512, %v2512
    %v2515 = vsel %vm877, %v2513, 0.0
    %2516 = vadd.xlane.f32.xlu0 %v2515
    %v2517 = vpop.xlane.xlu0 %2516
    %v2518 = vsel %vm877, %v2514, 0.0
    %2519 = vadd.xlane.f32.xlu0 %v2518
    %v2520 = vpop.xlane.xlu0 %2519
    %v2521 = vmul.f32 %v2517, %v890
    %v2522 = vmul.f32 %v2520, %v890
    %v2523 = vadd.f32 %v2521, 1e-05
    %v2524 = vadd.f32 %v2522, 1e-05
    %v2525 = vrsqrt.pop %v2523
    %v2526 = vmul.f32 %v2525, %v2523
    %v2527 = vmul.f32 %v2526, %v2525
    %v2528 = vmul.f32 0.5, %v2527
    %v2529 = vsub.f32 1.5, %v2528
    %v2530 = vmul.f32 %v2525, %v2529
    %vm2531 = vweird.f32 %v2523
    %vm2532 = vweird.f32 %v2525
    %vm2533 = vmor %vm2531, %vm2532
    %v2534 = vsel %vm2533, %v2525, %v2530
    %v2535 = vrsqrt.pop %v2524
    %v2536 = vmul.f32 %v2535, %v2524
    %v2537 = vmul.f32 %v2536, %v2535
    %v2538 = vmul.f32 0.5, %v2537
    %v2539 = vsub.f32 1.5, %v2538
    %v2540 = vmul.f32 %v2535, %v2539
    %vm2541 = vweird.f32 %v2524
    %vm2542 = vweird.f32 %v2535
    %vm2543 = vmor %vm2541, %vm2542
    %v2544 = vsel %vm2543, %v2535, %v2540
    %v2545 = vmul.f32 %v2511, %v2534
    %v2546 = vmul.f32 %v2512, %v2544
    %v2548 = vperm.slane %v2502, 0
    %v2550 = vmul.f32 %v2545, %v2548
    %v2551 = vmul.f32 %v2546, %v2548
    %2552 = vrot.lane.b32.xlu0 %v1922, 64
    %v2553 = vpop.permute.xlu0 %2552
    %2554 = vrot.lane.b32.xlu0 %v1923, 64
    %v2555 = vpop.permute.xlu0 %2554
    %v2558 = vmul.f32 %v2550, %v2553
    %v2559 = vmul.f32 %v2551, %v2555
    %2560 = vrot.lane.b32.xlu0 %v1928, 32
    %v2561 = vpop.permute.xlu0 %2560
    %2562 = vrot.lane.b32.xlu0 %v1929, 32
    %v2563 = vpop.permute.xlu0 %2562
    %v2566 = vadd.f32 %v2558, %v2561
    %v2567 = vadd.f32 %v2559, %v2563
    %s2568 = scalar_lea.vmem %s9, 16
    %v2569 = vld [vmem:[%s2568] sm:$0xf]
    %v2570 = vld [vmem:[%s2568 + $0x4] sm:$0xf]
    %v2571 = vld [vmem:[%s2568 + $0x8] sm:$0xf]
    %v2572 = vld [vmem:[%s2568 + $0xc] sm:$0xf]
    %v2573 = vpack.c.bf16 %v2567, %v2566
    %s2574 = scalar_lea.vmem [#allocation13], 1
    %v2575 = vld [vmem:[%s2574] sm:$0x1]
    %v2577 = vperm.slane %v2575, 0
    %v2583 = vunpack.c.l.b16 %v2569
    %v2584 = vunpack.c.l.b16 %v2570
    %v2585 = vunpack.c.l.b16 %v2571
    %v2586 = vunpack.c.l.b16 %v2572
    %v2587 = vpack.c.b16 %v2584, %v2583
    %v2588 = vpack.c.b16 %v2586, %v2585
    %v2592 = vsel %vm877, %v2573, 0
    %2594 = vmatpush.bf16.msra.mxu0 0
    %2595 = vmatpush.bf16.msra.mxu0 0
    %2596 = vmatpush.bf16.msra.mxu0 0
    %2597 = vmatpush.bf16.msra.mxu0 0
    %2598 = vmatpush.bf16.msra.mxu0 0
    %2599 = vmatpush.bf16.msra.mxu0 0
    %2600 = vmatpush.bf16.msra.mxu0 %v2588
    %2601 = vmatpush.bf16.msra.mxu0 %v2587
    %2602 = vmatmul.bf16.gmra.mxu0 %v2592
    %v2603 = vpop.f32.mrf.mxu0
    %v2604 = vadd.f32 %v2577, %v2603
    %v2605 = vpop.f32.mrf.mxu0
    %v2606 = vadd.f32 %v2577, %v2605
    %2607 = vdwg.mxu0
    %v2608 = vmul.f32 %v2604, %v2604
    %v2609 = vmul.f32 %v2606, %v2606
    %v2610 = vmul.f32 %v2604, %v2608
    %v2611 = vmul.f32 %v2606, %v2609
    %v2612 = vmul.f32 %v2610, 0.044715
    %v2613 = vmul.f32 %v2611, 0.044715
    %v2614 = vadd.f32 %v2604, %v2612
    %v2615 = vadd.f32 %v2606, %v2613
    %v2616 = vmul.f32 %v2614, 0.7978846
    %v2617 = vmul.f32 %v2615, 0.7978846
    %v2618 = vtanh.pop %v2616
    %v2619 = vtanh.pop %v2617
    %v2620 = vadd.f32 %v2618, 1.0
    %v2621 = vadd.f32 %v2619, 1.0
    %v2622 = vmul.f32 %v2620, 0.5
    %v2623 = vmul.f32 %v2621, 0.5
    %v2624 = vmul.f32 %v2604, %v2622
    %v2625 = vmul.f32 %v2606, %v2623
    %s2626 = scalar_lea.vmem [#allocation14], 64
    %v2627 = vld [vmem:[%s2626] sm:$0xf]
    %v2628 = vld [vmem:[%s2626 + $0x4] sm:$0xf]
    %v2629 = vld [vmem:[%s2626 + $0x8] sm:$0xf]
    %v2630 = vld [vmem:[%s2626 + $0xc] sm:$0xf]
    %v2631 = vld [vmem:[%s2626 + $0x10] sm:$0xf]
    %v2632 = vld [vmem:[%s2626 + $0x14] sm:$0xf]
    %v2633 = vld [vmem:[%s2626 + $0x18] sm:$0xf]
    %v2634 = vld [vmem:[%s2626 + $0x1c] sm:$0xf]
    %v2635 = vld [vmem:[%s2626 + $0x20] sm:$0xf]
    %v2636 = vld [vmem:[%s2626 + $0x24] sm:$0xf]
    %v2637 = vld [vmem:[%s2626 + $0x28] sm:$0xf]
    %v2638 = vld [vmem:[%s2626 + $0x2c] sm:$0xf]
    %v2639 = vld [vmem:[%s2626 + $0x30] sm:$0xf]
    %v2640 = vld [vmem:[%s2626 + $0x34] sm:$0xf]
    %v2641 = vld [vmem:[%s2626 + $0x38] sm:$0xf]
    %v2642 = vld [vmem:[%s2626 + $0x3c] sm:$0xf]
    %v2643 = vpack.c.bf16 %v2625, %v2624
    %v2660 = vunpack.c.l.b16 %v2627
    %v2661 = vunpack.c.l.b16 %v2628
    %v2662 = vunpack.c.l.b16 %v2629
    %v2663 = vunpack.c.l.b16 %v2630
    %v2664 = vunpack.c.l.b16 %v2631
    %v2665 = vunpack.c.l.b16 %v2632
    %v2666 = vunpack.c.l.b16 %v2633
    %v2667 = vunpack.c.l.b16 %v2634
    %v2668 = vunpack.c.l.b16 %v2635
    %v2669 = vunpack.c.l.b16 %v2636
    %v2670 = vunpack.c.l.b16 %v2637
    %v2671 = vunpack.c.l.b16 %v2638
    %v2672 = vunpack.c.l.b16 %v2639
    %v2673 = vunpack.c.l.b16 %v2640
    %v2674 = vunpack.c.l.b16 %v2641
    %v2675 = vunpack.c.l.b16 %v2642
    %v2676 = vpack.c.b16 %v2661, %v2660
    %v2677 = vpack.c.b16 %v2663, %v2662
    %v2678 = vpack.c.b16 %v2665, %v2664
    %v2679 = vpack.c.b16 %v2667, %v2666
    %v2680 = vpack.c.b16 %v2669, %v2668
    %v2681 = vpack.c.b16 %v2671, %v2670
    %v2682 = vpack.c.b16 %v2673, %v2672
    %v2683 = vpack.c.b16 %v2675, %v2674
    %2692 = vmatpush.bf16.msra.mxu0 %v2683
    %2693 = vmatpush.bf16.msra.mxu0 %v2682
    %2694 = vmatpush.bf16.msra.mxu0 %v2681
    %2695 = vmatpush.bf16.msra.mxu0 %v2680
    %2696 = vmatpush.bf16.msra.mxu0 %v2679
    %2697 = vmatpush.bf16.msra.mxu0 %v2678
    %2698 = vmatpush.bf16.msra.mxu0 %v2677
    %2699 = vmatpush.bf16.msra.mxu0 %v2676
    %2700 = vmatmul.bf16.gmra.mxu0 %v2643
    %v2701 = vpop.f32.mrf.mxu0
    %v2702 = vadd.f32 0.0, %v2701
    %v2703 = vpop.f32.mrf.mxu0
    %v2704 = vadd.f32 0.0, %v2703
    %2705 = vdwg.mxu0
    %v2706 = vadd.f32 %v2499, %v2702
    %v2707 = vadd.f32 %v2500, %v2704
    %s2708 = scalar_lea.vmem %s12, 1
    %v2709 = vld [vmem:[%s2708] sm:$0x1]
    %v2711 = vperm.slane %v2709, 0
    %v2713 = vadd.f32 %v2706, %v2711
    %v2714 = vadd.f32 %v2707, %v2711
    %s2715 = scalar_lea.vmem [#allocation7], 2
    %v2716 = vld [vmem:[%s2715] sm:$0x1]
    %v2718 = vperm.slane %v2716, 0
    %v2720 = vmul.f32 %v1271, %v2718
    %v2721 = vmul.f32 %v1272, %v2718
    %v2722 = vmul.f32 %v1273, %v2718
    %v2723 = vmul.f32 %v1274, %v2718
    %v2724 = vmul.f32 %v1275, %v2718
    %v2725 = vmul.f32 %v1276, %v2718
    %v2726 = vmul.f32 %v1277, %v2718
    %v2727 = vmul.f32 %v1278, %v2718
    %v2728 = vmul.f32 %v1279, %v2718
    %v2729 = vmul.f32 %v1280, %v2718
    %v2730 = vmul.f32 %v1281, %v2718
    %v2731 = vmul.f32 %v1282, %v2718
    %v2732 = vmul.f32 %v1283, %v2718
    %v2733 = vmul.f32 %v1284, %v2718
    %v2734 = vmul.f32 %v1285, %v2718
    %v2735 = vmul.f32 %v1286, %v2718
    %v2737 = vrot.slane %v318, 1
    %v2739 = vadd.f32 %v318, 1.0
    %v2740 = vadd.f32 %v2737, 1.0
    %v2743 = vperm.slane %v2739, 0
    %v2744 = vperm.slane %v2740, 0
    %v2747 = vmul.f32 %v2720, %v2743
    %v2748 = vmul.f32 %v2721, %v2743
    %v2749 = vmul.f32 %v2722, %v2743
    %v2750 = vmul.f32 %v2723, %v2743
    %v2751 = vmul.f32 %v2724, %v2743
    %v2752 = vmul.f32 %v2725, %v2743
    %v2753 = vmul.f32 %v2726, %v2743
    %v2754 = vmul.f32 %v2727, %v2743
    %v2755 = vmul.f32 %v2728, %v2744
    %v2756 = vmul.f32 %v2729, %v2744
    %v2757 = vmul.f32 %v2730, %v2744
    %v2758 = vmul.f32 %v2731, %v2744
    %v2759 = vmul.f32 %v2732, %v2744
    %v2760 = vmul.f32 %v2733, %v2744
    %v2761 = vmul.f32 %v2734, %v2744
    %v2762 = vmul.f32 %v2735, %v2744
    %v2763 = vperm.slane %v318, 0
    %v2764 = vperm.slane %v2737, 0
    %2765 = vrot.lane.b32.xlu0 %v2763, 96
    %v2766 = vpop.permute.xlu0 %2765
    %2767 = vrot.lane.b32.xlu0 %v2764, 96
    %v2768 = vpop.permute.xlu0 %2767
    %v2771 = vadd.f32 %v2747, %v2766
    %v2772 = vadd.f32 %v2748, %v2766
    %v2773 = vadd.f32 %v2749, %v2766
    %v2774 = vadd.f32 %v2750, %v2766
    %v2775 = vadd.f32 %v2751, %v2766
    %v2776 = vadd.f32 %v2752, %v2766
    %v2777 = vadd.f32 %v2753, %v2766
    %v2778 = vadd.f32 %v2754, %v2766
    %v2779 = vadd.f32 %v2755, %v2768
    %v2780 = vadd.f32 %v2756, %v2768
    %v2781 = vadd.f32 %v2757, %v2768
    %v2782 = vadd.f32 %v2758, %v2768
    %v2783 = vadd.f32 %v2759, %v2768
    %v2784 = vadd.f32 %v2760, %v2768
    %v2785 = vadd.f32 %v2761, %v2768
    %v2786 = vadd.f32 %v2762, %v2768
    %s2787 = scalar_lea.vmem [#allocation10], 32
    %v2788 = vld [vmem:[%s2787] sm:$0xf]
    %v2789 = vld [vmem:[%s2787 + $0x4] sm:$0xf]
    %v2790 = vld [vmem:[%s2787 + $0x8] sm:$0xf]
    %v2791 = vld [vmem:[%s2787 + $0xc] sm:$0xf]
    %v2792 = vpack.c.bf16 %v2772, %v2771
    %v2793 = vpack.c.bf16 %v2774, %v2773
    %v2794 = vpack.c.bf16 %v2776, %v2775
    %v2795 = vpack.c.bf16 %v2778, %v2777
    %v2796 = vpack.c.bf16 %v2780, %v2779
    %v2797 = vpack.c.bf16 %v2782, %v2781
    %v2798 = vpack.c.bf16 %v2784, %v2783
    %v2799 = vpack.c.bf16 %v2786, %v2785
    %v2804 = vunpack.c.l.b16 %v2788
    %v2805 = vunpack.c.l.b16 %v2789
    %v2806 = vunpack.c.l.b16 %v2790
    %v2807 = vunpack.c.l.b16 %v2791
    %v2808 = vpack.c.b16 %v2805, %v2804
    %v2809 = vpack.c.b16 %v2807, %v2806
    %v2813 = vsel %vm877, %v2792, 0
    %v2816 = vsel %vm877, %v2793, 0
    %v2819 = vsel %vm877, %v2794, 0
    %v2822 = vsel %vm877, %v2795, 0
    %v2825 = vsel %vm877, %v2796, 0
    %v2828 = vsel %vm877, %v2797, 0
    %v2831 = vsel %vm877, %v2798, 0
    %v2834 = vsel %vm877, %v2799, 0
    %2836 = vmatpush.bf16.msra.mxu0 0
    %2837 = vmatpush.bf16.msra.mxu0 0
    %2838 = vmatpush.bf16.msra.mxu0 0
    %2839 = vmatpush.bf16.msra.mxu0 0
    %2840 = vmatpush.bf16.msra.mxu0 0
    %2841 = vmatpush.bf16.msra.mxu0 0
    %2842 = vmatpush.bf16.msra.mxu0 %v2809
    %2843 = vmatpush.bf16.msra.mxu0 %v2808
    %2844 = vmatmul.bf16.gmra.mxu0 %v2813
    %v2845 = vpop.f32.mrf.mxu0
    %v2846 = vadd.f32 0.0, %v2845
    %v2847 = vpop.f32.mrf.mxu0
    %v2848 = vadd.f32 0.0, %v2847
    %2849 = vmatmul.bf16.gmra.mxu0 %v2816
    %v2850 = vpop.f32.mrf.mxu0
    %v2851 = vadd.f32 0.0, %v2850
    %v2852 = vpop.f32.mrf.mxu0
    %v2853 = vadd.f32 0.0, %v2852
    %2854 = vmatmul.bf16.gmra.mxu0 %v2819
    %v2855 = vpop.f32.mrf.mxu0
    %v2856 = vadd.f32 0.0, %v2855
    %v2857 = vpop.f32.mrf.mxu0
    %v2858 = vadd.f32 0.0, %v2857
    %2859 = vmatmul.bf16.gmra.mxu0 %v2822
    %v2860 = vpop.f32.mrf.mxu0
    %v2861 = vadd.f32 0.0, %v2860
    %v2862 = vpop.f32.mrf.mxu0
    %v2863 = vadd.f32 0.0, %v2862
    %2864 = vmatmul.bf16.gmra.mxu0 %v2825
    %v2865 = vpop.f32.mrf.mxu0
    %v2866 = vadd.f32 0.0, %v2865
    %v2867 = vpop.f32.mrf.mxu0
    %v2868 = vadd.f32 0.0, %v2867
    %2869 = vmatmul.bf16.gmra.mxu0 %v2828
    %v2870 = vpop.f32.mrf.mxu0
    %v2871 = vadd.f32 0.0, %v2870
    %v2872 = vpop.f32.mrf.mxu0
    %v2873 = vadd.f32 0.0, %v2872
    %2874 = vmatmul.bf16.gmra.mxu0 %v2831
    %v2875 = vpop.f32.mrf.mxu0
    %v2876 = vadd.f32 0.0, %v2875
    %v2877 = vpop.f32.mrf.mxu0
    %v2878 = vadd.f32 0.0, %v2877
    %2879 = vmatmul.bf16.gmra.mxu0 %v2834
    %v2880 = vpop.f32.mrf.mxu0
    %v2881 = vadd.f32 0.0, %v2880
    %v2882 = vpop.f32.mrf.mxu0
    %v2883 = vadd.f32 0.0, %v2882
    %2884 = vdwg.mxu0
    %v2885 = vmul.f32 %v2846, 0.25
    %v2886 = vmul.f32 %v2848, 0.25
    %v2887 = vmul.f32 %v2851, 0.25
    %v2888 = vmul.f32 %v2853, 0.25
    %v2889 = vmul.f32 %v2856, 0.25
    %v2890 = vmul.f32 %v2858, 0.25
    %v2891 = vmul.f32 %v2861, 0.25
    %v2892 = vmul.f32 %v2863, 0.25
    %v2893 = vmul.f32 %v2866, 0.25
    %v2894 = vmul.f32 %v2868, 0.25
    %v2895 = vmul.f32 %v2871, 0.25
    %v2896 = vmul.f32 %v2873, 0.25
    %v2897 = vmul.f32 %v2876, 0.25
    %v2898 = vmul.f32 %v2878, 0.25
    %v2899 = vmul.f32 %v2881, 0.25
    %v2900 = vmul.f32 %v2883, 0.25
    %s2901 = scalar_lea.vmem %s6, 32
    %v2902 = vld [vmem:[%s2901] sm:$0xf]
    %v2903 = vld [vmem:[%s2901 + $0x4] sm:$0xf]
    %v2904 = vld [vmem:[%s2901 + $0x8] sm:$0xf]
    %v2905 = vld [vmem:[%s2901 + $0xc] sm:$0xf]
    %v2906 = vpack.c.bf16 %v2721, %v2720
    %v2907 = vpack.c.bf16 %v2723, %v2722
    %v2908 = vpack.c.bf16 %v2725, %v2724
    %v2909 = vpack.c.bf16 %v2727, %v2726
    %v2910 = vpack.c.bf16 %v2729, %v2728
    %v2911 = vpack.c.bf16 %v2731, %v2730
    %v2912 = vpack.c.bf16 %v2733, %v2732
    %v2913 = vpack.c.bf16 %v2735, %v2734
    %v2918 = vunpack.c.l.b16 %v2902
    %v2919 = vunpack.c.l.b16 %v2903
    %v2920 = vunpack.c.l.b16 %v2904
    %v2921 = vunpack.c.l.b16 %v2905
    %v2922 = vpack.c.b16 %v2919, %v2918
    %v2923 = vpack.c.b16 %v2921, %v2920
    %v2927 = vsel %vm877, %v2906, 0
    %v2930 = vsel %vm877, %v2907, 0
    %v2933 = vsel %vm877, %v2908, 0
    %v2936 = vsel %vm877, %v2909, 0
    %v2939 = vsel %vm877, %v2910, 0
    %v2942 = vsel %vm877, %v2911, 0
    %v2945 = vsel %vm877, %v2912, 0
    %v2948 = vsel %vm877, %v2913, 0
    %2950 = vmatpush.bf16.msra.mxu0 0
    %2951 = vmatpush.bf16.msra.mxu0 0
    %2952 = vmatpush.bf16.msra.mxu0 0
    %2953 = vmatpush.bf16.msra.mxu0 0
    %2954 = vmatpush.bf16.msra.mxu0 0
    %2955 = vmatpush.bf16.msra.mxu0 0
    %2956 = vmatpush.bf16.msra.mxu0 %v2923
    %2957 = vmatpush.bf16.msra.mxu0 %v2922
    %2958 = vmatmul.bf16.gmra.mxu0 %v2927
    %v2959 = vpop.f32.mrf.mxu0
    %v2960 = vadd.f32 0.0, %v2959
    %v2961 = vpop.f32.mrf.mxu0
    %v2962 = vadd.f32 0.0, %v2961
    %2963 = vmatmul.bf16.gmra.mxu0 %v2930
    %v2964 = vpop.f32.mrf.mxu0
    %v2965 = vadd.f32 0.0, %v2964
    %v2966 = vpop.f32.mrf.mxu0
    %v2967 = vadd.f32 0.0, %v2966
    %2968 = vmatmul.bf16.gmra.mxu0 %v2933
    %v2969 = vpop.f32.mrf.mxu0
    %v2970 = vadd.f32 0.0, %v2969
    %v2971 = vpop.f32.mrf.mxu0
    %v2972 = vadd.f32 0.0, %v2971
    %2973 = vmatmul.bf16.gmra.mxu0 %v2936
    %v2974 = vpop.f32.mrf.mxu0
    %v2975 = vadd.f32 0.0, %v2974
    %v2976 = vpop.f32.mrf.mxu0
    %v2977 = vadd.f32 0.0, %v2976
    %2978 = vmatmul.bf16.gmra.mxu0 %v2939
    %v2979 = vpop.f32.mrf.mxu0
    %v2980 = vadd.f32 0.0, %v2979
    %v2981 = vpop.f32.mrf.mxu0
    %v2982 = vadd.f32 0.0, %v2981
    %2983 = vmatmul.bf16.gmra.mxu0 %v2942
    %v2984 = vpop.f32.mrf.mxu0
    %v2985 = vadd.f32 0.0, %v2984
    %v2986 = vpop.f32.mrf.mxu0
    %v2987 = vadd.f32 0.0, %v2986
    %2988 = vmatmul.bf16.gmra.mxu0 %v2945
    %v2989 = vpop.f32.mrf.mxu0
    %v2990 = vadd.f32 0.0, %v2989
    %v2991 = vpop.f32.mrf.mxu0
    %v2992 = vadd.f32 0.0, %v2991
    %2993 = vmatmul.bf16.gmra.mxu0 %v2948
    %v2994 = vpop.f32.mrf.mxu0
    %v2995 = vadd.f32 0.0, %v2994
    %v2996 = vpop.f32.mrf.mxu0
    %v2997 = vadd.f32 0.0, %v2996
    %2998 = vdwg.mxu0
    %v2999 = vpack.c.bf16 %v2885, %v2885
    %v3000 = vpack.c.bf16 %v2886, %v2886
    %v3001 = vpack.c.bf16 %v2887, %v2887
    %v3002 = vpack.c.bf16 %v2888, %v2888
    %v3003 = vpack.c.bf16 %v2889, %v2889
    %v3004 = vpack.c.bf16 %v2890, %v2890
    %v3005 = vpack.c.bf16 %v2891, %v2891
    %v3006 = vpack.c.bf16 %v2892, %v2892
    %v3007 = vpack.c.bf16 %v2893, %v2893
    %v3008 = vpack.c.bf16 %v2894, %v2894
    %v3009 = vpack.c.bf16 %v2895, %v2895
    %v3010 = vpack.c.bf16 %v2896, %v2896
    %v3011 = vpack.c.bf16 %v2897, %v2897
    %v3012 = vpack.c.bf16 %v2898, %v2898
    %v3013 = vpack.c.bf16 %v2899, %v2899
    %v3014 = vpack.c.bf16 %v2900, %v2900
    %v3015 = vpack.c.bf16 %v2960, %v2960
    %v3016 = vpack.c.bf16 %v2962, %v2962
    %v3017 = vpack.c.bf16 %v2965, %v2965
    %v3018 = vpack.c.bf16 %v2967, %v2967
    %v3019 = vpack.c.bf16 %v2970, %v2970
    %v3020 = vpack.c.bf16 %v2972, %v2972
    %v3021 = vpack.c.bf16 %v2975, %v2975
    %v3022 = vpack.c.bf16 %v2977, %v2977
    %v3023 = vpack.c.bf16 %v2980, %v2980
    %v3024 = vpack.c.bf16 %v2982, %v2982
    %v3025 = vpack.c.bf16 %v2985, %v2985
    %v3026 = vpack.c.bf16 %v2987, %v2987
    %v3027 = vpack.c.bf16 %v2990, %v2990
    %v3028 = vpack.c.bf16 %v2992, %v2992
    %v3029 = vpack.c.bf16 %v2995, %v2995
    %v3030 = vpack.c.bf16 %v2997, %v2997
    %v3039 = vunpack.c.l.b16 %v2999
    %v3040 = vunpack.c.l.b16 %v3000
    %v3041 = vunpack.c.l.b16 %v3001
    %v3042 = vunpack.c.l.b16 %v3002
    %v3043 = vunpack.c.l.b16 %v3003
    %v3044 = vunpack.c.l.b16 %v3004
    %v3045 = vunpack.c.l.b16 %v3005
    %v3046 = vunpack.c.l.b16 %v3006
    %v3047 = vpack.c.b16 %v3040, %v3039
    %v3048 = vpack.c.b16 %v3042, %v3041
    %v3049 = vpack.c.b16 %v3044, %v3043
    %v3050 = vpack.c.b16 %v3046, %v3045
    %v3059 = vunpack.c.l.b16 %v3015
    %v3060 = vunpack.c.l.b16 %v3016
    %v3061 = vunpack.c.l.b16 %v3017
    %v3062 = vunpack.c.l.b16 %v3018
    %v3063 = vunpack.c.l.b16 %v3019
    %v3064 = vunpack.c.l.b16 %v3020
    %v3065 = vunpack.c.l.b16 %v3021
    %v3066 = vunpack.c.l.b16 %v3022
    %v3067 = vpack.c.b16 %v3060, %v3059
    %v3068 = vpack.c.b16 %v3062, %v3061
    %v3069 = vpack.c.b16 %v3064, %v3063
    %v3070 = vpack.c.b16 %v3066, %v3065
    %v3072 = vsel %vm291, %v3047, 0
    %v3075 = vsel %vm291, %v3048, 0
    %v3078 = vsel %vm291, %v3049, 0
    %v3081 = vsel %vm291, %v3050, 0
    %v3084 = vsel %vm291, %v3067, 0
    %v3087 = vsel %vm291, %v3068, 0
    %v3090 = vsel %vm291, %v3069, 0
    %v3093 = vsel %vm291, %v3070, 0
    %3095 = vmatpush.bf16.xpose.msra.mxu0 0
    %3096 = vmatpush.bf16.xpose.msra.mxu0 0
    %3097 = vmatpush.bf16.xpose.msra.mxu0 0
    %3098 = vmatpush.bf16.xpose.msra.mxu0 0
    %3099 = vmatpush.bf16.xpose.msra.mxu0 %v3093
    %3100 = vmatpush.bf16.xpose.msra.mxu0 %v3090
    %3101 = vmatpush.bf16.xpose.msra.mxu0 %v3087
    %3102 = vmatpush.bf16.xpose.msra.mxu0 %v3084
    %3103 = vmatmul.bf16.gmra.mxu0 %v3072
    %v3104 = vpop.f32.mrf.mxu0
    %v3105 = vadd.f32 0.0, %v3104
    %v3106 = vpop.f32.mrf.mxu0
    %v3107 = vadd.f32 0.0, %v3106
    %3108 = vmatmul.bf16.gmra.mxu0 %v3075
    %v3109 = vpop.f32.mrf.mxu0
    %v3110 = vadd.f32 0.0, %v3109
    %v3111 = vpop.f32.mrf.mxu0
    %v3112 = vadd.f32 0.0, %v3111
    %3113 = vmatmul.bf16.gmra.mxu0 %v3078
    %v3114 = vpop.f32.mrf.mxu0
    %v3115 = vadd.f32 0.0, %v3114
    %v3116 = vpop.f32.mrf.mxu0
    %v3117 = vadd.f32 0.0, %v3116
    %3118 = vmatmul.bf16.gmra.mxu0 %v3081
    %v3119 = vpop.f32.mrf.mxu0
    %v3120 = vadd.f32 0.0, %v3119
    %v3121 = vpop.f32.mrf.mxu0
    %v3122 = vadd.f32 0.0, %v3121
    %3123 = vdwg.mxu0
    %v3132 = vunpack.c.l.b16 %v3007
    %v3133 = vunpack.c.l.b16 %v3008
    %v3134 = vunpack.c.l.b16 %v3009
    %v3135 = vunpack.c.l.b16 %v3010
    %v3136 = vunpack.c.l.b16 %v3011
    %v3137 = vunpack.c.l.b16 %v3012
    %v3138 = vunpack.c.l.b16 %v3013
    %v3139 = vunpack.c.l.b16 %v3014
    %v3140 = vpack.c.b16 %v3133, %v3132
    %v3141 = vpack.c.b16 %v3135, %v3134
    %v3142 = vpack.c.b16 %v3137, %v3136
    %v3143 = vpack.c.b16 %v3139, %v3138
    %v3152 = vunpack.c.l.b16 %v3023
    %v3153 = vunpack.c.l.b16 %v3024
    %v3154 = vunpack.c.l.b16 %v3025
    %v3155 = vunpack.c.l.b16 %v3026
    %v3156 = vunpack.c.l.b16 %v3027
    %v3157 = vunpack.c.l.b16 %v3028
    %v3158 = vunpack.c.l.b16 %v3029
    %v3159 = vunpack.c.l.b16 %v3030
    %v3160 = vpack.c.b16 %v3153, %v3152
    %v3161 = vpack.c.b16 %v3155, %v3154
    %v3162 = vpack.c.b16 %v3157, %v3156
    %v3163 = vpack.c.b16 %v3159, %v3158
    %v3165 = vsel %vm291, %v3140, 0
    %v3168 = vsel %vm291, %v3141, 0
    %v3171 = vsel %vm291, %v3142, 0
    %v3174 = vsel %vm291, %v3143, 0
    %v3177 = vsel %vm291, %v3160, 0
    %v3180 = vsel %vm291, %v3161, 0
    %v3183 = vsel %vm291, %v3162, 0
    %v3186 = vsel %vm291, %v3163, 0
    %3188 = vmatpush.bf16.xpose.msra.mxu0 0
    %3189 = vmatpush.bf16.xpose.msra.mxu0 0
    %3190 = vmatpush.bf16.xpose.msra.mxu0 0
    %3191 = vmatpush.bf16.xpose.msra.mxu0 0
    %3192 = vmatpush.bf16.xpose.msra.mxu0 %v3186
    %3193 = vmatpush.bf16.xpose.msra.mxu0 %v3183
    %3194 = vmatpush.bf16.xpose.msra.mxu0 %v3180
    %3195 = vmatpush.bf16.xpose.msra.mxu0 %v3177
    %3196 = vmatmul.bf16.gmra.mxu0 %v3165
    %v3197 = vpop.f32.mrf.mxu0
    %v3198 = vadd.f32 0.0, %v3197
    %v3199 = vpop.f32.mrf.mxu0
    %v3200 = vadd.f32 0.0, %v3199
    %3201 = vmatmul.bf16.gmra.mxu0 %v3168
    %v3202 = vpop.f32.mrf.mxu0
    %v3203 = vadd.f32 0.0, %v3202
    %v3204 = vpop.f32.mrf.mxu0
    %v3205 = vadd.f32 0.0, %v3204
    %3206 = vmatmul.bf16.gmra.mxu0 %v3171
    %v3207 = vpop.f32.mrf.mxu0
    %v3208 = vadd.f32 0.0, %v3207
    %v3209 = vpop.f32.mrf.mxu0
    %v3210 = vadd.f32 0.0, %v3209
    %3211 = vmatmul.bf16.gmra.mxu0 %v3174
    %v3212 = vpop.f32.mrf.mxu0
    %v3213 = vadd.f32 0.0, %v3212
    %v3214 = vpop.f32.mrf.mxu0
    %v3215 = vadd.f32 0.0, %v3214
    %3216 = vdwg.mxu0
    %v3217 = vsel %vm1576, %v3105, -inf
    %3218 = vmax.xlane.f32.xlu0 %v3217
    %v3219 = vpop.xlane.xlu0 %3218
    %v3220 = vsel %vm1576, %v3107, -inf
    %3221 = vmax.xlane.f32.xlu0 %v3220
    %v3222 = vpop.xlane.xlu0 %3221
    %v3223 = vsel %vm1576, %v3110, -inf
    %3224 = vmax.xlane.f32.xlu0 %v3223
    %v3225 = vpop.xlane.xlu0 %3224
    %v3226 = vsel %vm1576, %v3112, -inf
    %3227 = vmax.xlane.f32.xlu0 %v3226
    %v3228 = vpop.xlane.xlu0 %3227
    %v3229 = vsel %vm1576, %v3115, -inf
    %3230 = vmax.xlane.f32.xlu0 %v3229
    %v3231 = vpop.xlane.xlu0 %3230
    %v3232 = vsel %vm1576, %v3117, -inf
    %3233 = vmax.xlane.f32.xlu0 %v3232
    %v3234 = vpop.xlane.xlu0 %3233
    %v3235 = vsel %vm1576, %v3120, -inf
    %3236 = vmax.xlane.f32.xlu0 %v3235
    %v3237 = vpop.xlane.xlu0 %3236
    %v3238 = vsel %vm1576, %v3122, -inf
    %3239 = vmax.xlane.f32.xlu0 %v3238
    %v3240 = vpop.xlane.xlu0 %3239
    %v3241 = vsel %vm1576, %v3198, -inf
    %3242 = vmax.xlane.f32.xlu0 %v3241
    %v3243 = vpop.xlane.xlu0 %3242
    %v3244 = vsel %vm1576, %v3200, -inf
    %3245 = vmax.xlane.f32.xlu0 %v3244
    %v3246 = vpop.xlane.xlu0 %3245
    %v3247 = vsel %vm1576, %v3203, -inf
    %3248 = vmax.xlane.f32.xlu0 %v3247
    %v3249 = vpop.xlane.xlu0 %3248
    %v3250 = vsel %vm1576, %v3205, -inf
    %3251 = vmax.xlane.f32.xlu0 %v3250
    %v3252 = vpop.xlane.xlu0 %3251
    %v3253 = vsel %vm1576, %v3208, -inf
    %3254 = vmax.xlane.f32.xlu0 %v3253
    %v3255 = vpop.xlane.xlu0 %3254
    %v3256 = vsel %vm1576, %v3210, -inf
    %3257 = vmax.xlane.f32.xlu0 %v3256
    %v3258 = vpop.xlane.xlu0 %3257
    %v3259 = vsel %vm1576, %v3213, -inf
    %3260 = vmax.xlane.f32.xlu0 %v3259
    %v3261 = vpop.xlane.xlu0 %3260
    %v3262 = vsel %vm1576, %v3215, -inf
    %3263 = vmax.xlane.f32.xlu0 %v3262
    %v3264 = vpop.xlane.xlu0 %3263
    %v3265 = vsub.f32 %v3105, %v3219
    %v3266 = vsub.f32 %v3107, %v3222
    %v3267 = vsub.f32 %v3110, %v3225
    %v3268 = vsub.f32 %v3112, %v3228
    %v3269 = vsub.f32 %v3115, %v3231
    %v3270 = vsub.f32 %v3117, %v3234
    %v3271 = vsub.f32 %v3120, %v3237
    %v3272 = vsub.f32 %v3122, %v3240
    %v3273 = vsub.f32 %v3198, %v3243
    %v3274 = vsub.f32 %v3200, %v3246
    %v3275 = vsub.f32 %v3203, %v3249
    %v3276 = vsub.f32 %v3205, %v3252
    %v3277 = vsub.f32 %v3208, %v3255
    %v3278 = vsub.f32 %v3210, %v3258
    %v3279 = vsub.f32 %v3213, %v3261
    %v3280 = vsub.f32 %v3215, %v3264
    %v3281 = vmul.f32 %v3265, 1.442695
    %v3282 = vpow.pop %v3281
    %v3283 = vmul.f32 %v3266, 1.442695
    %v3284 = vpow.pop %v3283
    %v3285 = vmul.f32 %v3267, 1.442695
    %v3286 = vpow.pop %v3285
    %v3287 = vmul.f32 %v3268, 1.442695
    %v3288 = vpow.pop %v3287
    %v3289 = vmul.f32 %v3269, 1.442695
    %v3290 = vpow.pop %v3289
    %v3291 = vmul.f32 %v3270, 1.442695
    %v3292 = vpow.pop %v3291
    %v3293 = vmul.f32 %v3271, 1.442695
    %v3294 = vpow.pop %v3293
    %v3295 = vmul.f32 %v3272, 1.442695
    %v3296 = vpow.pop %v3295
    %v3297 = vmul.f32 %v3273, 1.442695
    %v3298 = vpow.pop %v3297
    %v3299 = vmul.f32 %v3274, 1.442695
    %v3300 = vpow.pop %v3299
    %v3301 = vmul.f32 %v3275, 1.442695
    %v3302 = vpow.pop %v3301
    %v3303 = vmul.f32 %v3276, 1.442695
    %v3304 = vpow.pop %v3303
    %v3305 = vmul.f32 %v3277, 1.442695
    %v3306 = vpow.pop %v3305
    %v3307 = vmul.f32 %v3278, 1.442695
    %v3308 = vpow.pop %v3307
    %v3309 = vmul.f32 %v3279, 1.442695
    %v3310 = vpow.pop %v3309
    %v3311 = vmul.f32 %v3280, 1.442695
    %v3312 = vpow.pop %v3311
    %v3313 = vsel %vm1576, %v3282, 0.0
    %3314 = vadd.xlane.f32.xlu0 %v3313
    %v3315 = vpop.xlane.xlu0 %3314
    %v3316 = vsel %vm1576, %v3284, 0.0
    %3317 = vadd.xlane.f32.xlu0 %v3316
    %v3318 = vpop.xlane.xlu0 %3317
    %v3319 = vsel %vm1576, %v3286, 0.0
    %3320 = vadd.xlane.f32.xlu0 %v3319
    %v3321 = vpop.xlane.xlu0 %3320
    %v3322 = vsel %vm1576, %v3288, 0.0
    %3323 = vadd.xlane.f32.xlu0 %v3322
    %v3324 = vpop.xlane.xlu0 %3323
    %v3325 = vsel %vm1576, %v3290, 0.0
    %3326 = vadd.xlane.f32.xlu0 %v3325
    %v3327 = vpop.xlane.xlu0 %3326
    %v3328 = vsel %vm1576, %v3292, 0.0
    %3329 = vadd.xlane.f32.xlu0 %v3328
    %v3330 = vpop.xlane.xlu0 %3329
    %v3331 = vsel %vm1576, %v3294, 0.0
    %3332 = vadd.xlane.f32.xlu0 %v3331
    %v3333 = vpop.xlane.xlu0 %3332
    %v3334 = vsel %vm1576, %v3296, 0.0
    %3335 = vadd.xlane.f32.xlu0 %v3334
    %v3336 = vpop.xlane.xlu0 %3335
    %v3337 = vsel %vm1576, %v3298, 0.0
    %3338 = vadd.xlane.f32.xlu0 %v3337
    %v3339 = vpop.xlane.xlu0 %3338
    %v3340 = vsel %vm1576, %v3300, 0.0
    %3341 = vadd.xlane.f32.xlu0 %v3340
    %v3342 = vpop.xlane.xlu0 %3341
    %v3343 = vsel %vm1576, %v3302, 0.0
    %3344 = vadd.xlane.f32.xlu0 %v3343
    %v3345 = vpop.xlane.xlu0 %3344
    %v3346 = vsel %vm1576, %v3304, 0.0
    %3347 = vadd.xlane.f32.xlu0 %v3346
    %v3348 = vpop.xlane.xlu0 %3347
    %v3349 = vsel %vm1576, %v3306, 0.0
    %3350 = vadd.xlane.f32.xlu0 %v3349
    %v3351 = vpop.xlane.xlu0 %3350
    %v3352 = vsel %vm1576, %v3308, 0.0
    %3353 = vadd.xlane.f32.xlu0 %v3352
    %v3354 = vpop.xlane.xlu0 %3353
    %v3355 = vsel %vm1576, %v3310, 0.0
    %3356 = vadd.xlane.f32.xlu0 %v3355
    %v3357 = vpop.xlane.xlu0 %3356
    %v3358 = vsel %vm1576, %v3312, 0.0
    %3359 = vadd.xlane.f32.xlu0 %v3358
    %v3360 = vpop.xlane.xlu0 %3359
    %v3361 = vrcp.pop %v3315
    %v3362 = vrcp.pop %v3318
    %v3363 = vrcp.pop %v3321
    %v3364 = vrcp.pop %v3324
    %v3365 = vrcp.pop %v3327
    %v3366 = vrcp.pop %v3330
    %v3367 = vrcp.pop %v3333
    %v3368 = vrcp.pop %v3336
    %v3369 = vrcp.pop %v3339
    %v3370 = vrcp.pop %v3342
    %v3371 = vrcp.pop %v3345
    %v3372 = vrcp.pop %v3348
    %v3373 = vrcp.pop %v3351
    %v3374 = vrcp.pop %v3354
    %v3375 = vrcp.pop %v3357
    %v3376 = vrcp.pop %v3360
    %v3377 = vmul.f32 %v3282, %v3361
    %v3378 = vmul.f32 %v3284, %v3362
    %v3379 = vmul.f32 %v3286, %v3363
    %v3380 = vmul.f32 %v3288, %v3364
    %v3381 = vmul.f32 %v3290, %v3365
    %v3382 = vmul.f32 %v3292, %v3366
    %v3383 = vmul.f32 %v3294, %v3367
    %v3384 = vmul.f32 %v3296, %v3368
    %v3385 = vmul.f32 %v3298, %v3369
    %v3386 = vmul.f32 %v3300, %v3370
    %v3387 = vmul.f32 %v3302, %v3371
    %v3388 = vmul.f32 %v3304, %v3372
    %v3389 = vmul.f32 %v3306, %v3373
    %v3390 = vmul.f32 %v3308, %v3374
    %v3391 = vmul.f32 %v3310, %v3375
    %v3392 = vmul.f32 %v3312, %v3376
    %v3393 = vpack.c.bf16 %v3377, %v3377
    %v3394 = vpack.c.bf16 %v3378, %v3378
    %v3395 = vpack.c.bf16 %v3379, %v3379
    %v3396 = vpack.c.bf16 %v3380, %v3380
    %v3397 = vpack.c.bf16 %v3381, %v3381
    %v3398 = vpack.c.bf16 %v3382, %v3382
    %v3399 = vpack.c.bf16 %v3383, %v3383
    %v3400 = vpack.c.bf16 %v3384, %v3384
    %v3401 = vpack.c.bf16 %v3385, %v3385
    %v3402 = vpack.c.bf16 %v3386, %v3386
    %v3403 = vpack.c.bf16 %v3387, %v3387
    %v3404 = vpack.c.bf16 %v3388, %v3388
    %v3405 = vpack.c.bf16 %v3389, %v3389
    %v3406 = vpack.c.bf16 %v3390, %v3390
    %v3407 = vpack.c.bf16 %v3391, %v3391
    %v3408 = vpack.c.bf16 %v3392, %v3392
    %v3417 = vunpack.c.l.b16 %v3393
    %v3418 = vunpack.c.l.b16 %v3394
    %v3419 = vunpack.c.l.b16 %v3395
    %v3420 = vunpack.c.l.b16 %v3396
    %v3421 = vunpack.c.l.b16 %v3397
    %v3422 = vunpack.c.l.b16 %v3398
    %v3423 = vunpack.c.l.b16 %v3399
    %v3424 = vunpack.c.l.b16 %v3400
    %v3425 = vpack.c.b16 %v3418, %v3417
    %v3426 = vpack.c.b16 %v3420, %v3419
    %v3427 = vpack.c.b16 %v3422, %v3421
    %v3428 = vpack.c.b16 %v3424, %v3423
    %3429 = vrot.lane.b32.xlu0 %v3067, 96
    %v3430 = vpop.permute.xlu0 %3429
    %3431 = vrot.lane.b32.xlu0 %v3068, 96
    %v3432 = vpop.permute.xlu0 %3431
    %3433 = vrot.lane.b32.xlu0 %v3069, 96
    %v3434 = vpop.permute.xlu0 %3433
    %3435 = vrot.lane.b32.xlu0 %v3070, 96
    %v3436 = vpop.permute.xlu0 %3435
    %v3442 = vsel %vm1576, %v3425, 0
    %v3445 = vsel %vm1576, %v3426, 0
    %v3448 = vsel %vm1576, %v3427, 0
    %v3451 = vsel %vm1576, %v3428, 0
    %3453 = vmatpush.bf16.msra.mxu0 0
    %3454 = vmatpush.bf16.msra.mxu0 0
    %3455 = vmatpush.bf16.msra.mxu0 0
    %3456 = vmatpush.bf16.msra.mxu0 0
    %3457 = vmatpush.bf16.msra.mxu0 %v3436
    %3458 = vmatpush.bf16.msra.mxu0 %v3434
    %3459 = vmatpush.bf16.msra.mxu0 %v3432
    %3460 = vmatpush.bf16.msra.mxu0 %v3430
    %3461 = vmatmul.bf16.gmra.mxu0 %v3442
    %v3462 = vpop.f32.mrf.mxu0
    %v3463 = vadd.f32 0.0, %v3462
    %v3464 = vpop.f32.mrf.mxu0
    %v3465 = vadd.f32 0.0, %v3464
    %3466 = vmatmul.bf16.gmra.mxu0 %v3445
    %v3467 = vpop.f32.mrf.mxu0
    %v3468 = vadd.f32 0.0, %v3467
    %v3469 = vpop.f32.mrf.mxu0
    %v3470 = vadd.f32 0.0, %v3469
    %3471 = vmatmul.bf16.gmra.mxu0 %v3448
    %v3472 = vpop.f32.mrf.mxu0
    %v3473 = vadd.f32 0.0, %v3472
    %v3474 = vpop.f32.mrf.mxu0
    %v3475 = vadd.f32 0.0, %v3474
    %3476 = vmatmul.bf16.gmra.mxu0 %v3451
    %v3477 = vpop.f32.mrf.mxu0
    %v3478 = vadd.f32 0.0, %v3477
    %v3479 = vpop.f32.mrf.mxu0
    %v3480 = vadd.f32 0.0, %v3479
    %3481 = vdwg.mxu0
    %v3490 = vunpack.c.l.b16 %v3401
    %v3491 = vunpack.c.l.b16 %v3402
    %v3492 = vunpack.c.l.b16 %v3403
    %v3493 = vunpack.c.l.b16 %v3404
    %v3494 = vunpack.c.l.b16 %v3405
    %v3495 = vunpack.c.l.b16 %v3406
    %v3496 = vunpack.c.l.b16 %v3407
    %v3497 = vunpack.c.l.b16 %v3408
    %v3498 = vpack.c.b16 %v3491, %v3490
    %v3499 = vpack.c.b16 %v3493, %v3492
    %v3500 = vpack.c.b16 %v3495, %v3494
    %v3501 = vpack.c.b16 %v3497, %v3496
    %3502 = vrot.lane.b32.xlu0 %v3160, 96
    %v3503 = vpop.permute.xlu0 %3502
    %3504 = vrot.lane.b32.xlu0 %v3161, 96
    %v3505 = vpop.permute.xlu0 %3504
    %3506 = vrot.lane.b32.xlu0 %v3162, 96
    %v3507 = vpop.permute.xlu0 %3506
    %3508 = vrot.lane.b32.xlu0 %v3163, 96
    %v3509 = vpop.permute.xlu0 %3508
    %v3515 = vsel %vm1576, %v3498, 0
    %v3518 = vsel %vm1576, %v3499, 0
    %v3521 = vsel %vm1576, %v3500, 0
    %v3524 = vsel %vm1576, %v3501, 0
    %3526 = vmatpush.bf16.msra.mxu0 0
    %3527 = vmatpush.bf16.msra.mxu0 0
    %3528 = vmatpush.bf16.msra.mxu0 0
    %3529 = vmatpush.bf16.msra.mxu0 0
    %3530 = vmatpush.bf16.msra.mxu0 %v3509
    %3531 = vmatpush.bf16.msra.mxu0 %v3507
    %3532 = vmatpush.bf16.msra.mxu0 %v3505
    %3533 = vmatpush.bf16.msra.mxu0 %v3503
    %3534 = vmatmul.bf16.gmra.mxu0 %v3515
    %v3535 = vpop.f32.mrf.mxu0
    %v3536 = vadd.f32 0.0, %v3535
    %v3537 = vpop.f32.mrf.mxu0
    %v3538 = vadd.f32 0.0, %v3537
    %3539 = vmatmul.bf16.gmra.mxu0 %v3518
    %v3540 = vpop.f32.mrf.mxu0
    %v3541 = vadd.f32 0.0, %v3540
    %v3542 = vpop.f32.mrf.mxu0
    %v3543 = vadd.f32 0.0, %v3542
    %3544 = vmatmul.bf16.gmra.mxu0 %v3521
    %v3545 = vpop.f32.mrf.mxu0
    %v3546 = vadd.f32 0.0, %v3545
    %v3547 = vpop.f32.mrf.mxu0
    %v3548 = vadd.f32 0.0, %v3547
    %3549 = vmatmul.bf16.gmra.mxu0 %v3524
    %v3550 = vpop.f32.mrf.mxu0
    %v3551 = vadd.f32 0.0, %v3550
    %v3552 = vpop.f32.mrf.mxu0
    %v3553 = vadd.f32 0.0, %v3552
    %3554 = vdwg.mxu0
    %3555 = vrot.lane.b32.xlu0 %v3047, 112
    %v3556 = vpop.permute.xlu0 %3555
    %3557 = vrot.lane.b32.xlu0 %v3048, 112
    %v3558 = vpop.permute.xlu0 %3557
    %3559 = vrot.lane.b32.xlu0 %v3049, 112
    %v3560 = vpop.permute.xlu0 %3559
    %3561 = vrot.lane.b32.xlu0 %v3050, 112
    %v3562 = vpop.permute.xlu0 %3561
    %3563 = vrot.lane.b32.xlu0 %v3067, 112
    %v3564 = vpop.permute.xlu0 %3563
    %3565 = vrot.lane.b32.xlu0 %v3068, 112
    %v3566 = vpop.permute.xlu0 %3565
    %3567 = vrot.lane.b32.xlu0 %v3069, 112
    %v3568 = vpop.permute.xlu0 %3567
    %3569 = vrot.lane.b32.xlu0 %v3070, 112
    %v3570 = vpop.permute.xlu0 %3569
    %v3572 = vsel %vm291, %v3556, 0
    %v3575 = vsel %vm291, %v3558, 0
    %v3578 = vsel %vm291, %v3560, 0
    %v3581 = vsel %vm291, %v3562, 0
    %v3584 = vsel %vm291, %v3564, 0
    %v3587 = vsel %vm291, %v3566, 0
    %v3590 = vsel %vm291, %v3568, 0
    %v3593 = vsel %vm291, %v3570, 0
    %3595 = vmatpush.bf16.xpose.msra.mxu0 0
    %3596 = vmatpush.bf16.xpose.msra.mxu0 0
    %3597 = vmatpush.bf16.xpose.msra.mxu0 0
    %3598 = vmatpush.bf16.xpose.msra.mxu0 0
    %3599 = vmatpush.bf16.xpose.msra.mxu0 %v3593
    %3600 = vmatpush.bf16.xpose.msra.mxu0 %v3590
    %3601 = vmatpush.bf16.xpose.msra.mxu0 %v3587
    %3602 = vmatpush.bf16.xpose.msra.mxu0 %v3584
    %3603 = vmatmul.bf16.gmra.mxu0 %v3572
    %v3604 = vpop.f32.mrf.mxu0
    %v3605 = vadd.f32 0.0, %v3604
    %v3606 = vpop.f32.mrf.mxu0
    %v3607 = vadd.f32 0.0, %v3606
    %3608 = vmatmul.bf16.gmra.mxu0 %v3575
    %v3609 = vpop.f32.mrf.mxu0
    %v3610 = vadd.f32 0.0, %v3609
    %v3611 = vpop.f32.mrf.mxu0
    %v3612 = vadd.f32 0.0, %v3611
    %3613 = vmatmul.bf16.gmra.mxu0 %v3578
    %v3614 = vpop.f32.mrf.mxu0
    %v3615 = vadd.f32 0.0, %v3614
    %v3616 = vpop.f32.mrf.mxu0
    %v3617 = vadd.f32 0.0, %v3616
    %3618 = vmatmul.bf16.gmra.mxu0 %v3581
    %v3619 = vpop.f32.mrf.mxu0
    %v3620 = vadd.f32 0.0, %v3619
    %v3621 = vpop.f32.mrf.mxu0
    %v3622 = vadd.f32 0.0, %v3621
    %3623 = vdwg.mxu0
    %3624 = vrot.lane.b32.xlu0 %v3140, 112
    %v3625 = vpop.permute.xlu0 %3624
    %3626 = vrot.lane.b32.xlu0 %v3141, 112
    %v3627 = vpop.permute.xlu0 %3626
    %3628 = vrot.lane.b32.xlu0 %v3142, 112
    %v3629 = vpop.permute.xlu0 %3628
    %3630 = vrot.lane.b32.xlu0 %v3143, 112
    %v3631 = vpop.permute.xlu0 %3630
    %3632 = vrot.lane.b32.xlu0 %v3160, 112
    %v3633 = vpop.permute.xlu0 %3632
    %3634 = vrot.lane.b32.xlu0 %v3161, 112
    %v3635 = vpop.permute.xlu0 %3634
    %3636 = vrot.lane.b32.xlu0 %v3162, 112
    %v3637 = vpop.permute.xlu0 %3636
    %3638 = vrot.lane.b32.xlu0 %v3163, 112
    %v3639 = vpop.permute.xlu0 %3638
    %v3641 = vsel %vm291, %v3625, 0
    %v3644 = vsel %vm291, %v3627, 0
    %v3647 = vsel %vm291, %v3629, 0
    %v3650 = vsel %vm291, %v3631, 0
    %v3653 = vsel %vm291, %v3633, 0
    %v3656 = vsel %vm291, %v3635, 0
    %v3659 = vsel %vm291, %v3637, 0
    %v3662 = vsel %vm291, %v3639, 0
    %3664 = vmatpush.bf16.xpose.msra.mxu0 0
    %3665 = vmatpush.bf16.xpose.msra.mxu0 0
    %3666 = vmatpush.bf16.xpose.msra.mxu0 0
    %3667 = vmatpush.bf16.xpose.msra.mxu0 0
    %3668 = vmatpush.bf16.xpose.msra.mxu0 %v3662
    %3669 = vmatpush.bf16.xpose.msra.mxu0 %v3659
    %3670 = vmatpush.bf16.xpose.msra.mxu0 %v3656
    %3671 = vmatpush.bf16.xpose.msra.mxu0 %v3653
    %3672 = vmatmul.bf16.gmra.mxu0 %v3641
    %v3673 = vpop.f32.mrf.mxu0
    %v3674 = vadd.f32 0.0, %v3673
    %v3675 = vpop.f32.mrf.mxu0
    %v3676 = vadd.f32 0.0, %v3675
    %3677 = vmatmul.bf16.gmra.mxu0 %v3644
    %v3678 = vpop.f32.mrf.mxu0
    %v3679 = vadd.f32 0.0, %v3678
    %v3680 = vpop.f32.mrf.mxu0
    %v3681 = vadd.f32 0.0, %v3680
    %3682 = vmatmul.bf16.gmra.mxu0 %v3647
    %v3683 = vpop.f32.mrf.mxu0
    %v3684 = vadd.f32 0.0, %v3683
    %v3685 = vpop.f32.mrf.mxu0
    %v3686 = vadd.f32 0.0, %v3685
    %3687 = vmatmul.bf16.gmra.mxu0 %v3650
    %v3688 = vpop.f32.mrf.mxu0
    %v3689 = vadd.f32 0.0, %v3688
    %v3690 = vpop.f32.mrf.mxu0
    %v3691 = vadd.f32 0.0, %v3690
    %3692 = vdwg.mxu0
    %v3693 = vsel %vm1576, %v3605, -inf
    %3694 = vmax.xlane.f32.xlu0 %v3693
    %v3695 = vpop.xlane.xlu0 %3694
    %v3696 = vsel %vm1576, %v3607, -inf
    %3697 = vmax.xlane.f32.xlu0 %v3696
    %v3698 = vpop.xlane.xlu0 %3697
    %v3699 = vsel %vm1576, %v3610, -inf
    %3700 = vmax.xlane.f32.xlu0 %v3699
    %v3701 = vpop.xlane.xlu0 %3700
    %v3702 = vsel %vm1576, %v3612, -inf
    %3703 = vmax.xlane.f32.xlu0 %v3702
    %v3704 = vpop.xlane.xlu0 %3703
    %v3705 = vsel %vm1576, %v3615, -inf
    %3706 = vmax.xlane.f32.xlu0 %v3705
    %v3707 = vpop.xlane.xlu0 %3706
    %v3708 = vsel %vm1576, %v3617, -inf
    %3709 = vmax.xlane.f32.xlu0 %v3708
    %v3710 = vpop.xlane.xlu0 %3709
    %v3711 = vsel %vm1576, %v3620, -inf
    %3712 = vmax.xlane.f32.xlu0 %v3711
    %v3713 = vpop.xlane.xlu0 %3712
    %v3714 = vsel %vm1576, %v3622, -inf
    %3715 = vmax.xlane.f32.xlu0 %v3714
    %v3716 = vpop.xlane.xlu0 %3715
    %v3717 = vsel %vm1576, %v3674, -inf
    %3718 = vmax.xlane.f32.xlu0 %v3717
    %v3719 = vpop.xlane.xlu0 %3718
    %v3720 = vsel %vm1576, %v3676, -inf
    %3721 = vmax.xlane.f32.xlu0 %v3720
    %v3722 = vpop.xlane.xlu0 %3721
    %v3723 = vsel %vm1576, %v3679, -inf
    %3724 = vmax.xlane.f32.xlu0 %v3723
    %v3725 = vpop.xlane.xlu0 %3724
    %v3726 = vsel %vm1576, %v3681, -inf
    %3727 = vmax.xlane.f32.xlu0 %v3726
    %v3728 = vpop.xlane.xlu0 %3727
    %v3729 = vsel %vm1576, %v3684, -inf
    %3730 = vmax.xlane.f32.xlu0 %v3729
    %v3731 = vpop.xlane.xlu0 %3730
    %v3732 = vsel %vm1576, %v3686, -inf
    %3733 = vmax.xlane.f32.xlu0 %v3732
    %v3734 = vpop.xlane.xlu0 %3733
    %v3735 = vsel %vm1576, %v3689, -inf
    %3736 = vmax.xlane.f32.xlu0 %v3735
    %v3737 = vpop.xlane.xlu0 %3736
    %v3738 = vsel %vm1576, %v3691, -inf
    %3739 = vmax.xlane.f32.xlu0 %v3738
    %v3740 = vpop.xlane.xlu0 %3739
    %v3741 = vsub.f32 %v3605, %v3695
    %v3742 = vsub.f32 %v3607, %v3698
    %v3743 = vsub.f32 %v3610, %v3701
    %v3744 = vsub.f32 %v3612, %v3704
    %v3745 = vsub.f32 %v3615, %v3707
    %v3746 = vsub.f32 %v3617, %v3710
    %v3747 = vsub.f32 %v3620, %v3713
    %v3748 = vsub.f32 %v3622, %v3716
    %v3749 = vsub.f32 %v3674, %v3719
    %v3750 = vsub.f32 %v3676, %v3722
    %v3751 = vsub.f32 %v3679, %v3725
    %v3752 = vsub.f32 %v3681, %v3728
    %v3753 = vsub.f32 %v3684, %v3731
    %v3754 = vsub.f32 %v3686, %v3734
    %v3755 = vsub.f32 %v3689, %v3737
    %v3756 = vsub.f32 %v3691, %v3740
    %v3757 = vmul.f32 %v3741, 1.442695
    %v3758 = vpow.pop %v3757
    %v3759 = vmul.f32 %v3742, 1.442695
    %v3760 = vpow.pop %v3759
    %v3761 = vmul.f32 %v3743, 1.442695
    %v3762 = vpow.pop %v3761
    %v3763 = vmul.f32 %v3744, 1.442695
    %v3764 = vpow.pop %v3763
    %v3765 = vmul.f32 %v3745, 1.442695
    %v3766 = vpow.pop %v3765
    %v3767 = vmul.f32 %v3746, 1.442695
    %v3768 = vpow.pop %v3767
    %v3769 = vmul.f32 %v3747, 1.442695
    %v3770 = vpow.pop %v3769
    %v3771 = vmul.f32 %v3748, 1.442695
    %v3772 = vpow.pop %v3771
    %v3773 = vmul.f32 %v3749, 1.442695
    %v3774 = vpow.pop %v3773
    %v3775 = vmul.f32 %v3750, 1.442695
    %v3776 = vpow.pop %v3775
    %v3777 = vmul.f32 %v3751, 1.442695
    %v3778 = vpow.pop %v3777
    %v3779 = vmul.f32 %v3752, 1.442695
    %v3780 = vpow.pop %v3779
    %v3781 = vmul.f32 %v3753, 1.442695
    %v3782 = vpow.pop %v3781
    %v3783 = vmul.f32 %v3754, 1.442695
    %v3784 = vpow.pop %v3783
    %v3785 = vmul.f32 %v3755, 1.442695
    %v3786 = vpow.pop %v3785
    %v3787 = vmul.f32 %v3756, 1.442695
    %v3788 = vpow.pop %v3787
    %v3789 = vsel %vm1576, %v3758, 0.0
    %3790 = vadd.xlane.f32.xlu0 %v3789
    %v3791 = vpop.xlane.xlu0 %3790
    %v3792 = vsel %vm1576, %v3760, 0.0
    %3793 = vadd.xlane.f32.xlu0 %v3792
    %v3794 = vpop.xlane.xlu0 %3793
    %v3795 = vsel %vm1576, %v3762, 0.0
    %3796 = vadd.xlane.f32.xlu0 %v3795
    %v3797 = vpop.xlane.xlu0 %3796
    %v3798 = vsel %vm1576, %v3764, 0.0
    %3799 = vadd.xlane.f32.xlu0 %v3798
    %v3800 = vpop.xlane.xlu0 %3799
    %v3801 = vsel %vm1576, %v3766, 0.0
    %3802 = vadd.xlane.f32.xlu0 %v3801
    %v3803 = vpop.xlane.xlu0 %3802
    %v3804 = vsel %vm1576, %v3768, 0.0
    %3805 = vadd.xlane.f32.xlu0 %v3804
    %v3806 = vpop.xlane.xlu0 %3805
    %v3807 = vsel %vm1576, %v3770, 0.0
    %3808 = vadd.xlane.f32.xlu0 %v3807
    %v3809 = vpop.xlane.xlu0 %3808
    %v3810 = vsel %vm1576, %v3772, 0.0
    %3811 = vadd.xlane.f32.xlu0 %v3810
    %v3812 = vpop.xlane.xlu0 %3811
    %v3813 = vsel %vm1576, %v3774, 0.0
    %3814 = vadd.xlane.f32.xlu0 %v3813
    %v3815 = vpop.xlane.xlu0 %3814
    %v3816 = vsel %vm1576, %v3776, 0.0
    %3817 = vadd.xlane.f32.xlu0 %v3816
    %v3818 = vpop.xlane.xlu0 %3817
    %v3819 = vsel %vm1576, %v3778, 0.0
    %3820 = vadd.xlane.f32.xlu0 %v3819
    %v3821 = vpop.xlane.xlu0 %3820
    %v3822 = vsel %vm1576, %v3780, 0.0
    %3823 = vadd.xlane.f32.xlu0 %v3822
    %v3824 = vpop.xlane.xlu0 %3823
    %v3825 = vsel %vm1576, %v3782, 0.0
    %3826 = vadd.xlane.f32.xlu0 %v3825
    %v3827 = vpop.xlane.xlu0 %3826
    %v3828 = vsel %vm1576, %v3784, 0.0
    %3829 = vadd.xlane.f32.xlu0 %v3828
    %v3830 = vpop.xlane.xlu0 %3829
    %v3831 = vsel %vm1576, %v3786, 0.0
    %3832 = vadd.xlane.f32.xlu0 %v3831
    %v3833 = vpop.xlane.xlu0 %3832
    %v3834 = vsel %vm1576, %v3788, 0.0
    %3835 = vadd.xlane.f32.xlu0 %v3834
    %v3836 = vpop.xlane.xlu0 %3835
    %v3837 = vrcp.pop %v3791
    %v3838 = vrcp.pop %v3794
    %v3839 = vrcp.pop %v3797
    %v3840 = vrcp.pop %v3800
    %v3841 = vrcp.pop %v3803
    %v3842 = vrcp.pop %v3806
    %v3843 = vrcp.pop %v3809
    %v3844 = vrcp.pop %v3812
    %v3845 = vrcp.pop %v3815
    %v3846 = vrcp.pop %v3818
    %v3847 = vrcp.pop %v3821
    %v3848 = vrcp.pop %v3824
    %v3849 = vrcp.pop %v3827
    %v3850 = vrcp.pop %v3830
    %v3851 = vrcp.pop %v3833
    %v3852 = vrcp.pop %v3836
    %v3853 = vmul.f32 %v3758, %v3837
    %v3854 = vmul.f32 %v3760, %v3838
    %v3855 = vmul.f32 %v3762, %v3839
    %v3856 = vmul.f32 %v3764, %v3840
    %v3857 = vmul.f32 %v3766, %v3841
    %v3858 = vmul.f32 %v3768, %v3842
    %v3859 = vmul.f32 %v3770, %v3843
    %v3860 = vmul.f32 %v3772, %v3844
    %v3861 = vmul.f32 %v3774, %v3845
    %v3862 = vmul.f32 %v3776, %v3846
    %v3863 = vmul.f32 %v3778, %v3847
    %v3864 = vmul.f32 %v3780, %v3848
    %v3865 = vmul.f32 %v3782, %v3849
    %v3866 = vmul.f32 %v3784, %v3850
    %v3867 = vmul.f32 %v3786, %v3851
    %v3868 = vmul.f32 %v3788, %v3852
    %v3869 = vpack.c.bf16 %v3853, %v3853
    %v3870 = vpack.c.bf16 %v3854, %v3854
    %v3871 = vpack.c.bf16 %v3855, %v3855
    %v3872 = vpack.c.bf16 %v3856, %v3856
    %v3873 = vpack.c.bf16 %v3857, %v3857
    %v3874 = vpack.c.bf16 %v3858, %v3858
    %v3875 = vpack.c.bf16 %v3859, %v3859
    %v3876 = vpack.c.bf16 %v3860, %v3860
    %v3877 = vpack.c.bf16 %v3861, %v3861
    %v3878 = vpack.c.bf16 %v3862, %v3862
    %v3879 = vpack.c.bf16 %v3863, %v3863
    %v3880 = vpack.c.bf16 %v3864, %v3864
    %v3881 = vpack.c.bf16 %v3865, %v3865
    %v3882 = vpack.c.bf16 %v3866, %v3866
    %v3883 = vpack.c.bf16 %v3867, %v3867
    %v3884 = vpack.c.bf16 %v3868, %v3868
    %v3893 = vunpack.c.l.b16 %v3869
    %v3894 = vunpack.c.l.b16 %v3870
    %v3895 = vunpack.c.l.b16 %v3871
    %v3896 = vunpack.c.l.b16 %v3872
    %v3897 = vunpack.c.l.b16 %v3873
    %v3898 = vunpack.c.l.b16 %v3874
    %v3899 = vunpack.c.l.b16 %v3875
    %v3900 = vunpack.c.l.b16 %v3876
    %v3901 = vpack.c.b16 %v3894, %v3893
    %v3902 = vpack.c.b16 %v3896, %v3895
    %v3903 = vpack.c.b16 %v3898, %v3897
    %v3904 = vpack.c.b16 %v3900, %v3899
    %3905 = vrot.lane.b32.xlu0 %v3067, 80
    %v3906 = vpop.permute.xlu0 %3905
    %3907 = vrot.lane.b32.xlu0 %v3068, 80
    %v3908 = vpop.permute.xlu0 %3907
    %3909 = vrot.lane.b32.xlu0 %v3069, 80
    %v3910 = vpop.permute.xlu0 %3909
    %3911 = vrot.lane.b32.xlu0 %v3070, 80
    %v3912 = vpop.permute.xlu0 %3911
    %v3918 = vsel %vm1576, %v3901, 0
    %v3921 = vsel %vm1576, %v3902, 0
    %v3924 = vsel %vm1576, %v3903, 0
    %v3927 = vsel %vm1576, %v3904, 0
    %3929 = vmatpush.bf16.msra.mxu0 0
    %3930 = vmatpush.bf16.msra.mxu0 0
    %3931 = vmatpush.bf16.msra.mxu0 0
    %3932 = vmatpush.bf16.msra.mxu0 0
    %3933 = vmatpush.bf16.msra.mxu0 %v3912
    %3934 = vmatpush.bf16.msra.mxu0 %v3910
    %3935 = vmatpush.bf16.msra.mxu0 %v3908
    %3936 = vmatpush.bf16.msra.mxu0 %v3906
    %3937 = vmatmul.bf16.gmra.mxu0 %v3918
    %v3938 = vpop.f32.mrf.mxu0
    %v3939 = vadd.f32 0.0, %v3938
    %v3940 = vpop.f32.mrf.mxu0
    %v3941 = vadd.f32 0.0, %v3940
    %3942 = vmatmul.bf16.gmra.mxu0 %v3921
    %v3943 = vpop.f32.mrf.mxu0
    %v3944 = vadd.f32 0.0, %v3943
    %v3945 = vpop.f32.mrf.mxu0
    %v3946 = vadd.f32 0.0, %v3945
    %3947 = vmatmul.bf16.gmra.mxu0 %v3924
    %v3948 = vpop.f32.mrf.mxu0
    %v3949 = vadd.f32 0.0, %v3948
    %v3950 = vpop.f32.mrf.mxu0
    %v3951 = vadd.f32 0.0, %v3950
    %3952 = vmatmul.bf16.gmra.mxu0 %v3927
    %v3953 = vpop.f32.mrf.mxu0
    %v3954 = vadd.f32 0.0, %v3953
    %v3955 = vpop.f32.mrf.mxu0
    %v3956 = vadd.f32 0.0, %v3955
    %3957 = vdwg.mxu0
    %v3966 = vunpack.c.l.b16 %v3877
    %v3967 = vunpack.c.l.b16 %v3878
    %v3968 = vunpack.c.l.b16 %v3879
    %v3969 = vunpack.c.l.b16 %v3880
    %v3970 = vunpack.c.l.b16 %v3881
    %v3971 = vunpack.c.l.b16 %v3882
    %v3972 = vunpack.c.l.b16 %v3883
    %v3973 = vunpack.c.l.b16 %v3884
    %v3974 = vpack.c.b16 %v3967, %v3966
    %v3975 = vpack.c.b16 %v3969, %v3968
    %v3976 = vpack.c.b16 %v3971, %v3970
    %v3977 = vpack.c.b16 %v3973, %v3972
    %3978 = vrot.lane.b32.xlu0 %v3160, 80
    %v3979 = vpop.permute.xlu0 %3978
    %3980 = vrot.lane.b32.xlu0 %v3161, 80
    %v3981 = vpop.permute.xlu0 %3980
    %3982 = vrot.lane.b32.xlu0 %v3162, 80
    %v3983 = vpop.permute.xlu0 %3982
    %3984 = vrot.lane.b32.xlu0 %v3163, 80
    %v3985 = vpop.permute.xlu0 %3984
    %v3991 = vsel %vm1576, %v3974, 0
    %v3994 = vsel %vm1576, %v3975, 0
    %v3997 = vsel %vm1576, %v3976, 0
    %v4000 = vsel %vm1576, %v3977, 0
    %4002 = vmatpush.bf16.msra.mxu0 0
    %4003 = vmatpush.bf16.msra.mxu0 0
    %4004 = vmatpush.bf16.msra.mxu0 0
    %4005 = vmatpush.bf16.msra.mxu0 0
    %4006 = vmatpush.bf16.msra.mxu0 %v3985
    %4007 = vmatpush.bf16.msra.mxu0 %v3983
    %4008 = vmatpush.bf16.msra.mxu0 %v3981
    %4009 = vmatpush.bf16.msra.mxu0 %v3979
    %4010 = vmatmul.bf16.gmra.mxu0 %v3991
    %v4011 = vpop.f32.mrf.mxu0
    %v4012 = vadd.f32 0.0, %v4011
    %v4013 = vpop.f32.mrf.mxu0
    %v4014 = vadd.f32 0.0, %v4013
    %4015 = vmatmul.bf16.gmra.mxu0 %v3994
    %v4016 = vpop.f32.mrf.mxu0
    %v4017 = vadd.f32 0.0, %v4016
    %v4018 = vpop.f32.mrf.mxu0
    %v4019 = vadd.f32 0.0, %v4018
    %4020 = vmatmul.bf16.gmra.mxu0 %v3997
    %v4021 = vpop.f32.mrf.mxu0
    %v4022 = vadd.f32 0.0, %v4021
    %v4023 = vpop.f32.mrf.mxu0
    %v4024 = vadd.f32 0.0, %v4023
    %4025 = vmatmul.bf16.gmra.mxu0 %v4000
    %v4026 = vpop.f32.mrf.mxu0
    %v4027 = vadd.f32 0.0, %v4026
    %v4028 = vpop.f32.mrf.mxu0
    %v4029 = vadd.f32 0.0, %v4028
    %4030 = vdwg.mxu0
    %4047 = vrot.lane.b32.xlu0 %v3939, 16
    %v4048 = vpop.permute.xlu0 %4047
    %4049 = vrot.lane.b32.xlu0 %v3941, 16
    %v4050 = vpop.permute.xlu0 %4049
    %4051 = vrot.lane.b32.xlu0 %v3944, 16
    %v4052 = vpop.permute.xlu0 %4051
    %4053 = vrot.lane.b32.xlu0 %v3946, 16
    %v4054 = vpop.permute.xlu0 %4053
    %4055 = vrot.lane.b32.xlu0 %v3949, 16
    %v4056 = vpop.permute.xlu0 %4055
    %4057 = vrot.lane.b32.xlu0 %v3951, 16
    %v4058 = vpop.permute.xlu0 %4057
    %4059 = vrot.lane.b32.xlu0 %v3954, 16
    %v4060 = vpop.permute.xlu0 %4059
    %4061 = vrot.lane.b32.xlu0 %v3956, 16
    %v4062 = vpop.permute.xlu0 %4061
    %4063 = vrot.lane.b32.xlu0 %v4012, 16
    %v4064 = vpop.permute.xlu0 %4063
    %4065 = vrot.lane.b32.xlu0 %v4014, 16
    %v4066 = vpop.permute.xlu0 %4065
    %4067 = vrot.lane.b32.xlu0 %v4017, 16
    %v4068 = vpop.permute.xlu0 %4067
    %4069 = vrot.lane.b32.xlu0 %v4019, 16
    %v4070 = vpop.permute.xlu0 %4069
    %4071 = vrot.lane.b32.xlu0 %v4022, 16
    %v4072 = vpop.permute.xlu0 %4071
    %4073 = vrot.lane.b32.xlu0 %v4024, 16
    %v4074 = vpop.permute.xlu0 %4073
    %4075 = vrot.lane.b32.xlu0 %v4027, 16
    %v4076 = vpop.permute.xlu0 %4075
    %4077 = vrot.lane.b32.xlu0 %v4029, 16
    %v4078 = vpop.permute.xlu0 %4077
    %v4095 = vsel %vm291, %v3463, %v4048
    %v4096 = vsel %vm291, %v3465, %v4050
    %v4097 = vsel %vm291, %v3468, %v4052
    %v4098 = vsel %vm291, %v3470, %v4054
    %v4099 = vsel %vm291, %v3473, %v4056
    %v4100 = vsel %vm291, %v3475, %v4058
    %v4101 = vsel %vm291, %v3478, %v4060
    %v4102 = vsel %vm291, %v3480, %v4062
    %v4103 = vsel %vm291, %v3536, %v4064
    %v4104 = vsel %vm291, %v3538, %v4066
    %v4105 = vsel %vm291, %v3541, %v4068
    %v4106 = vsel %vm291, %v3543, %v4070
    %v4107 = vsel %vm291, %v3546, %v4072
    %v4108 = vsel %vm291, %v3548, %v4074
    %v4109 = vsel %vm291, %v3551, %v4076
    %v4110 = vsel %vm291, %v3553, %v4078
    %s4111 = scalar_lea.vmem %s7, 32
    %v4112 = vld [vmem:[%s4111] sm:$0xf]
    %v4113 = vld [vmem:[%s4111 + $0x4] sm:$0xf]
    %v4114 = vld [vmem:[%s4111 + $0x8] sm:$0xf]
    %v4115 = vld [vmem:[%s4111 + $0xc] sm:$0xf]
    %v4116 = vpack.c.bf16 %v4096, %v4095
    %v4117 = vpack.c.bf16 %v4098, %v4097
    %v4118 = vpack.c.bf16 %v4100, %v4099
    %v4119 = vpack.c.bf16 %v4102, %v4101
    %v4120 = vpack.c.bf16 %v4104, %v4103
    %v4121 = vpack.c.bf16 %v4106, %v4105
    %v4122 = vpack.c.bf16 %v4108, %v4107
    %v4123 = vpack.c.bf16 %v4110, %v4109
    %v4128 = vunpack.c.l.b16 %v4112
    %v4129 = vunpack.c.l.b16 %v4113
    %v4130 = vunpack.c.l.b16 %v4114
    %v4131 = vunpack.c.l.b16 %v4115
    %v4132 = vpack.c.b16 %v4129, %v4128
    %v4133 = vpack.c.b16 %v4131, %v4130
    %v4137 = vsel %vm877, %v4116, 0
    %v4140 = vsel %vm877, %v4117, 0
    %v4143 = vsel %vm877, %v4118, 0
    %v4146 = vsel %vm877, %v4119, 0
    %v4149 = vsel %vm877, %v4120, 0
    %v4152 = vsel %vm877, %v4121, 0
    %v4155 = vsel %vm877, %v4122, 0
    %v4158 = vsel %vm877, %v4123, 0
    %4160 = vmatpush.bf16.msra.mxu0 0
    %4161 = vmatpush.bf16.msra.mxu0 0
    %4162 = vmatpush.bf16.msra.mxu0 0
    %4163 = vmatpush.bf16.msra.mxu0 0
    %4164 = vmatpush.bf16.msra.mxu0 0
    %4165 = vmatpush.bf16.msra.mxu0 0
    %4166 = vmatpush.bf16.msra.mxu0 %v4133
    %4167 = vmatpush.bf16.msra.mxu0 %v4132
    %4168 = vmatmul.bf16.gmra.mxu0 %v4137
    %v4169 = vpop.f32.mrf.mxu0
    %v4170 = vadd.f32 0.0, %v4169
    %v4171 = vpop.f32.mrf.mxu0
    %v4172 = vadd.f32 0.0, %v4171
    %4173 = vmatmul.bf16.gmra.mxu0 %v4140
    %v4174 = vpop.f32.mrf.mxu0
    %v4175 = vadd.f32 0.0, %v4174
    %v4176 = vpop.f32.mrf.mxu0
    %v4177 = vadd.f32 0.0, %v4176
    %4178 = vmatmul.bf16.gmra.mxu0 %v4143
    %v4179 = vpop.f32.mrf.mxu0
    %v4180 = vadd.f32 0.0, %v4179
    %v4181 = vpop.f32.mrf.mxu0
    %v4182 = vadd.f32 0.0, %v4181
    %4183 = vmatmul.bf16.gmra.mxu0 %v4146
    %v4184 = vpop.f32.mrf.mxu0
    %v4185 = vadd.f32 0.0, %v4184
    %v4186 = vpop.f32.mrf.mxu0
    %v4187 = vadd.f32 0.0, %v4186
    %4188 = vmatmul.bf16.gmra.mxu0 %v4149
    %v4189 = vpop.f32.mrf.mxu0
    %v4190 = vadd.f32 0.0, %v4189
    %v4191 = vpop.f32.mrf.mxu0
    %v4192 = vadd.f32 0.0, %v4191
    %4193 = vmatmul.bf16.gmra.mxu0 %v4152
    %v4194 = vpop.f32.mrf.mxu0
    %v4195 = vadd.f32 0.0, %v4194
    %v4196 = vpop.f32.mrf.mxu0
    %v4197 = vadd.f32 0.0, %v4196
    %4198 = vmatmul.bf16.gmra.mxu0 %v4155
    %v4199 = vpop.f32.mrf.mxu0
    %v4200 = vadd.f32 0.0, %v4199
    %v4201 = vpop.f32.mrf.mxu0
    %v4202 = vadd.f32 0.0, %v4201
    %4203 = vmatmul.bf16.gmra.mxu0 %v4158
    %v4204 = vpop.f32.mrf.mxu0
    %v4205 = vadd.f32 0.0, %v4204
    %v4206 = vpop.f32.mrf.mxu0
    %v4207 = vadd.f32 0.0, %v4206
    %4208 = vdwg.mxu0
    %v4209 = vadd.f32 %v860, %v4170
    %v4210 = vadd.f32 %v861, %v4172
    %v4211 = vadd.f32 %v862, %v4175
    %v4212 = vadd.f32 %v863, %v4177
    %v4213 = vadd.f32 %v864, %v4180
    %v4214 = vadd.f32 %v865, %v4182
    %v4215 = vadd.f32 %v866, %v4185
    %v4216 = vadd.f32 %v867, %v4187
    %v4217 = vadd.f32 %v868, %v4190
    %v4218 = vadd.f32 %v869, %v4192
    %v4219 = vadd.f32 %v870, %v4195
    %v4220 = vadd.f32 %v871, %v4197
    %v4221 = vadd.f32 %v872, %v4200
    %v4222 = vadd.f32 %v873, %v4202
    %v4223 = vadd.f32 %v874, %v4205
    %v4224 = vadd.f32 %v875, %v4207
    %s4225 = scalar_lea.vmem [#allocation11], 2
    %v4226 = vld [vmem:[%s4225] sm:$0x1]
    %v4227 = vsel %vm877, %v4209, 0.0
    %4228 = vadd.xlane.f32.xlu0 %v4227
    %v4229 = vpop.xlane.xlu0 %4228
    %v4230 = vsel %vm877, %v4210, 0.0
    %4231 = vadd.xlane.f32.xlu0 %v4230
    %v4232 = vpop.xlane.xlu0 %4231
    %v4233 = vsel %vm877, %v4211, 0.0
    %4234 = vadd.xlane.f32.xlu0 %v4233
    %v4235 = vpop.xlane.xlu0 %4234
    %v4236 = vsel %vm877, %v4212, 0.0
    %4237 = vadd.xlane.f32.xlu0 %v4236
    %v4238 = vpop.xlane.xlu0 %4237
    %v4239 = vsel %vm877, %v4213, 0.0
    %4240 = vadd.xlane.f32.xlu0 %v4239
    %v4241 = vpop.xlane.xlu0 %4240
    %v4242 = vsel %vm877, %v4214, 0.0
    %4243 = vadd.xlane.f32.xlu0 %v4242
    %v4244 = vpop.xlane.xlu0 %4243
    %v4245 = vsel %vm877, %v4215, 0.0
    %4246 = vadd.xlane.f32.xlu0 %v4245
    %v4247 = vpop.xlane.xlu0 %4246
    %v4248 = vsel %vm877, %v4216, 0.0
    %4249 = vadd.xlane.f32.xlu0 %v4248
    %v4250 = vpop.xlane.xlu0 %4249
    %v4251 = vsel %vm877, %v4217, 0.0
    %4252 = vadd.xlane.f32.xlu0 %v4251
    %v4253 = vpop.xlane.xlu0 %4252
    %v4254 = vsel %vm877, %v4218, 0.0
    %4255 = vadd.xlane.f32.xlu0 %v4254
    %v4256 = vpop.xlane.xlu0 %4255
    %v4257 = vsel %vm877, %v4219, 0.0
    %4258 = vadd.xlane.f32.xlu0 %v4257
    %v4259 = vpop.xlane.xlu0 %4258
    %v4260 = vsel %vm877, %v4220, 0.0
    %4261 = vadd.xlane.f32.xlu0 %v4260
    %v4262 = vpop.xlane.xlu0 %4261
    %v4263 = vsel %vm877, %v4221, 0.0
    %4264 = vadd.xlane.f32.xlu0 %v4263
    %v4265 = vpop.xlane.xlu0 %4264
    %v4266 = vsel %vm877, %v4222, 0.0
    %4267 = vadd.xlane.f32.xlu0 %v4266
    %v4268 = vpop.xlane.xlu0 %4267
    %v4269 = vsel %vm877, %v4223, 0.0
    %4270 = vadd.xlane.f32.xlu0 %v4269
    %v4271 = vpop.xlane.xlu0 %4270
    %v4272 = vsel %vm877, %v4224, 0.0
    %4273 = vadd.xlane.f32.xlu0 %v4272
    %v4274 = vpop.xlane.xlu0 %4273
    %v4275 = vmul.f32 %v4229, %v890
    %v4276 = vmul.f32 %v4232, %v890
    %v4277 = vmul.f32 %v4235, %v890
    %v4278 = vmul.f32 %v4238, %v890
    %v4279 = vmul.f32 %v4241, %v890
    %v4280 = vmul.f32 %v4244, %v890
    %v4281 = vmul.f32 %v4247, %v890
    %v4282 = vmul.f32 %v4250, %v890
    %v4283 = vmul.f32 %v4253, %v890
    %v4284 = vmul.f32 %v4256, %v890
    %v4285 = vmul.f32 %v4259, %v890
    %v4286 = vmul.f32 %v4262, %v890
    %v4287 = vmul.f32 %v4265, %v890
    %v4288 = vmul.f32 %v4268, %v890
    %v4289 = vmul.f32 %v4271, %v890
    %v4290 = vmul.f32 %v4274, %v890
    %v4291 = vsub.f32 %v4209, %v4275
    %v4292 = vsub.f32 %v4210, %v4276
    %v4293 = vsub.f32 %v4211, %v4277
    %v4294 = vsub.f32 %v4212, %v4278
    %v4295 = vsub.f32 %v4213, %v4279
    %v4296 = vsub.f32 %v4214, %v4280
    %v4297 = vsub.f32 %v4215, %v4281
    %v4298 = vsub.f32 %v4216, %v4282
    %v4299 = vsub.f32 %v4217, %v4283
    %v4300 = vsub.f32 %v4218, %v4284
    %v4301 = vsub.f32 %v4219, %v4285
    %v4302 = vsub.f32 %v4220, %v4286
    %v4303 = vsub.f32 %v4221, %v4287
    %v4304 = vsub.f32 %v4222, %v4288
    %v4305 = vsub.f32 %v4223, %v4289
    %v4306 = vsub.f32 %v4224, %v4290
    %v4307 = vmul.f32 %v4291, %v4291
    %v4308 = vmul.f32 %v4292, %v4292
    %v4309 = vmul.f32 %v4293, %v4293
    %v4310 = vmul.f32 %v4294, %v4294
    %v4311 = vmul.f32 %v4295, %v4295
    %v4312 = vmul.f32 %v4296, %v4296
    %v4313 = vmul.f32 %v4297, %v4297
    %v4314 = vmul.f32 %v4298, %v4298
    %v4315 = vmul.f32 %v4299, %v4299
    %v4316 = vmul.f32 %v4300, %v4300
    %v4317 = vmul.f32 %v4301, %v4301
    %v4318 = vmul.f32 %v4302, %v4302
    %v4319 = vmul.f32 %v4303, %v4303
    %v4320 = vmul.f32 %v4304, %v4304
    %v4321 = vmul.f32 %v4305, %v4305
    %v4322 = vmul.f32 %v4306, %v4306
    %v4323 = vsel %vm877, %v4307, 0.0
    %4324 = vadd.xlane.f32.xlu0 %v4323
    %v4325 = vpop.xlane.xlu0 %4324
    %v4326 = vsel %vm877, %v4308, 0.0
    %4327 = vadd.xlane.f32.xlu0 %v4326
    %v4328 = vpop.xlane.xlu0 %4327
    %v4329 = vsel %vm877, %v4309, 0.0
    %4330 = vadd.xlane.f32.xlu0 %v4329
    %v4331 = vpop.xlane.xlu0 %4330
    %v4332 = vsel %vm877, %v4310, 0.0
    %4333 = vadd.xlane.f32.xlu0 %v4332
    %v4334 = vpop.xlane.xlu0 %4333
    %v4335 = vsel %vm877, %v4311, 0.0
    %4336 = vadd.xlane.f32.xlu0 %v4335
    %v4337 = vpop.xlane.xlu0 %4336
    %v4338 = vsel %vm877, %v4312, 0.0
    %4339 = vadd.xlane.f32.xlu0 %v4338
    %v4340 = vpop.xlane.xlu0 %4339
    %v4341 = vsel %vm877, %v4313, 0.0
    %4342 = vadd.xlane.f32.xlu0 %v4341
    %v4343 = vpop.xlane.xlu0 %4342
    %v4344 = vsel %vm877, %v4314, 0.0
    %4345 = vadd.xlane.f32.xlu0 %v4344
    %v4346 = vpop.xlane.xlu0 %4345
    %v4347 = vsel %vm877, %v4315, 0.0
    %4348 = vadd.xlane.f32.xlu0 %v4347
    %v4349 = vpop.xlane.xlu0 %4348
    %v4350 = vsel %vm877, %v4316, 0.0
    %4351 = vadd.xlane.f32.xlu0 %v4350
    %v4352 = vpop.xlane.xlu0 %4351
    %v4353 = vsel %vm877, %v4317, 0.0
    %4354 = vadd.xlane.f32.xlu0 %v4353
    %v4355 = vpop.xlane.xlu0 %4354
    %v4356 = vsel %vm877, %v4318, 0.0
    %4357 = vadd.xlane.f32.xlu0 %v4356
    %v4358 = vpop.xlane.xlu0 %4357
    %v4359 = vsel %vm877, %v4319, 0.0
    %4360 = vadd.xlane.f32.xlu0 %v4359
    %v4361 = vpop.xlane.xlu0 %4360
    %v4362 = vsel %vm877, %v4320, 0.0
    %4363 = vadd.xlane.f32.xlu0 %v4362
    %v4364 = vpop.xlane.xlu0 %4363
    %v4365 = vsel %vm877, %v4321, 0.0
    %4366 = vadd.xlane.f32.xlu0 %v4365
    %v4367 = vpop.xlane.xlu0 %4366
    %v4368 = vsel %vm877, %v4322, 0.0
    %4369 = vadd.xlane.f32.xlu0 %v4368
    %v4370 = vpop.xlane.xlu0 %4369
    %v4371 = vmul.f32 %v4325, %v890
    %v4372 = vmul.f32 %v4328, %v890
    %v4373 = vmul.f32 %v4331, %v890
    %v4374 = vmul.f32 %v4334, %v890
    %v4375 = vmul.f32 %v4337, %v890
    %v4376 = vmul.f32 %v4340, %v890
    %v4377 = vmul.f32 %v4343, %v890
    %v4378 = vmul.f32 %v4346, %v890
    %v4379 = vmul.f32 %v4349, %v890
    %v4380 = vmul.f32 %v4352, %v890
    %v4381 = vmul.f32 %v4355, %v890
    %v4382 = vmul.f32 %v4358, %v890
    %v4383 = vmul.f32 %v4361, %v890
    %v4384 = vmul.f32 %v4364, %v890
    %v4385 = vmul.f32 %v4367, %v890
    %v4386 = vmul.f32 %v4370, %v890
    %v4387 = vadd.f32 %v4371, 1e-05
    %v4388 = vadd.f32 %v4372, 1e-05
    %v4389 = vadd.f32 %v4373, 1e-05
    %v4390 = vadd.f32 %v4374, 1e-05
    %v4391 = vadd.f32 %v4375, 1e-05
    %v4392 = vadd.f32 %v4376, 1e-05
    %v4393 = vadd.f32 %v4377, 1e-05
    %v4394 = vadd.f32 %v4378, 1e-05
    %v4395 = vadd.f32 %v4379, 1e-05
    %v4396 = vadd.f32 %v4380, 1e-05
    %v4397 = vadd.f32 %v4381, 1e-05
    %v4398 = vadd.f32 %v4382, 1e-05
    %v4399 = vadd.f32 %v4383, 1e-05
    %v4400 = vadd.f32 %v4384, 1e-05
    %v4401 = vadd.f32 %v4385, 1e-05
    %v4402 = vadd.f32 %v4386, 1e-05
    %v4403 = vrsqrt.pop %v4387
    %v4404 = vmul.f32 %v4403, %v4387
    %v4405 = vmul.f32 %v4404, %v4403
    %v4406 = vmul.f32 0.5, %v4405
    %v4407 = vsub.f32 1.5, %v4406
    %v4408 = vmul.f32 %v4403, %v4407
    %vm4409 = vweird.f32 %v4387
    %vm4410 = vweird.f32 %v4403
    %vm4411 = vmor %vm4409, %vm4410
    %v4412 = vsel %vm4411, %v4403, %v4408
    %v4413 = vrsqrt.pop %v4388
    %v4414 = vmul.f32 %v4413, %v4388
    %v4415 = vmul.f32 %v4414, %v4413
    %v4416 = vmul.f32 0.5, %v4415
    %v4417 = vsub.f32 1.5, %v4416
    %v4418 = vmul.f32 %v4413, %v4417
    %vm4419 = vweird.f32 %v4388
    %vm4420 = vweird.f32 %v4413
    %vm4421 = vmor %vm4419, %vm4420
    %v4422 = vsel %vm4421, %v4413, %v4418
    %v4423 = vrsqrt.pop %v4389
    %v4424 = vmul.f32 %v4423, %v4389
    %v4425 = vmul.f32 %v4424, %v4423
    %v4426 = vmul.f32 0.5, %v4425
    %v4427 = vsub.f32 1.5, %v4426
    %v4428 = vmul.f32 %v4423, %v4427
    %vm4429 = vweird.f32 %v4389
    %vm4430 = vweird.f32 %v4423
    %vm4431 = vmor %vm4429, %vm4430
    %v4432 = vsel %vm4431, %v4423, %v4428
    %v4433 = vrsqrt.pop %v4390
    %v4434 = vmul.f32 %v4433, %v4390
    %v4435 = vmul.f32 %v4434, %v4433
    %v4436 = vmul.f32 0.5, %v4435
    %v4437 = vsub.f32 1.5, %v4436
    %v4438 = vmul.f32 %v4433, %v4437
    %vm4439 = vweird.f32 %v4390
    %vm4440 = vweird.f32 %v4433
    %vm4441 = vmor %vm4439, %vm4440
    %v4442 = vsel %vm4441, %v4433, %v4438
    %v4443 = vrsqrt.pop %v4391
    %v4444 = vmul.f32 %v4443, %v4391
    %v4445 = vmul.f32 %v4444, %v4443
    %v4446 = vmul.f32 0.5, %v4445
    %v4447 = vsub.f32 1.5, %v4446
    %v4448 = vmul.f32 %v4443, %v4447
    %vm4449 = vweird.f32 %v4391
    %vm4450 = vweird.f32 %v4443
    %vm4451 = vmor %vm4449, %vm4450
    %v4452 = vsel %vm4451, %v4443, %v4448
    %v4453 = vrsqrt.pop %v4392
    %v4454 = vmul.f32 %v4453, %v4392
    %v4455 = vmul.f32 %v4454, %v4453
    %v4456 = vmul.f32 0.5, %v4455
    %v4457 = vsub.f32 1.5, %v4456
    %v4458 = vmul.f32 %v4453, %v4457
    %vm4459 = vweird.f32 %v4392
    %vm4460 = vweird.f32 %v4453
    %vm4461 = vmor %vm4459, %vm4460
    %v4462 = vsel %vm4461, %v4453, %v4458
    %v4463 = vrsqrt.pop %v4393
    %v4464 = vmul.f32 %v4463, %v4393
    %v4465 = vmul.f32 %v4464, %v4463
    %v4466 = vmul.f32 0.5, %v4465
    %v4467 = vsub.f32 1.5, %v4466
    %v4468 = vmul.f32 %v4463, %v4467
    %vm4469 = vweird.f32 %v4393
    %vm4470 = vweird.f32 %v4463
    %vm4471 = vmor %vm4469, %vm4470
    %v4472 = vsel %vm4471, %v4463, %v4468
    %v4473 = vrsqrt.pop %v4394
    %v4474 = vmul.f32 %v4473, %v4394
    %v4475 = vmul.f32 %v4474, %v4473
    %v4476 = vmul.f32 0.5, %v4475
    %v4477 = vsub.f32 1.5, %v4476
    %v4478 = vmul.f32 %v4473, %v4477
    %vm4479 = vweird.f32 %v4394
    %vm4480 = vweird.f32 %v4473
    %vm4481 = vmor %vm4479, %vm4480
    %v4482 = vsel %vm4481, %v4473, %v4478
    %v4483 = vrsqrt.pop %v4395
    %v4484 = vmul.f32 %v4483, %v4395
    %v4485 = vmul.f32 %v4484, %v4483
    %v4486 = vmul.f32 0.5, %v4485
    %v4487 = vsub.f32 1.5, %v4486
    %v4488 = vmul.f32 %v4483, %v4487
    %vm4489 = vweird.f32 %v4395
    %vm4490 = vweird.f32 %v4483
    %vm4491 = vmor %vm4489, %vm4490
    %v4492 = vsel %vm4491, %v4483, %v4488
    %v4493 = vrsqrt.pop %v4396
    %v4494 = vmul.f32 %v4493, %v4396
    %v4495 = vmul.f32 %v4494, %v4493
    %v4496 = vmul.f32 0.5, %v4495
    %v4497 = vsub.f32 1.5, %v4496
    %v4498 = vmul.f32 %v4493, %v4497
    %vm4499 = vweird.f32 %v4396
    %vm4500 = vweird.f32 %v4493
    %vm4501 = vmor %vm4499, %vm4500
    %v4502 = vsel %vm4501, %v4493, %v4498
    %v4503 = vrsqrt.pop %v4397
    %v4504 = vmul.f32 %v4503, %v4397
    %v4505 = vmul.f32 %v4504, %v4503
    %v4506 = vmul.f32 0.5, %v4505
    %v4507 = vsub.f32 1.5, %v4506
    %v4508 = vmul.f32 %v4503, %v4507
    %vm4509 = vweird.f32 %v4397
    %vm4510 = vweird.f32 %v4503
    %vm4511 = vmor %vm4509, %vm4510
    %v4512 = vsel %vm4511, %v4503, %v4508
    %v4513 = vrsqrt.pop %v4398
    %v4514 = vmul.f32 %v4513, %v4398
    %v4515 = vmul.f32 %v4514, %v4513
    %v4516 = vmul.f32 0.5, %v4515
    %v4517 = vsub.f32 1.5, %v4516
    %v4518 = vmul.f32 %v4513, %v4517
    %vm4519 = vweird.f32 %v4398
    %vm4520 = vweird.f32 %v4513
    %vm4521 = vmor %vm4519, %vm4520
    %v4522 = vsel %vm4521, %v4513, %v4518
    %v4523 = vrsqrt.pop %v4399
    %v4524 = vmul.f32 %v4523, %v4399
    %v4525 = vmul.f32 %v4524, %v4523
    %v4526 = vmul.f32 0.5, %v4525
    %v4527 = vsub.f32 1.5, %v4526
    %v4528 = vmul.f32 %v4523, %v4527
    %vm4529 = vweird.f32 %v4399
    %vm4530 = vweird.f32 %v4523
    %vm4531 = vmor %vm4529, %vm4530
    %v4532 = vsel %vm4531, %v4523, %v4528
    %v4533 = vrsqrt.pop %v4400
    %v4534 = vmul.f32 %v4533, %v4400
    %v4535 = vmul.f32 %v4534, %v4533
    %v4536 = vmul.f32 0.5, %v4535
    %v4537 = vsub.f32 1.5, %v4536
    %v4538 = vmul.f32 %v4533, %v4537
    %vm4539 = vweird.f32 %v4400
    %vm4540 = vweird.f32 %v4533
    %vm4541 = vmor %vm4539, %vm4540
    %v4542 = vsel %vm4541, %v4533, %v4538
    %v4543 = vrsqrt.pop %v4401
    %v4544 = vmul.f32 %v4543, %v4401
    %v4545 = vmul.f32 %v4544, %v4543
    %v4546 = vmul.f32 0.5, %v4545
    %v4547 = vsub.f32 1.5, %v4546
    %v4548 = vmul.f32 %v4543, %v4547
    %vm4549 = vweird.f32 %v4401
    %vm4550 = vweird.f32 %v4543
    %vm4551 = vmor %vm4549, %vm4550
    %v4552 = vsel %vm4551, %v4543, %v4548
    %v4553 = vrsqrt.pop %v4402
    %v4554 = vmul.f32 %v4553, %v4402
    %v4555 = vmul.f32 %v4554, %v4553
    %v4556 = vmul.f32 0.5, %v4555
    %v4557 = vsub.f32 1.5, %v4556
    %v4558 = vmul.f32 %v4553, %v4557
    %vm4559 = vweird.f32 %v4402
    %vm4560 = vweird.f32 %v4553
    %vm4561 = vmor %vm4559, %vm4560
    %v4562 = vsel %vm4561, %v4553, %v4558
    %v4563 = vmul.f32 %v4291, %v4412
    %v4564 = vmul.f32 %v4292, %v4422
    %v4565 = vmul.f32 %v4293, %v4432
    %v4566 = vmul.f32 %v4294, %v4442
    %v4567 = vmul.f32 %v4295, %v4452
    %v4568 = vmul.f32 %v4296, %v4462
    %v4569 = vmul.f32 %v4297, %v4472
    %v4570 = vmul.f32 %v4298, %v4482
    %v4571 = vmul.f32 %v4299, %v4492
    %v4572 = vmul.f32 %v4300, %v4502
    %v4573 = vmul.f32 %v4301, %v4512
    %v4574 = vmul.f32 %v4302, %v4522
    %v4575 = vmul.f32 %v4303, %v4532
    %v4576 = vmul.f32 %v4304, %v4542
    %v4577 = vmul.f32 %v4305, %v4552
    %v4578 = vmul.f32 %v4306, %v4562
    %v4580 = vperm.slane %v4226, 0
    %v4582 = vmul.f32 %v4563, %v4580
    %v4583 = vmul.f32 %v4564, %v4580
    %v4584 = vmul.f32 %v4565, %v4580
    %v4585 = vmul.f32 %v4566, %v4580
    %v4586 = vmul.f32 %v4567, %v4580
    %v4587 = vmul.f32 %v4568, %v4580
    %v4588 = vmul.f32 %v4569, %v4580
    %v4589 = vmul.f32 %v4570, %v4580
    %v4590 = vmul.f32 %v4571, %v4580
    %v4591 = vmul.f32 %v4572, %v4580
    %v4592 = vmul.f32 %v4573, %v4580
    %v4593 = vmul.f32 %v4574, %v4580
    %v4594 = vmul.f32 %v4575, %v4580
    %v4595 = vmul.f32 %v4576, %v4580
    %v4596 = vmul.f32 %v4577, %v4580
    %v4597 = vmul.f32 %v4578, %v4580
    %s4598 = scalar_lea.vmem %s9, 32
    %v4599 = vld [vmem:[%s4598] sm:$0xf]
    %v4600 = vld [vmem:[%s4598 + $0x4] sm:$0xf]
    %v4601 = vld [vmem:[%s4598 + $0x8] sm:$0xf]
    %v4602 = vld [vmem:[%s4598 + $0xc] sm:$0xf]
    %v4603 = vpack.c.bf16 %v4583, %v4582
    %v4604 = vpack.c.bf16 %v4585, %v4584
    %v4605 = vpack.c.bf16 %v4587, %v4586
    %v4606 = vpack.c.bf16 %v4589, %v4588
    %v4607 = vpack.c.bf16 %v4591, %v4590
    %v4608 = vpack.c.bf16 %v4593, %v4592
    %v4609 = vpack.c.bf16 %v4595, %v4594
    %v4610 = vpack.c.bf16 %v4597, %v4596
    %s4611 = scalar_lea.vmem [#allocation13], 2
    %v4612 = vld [vmem:[%s4611] sm:$0x1]
    %v4614 = vperm.slane %v4612, 0
    %v4620 = vunpack.c.l.b16 %v4599
    %v4621 = vunpack.c.l.b16 %v4600
    %v4622 = vunpack.c.l.b16 %v4601
    %v4623 = vunpack.c.l.b16 %v4602
    %v4624 = vpack.c.b16 %v4621, %v4620
    %v4625 = vpack.c.b16 %v4623, %v4622
    %v4629 = vsel %vm877, %v4603, 0
    %v4632 = vsel %vm877, %v4604, 0
    %v4635 = vsel %vm877, %v4605, 0
    %v4638 = vsel %vm877, %v4606, 0
    %v4641 = vsel %vm877, %v4607, 0
    %v4644 = vsel %vm877, %v4608, 0
    %v4647 = vsel %vm877, %v4609, 0
    %v4650 = vsel %vm877, %v4610, 0
    %4652 = vmatpush.bf16.msra.mxu0 0
    %4653 = vmatpush.bf16.msra.mxu0 0
    %4654 = vmatpush.bf16.msra.mxu0 0
    %4655 = vmatpush.bf16.msra.mxu0 0
    %4656 = vmatpush.bf16.msra.mxu0 0
    %4657 = vmatpush.bf16.msra.mxu0 0
    %4658 = vmatpush.bf16.msra.mxu0 %v4625
    %4659 = vmatpush.bf16.msra.mxu0 %v4624
    %4660 = vmatmul.bf16.gmra.mxu0 %v4629
    %v4661 = vpop.f32.mrf.mxu0
    %v4662 = vadd.f32 %v4614, %v4661
    %v4663 = vpop.f32.mrf.mxu0
    %v4664 = vadd.f32 %v4614, %v4663
    %4665 = vmatmul.bf16.gmra.mxu0 %v4632
    %v4666 = vpop.f32.mrf.mxu0
    %v4667 = vadd.f32 %v4614, %v4666
    %v4668 = vpop.f32.mrf.mxu0
    %v4669 = vadd.f32 %v4614, %v4668
    %4670 = vmatmul.bf16.gmra.mxu0 %v4635
    %v4671 = vpop.f32.mrf.mxu0
    %v4672 = vadd.f32 %v4614, %v4671
    %v4673 = vpop.f32.mrf.mxu0
    %v4674 = vadd.f32 %v4614, %v4673
    %4675 = vmatmul.bf16.gmra.mxu0 %v4638
    %v4676 = vpop.f32.mrf.mxu0
    %v4677 = vadd.f32 %v4614, %v4676
    %v4678 = vpop.f32.mrf.mxu0
    %v4679 = vadd.f32 %v4614, %v4678
    %4680 = vmatmul.bf16.gmra.mxu0 %v4641
    %v4681 = vpop.f32.mrf.mxu0
    %v4682 = vadd.f32 %v4614, %v4681
    %v4683 = vpop.f32.mrf.mxu0
    %v4684 = vadd.f32 %v4614, %v4683
    %4685 = vmatmul.bf16.gmra.mxu0 %v4644
    %v4686 = vpop.f32.mrf.mxu0
    %v4687 = vadd.f32 %v4614, %v4686
    %v4688 = vpop.f32.mrf.mxu0
    %v4689 = vadd.f32 %v4614, %v4688
    %4690 = vmatmul.bf16.gmra.mxu0 %v4647
    %v4691 = vpop.f32.mrf.mxu0
    %v4692 = vadd.f32 %v4614, %v4691
    %v4693 = vpop.f32.mrf.mxu0
    %v4694 = vadd.f32 %v4614, %v4693
    %4695 = vmatmul.bf16.gmra.mxu0 %v4650
    %v4696 = vpop.f32.mrf.mxu0
    %v4697 = vadd.f32 %v4614, %v4696
    %v4698 = vpop.f32.mrf.mxu0
    %v4699 = vadd.f32 %v4614, %v4698
    %4700 = vdwg.mxu0
    %v4701 = vmul.f32 %v4662, %v4662
    %v4702 = vmul.f32 %v4664, %v4664
    %v4703 = vmul.f32 %v4667, %v4667
    %v4704 = vmul.f32 %v4669, %v4669
    %v4705 = vmul.f32 %v4672, %v4672
    %v4706 = vmul.f32 %v4674, %v4674
    %v4707 = vmul.f32 %v4677, %v4677
    %v4708 = vmul.f32 %v4679, %v4679
    %v4709 = vmul.f32 %v4682, %v4682
    %v4710 = vmul.f32 %v4684, %v4684
    %v4711 = vmul.f32 %v4687, %v4687
    %v4712 = vmul.f32 %v4689, %v4689
    %v4713 = vmul.f32 %v4692, %v4692
    %v4714 = vmul.f32 %v4694, %v4694
    %v4715 = vmul.f32 %v4697, %v4697
    %v4716 = vmul.f32 %v4699, %v4699
    %v4717 = vmul.f32 %v4662, %v4701
    %v4718 = vmul.f32 %v4664, %v4702
    %v4719 = vmul.f32 %v4667, %v4703
    %v4720 = vmul.f32 %v4669, %v4704
    %v4721 = vmul.f32 %v4672, %v4705
    %v4722 = vmul.f32 %v4674, %v4706
    %v4723 = vmul.f32 %v4677, %v4707
    %v4724 = vmul.f32 %v4679, %v4708
    %v4725 = vmul.f32 %v4682, %v4709
    %v4726 = vmul.f32 %v4684, %v4710
    %v4727 = vmul.f32 %v4687, %v4711
    %v4728 = vmul.f32 %v4689, %v4712
    %v4729 = vmul.f32 %v4692, %v4713
    %v4730 = vmul.f32 %v4694, %v4714
    %v4731 = vmul.f32 %v4697, %v4715
    %v4732 = vmul.f32 %v4699, %v4716
    %v4733 = vmul.f32 %v4717, 0.044715
    %v4734 = vmul.f32 %v4718, 0.044715
    %v4735 = vmul.f32 %v4719, 0.044715
    %v4736 = vmul.f32 %v4720, 0.044715
    %v4737 = vmul.f32 %v4721, 0.044715
    %v4738 = vmul.f32 %v4722, 0.044715
    %v4739 = vmul.f32 %v4723, 0.044715
    %v4740 = vmul.f32 %v4724, 0.044715
    %v4741 = vmul.f32 %v4725, 0.044715
    %v4742 = vmul.f32 %v4726, 0.044715
    %v4743 = vmul.f32 %v4727, 0.044715
    %v4744 = vmul.f32 %v4728, 0.044715
    %v4745 = vmul.f32 %v4729, 0.044715
    %v4746 = vmul.f32 %v4730, 0.044715
    %v4747 = vmul.f32 %v4731, 0.044715
    %v4748 = vmul.f32 %v4732, 0.044715
    %v4749 = vadd.f32 %v4662, %v4733
    %v4750 = vadd.f32 %v4664, %v4734
    %v4751 = vadd.f32 %v4667, %v4735
    %v4752 = vadd.f32 %v4669, %v4736
    %v4753 = vadd.f32 %v4672, %v4737
    %v4754 = vadd.f32 %v4674, %v4738
    %v4755 = vadd.f32 %v4677, %v4739
    %v4756 = vadd.f32 %v4679, %v4740
    %v4757 = vadd.f32 %v4682, %v4741
    %v4758 = vadd.f32 %v4684, %v4742
    %v4759 = vadd.f32 %v4687, %v4743
    %v4760 = vadd.f32 %v4689, %v4744
    %v4761 = vadd.f32 %v4692, %v4745
    %v4762 = vadd.f32 %v4694, %v4746
    %v4763 = vadd.f32 %v4697, %v4747
    %v4764 = vadd.f32 %v4699, %v4748
    %v4765 = vmul.f32 %v4749, 0.7978846
    %v4766 = vmul.f32 %v4750, 0.7978846
    %v4767 = vmul.f32 %v4751, 0.7978846
    %v4768 = vmul.f32 %v4752, 0.7978846
    %v4769 = vmul.f32 %v4753, 0.7978846
    %v4770 = vmul.f32 %v4754, 0.7978846
    %v4771 = vmul.f32 %v4755, 0.7978846
    %v4772 = vmul.f32 %v4756, 0.7978846
    %v4773 = vmul.f32 %v4757, 0.7978846
    %v4774 = vmul.f32 %v4758, 0.7978846
    %v4775 = vmul.f32 %v4759, 0.7978846
    %v4776 = vmul.f32 %v4760, 0.7978846
    %v4777 = vmul.f32 %v4761, 0.7978846
    %v4778 = vmul.f32 %v4762, 0.7978846
    %v4779 = vmul.f32 %v4763, 0.7978846
    %v4780 = vmul.f32 %v4764, 0.7978846
    %v4781 = vtanh.pop %v4765
    %v4782 = vtanh.pop %v4766
    %v4783 = vtanh.pop %v4767
    %v4784 = vtanh.pop %v4768
    %v4785 = vtanh.pop %v4769
    %v4786 = vtanh.pop %v4770
    %v4787 = vtanh.pop %v4771
    %v4788 = vtanh.pop %v4772
    %v4789 = vtanh.pop %v4773
    %v4790 = vtanh.pop %v4774
    %v4791 = vtanh.pop %v4775
    %v4792 = vtanh.pop %v4776
    %v4793 = vtanh.pop %v4777
    %v4794 = vtanh.pop %v4778
    %v4795 = vtanh.pop %v4779
    %v4796 = vtanh.pop %v4780
    %v4797 = vadd.f32 %v4781, 1.0
    %v4798 = vadd.f32 %v4782, 1.0
    %v4799 = vadd.f32 %v4783, 1.0
    %v4800 = vadd.f32 %v4784, 1.0
    %v4801 = vadd.f32 %v4785, 1.0
    %v4802 = vadd.f32 %v4786, 1.0
    %v4803 = vadd.f32 %v4787, 1.0
    %v4804 = vadd.f32 %v4788, 1.0
    %v4805 = vadd.f32 %v4789, 1.0
    %v4806 = vadd.f32 %v4790, 1.0
    %v4807 = vadd.f32 %v4791, 1.0
    %v4808 = vadd.f32 %v4792, 1.0
    %v4809 = vadd.f32 %v4793, 1.0
    %v4810 = vadd.f32 %v4794, 1.0
    %v4811 = vadd.f32 %v4795, 1.0
    %v4812 = vadd.f32 %v4796, 1.0
    %v4813 = vmul.f32 %v4797, 0.5
    %v4814 = vmul.f32 %v4798, 0.5
    %v4815 = vmul.f32 %v4799, 0.5
    %v4816 = vmul.f32 %v4800, 0.5
    %v4817 = vmul.f32 %v4801, 0.5
    %v4818 = vmul.f32 %v4802, 0.5
    %v4819 = vmul.f32 %v4803, 0.5
    %v4820 = vmul.f32 %v4804, 0.5
    %v4821 = vmul.f32 %v4805, 0.5
    %v4822 = vmul.f32 %v4806, 0.5
    %v4823 = vmul.f32 %v4807, 0.5
    %v4824 = vmul.f32 %v4808, 0.5
    %v4825 = vmul.f32 %v4809, 0.5
    %v4826 = vmul.f32 %v4810, 0.5
    %v4827 = vmul.f32 %v4811, 0.5
    %v4828 = vmul.f32 %v4812, 0.5
    %v4829 = vmul.f32 %v4662, %v4813
    %v4830 = vmul.f32 %v4664, %v4814
    %v4831 = vmul.f32 %v4667, %v4815
    %v4832 = vmul.f32 %v4669, %v4816
    %v4833 = vmul.f32 %v4672, %v4817
    %v4834 = vmul.f32 %v4674, %v4818
    %v4835 = vmul.f32 %v4677, %v4819
    %v4836 = vmul.f32 %v4679, %v4820
    %v4837 = vmul.f32 %v4682, %v4821
    %v4838 = vmul.f32 %v4684, %v4822
    %v4839 = vmul.f32 %v4687, %v4823
    %v4840 = vmul.f32 %v4689, %v4824
    %v4841 = vmul.f32 %v4692, %v4825
    %v4842 = vmul.f32 %v4694, %v4826
    %v4843 = vmul.f32 %v4697, %v4827
    %v4844 = vmul.f32 %v4699, %v4828
    %s4845 = scalar_lea.vmem [#allocation14], 128
    %v4846 = vld [vmem:[%s4845] sm:$0xf]
    %v4847 = vld [vmem:[%s4845 + $0x4] sm:$0xf]
    %v4848 = vld [vmem:[%s4845 + $0x8] sm:$0xf]
    %v4849 = vld [vmem:[%s4845 + $0xc] sm:$0xf]
    %v4850 = vld [vmem:[%s4845 + $0x10] sm:$0xf]
    %v4851 = vld [vmem:[%s4845 + $0x14] sm:$0xf]
    %v4852 = vld [vmem:[%s4845 + $0x18] sm:$0xf]
    %v4853 = vld [vmem:[%s4845 + $0x1c] sm:$0xf]
    %v4854 = vld [vmem:[%s4845 + $0x20] sm:$0xf]
    %v4855 = vld [vmem:[%s4845 + $0x24] sm:$0xf]
    %v4856 = vld [vmem:[%s4845 + $0x28] sm:$0xf]
    %v4857 = vld [vmem:[%s4845 + $0x2c] sm:$0xf]
    %v4858 = vld [vmem:[%s4845 + $0x30] sm:$0xf]
    %v4859 = vld [vmem:[%s4845 + $0x34] sm:$0xf]
    %v4860 = vld [vmem:[%s4845 + $0x38] sm:$0xf]
    %v4861 = vld [vmem:[%s4845 + $0x3c] sm:$0xf]
    %v4862 = vpack.c.bf16 %v4830, %v4829
    %v4863 = vpack.c.bf16 %v4832, %v4831
    %v4864 = vpack.c.bf16 %v4834, %v4833
    %v4865 = vpack.c.bf16 %v4836, %v4835
    %v4866 = vpack.c.bf16 %v4838, %v4837
    %v4867 = vpack.c.bf16 %v4840, %v4839
    %v4868 = vpack.c.bf16 %v4842, %v4841
    %v4869 = vpack.c.bf16 %v4844, %v4843
    %v4886 = vunpack.c.l.b16 %v4846
    %v4887 = vunpack.c.l.b16 %v4847
    %v4888 = vunpack.c.l.b16 %v4848
    %v4889 = vunpack.c.l.b16 %v4849
    %v4890 = vunpack.c.l.b16 %v4850
    %v4891 = vunpack.c.l.b16 %v4851
    %v4892 = vunpack.c.l.b16 %v4852
    %v4893 = vunpack.c.l.b16 %v4853
    %v4894 = vunpack.c.l.b16 %v4854
    %v4895 = vunpack.c.l.b16 %v4855
    %v4896 = vunpack.c.l.b16 %v4856
    %v4897 = vunpack.c.l.b16 %v4857
    %v4898 = vunpack.c.l.b16 %v4858
    %v4899 = vunpack.c.l.b16 %v4859
    %v4900 = vunpack.c.l.b16 %v4860
    %v4901 = vunpack.c.l.b16 %v4861
    %v4902 = vpack.c.b16 %v4887, %v4886
    %v4903 = vpack.c.b16 %v4889, %v4888
    %v4904 = vpack.c.b16 %v4891, %v4890
    %v4905 = vpack.c.b16 %v4893, %v4892
    %v4906 = vpack.c.b16 %v4895, %v4894
    %v4907 = vpack.c.b16 %v4897, %v4896
    %v4908 = vpack.c.b16 %v4899, %v4898
    %v4909 = vpack.c.b16 %v4901, %v4900
    %4918 = vmatpush.bf16.msra.mxu0 %v4909
    %4919 = vmatpush.bf16.msra.mxu0 %v4908
    %4920 = vmatpush.bf16.msra.mxu0 %v4907
    %4921 = vmatpush.bf16.msra.mxu0 %v4906
    %4922 = vmatpush.bf16.msra.mxu0 %v4905
    %4923 = vmatpush.bf16.msra.mxu0 %v4904
    %4924 = vmatpush.bf16.msra.mxu0 %v4903
    %4925 = vmatpush.bf16.msra.mxu0 %v4902
    %4926 = vmatmul.bf16.gmra.mxu0 %v4862
    %v4927 = vpop.f32.mrf.mxu0
    %v4928 = vadd.f32 0.0, %v4927
    %v4929 = vpop.f32.mrf.mxu0
    %v4930 = vadd.f32 0.0, %v4929
    %4931 = vmatmul.bf16.gmra.mxu0 %v4863
    %v4932 = vpop.f32.mrf.mxu0
    %v4933 = vadd.f32 0.0, %v4932
    %v4934 = vpop.f32.mrf.mxu0
    %v4935 = vadd.f32 0.0, %v4934
    %4936 = vmatmul.bf16.gmra.mxu0 %v4864
    %v4937 = vpop.f32.mrf.mxu0
    %v4938 = vadd.f32 0.0, %v4937
    %v4939 = vpop.f32.mrf.mxu0
    %v4940 = vadd.f32 0.0, %v4939
    %4941 = vmatmul.bf16.gmra.mxu0 %v4865
    %v4942 = vpop.f32.mrf.mxu0
    %v4943 = vadd.f32 0.0, %v4942
    %v4944 = vpop.f32.mrf.mxu0
    %v4945 = vadd.f32 0.0, %v4944
    %4946 = vmatmul.bf16.gmra.mxu0 %v4866
    %v4947 = vpop.f32.mrf.mxu0
    %v4948 = vadd.f32 0.0, %v4947
    %v4949 = vpop.f32.mrf.mxu0
    %v4950 = vadd.f32 0.0, %v4949
    %4951 = vmatmul.bf16.gmra.mxu0 %v4867
    %v4952 = vpop.f32.mrf.mxu0
    %v4953 = vadd.f32 0.0, %v4952
    %v4954 = vpop.f32.mrf.mxu0
    %v4955 = vadd.f32 0.0, %v4954
    %4956 = vmatmul.bf16.gmra.mxu0 %v4868
    %v4957 = vpop.f32.mrf.mxu0
    %v4958 = vadd.f32 0.0, %v4957
    %v4959 = vpop.f32.mrf.mxu0
    %v4960 = vadd.f32 0.0, %v4959
    %4961 = vmatmul.bf16.gmra.mxu0 %v4869
    %v4962 = vpop.f32.mrf.mxu0
    %v4963 = vadd.f32 0.0, %v4962
    %v4964 = vpop.f32.mrf.mxu0
    %v4965 = vadd.f32 0.0, %v4964
    %4966 = vdwg.mxu0
    %v4967 = vadd.f32 %v4209, %v4928
    %v4968 = vadd.f32 %v4210, %v4930
    %v4969 = vadd.f32 %v4211, %v4933
    %v4970 = vadd.f32 %v4212, %v4935
    %v4971 = vadd.f32 %v4213, %v4938
    %v4972 = vadd.f32 %v4214, %v4940
    %v4973 = vadd.f32 %v4215, %v4943
    %v4974 = vadd.f32 %v4216, %v4945
    %v4975 = vadd.f32 %v4217, %v4948
    %v4976 = vadd.f32 %v4218, %v4950
    %v4977 = vadd.f32 %v4219, %v4953
    %v4978 = vadd.f32 %v4220, %v4955
    %v4979 = vadd.f32 %v4221, %v4958
    %v4980 = vadd.f32 %v4222, %v4960
    %v4981 = vadd.f32 %v4223, %v4963
    %v4982 = vadd.f32 %v4224, %v4965
    %s4983 = scalar_lea.vmem %s12, 2
    %v4984 = vld [vmem:[%s4983] sm:$0x1]
    %v4986 = vperm.slane %v4984, 0
    %v4988 = vadd.f32 %v4967, %v4986
    %v4989 = vadd.f32 %v4968, %v4986
    %v4990 = vadd.f32 %v4969, %v4986
    %v4991 = vadd.f32 %v4970, %v4986
    %v4992 = vadd.f32 %v4971, %v4986
    %v4993 = vadd.f32 %v4972, %v4986
    %v4994 = vadd.f32 %v4973, %v4986
    %v4995 = vadd.f32 %v4974, %v4986
    %v4996 = vadd.f32 %v4975, %v4986
    %v4997 = vadd.f32 %v4976, %v4986
    %v4998 = vadd.f32 %v4977, %v4986
    %v4999 = vadd.f32 %v4978, %v4986
    %v5000 = vadd.f32 %v4979, %v4986
    %v5001 = vadd.f32 %v4980, %v4986
    %v5002 = vadd.f32 %v4981, %v4986
    %v5003 = vadd.f32 %v4982, %v4986
    %s5004 = scalar_lea.vmem [#allocation7], 3
    %v5005 = vld [vmem:[%s5004] sm:$0x1]
    %v5006 = vsel %vm877, %v4988, 0.0
    %5007 = vadd.xlane.f32.xlu0 %v5006
    %v5008 = vpop.xlane.xlu0 %5007
    %v5009 = vsel %vm877, %v4989, 0.0
    %5010 = vadd.xlane.f32.xlu0 %v5009
    %v5011 = vpop.xlane.xlu0 %5010
    %v5012 = vsel %vm877, %v4990, 0.0
    %5013 = vadd.xlane.f32.xlu0 %v5012
    %v5014 = vpop.xlane.xlu0 %5013
    %v5015 = vsel %vm877, %v4991, 0.0
    %5016 = vadd.xlane.f32.xlu0 %v5015
    %v5017 = vpop.xlane.xlu0 %5016
    %v5018 = vsel %vm877, %v4992, 0.0
    %5019 = vadd.xlane.f32.xlu0 %v5018
    %v5020 = vpop.xlane.xlu0 %5019
    %v5021 = vsel %vm877, %v4993, 0.0
    %5022 = vadd.xlane.f32.xlu0 %v5021
    %v5023 = vpop.xlane.xlu0 %5022
    %v5024 = vsel %vm877, %v4994, 0.0
    %5025 = vadd.xlane.f32.xlu0 %v5024
    %v5026 = vpop.xlane.xlu0 %5025
    %v5027 = vsel %vm877, %v4995, 0.0
    %5028 = vadd.xlane.f32.xlu0 %v5027
    %v5029 = vpop.xlane.xlu0 %5028
    %v5030 = vsel %vm877, %v4996, 0.0
    %5031 = vadd.xlane.f32.xlu0 %v5030
    %v5032 = vpop.xlane.xlu0 %5031
    %v5033 = vsel %vm877, %v4997, 0.0
    %5034 = vadd.xlane.f32.xlu0 %v5033
    %v5035 = vpop.xlane.xlu0 %5034
    %v5036 = vsel %vm877, %v4998, 0.0
    %5037 = vadd.xlane.f32.xlu0 %v5036
    %v5038 = vpop.xlane.xlu0 %5037
    %v5039 = vsel %vm877, %v4999, 0.0
    %5040 = vadd.xlane.f32.xlu0 %v5039
    %v5041 = vpop.xlane.xlu0 %5040
    %v5042 = vsel %vm877, %v5000, 0.0
    %5043 = vadd.xlane.f32.xlu0 %v5042
    %v5044 = vpop.xlane.xlu0 %5043
    %v5045 = vsel %vm877, %v5001, 0.0
    %5046 = vadd.xlane.f32.xlu0 %v5045
    %v5047 = vpop.xlane.xlu0 %5046
    %v5048 = vsel %vm877, %v5002, 0.0
    %5049 = vadd.xlane.f32.xlu0 %v5048
    %v5050 = vpop.xlane.xlu0 %5049
    %v5051 = vsel %vm877, %v5003, 0.0
    %5052 = vadd.xlane.f32.xlu0 %v5051
    %v5053 = vpop.xlane.xlu0 %5052
    %v5054 = vmul.f32 %v5008, %v890
    %v5055 = vmul.f32 %v5011, %v890
    %v5056 = vmul.f32 %v5014, %v890
    %v5057 = vmul.f32 %v5017, %v890
    %v5058 = vmul.f32 %v5020, %v890
    %v5059 = vmul.f32 %v5023, %v890
    %v5060 = vmul.f32 %v5026, %v890
    %v5061 = vmul.f32 %v5029, %v890
    %v5062 = vmul.f32 %v5032, %v890
    %v5063 = vmul.f32 %v5035, %v890
    %v5064 = vmul.f32 %v5038, %v890
    %v5065 = vmul.f32 %v5041, %v890
    %v5066 = vmul.f32 %v5044, %v890
    %v5067 = vmul.f32 %v5047, %v890
    %v5068 = vmul.f32 %v5050, %v890
    %v5069 = vmul.f32 %v5053, %v890
    %v5070 = vsub.f32 %v4988, %v5054
    %v5071 = vsub.f32 %v4989, %v5055
    %v5072 = vsub.f32 %v4990, %v5056
    %v5073 = vsub.f32 %v4991, %v5057
    %v5074 = vsub.f32 %v4992, %v5058
    %v5075 = vsub.f32 %v4993, %v5059
    %v5076 = vsub.f32 %v4994, %v5060
    %v5077 = vsub.f32 %v4995, %v5061
    %v5078 = vsub.f32 %v4996, %v5062
    %v5079 = vsub.f32 %v4997, %v5063
    %v5080 = vsub.f32 %v4998, %v5064
    %v5081 = vsub.f32 %v4999, %v5065
    %v5082 = vsub.f32 %v5000, %v5066
    %v5083 = vsub.f32 %v5001, %v5067
    %v5084 = vsub.f32 %v5002, %v5068
    %v5085 = vsub.f32 %v5003, %v5069
    %v5086 = vmul.f32 %v5070, %v5070
    %v5087 = vmul.f32 %v5071, %v5071
    %v5088 = vmul.f32 %v5072, %v5072
    %v5089 = vmul.f32 %v5073, %v5073
    %v5090 = vmul.f32 %v5074, %v5074
    %v5091 = vmul.f32 %v5075, %v5075
    %v5092 = vmul.f32 %v5076, %v5076
    %v5093 = vmul.f32 %v5077, %v5077
    %v5094 = vmul.f32 %v5078, %v5078
    %v5095 = vmul.f32 %v5079, %v5079
    %v5096 = vmul.f32 %v5080, %v5080
    %v5097 = vmul.f32 %v5081, %v5081
    %v5098 = vmul.f32 %v5082, %v5082
    %v5099 = vmul.f32 %v5083, %v5083
    %v5100 = vmul.f32 %v5084, %v5084
    %v5101 = vmul.f32 %v5085, %v5085
    %v5102 = vsel %vm877, %v5086, 0.0
    %5103 = vadd.xlane.f32.xlu0 %v5102
    %v5104 = vpop.xlane.xlu0 %5103
    %v5105 = vsel %vm877, %v5087, 0.0
    %5106 = vadd.xlane.f32.xlu0 %v5105
    %v5107 = vpop.xlane.xlu0 %5106
    %v5108 = vsel %vm877, %v5088, 0.0
    %5109 = vadd.xlane.f32.xlu0 %v5108
    %v5110 = vpop.xlane.xlu0 %5109
    %v5111 = vsel %vm877, %v5089, 0.0
    %5112 = vadd.xlane.f32.xlu0 %v5111
    %v5113 = vpop.xlane.xlu0 %5112
    %v5114 = vsel %vm877, %v5090, 0.0
    %5115 = vadd.xlane.f32.xlu0 %v5114
    %v5116 = vpop.xlane.xlu0 %5115
    %v5117 = vsel %vm877, %v5091, 0.0
    %5118 = vadd.xlane.f32.xlu0 %v5117
    %v5119 = vpop.xlane.xlu0 %5118
    %v5120 = vsel %vm877, %v5092, 0.0
    %5121 = vadd.xlane.f32.xlu0 %v5120
    %v5122 = vpop.xlane.xlu0 %5121
    %v5123 = vsel %vm877, %v5093, 0.0
    %5124 = vadd.xlane.f32.xlu0 %v5123
    %v5125 = vpop.xlane.xlu0 %5124
    %v5126 = vsel %vm877, %v5094, 0.0
    %5127 = vadd.xlane.f32.xlu0 %v5126
    %v5128 = vpop.xlane.xlu0 %5127
    %v5129 = vsel %vm877, %v5095, 0.0
    %5130 = vadd.xlane.f32.xlu0 %v5129
    %v5131 = vpop.xlane.xlu0 %5130
    %v5132 = vsel %vm877, %v5096, 0.0
    %5133 = vadd.xlane.f32.xlu0 %v5132
    %v5134 = vpop.xlane.xlu0 %5133
    %v5135 = vsel %vm877, %v5097, 0.0
    %5136 = vadd.xlane.f32.xlu0 %v5135
    %v5137 = vpop.xlane.xlu0 %5136
    %v5138 = vsel %vm877, %v5098, 0.0
    %5139 = vadd.xlane.f32.xlu0 %v5138
    %v5140 = vpop.xlane.xlu0 %5139
    %v5141 = vsel %vm877, %v5099, 0.0
    %5142 = vadd.xlane.f32.xlu0 %v5141
    %v5143 = vpop.xlane.xlu0 %5142
    %v5144 = vsel %vm877, %v5100, 0.0
    %5145 = vadd.xlane.f32.xlu0 %v5144
    %v5146 = vpop.xlane.xlu0 %5145
    %v5147 = vsel %vm877, %v5101, 0.0
    %5148 = vadd.xlane.f32.xlu0 %v5147
    %v5149 = vpop.xlane.xlu0 %5148
    %v5150 = vmul.f32 %v5104, %v890
    %v5151 = vmul.f32 %v5107, %v890
    %v5152 = vmul.f32 %v5110, %v890
    %v5153 = vmul.f32 %v5113, %v890
    %v5154 = vmul.f32 %v5116, %v890
    %v5155 = vmul.f32 %v5119, %v890
    %v5156 = vmul.f32 %v5122, %v890
    %v5157 = vmul.f32 %v5125, %v890
    %v5158 = vmul.f32 %v5128, %v890
    %v5159 = vmul.f32 %v5131, %v890
    %v5160 = vmul.f32 %v5134, %v890
    %v5161 = vmul.f32 %v5137, %v890
    %v5162 = vmul.f32 %v5140, %v890
    %v5163 = vmul.f32 %v5143, %v890
    %v5164 = vmul.f32 %v5146, %v890
    %v5165 = vmul.f32 %v5149, %v890
    %v5166 = vadd.f32 %v5150, 1e-05
    %v5167 = vadd.f32 %v5151, 1e-05
    %v5168 = vadd.f32 %v5152, 1e-05
    %v5169 = vadd.f32 %v5153, 1e-05
    %v5170 = vadd.f32 %v5154, 1e-05
    %v5171 = vadd.f32 %v5155, 1e-05
    %v5172 = vadd.f32 %v5156, 1e-05
    %v5173 = vadd.f32 %v5157, 1e-05
    %v5174 = vadd.f32 %v5158, 1e-05
    %v5175 = vadd.f32 %v5159, 1e-05
    %v5176 = vadd.f32 %v5160, 1e-05
    %v5177 = vadd.f32 %v5161, 1e-05
    %v5178 = vadd.f32 %v5162, 1e-05
    %v5179 = vadd.f32 %v5163, 1e-05
    %v5180 = vadd.f32 %v5164, 1e-05
    %v5181 = vadd.f32 %v5165, 1e-05
    %v5182 = vrsqrt.pop %v5166
    %v5183 = vmul.f32 %v5182, %v5166
    %v5184 = vmul.f32 %v5183, %v5182
    %v5185 = vmul.f32 0.5, %v5184
    %v5186 = vsub.f32 1.5, %v5185
    %v5187 = vmul.f32 %v5182, %v5186
    %vm5188 = vweird.f32 %v5166
    %vm5189 = vweird.f32 %v5182
    %vm5190 = vmor %vm5188, %vm5189
    %v5191 = vsel %vm5190, %v5182, %v5187
    %v5192 = vrsqrt.pop %v5167
    %v5193 = vmul.f32 %v5192, %v5167
    %v5194 = vmul.f32 %v5193, %v5192
    %v5195 = vmul.f32 0.5, %v5194
    %v5196 = vsub.f32 1.5, %v5195
    %v5197 = vmul.f32 %v5192, %v5196
    %vm5198 = vweird.f32 %v5167
    %vm5199 = vweird.f32 %v5192
    %vm5200 = vmor %vm5198, %vm5199
    %v5201 = vsel %vm5200, %v5192, %v5197
    %v5202 = vrsqrt.pop %v5168
    %v5203 = vmul.f32 %v5202, %v5168
    %v5204 = vmul.f32 %v5203, %v5202
    %v5205 = vmul.f32 0.5, %v5204
    %v5206 = vsub.f32 1.5, %v5205
    %v5207 = vmul.f32 %v5202, %v5206
    %vm5208 = vweird.f32 %v5168
    %vm5209 = vweird.f32 %v5202
    %vm5210 = vmor %vm5208, %vm5209
    %v5211 = vsel %vm5210, %v5202, %v5207
    %v5212 = vrsqrt.pop %v5169
    %v5213 = vmul.f32 %v5212, %v5169
    %v5214 = vmul.f32 %v5213, %v5212
    %v5215 = vmul.f32 0.5, %v5214
    %v5216 = vsub.f32 1.5, %v5215
    %v5217 = vmul.f32 %v5212, %v5216
    %vm5218 = vweird.f32 %v5169
    %vm5219 = vweird.f32 %v5212
    %vm5220 = vmor %vm5218, %vm5219
    %v5221 = vsel %vm5220, %v5212, %v5217
    %v5222 = vrsqrt.pop %v5170
    %v5223 = vmul.f32 %v5222, %v5170
    %v5224 = vmul.f32 %v5223, %v5222
    %v5225 = vmul.f32 0.5, %v5224
    %v5226 = vsub.f32 1.5, %v5225
    %v5227 = vmul.f32 %v5222, %v5226
    %vm5228 = vweird.f32 %v5170
    %vm5229 = vweird.f32 %v5222
    %vm5230 = vmor %vm5228, %vm5229
    %v5231 = vsel %vm5230, %v5222, %v5227
    %v5232 = vrsqrt.pop %v5171
    %v5233 = vmul.f32 %v5232, %v5171
    %v5234 = vmul.f32 %v5233, %v5232
    %v5235 = vmul.f32 0.5, %v5234
    %v5236 = vsub.f32 1.5, %v5235
    %v5237 = vmul.f32 %v5232, %v5236
    %vm5238 = vweird.f32 %v5171
    %vm5239 = vweird.f32 %v5232
    %vm5240 = vmor %vm5238, %vm5239
    %v5241 = vsel %vm5240, %v5232, %v5237
    %v5242 = vrsqrt.pop %v5172
    %v5243 = vmul.f32 %v5242, %v5172
    %v5244 = vmul.f32 %v5243, %v5242
    %v5245 = vmul.f32 0.5, %v5244
    %v5246 = vsub.f32 1.5, %v5245
    %v5247 = vmul.f32 %v5242, %v5246
    %vm5248 = vweird.f32 %v5172
    %vm5249 = vweird.f32 %v5242
    %vm5250 = vmor %vm5248, %vm5249
    %v5251 = vsel %vm5250, %v5242, %v5247
    %v5252 = vrsqrt.pop %v5173
    %v5253 = vmul.f32 %v5252, %v5173
    %v5254 = vmul.f32 %v5253, %v5252
    %v5255 = vmul.f32 0.5, %v5254
    %v5256 = vsub.f32 1.5, %v5255
    %v5257 = vmul.f32 %v5252, %v5256
    %vm5258 = vweird.f32 %v5173
    %vm5259 = vweird.f32 %v5252
    %vm5260 = vmor %vm5258, %vm5259
    %v5261 = vsel %vm5260, %v5252, %v5257
    %v5262 = vrsqrt.pop %v5174
    %v5263 = vmul.f32 %v5262, %v5174
    %v5264 = vmul.f32 %v5263, %v5262
    %v5265 = vmul.f32 0.5, %v5264
    %v5266 = vsub.f32 1.5, %v5265
    %v5267 = vmul.f32 %v5262, %v5266
    %vm5268 = vweird.f32 %v5174
    %vm5269 = vweird.f32 %v5262
    %vm5270 = vmor %vm5268, %vm5269
    %v5271 = vsel %vm5270, %v5262, %v5267
    %v5272 = vrsqrt.pop %v5175
    %v5273 = vmul.f32 %v5272, %v5175
    %v5274 = vmul.f32 %v5273, %v5272
    %v5275 = vmul.f32 0.5, %v5274
    %v5276 = vsub.f32 1.5, %v5275
    %v5277 = vmul.f32 %v5272, %v5276
    %vm5278 = vweird.f32 %v5175
    %vm5279 = vweird.f32 %v5272
    %vm5280 = vmor %vm5278, %vm5279
    %v5281 = vsel %vm5280, %v5272, %v5277
    %v5282 = vrsqrt.pop %v5176
    %v5283 = vmul.f32 %v5282, %v5176
    %v5284 = vmul.f32 %v5283, %v5282
    %v5285 = vmul.f32 0.5, %v5284
    %v5286 = vsub.f32 1.5, %v5285
    %v5287 = vmul.f32 %v5282, %v5286
    %vm5288 = vweird.f32 %v5176
    %vm5289 = vweird.f32 %v5282
    %vm5290 = vmor %vm5288, %vm5289
    %v5291 = vsel %vm5290, %v5282, %v5287
    %v5292 = vrsqrt.pop %v5177
    %v5293 = vmul.f32 %v5292, %v5177
    %v5294 = vmul.f32 %v5293, %v5292
    %v5295 = vmul.f32 0.5, %v5294
    %v5296 = vsub.f32 1.5, %v5295
    %v5297 = vmul.f32 %v5292, %v5296
    %vm5298 = vweird.f32 %v5177
    %vm5299 = vweird.f32 %v5292
    %vm5300 = vmor %vm5298, %vm5299
    %v5301 = vsel %vm5300, %v5292, %v5297
    %v5302 = vrsqrt.pop %v5178
    %v5303 = vmul.f32 %v5302, %v5178
    %v5304 = vmul.f32 %v5303, %v5302
    %v5305 = vmul.f32 0.5, %v5304
    %v5306 = vsub.f32 1.5, %v5305
    %v5307 = vmul.f32 %v5302, %v5306
    %vm5308 = vweird.f32 %v5178
    %vm5309 = vweird.f32 %v5302
    %vm5310 = vmor %vm5308, %vm5309
    %v5311 = vsel %vm5310, %v5302, %v5307
    %v5312 = vrsqrt.pop %v5179
    %v5313 = vmul.f32 %v5312, %v5179
    %v5314 = vmul.f32 %v5313, %v5312
    %v5315 = vmul.f32 0.5, %v5314
    %v5316 = vsub.f32 1.5, %v5315
    %v5317 = vmul.f32 %v5312, %v5316
    %vm5318 = vweird.f32 %v5179
    %vm5319 = vweird.f32 %v5312
    %vm5320 = vmor %vm5318, %vm5319
    %v5321 = vsel %vm5320, %v5312, %v5317
    %v5322 = vrsqrt.pop %v5180
    %v5323 = vmul.f32 %v5322, %v5180
    %v5324 = vmul.f32 %v5323, %v5322
    %v5325 = vmul.f32 0.5, %v5324
    %v5326 = vsub.f32 1.5, %v5325
    %v5327 = vmul.f32 %v5322, %v5326
    %vm5328 = vweird.f32 %v5180
    %vm5329 = vweird.f32 %v5322
    %vm5330 = vmor %vm5328, %vm5329
    %v5331 = vsel %vm5330, %v5322, %v5327
    %v5332 = vrsqrt.pop %v5181
    %v5333 = vmul.f32 %v5332, %v5181
    %v5334 = vmul.f32 %v5333, %v5332
    %v5335 = vmul.f32 0.5, %v5334
    %v5336 = vsub.f32 1.5, %v5335
    %v5337 = vmul.f32 %v5332, %v5336
    %vm5338 = vweird.f32 %v5181
    %vm5339 = vweird.f32 %v5332
    %vm5340 = vmor %vm5338, %vm5339
    %v5341 = vsel %vm5340, %v5332, %v5337
    %v5342 = vmul.f32 %v5070, %v5191
    %v5343 = vmul.f32 %v5071, %v5201
    %v5344 = vmul.f32 %v5072, %v5211
    %v5345 = vmul.f32 %v5073, %v5221
    %v5346 = vmul.f32 %v5074, %v5231
    %v5347 = vmul.f32 %v5075, %v5241
    %v5348 = vmul.f32 %v5076, %v5251
    %v5349 = vmul.f32 %v5077, %v5261
    %v5350 = vmul.f32 %v5078, %v5271
    %v5351 = vmul.f32 %v5079, %v5281
    %v5352 = vmul.f32 %v5080, %v5291
    %v5353 = vmul.f32 %v5081, %v5301
    %v5354 = vmul.f32 %v5082, %v5311
    %v5355 = vmul.f32 %v5083, %v5321
    %v5356 = vmul.f32 %v5084, %v5331
    %v5357 = vmul.f32 %v5085, %v5341
    %v5359 = vperm.slane %v5005, 0
    %v5361 = vmul.f32 %v5342, %v5359
    %v5362 = vmul.f32 %v5343, %v5359
    %v5363 = vmul.f32 %v5344, %v5359
    %v5364 = vmul.f32 %v5345, %v5359
    %v5365 = vmul.f32 %v5346, %v5359
    %v5366 = vmul.f32 %v5347, %v5359
    %v5367 = vmul.f32 %v5348, %v5359
    %v5368 = vmul.f32 %v5349, %v5359
    %v5369 = vmul.f32 %v5350, %v5359
    %v5370 = vmul.f32 %v5351, %v5359
    %v5371 = vmul.f32 %v5352, %v5359
    %v5372 = vmul.f32 %v5353, %v5359
    %v5373 = vmul.f32 %v5354, %v5359
    %v5374 = vmul.f32 %v5355, %v5359
    %v5375 = vmul.f32 %v5356, %v5359
    %v5376 = vmul.f32 %v5357, %v5359
    %s5377 = scalar_lea.vmem [#allocation8], 3
    %v5378 = vld [vmem:[%s5377] sm:$0x1]
    %v5379 = vsel %vm877, %v2713, 0.0
    %5380 = vadd.xlane.f32.xlu0 %v5379
    %v5381 = vpop.xlane.xlu0 %5380
    %v5382 = vsel %vm877, %v2714, 0.0
    %5383 = vadd.xlane.f32.xlu0 %v5382
    %v5384 = vpop.xlane.xlu0 %5383
    %v5385 = vmul.f32 %v5381, %v890
    %v5386 = vmul.f32 %v5384, %v890
    %v5387 = vsub.f32 %v2713, %v5385
    %v5388 = vsub.f32 %v2714, %v5386
    %v5389 = vmul.f32 %v5387, %v5387
    %v5390 = vmul.f32 %v5388, %v5388
    %v5391 = vsel %vm877, %v5389, 0.0
    %5392 = vadd.xlane.f32.xlu0 %v5391
    %v5393 = vpop.xlane.xlu0 %5392
    %v5394 = vsel %vm877, %v5390, 0.0
    %5395 = vadd.xlane.f32.xlu0 %v5394
    %v5396 = vpop.xlane.xlu0 %5395
    %v5397 = vmul.f32 %v5393, %v890
    %v5398 = vmul.f32 %v5396, %v890
    %v5399 = vadd.f32 %v5397, 1e-05
    %v5400 = vadd.f32 %v5398, 1e-05
    %v5401 = vrsqrt.pop %v5399
    %v5402 = vmul.f32 %v5401, %v5399
    %v5403 = vmul.f32 %v5402, %v5401
    %v5404 = vmul.f32 0.5, %v5403
    %v5405 = vsub.f32 1.5, %v5404
    %v5406 = vmul.f32 %v5401, %v5405
    %vm5407 = vweird.f32 %v5399
    %vm5408 = vweird.f32 %v5401
    %vm5409 = vmor %vm5407, %vm5408
    %v5410 = vsel %vm5409, %v5401, %v5406
    %v5411 = vrsqrt.pop %v5400
    %v5412 = vmul.f32 %v5411, %v5400
    %v5413 = vmul.f32 %v5412, %v5411
    %v5414 = vmul.f32 0.5, %v5413
    %v5415 = vsub.f32 1.5, %v5414
    %v5416 = vmul.f32 %v5411, %v5415
    %vm5417 = vweird.f32 %v5400
    %vm5418 = vweird.f32 %v5411
    %vm5419 = vmor %vm5417, %vm5418
    %v5420 = vsel %vm5419, %v5411, %v5416
    %v5421 = vmul.f32 %v5387, %v5410
    %v5422 = vmul.f32 %v5388, %v5420
    %v5424 = vperm.slane %v5378, 0
    %v5426 = vmul.f32 %v5421, %v5424
    %v5427 = vmul.f32 %v5422, %v5424
    %5428 = vrot.lane.b32.xlu0 %v2743, 64
    %v5429 = vpop.permute.xlu0 %5428
    %5430 = vrot.lane.b32.xlu0 %v2744, 64
    %v5431 = vpop.permute.xlu0 %5430
    %v5434 = vmul.f32 %v5361, %v5429
    %v5435 = vmul.f32 %v5362, %v5429
    %v5436 = vmul.f32 %v5363, %v5429
    %v5437 = vmul.f32 %v5364, %v5429
    %v5438 = vmul.f32 %v5365, %v5429
    %v5439 = vmul.f32 %v5366, %v5429
    %v5440 = vmul.f32 %v5367, %v5429
    %v5441 = vmul.f32 %v5368, %v5429
    %v5442 = vmul.f32 %v5369, %v5431
    %v5443 = vmul.f32 %v5370, %v5431
    %v5444 = vmul.f32 %v5371, %v5431
    %v5445 = vmul.f32 %v5372, %v5431
    %v5446 = vmul.f32 %v5373, %v5431
    %v5447 = vmul.f32 %v5374, %v5431
    %v5448 = vmul.f32 %v5375, %v5431
    %v5449 = vmul.f32 %v5376, %v5431
    %5450 = vrot.lane.b32.xlu0 %v2763, 32
    %v5451 = vpop.permute.xlu0 %5450
    %5452 = vrot.lane.b32.xlu0 %v2764, 32
    %v5453 = vpop.permute.xlu0 %5452
    %v5456 = vadd.f32 %v5434, %v5451
    %v5457 = vadd.f32 %v5435, %v5451
    %v5458 = vadd.f32 %v5436, %v5451
    %v5459 = vadd.f32 %v5437, %v5451
    %v5460 = vadd.f32 %v5438, %v5451
    %v5461 = vadd.f32 %v5439, %v5451
    %v5462 = vadd.f32 %v5440, %v5451
    %v5463 = vadd.f32 %v5441, %v5451
    %v5464 = vadd.f32 %v5442, %v5453
    %v5465 = vadd.f32 %v5443, %v5453
    %v5466 = vadd.f32 %v5444, %v5453
    %v5467 = vadd.f32 %v5445, %v5453
    %v5468 = vadd.f32 %v5446, %v5453
    %v5469 = vadd.f32 %v5447, %v5453
    %v5470 = vadd.f32 %v5448, %v5453
    %v5471 = vadd.f32 %v5449, %v5453
    %s5472 = scalar_lea.vmem [#allocation10], 48
    %v5473 = vld [vmem:[%s5472] sm:$0xf]
    %v5474 = vld [vmem:[%s5472 + $0x4] sm:$0xf]
    %v5475 = vld [vmem:[%s5472 + $0x8] sm:$0xf]
    %v5476 = vld [vmem:[%s5472 + $0xc] sm:$0xf]
    %v5477 = vpack.c.bf16 %v5457, %v5456
    %v5478 = vpack.c.bf16 %v5459, %v5458
    %v5479 = vpack.c.bf16 %v5461, %v5460
    %v5480 = vpack.c.bf16 %v5463, %v5462
    %v5481 = vpack.c.bf16 %v5465, %v5464
    %v5482 = vpack.c.bf16 %v5467, %v5466
    %v5483 = vpack.c.bf16 %v5469, %v5468
    %v5484 = vpack.c.bf16 %v5471, %v5470
    %v5489 = vunpack.c.l.b16 %v5473
    %v5490 = vunpack.c.l.b16 %v5474
    %v5491 = vunpack.c.l.b16 %v5475
    %v5492 = vunpack.c.l.b16 %v5476
    %v5493 = vpack.c.b16 %v5490, %v5489
    %v5494 = vpack.c.b16 %v5492, %v5491
    %v5498 = vsel %vm877, %v5477, 0
    %v5501 = vsel %vm877, %v5478, 0
    %v5504 = vsel %vm877, %v5479, 0
    %v5507 = vsel %vm877, %v5480, 0
    %v5510 = vsel %vm877, %v5481, 0
    %v5513 = vsel %vm877, %v5482, 0
    %v5516 = vsel %vm877, %v5483, 0
    %v5519 = vsel %vm877, %v5484, 0
    %5521 = vmatpush.bf16.msra.mxu0 0
    %5522 = vmatpush.bf16.msra.mxu0 0
    %5523 = vmatpush.bf16.msra.mxu0 0
    %5524 = vmatpush.bf16.msra.mxu0 0
    %5525 = vmatpush.bf16.msra.mxu0 0
    %5526 = vmatpush.bf16.msra.mxu0 0
    %5527 = vmatpush.bf16.msra.mxu0 %v5494
    %5528 = vmatpush.bf16.msra.mxu0 %v5493
    %5529 = vmatmul.bf16.gmra.mxu0 %v5498
    %v5530 = vpop.f32.mrf.mxu0
    %v5531 = vadd.f32 0.0, %v5530
    %v5532 = vpop.f32.mrf.mxu0
    %v5533 = vadd.f32 0.0, %v5532
    %5534 = vmatmul.bf16.gmra.mxu0 %v5501
    %v5535 = vpop.f32.mrf.mxu0
    %v5536 = vadd.f32 0.0, %v5535
    %v5537 = vpop.f32.mrf.mxu0
    %v5538 = vadd.f32 0.0, %v5537
    %5539 = vmatmul.bf16.gmra.mxu0 %v5504
    %v5540 = vpop.f32.mrf.mxu0
    %v5541 = vadd.f32 0.0, %v5540
    %v5542 = vpop.f32.mrf.mxu0
    %v5543 = vadd.f32 0.0, %v5542
    %5544 = vmatmul.bf16.gmra.mxu0 %v5507
    %v5545 = vpop.f32.mrf.mxu0
    %v5546 = vadd.f32 0.0, %v5545
    %v5547 = vpop.f32.mrf.mxu0
    %v5548 = vadd.f32 0.0, %v5547
    %5549 = vmatmul.bf16.gmra.mxu0 %v5510
    %v5550 = vpop.f32.mrf.mxu0
    %v5551 = vadd.f32 0.0, %v5550
    %v5552 = vpop.f32.mrf.mxu0
    %v5553 = vadd.f32 0.0, %v5552
    %5554 = vmatmul.bf16.gmra.mxu0 %v5513
    %v5555 = vpop.f32.mrf.mxu0
    %v5556 = vadd.f32 0.0, %v5555
    %v5557 = vpop.f32.mrf.mxu0
    %v5558 = vadd.f32 0.0, %v5557
    %5559 = vmatmul.bf16.gmra.mxu0 %v5516
    %v5560 = vpop.f32.mrf.mxu0
    %v5561 = vadd.f32 0.0, %v5560
    %v5562 = vpop.f32.mrf.mxu0
    %v5563 = vadd.f32 0.0, %v5562
    %5564 = vmatmul.bf16.gmra.mxu0 %v5519
    %v5565 = vpop.f32.mrf.mxu0
    %v5566 = vadd.f32 0.0, %v5565
    %v5567 = vpop.f32.mrf.mxu0
    %v5568 = vadd.f32 0.0, %v5567
    %5569 = vdwg.mxu0
    %v5570 = vmul.f32 %v5531, 0.25
    %v5571 = vmul.f32 %v5533, 0.25
    %v5572 = vmul.f32 %v5536, 0.25
    %v5573 = vmul.f32 %v5538, 0.25
    %v5574 = vmul.f32 %v5541, 0.25
    %v5575 = vmul.f32 %v5543, 0.25
    %v5576 = vmul.f32 %v5546, 0.25
    %v5577 = vmul.f32 %v5548, 0.25
    %v5578 = vmul.f32 %v5551, 0.25
    %v5579 = vmul.f32 %v5553, 0.25
    %v5580 = vmul.f32 %v5556, 0.25
    %v5581 = vmul.f32 %v5558, 0.25
    %v5582 = vmul.f32 %v5561, 0.25
    %v5583 = vmul.f32 %v5563, 0.25
    %v5584 = vmul.f32 %v5566, 0.25
    %v5585 = vmul.f32 %v5568, 0.25
    %s5586 = scalar_lea.vmem %s6, 48
    %v5587 = vld [vmem:[%s5586] sm:$0xf]
    %v5588 = vld [vmem:[%s5586 + $0x4] sm:$0xf]
    %v5589 = vld [vmem:[%s5586 + $0x8] sm:$0xf]
    %v5590 = vld [vmem:[%s5586 + $0xc] sm:$0xf]
    %v5591 = vpack.c.bf16 %v5427, %v5426
    %v5596 = vunpack.c.l.b16 %v5587
    %v5597 = vunpack.c.l.b16 %v5588
    %v5598 = vunpack.c.l.b16 %v5589
    %v5599 = vunpack.c.l.b16 %v5590
    %v5600 = vpack.c.b16 %v5597, %v5596
    %v5601 = vpack.c.b16 %v5599, %v5598
    %v5605 = vsel %vm877, %v5591, 0
    %5607 = vmatpush.bf16.msra.mxu0 0
    %5608 = vmatpush.bf16.msra.mxu0 0
    %5609 = vmatpush.bf16.msra.mxu0 0
    %5610 = vmatpush.bf16.msra.mxu0 0
    %5611 = vmatpush.bf16.msra.mxu0 0
    %5612 = vmatpush.bf16.msra.mxu0 0
    %5613 = vmatpush.bf16.msra.mxu0 %v5601
    %5614 = vmatpush.bf16.msra.mxu0 %v5600
    %5615 = vmatmul.bf16.gmra.mxu0 %v5605
    %v5616 = vpop.f32.mrf.mxu0
    %v5617 = vadd.f32 0.0, %v5616
    %v5618 = vpop.f32.mrf.mxu0
    %v5619 = vadd.f32 0.0, %v5618
    %5620 = vdwg.mxu0
    %v5621 = vpack.c.bf16 %v5570, %v5570
    %v5622 = vpack.c.bf16 %v5571, %v5571
    %v5623 = vpack.c.bf16 %v5572, %v5572
    %v5624 = vpack.c.bf16 %v5573, %v5573
    %v5625 = vpack.c.bf16 %v5574, %v5574
    %v5626 = vpack.c.bf16 %v5575, %v5575
    %v5627 = vpack.c.bf16 %v5576, %v5576
    %v5628 = vpack.c.bf16 %v5577, %v5577
    %v5629 = vpack.c.bf16 %v5578, %v5578
    %v5630 = vpack.c.bf16 %v5579, %v5579
    %v5631 = vpack.c.bf16 %v5580, %v5580
    %v5632 = vpack.c.bf16 %v5581, %v5581
    %v5633 = vpack.c.bf16 %v5582, %v5582
    %v5634 = vpack.c.bf16 %v5583, %v5583
    %v5635 = vpack.c.bf16 %v5584, %v5584
    %v5636 = vpack.c.bf16 %v5585, %v5585
    %v5637 = vpack.c.bf16 %v5617, %v5617
    %v5638 = vpack.c.bf16 %v5619, %v5619
    %v5647 = vunpack.c.l.b16 %v5621
    %v5648 = vunpack.c.l.b16 %v5622
    %v5649 = vunpack.c.l.b16 %v5623
    %v5650 = vunpack.c.l.b16 %v5624
    %v5651 = vunpack.c.l.b16 %v5625
    %v5652 = vunpack.c.l.b16 %v5626
    %v5653 = vunpack.c.l.b16 %v5627
    %v5654 = vunpack.c.l.b16 %v5628
    %v5655 = vpack.c.b16 %v5648, %v5647
    %v5656 = vpack.c.b16 %v5650, %v5649
    %v5657 = vpack.c.b16 %v5652, %v5651
    %v5658 = vpack.c.b16 %v5654, %v5653
    %v5660 = vsel %vm291, %v5655, 0
    %v5663 = vsel %vm291, %v5656, 0
    %v5666 = vsel %vm291, %v5657, 0
    %v5669 = vsel %vm291, %v5658, 0
    %v5672 = vsel %vm291, %v5637, 0
    %5674 = vmatpush.bf16.xpose.msra.mxu0 0
    %5675 = vmatpush.bf16.xpose.msra.mxu0 0
    %5676 = vmatpush.bf16.xpose.msra.mxu0 0
    %5677 = vmatpush.bf16.xpose.msra.mxu0 0
    %5678 = vmatpush.bf16.xpose.msra.mxu0 0
    %5679 = vmatpush.bf16.xpose.msra.mxu0 0
    %5680 = vmatpush.bf16.xpose.msra.mxu0 0
    %5681 = vmatpush.bf16.xpose.msra.mxu0 %v5672
    %5682 = vmatmul.bf16.gmra.mxu0 %v5660
    %v5683 = vpop.f32.mrf.mxu0
    %v5684 = vadd.f32 0.0, %v5683
    %v5685 = vpop.f32.mrf.mxu0
    %v5686 = vadd.f32 0.0, %v5685
    %5687 = vmatmul.bf16.gmra.mxu0 %v5663
    %v5688 = vpop.f32.mrf.mxu0
    %v5689 = vadd.f32 0.0, %v5688
    %v5690 = vpop.f32.mrf.mxu0
    %v5691 = vadd.f32 0.0, %v5690
    %5692 = vmatmul.bf16.gmra.mxu0 %v5666
    %v5693 = vpop.f32.mrf.mxu0
    %v5694 = vadd.f32 0.0, %v5693
    %v5695 = vpop.f32.mrf.mxu0
    %v5696 = vadd.f32 0.0, %v5695
    %5697 = vmatmul.bf16.gmra.mxu0 %v5669
    %v5698 = vpop.f32.mrf.mxu0
    %v5699 = vadd.f32 0.0, %v5698
    %v5700 = vpop.f32.mrf.mxu0
    %v5701 = vadd.f32 0.0, %v5700
    %5702 = vdwg.mxu0
    %v5711 = vunpack.c.l.b16 %v5629
    %v5712 = vunpack.c.l.b16 %v5630
    %v5713 = vunpack.c.l.b16 %v5631
    %v5714 = vunpack.c.l.b16 %v5632
    %v5715 = vunpack.c.l.b16 %v5633
    %v5716 = vunpack.c.l.b16 %v5634
    %v5717 = vunpack.c.l.b16 %v5635
    %v5718 = vunpack.c.l.b16 %v5636
    %v5719 = vpack.c.b16 %v5712, %v5711
    %v5720 = vpack.c.b16 %v5714, %v5713
    %v5721 = vpack.c.b16 %v5716, %v5715
    %v5722 = vpack.c.b16 %v5718, %v5717
    %v5724 = vsel %vm291, %v5719, 0
    %v5727 = vsel %vm291, %v5720, 0
    %v5730 = vsel %vm291, %v5721, 0
    %v5733 = vsel %vm291, %v5722, 0
    %v5736 = vsel %vm291, %v5638, 0
    %5738 = vmatpush.bf16.xpose.msra.mxu0 0
    %5739 = vmatpush.bf16.xpose.msra.mxu0 0
    %5740 = vmatpush.bf16.xpose.msra.mxu0 0
    %5741 = vmatpush.bf16.xpose.msra.mxu0 0
    %5742 = vmatpush.bf16.xpose.msra.mxu0 0
    %5743 = vmatpush.bf16.xpose.msra.mxu0 0
    %5744 = vmatpush.bf16.xpose.msra.mxu0 0
    %5745 = vmatpush.bf16.xpose.msra.mxu0 %v5736
    %5746 = vmatmul.bf16.gmra.mxu0 %v5724
    %v5747 = vpop.f32.mrf.mxu0
    %v5748 = vadd.f32 0.0, %v5747
    %v5749 = vpop.f32.mrf.mxu0
    %v5750 = vadd.f32 0.0, %v5749
    %5751 = vmatmul.bf16.gmra.mxu0 %v5727
    %v5752 = vpop.f32.mrf.mxu0
    %v5753 = vadd.f32 0.0, %v5752
    %v5754 = vpop.f32.mrf.mxu0
    %v5755 = vadd.f32 0.0, %v5754
    %5756 = vmatmul.bf16.gmra.mxu0 %v5730
    %v5757 = vpop.f32.mrf.mxu0
    %v5758 = vadd.f32 0.0, %v5757
    %v5759 = vpop.f32.mrf.mxu0
    %v5760 = vadd.f32 0.0, %v5759
    %5761 = vmatmul.bf16.gmra.mxu0 %v5733
    %v5762 = vpop.f32.mrf.mxu0
    %v5763 = vadd.f32 0.0, %v5762
    %v5764 = vpop.f32.mrf.mxu0
    %v5765 = vadd.f32 0.0, %v5764
    %5766 = vdwg.mxu0
    %v5767 = vsel %vm2262, %v5684, -inf
    %5768 = vmax.xlane.f32.xlu0 %v5767
    %v5769 = vpop.xlane.xlu0 %5768
    %v5770 = vsel %vm2262, %v5686, -inf
    %5771 = vmax.xlane.f32.xlu0 %v5770
    %v5772 = vpop.xlane.xlu0 %5771
    %v5773 = vsel %vm2262, %v5689, -inf
    %5774 = vmax.xlane.f32.xlu0 %v5773
    %v5775 = vpop.xlane.xlu0 %5774
    %v5776 = vsel %vm2262, %v5691, -inf
    %5777 = vmax.xlane.f32.xlu0 %v5776
    %v5778 = vpop.xlane.xlu0 %5777
    %v5779 = vsel %vm2262, %v5694, -inf
    %5780 = vmax.xlane.f32.xlu0 %v5779
    %v5781 = vpop.xlane.xlu0 %5780
    %v5782 = vsel %vm2262, %v5696, -inf
    %5783 = vmax.xlane.f32.xlu0 %v5782
    %v5784 = vpop.xlane.xlu0 %5783
    %v5785 = vsel %vm2262, %v5699, -inf
    %5786 = vmax.xlane.f32.xlu0 %v5785
    %v5787 = vpop.xlane.xlu0 %5786
    %v5788 = vsel %vm2262, %v5701, -inf
    %5789 = vmax.xlane.f32.xlu0 %v5788
    %v5790 = vpop.xlane.xlu0 %5789
    %v5791 = vsel %vm2262, %v5748, -inf
    %5792 = vmax.xlane.f32.xlu0 %v5791
    %v5793 = vpop.xlane.xlu0 %5792
    %v5794 = vsel %vm2262, %v5750, -inf
    %5795 = vmax.xlane.f32.xlu0 %v5794
    %v5796 = vpop.xlane.xlu0 %5795
    %v5797 = vsel %vm2262, %v5753, -inf
    %5798 = vmax.xlane.f32.xlu0 %v5797
    %v5799 = vpop.xlane.xlu0 %5798
    %v5800 = vsel %vm2262, %v5755, -inf
    %5801 = vmax.xlane.f32.xlu0 %v5800
    %v5802 = vpop.xlane.xlu0 %5801
    %v5803 = vsel %vm2262, %v5758, -inf
    %5804 = vmax.xlane.f32.xlu0 %v5803
    %v5805 = vpop.xlane.xlu0 %5804
    %v5806 = vsel %vm2262, %v5760, -inf
    %5807 = vmax.xlane.f32.xlu0 %v5806
    %v5808 = vpop.xlane.xlu0 %5807
    %v5809 = vsel %vm2262, %v5763, -inf
    %5810 = vmax.xlane.f32.xlu0 %v5809
    %v5811 = vpop.xlane.xlu0 %5810
    %v5812 = vsel %vm2262, %v5765, -inf
    %5813 = vmax.xlane.f32.xlu0 %v5812
    %v5814 = vpop.xlane.xlu0 %5813
    %v5815 = vsub.f32 %v5684, %v5769
    %v5816 = vsub.f32 %v5686, %v5772
    %v5817 = vsub.f32 %v5689, %v5775
    %v5818 = vsub.f32 %v5691, %v5778
    %v5819 = vsub.f32 %v5694, %v5781
    %v5820 = vsub.f32 %v5696, %v5784
    %v5821 = vsub.f32 %v5699, %v5787
    %v5822 = vsub.f32 %v5701, %v5790
    %v5823 = vsub.f32 %v5748, %v5793
    %v5824 = vsub.f32 %v5750, %v5796
    %v5825 = vsub.f32 %v5753, %v5799
    %v5826 = vsub.f32 %v5755, %v5802
    %v5827 = vsub.f32 %v5758, %v5805
    %v5828 = vsub.f32 %v5760, %v5808
    %v5829 = vsub.f32 %v5763, %v5811
    %v5830 = vsub.f32 %v5765, %v5814
    %v5831 = vmul.f32 %v5815, 1.442695
    %v5832 = vpow.pop %v5831
    %v5833 = vmul.f32 %v5816, 1.442695
    %v5834 = vpow.pop %v5833
    %v5835 = vmul.f32 %v5817, 1.442695
    %v5836 = vpow.pop %v5835
    %v5837 = vmul.f32 %v5818, 1.442695
    %v5838 = vpow.pop %v5837
    %v5839 = vmul.f32 %v5819, 1.442695
    %v5840 = vpow.pop %v5839
    %v5841 = vmul.f32 %v5820, 1.442695
    %v5842 = vpow.pop %v5841
    %v5843 = vmul.f32 %v5821, 1.442695
    %v5844 = vpow.pop %v5843
    %v5845 = vmul.f32 %v5822, 1.442695
    %v5846 = vpow.pop %v5845
    %v5847 = vmul.f32 %v5823, 1.442695
    %v5848 = vpow.pop %v5847
    %v5849 = vmul.f32 %v5824, 1.442695
    %v5850 = vpow.pop %v5849
    %v5851 = vmul.f32 %v5825, 1.442695
    %v5852 = vpow.pop %v5851
    %v5853 = vmul.f32 %v5826, 1.442695
    %v5854 = vpow.pop %v5853
    %v5855 = vmul.f32 %v5827, 1.442695
    %v5856 = vpow.pop %v5855
    %v5857 = vmul.f32 %v5828, 1.442695
    %v5858 = vpow.pop %v5857
    %v5859 = vmul.f32 %v5829, 1.442695
    %v5860 = vpow.pop %v5859
    %v5861 = vmul.f32 %v5830, 1.442695
    %v5862 = vpow.pop %v5861
    %v5863 = vsel %vm2262, %v5832, 0.0
    %5864 = vadd.xlane.f32.xlu0 %v5863
    %v5865 = vpop.xlane.xlu0 %5864
    %v5866 = vsel %vm2262, %v5834, 0.0
    %5867 = vadd.xlane.f32.xlu0 %v5866
    %v5868 = vpop.xlane.xlu0 %5867
    %v5869 = vsel %vm2262, %v5836, 0.0
    %5870 = vadd.xlane.f32.xlu0 %v5869
    %v5871 = vpop.xlane.xlu0 %5870
    %v5872 = vsel %vm2262, %v5838, 0.0
    %5873 = vadd.xlane.f32.xlu0 %v5872
    %v5874 = vpop.xlane.xlu0 %5873
    %v5875 = vsel %vm2262, %v5840, 0.0
    %5876 = vadd.xlane.f32.xlu0 %v5875
    %v5877 = vpop.xlane.xlu0 %5876
    %v5878 = vsel %vm2262, %v5842, 0.0
    %5879 = vadd.xlane.f32.xlu0 %v5878
    %v5880 = vpop.xlane.xlu0 %5879
    %v5881 = vsel %vm2262, %v5844, 0.0
    %5882 = vadd.xlane.f32.xlu0 %v5881
    %v5883 = vpop.xlane.xlu0 %5882
    %v5884 = vsel %vm2262, %v5846, 0.0
    %5885 = vadd.xlane.f32.xlu0 %v5884
    %v5886 = vpop.xlane.xlu0 %5885
    %v5887 = vsel %vm2262, %v5848, 0.0
    %5888 = vadd.xlane.f32.xlu0 %v5887
    %v5889 = vpop.xlane.xlu0 %5888
    %v5890 = vsel %vm2262, %v5850, 0.0
    %5891 = vadd.xlane.f32.xlu0 %v5890
    %v5892 = vpop.xlane.xlu0 %5891
    %v5893 = vsel %vm2262, %v5852, 0.0
    %5894 = vadd.xlane.f32.xlu0 %v5893
    %v5895 = vpop.xlane.xlu0 %5894
    %v5896 = vsel %vm2262, %v5854, 0.0
    %5897 = vadd.xlane.f32.xlu0 %v5896
    %v5898 = vpop.xlane.xlu0 %5897
    %v5899 = vsel %vm2262, %v5856, 0.0
    %5900 = vadd.xlane.f32.xlu0 %v5899
    %v5901 = vpop.xlane.xlu0 %5900
    %v5902 = vsel %vm2262, %v5858, 0.0
    %5903 = vadd.xlane.f32.xlu0 %v5902
    %v5904 = vpop.xlane.xlu0 %5903
    %v5905 = vsel %vm2262, %v5860, 0.0
    %5906 = vadd.xlane.f32.xlu0 %v5905
    %v5907 = vpop.xlane.xlu0 %5906
    %v5908 = vsel %vm2262, %v5862, 0.0
    %5909 = vadd.xlane.f32.xlu0 %v5908
    %v5910 = vpop.xlane.xlu0 %5909
    %v5911 = vrcp.pop %v5865
    %v5912 = vrcp.pop %v5868
    %v5913 = vrcp.pop %v5871
    %v5914 = vrcp.pop %v5874
    %v5915 = vrcp.pop %v5877
    %v5916 = vrcp.pop %v5880
    %v5917 = vrcp.pop %v5883
    %v5918 = vrcp.pop %v5886
    %v5919 = vrcp.pop %v5889
    %v5920 = vrcp.pop %v5892
    %v5921 = vrcp.pop %v5895
    %v5922 = vrcp.pop %v5898
    %v5923 = vrcp.pop %v5901
    %v5924 = vrcp.pop %v5904
    %v5925 = vrcp.pop %v5907
    %v5926 = vrcp.pop %v5910
    %v5927 = vmul.f32 %v5832, %v5911
    %v5928 = vmul.f32 %v5834, %v5912
    %v5929 = vmul.f32 %v5836, %v5913
    %v5930 = vmul.f32 %v5838, %v5914
    %v5931 = vmul.f32 %v5840, %v5915
    %v5932 = vmul.f32 %v5842, %v5916
    %v5933 = vmul.f32 %v5844, %v5917
    %v5934 = vmul.f32 %v5846, %v5918
    %v5935 = vmul.f32 %v5848, %v5919
    %v5936 = vmul.f32 %v5850, %v5920
    %v5937 = vmul.f32 %v5852, %v5921
    %v5938 = vmul.f32 %v5854, %v5922
    %v5939 = vmul.f32 %v5856, %v5923
    %v5940 = vmul.f32 %v5858, %v5924
    %v5941 = vmul.f32 %v5860, %v5925
    %v5942 = vmul.f32 %v5862, %v5926
    %v5943 = vpack.c.bf16 %v5927, %v5927
    %v5944 = vpack.c.bf16 %v5928, %v5928
    %v5945 = vpack.c.bf16 %v5929, %v5929
    %v5946 = vpack.c.bf16 %v5930, %v5930
    %v5947 = vpack.c.bf16 %v5931, %v5931
    %v5948 = vpack.c.bf16 %v5932, %v5932
    %v5949 = vpack.c.bf16 %v5933, %v5933
    %v5950 = vpack.c.bf16 %v5934, %v5934
    %v5951 = vpack.c.bf16 %v5935, %v5935
    %v5952 = vpack.c.bf16 %v5936, %v5936
    %v5953 = vpack.c.bf16 %v5937, %v5937
    %v5954 = vpack.c.bf16 %v5938, %v5938
    %v5955 = vpack.c.bf16 %v5939, %v5939
    %v5956 = vpack.c.bf16 %v5940, %v5940
    %v5957 = vpack.c.bf16 %v5941, %v5941
    %v5958 = vpack.c.bf16 %v5942, %v5942
    %v5967 = vunpack.c.l.b16 %v5943
    %v5968 = vunpack.c.l.b16 %v5944
    %v5969 = vunpack.c.l.b16 %v5945
    %v5970 = vunpack.c.l.b16 %v5946
    %v5971 = vunpack.c.l.b16 %v5947
    %v5972 = vunpack.c.l.b16 %v5948
    %v5973 = vunpack.c.l.b16 %v5949
    %v5974 = vunpack.c.l.b16 %v5950
    %v5975 = vpack.c.b16 %v5968, %v5967
    %v5976 = vpack.c.b16 %v5970, %v5969
    %v5977 = vpack.c.b16 %v5972, %v5971
    %v5978 = vpack.c.b16 %v5974, %v5973
    %v5980 = vunpack.c.l.b16 %v5637
    %v5981 = vpack.c.b16 %v5980, %v5980
    %5982 = vrot.lane.b32.xlu0 %v5981, 96
    %v5983 = vpop.permute.xlu0 %5982
    %v5985 = vsel %vm2262, %v5975, 0
    %v5988 = vsel %vm2262, %v5976, 0
    %v5991 = vsel %vm2262, %v5977, 0
    %v5994 = vsel %vm2262, %v5978, 0
    %v5997 = vsel %vm2295, %v5983, 0
    %5999 = vmatpush.bf16.msra.mxu0 0
    %6000 = vmatpush.bf16.msra.mxu0 0
    %6001 = vmatpush.bf16.msra.mxu0 0
    %6002 = vmatpush.bf16.msra.mxu0 0
    %6003 = vmatpush.bf16.msra.mxu0 0
    %6004 = vmatpush.bf16.msra.mxu0 0
    %6005 = vmatpush.bf16.msra.mxu0 0
    %6006 = vmatpush.bf16.msra.mxu0 %v5997
    %6007 = vmatmul.bf16.gmra.mxu0 %v5985
    %v6008 = vpop.f32.mrf.mxu0
    %v6009 = vadd.f32 0.0, %v6008
    %v6010 = vpop.f32.mrf.mxu0
    %v6011 = vadd.f32 0.0, %v6010
    %6012 = vmatmul.bf16.gmra.mxu0 %v5988
    %v6013 = vpop.f32.mrf.mxu0
    %v6014 = vadd.f32 0.0, %v6013
    %v6015 = vpop.f32.mrf.mxu0
    %v6016 = vadd.f32 0.0, %v6015
    %6017 = vmatmul.bf16.gmra.mxu0 %v5991
    %v6018 = vpop.f32.mrf.mxu0
    %v6019 = vadd.f32 0.0, %v6018
    %v6020 = vpop.f32.mrf.mxu0
    %v6021 = vadd.f32 0.0, %v6020
    %6022 = vmatmul.bf16.gmra.mxu0 %v5994
    %v6023 = vpop.f32.mrf.mxu0
    %v6024 = vadd.f32 0.0, %v6023
    %v6025 = vpop.f32.mrf.mxu0
    %v6026 = vadd.f32 0.0, %v6025
    %6027 = vdwg.mxu0
    %v6036 = vunpack.c.l.b16 %v5951
    %v6037 = vunpack.c.l.b16 %v5952
    %v6038 = vunpack.c.l.b16 %v5953
    %v6039 = vunpack.c.l.b16 %v5954
    %v6040 = vunpack.c.l.b16 %v5955
    %v6041 = vunpack.c.l.b16 %v5956
    %v6042 = vunpack.c.l.b16 %v5957
    %v6043 = vunpack.c.l.b16 %v5958
    %v6044 = vpack.c.b16 %v6037, %v6036
    %v6045 = vpack.c.b16 %v6039, %v6038
    %v6046 = vpack.c.b16 %v6041, %v6040
    %v6047 = vpack.c.b16 %v6043, %v6042
    %v6049 = vunpack.c.l.b16 %v5638
    %v6050 = vpack.c.b16 %v6049, %v6049
    %6051 = vrot.lane.b32.xlu0 %v6050, 96
    %v6052 = vpop.permute.xlu0 %6051
    %v6054 = vsel %vm2262, %v6044, 0
    %v6057 = vsel %vm2262, %v6045, 0
    %v6060 = vsel %vm2262, %v6046, 0
    %v6063 = vsel %vm2262, %v6047, 0
    %v6066 = vsel %vm2295, %v6052, 0
    %6068 = vmatpush.bf16.msra.mxu0 0
    %6069 = vmatpush.bf16.msra.mxu0 0
    %6070 = vmatpush.bf16.msra.mxu0 0
    %6071 = vmatpush.bf16.msra.mxu0 0
    %6072 = vmatpush.bf16.msra.mxu0 0
    %6073 = vmatpush.bf16.msra.mxu0 0
    %6074 = vmatpush.bf16.msra.mxu0 0
    %6075 = vmatpush.bf16.msra.mxu0 %v6066
    %6076 = vmatmul.bf16.gmra.mxu0 %v6054
    %v6077 = vpop.f32.mrf.mxu0
    %v6078 = vadd.f32 0.0, %v6077
    %v6079 = vpop.f32.mrf.mxu0
    %v6080 = vadd.f32 0.0, %v6079
    %6081 = vmatmul.bf16.gmra.mxu0 %v6057
    %v6082 = vpop.f32.mrf.mxu0
    %v6083 = vadd.f32 0.0, %v6082
    %v6084 = vpop.f32.mrf.mxu0
    %v6085 = vadd.f32 0.0, %v6084
    %6086 = vmatmul.bf16.gmra.mxu0 %v6060
    %v6087 = vpop.f32.mrf.mxu0
    %v6088 = vadd.f32 0.0, %v6087
    %v6089 = vpop.f32.mrf.mxu0
    %v6090 = vadd.f32 0.0, %v6089
    %6091 = vmatmul.bf16.gmra.mxu0 %v6063
    %v6092 = vpop.f32.mrf.mxu0
    %v6093 = vadd.f32 0.0, %v6092
    %v6094 = vpop.f32.mrf.mxu0
    %v6095 = vadd.f32 0.0, %v6094
    %6096 = vdwg.mxu0
    %6097 = vrot.lane.b32.xlu0 %v5655, 112
    %v6098 = vpop.permute.xlu0 %6097
    %6099 = vrot.lane.b32.xlu0 %v5656, 112
    %v6100 = vpop.permute.xlu0 %6099
    %6101 = vrot.lane.b32.xlu0 %v5657, 112
    %v6102 = vpop.permute.xlu0 %6101
    %6103 = vrot.lane.b32.xlu0 %v5658, 112
    %v6104 = vpop.permute.xlu0 %6103
    %6105 = vrot.lane.b32.xlu0 %v5981, 112
    %v6106 = vpop.permute.xlu0 %6105
    %v6108 = vsel %vm291, %v6098, 0
    %v6111 = vsel %vm291, %v6100, 0
    %v6114 = vsel %vm291, %v6102, 0
    %v6117 = vsel %vm291, %v6104, 0
    %v6120 = vsel %vm291, %v6106, 0
    %6122 = vmatpush.bf16.xpose.msra.mxu0 0
    %6123 = vmatpush.bf16.xpose.msra.mxu0 0
    %6124 = vmatpush.bf16.xpose.msra.mxu0 0
    %6125 = vmatpush.bf16.xpose.msra.mxu0 0
    %6126 = vmatpush.bf16.xpose.msra.mxu0 0
    %6127 = vmatpush.bf16.xpose.msra.mxu0 0
    %6128 = vmatpush.bf16.xpose.msra.mxu0 0
    %6129 = vmatpush.bf16.xpose.msra.mxu0 %v6120
    %6130 = vmatmul.bf16.gmra.mxu0 %v6108
    %v6131 = vpop.f32.mrf.mxu0
    %v6132 = vadd.f32 0.0, %v6131
    %v6133 = vpop.f32.mrf.mxu0
    %v6134 = vadd.f32 0.0, %v6133
    %6135 = vmatmul.bf16.gmra.mxu0 %v6111
    %v6136 = vpop.f32.mrf.mxu0
    %v6137 = vadd.f32 0.0, %v6136
    %v6138 = vpop.f32.mrf.mxu0
    %v6139 = vadd.f32 0.0, %v6138
    %6140 = vmatmul.bf16.gmra.mxu0 %v6114
    %v6141 = vpop.f32.mrf.mxu0
    %v6142 = vadd.f32 0.0, %v6141
    %v6143 = vpop.f32.mrf.mxu0
    %v6144 = vadd.f32 0.0, %v6143
    %6145 = vmatmul.bf16.gmra.mxu0 %v6117
    %v6146 = vpop.f32.mrf.mxu0
    %v6147 = vadd.f32 0.0, %v6146
    %v6148 = vpop.f32.mrf.mxu0
    %v6149 = vadd.f32 0.0, %v6148
    %6150 = vdwg.mxu0
    %6151 = vrot.lane.b32.xlu0 %v5719, 112
    %v6152 = vpop.permute.xlu0 %6151
    %6153 = vrot.lane.b32.xlu0 %v5720, 112
    %v6154 = vpop.permute.xlu0 %6153
    %6155 = vrot.lane.b32.xlu0 %v5721, 112
    %v6156 = vpop.permute.xlu0 %6155
    %6157 = vrot.lane.b32.xlu0 %v5722, 112
    %v6158 = vpop.permute.xlu0 %6157
    %6159 = vrot.lane.b32.xlu0 %v6050, 112
    %v6160 = vpop.permute.xlu0 %6159
    %v6162 = vsel %vm291, %v6152, 0
    %v6165 = vsel %vm291, %v6154, 0
    %v6168 = vsel %vm291, %v6156, 0
    %v6171 = vsel %vm291, %v6158, 0
    %v6174 = vsel %vm291, %v6160, 0
    %6176 = vmatpush.bf16.xpose.msra.mxu0 0
    %6177 = vmatpush.bf16.xpose.msra.mxu0 0
    %6178 = vmatpush.bf16.xpose.msra.mxu0 0
    %6179 = vmatpush.bf16.xpose.msra.mxu0 0
    %6180 = vmatpush.bf16.xpose.msra.mxu0 0
    %6181 = vmatpush.bf16.xpose.msra.mxu0 0
    %6182 = vmatpush.bf16.xpose.msra.mxu0 0
    %6183 = vmatpush.bf16.xpose.msra.mxu0 %v6174
    %6184 = vmatmul.bf16.gmra.mxu0 %v6162
    %v6185 = vpop.f32.mrf.mxu0
    %v6186 = vadd.f32 0.0, %v6185
    %v6187 = vpop.f32.mrf.mxu0
    %v6188 = vadd.f32 0.0, %v6187
    %6189 = vmatmul.bf16.gmra.mxu0 %v6165
    %v6190 = vpop.f32.mrf.mxu0
    %v6191 = vadd.f32 0.0, %v6190
    %v6192 = vpop.f32.mrf.mxu0
    %v6193 = vadd.f32 0.0, %v6192
    %6194 = vmatmul.bf16.gmra.mxu0 %v6168
    %v6195 = vpop.f32.mrf.mxu0
    %v6196 = vadd.f32 0.0, %v6195
    %v6197 = vpop.f32.mrf.mxu0
    %v6198 = vadd.f32 0.0, %v6197
    %6199 = vmatmul.bf16.gmra.mxu0 %v6171
    %v6200 = vpop.f32.mrf.mxu0
    %v6201 = vadd.f32 0.0, %v6200
    %v6202 = vpop.f32.mrf.mxu0
    %v6203 = vadd.f32 0.0, %v6202
    %6204 = vdwg.mxu0
    %v6205 = vsel %vm2262, %v6132, -inf
    %6206 = vmax.xlane.f32.xlu0 %v6205
    %v6207 = vpop.xlane.xlu0 %6206
    %v6208 = vsel %vm2262, %v6134, -inf
    %6209 = vmax.xlane.f32.xlu0 %v6208
    %v6210 = vpop.xlane.xlu0 %6209
    %v6211 = vsel %vm2262, %v6137, -inf
    %6212 = vmax.xlane.f32.xlu0 %v6211
    %v6213 = vpop.xlane.xlu0 %6212
    %v6214 = vsel %vm2262, %v6139, -inf
    %6215 = vmax.xlane.f32.xlu0 %v6214
    %v6216 = vpop.xlane.xlu0 %6215
    %v6217 = vsel %vm2262, %v6142, -inf
    %6218 = vmax.xlane.f32.xlu0 %v6217
    %v6219 = vpop.xlane.xlu0 %6218
    %v6220 = vsel %vm2262, %v6144, -inf
    %6221 = vmax.xlane.f32.xlu0 %v6220
    %v6222 = vpop.xlane.xlu0 %6221
    %v6223 = vsel %vm2262, %v6147, -inf
    %6224 = vmax.xlane.f32.xlu0 %v6223
    %v6225 = vpop.xlane.xlu0 %6224
    %v6226 = vsel %vm2262, %v6149, -inf
    %6227 = vmax.xlane.f32.xlu0 %v6226
    %v6228 = vpop.xlane.xlu0 %6227
    %v6229 = vsel %vm2262, %v6186, -inf
    %6230 = vmax.xlane.f32.xlu0 %v6229
    %v6231 = vpop.xlane.xlu0 %6230
    %v6232 = vsel %vm2262, %v6188, -inf
    %6233 = vmax.xlane.f32.xlu0 %v6232
    %v6234 = vpop.xlane.xlu0 %6233
    %v6235 = vsel %vm2262, %v6191, -inf
    %6236 = vmax.xlane.f32.xlu0 %v6235
    %v6237 = vpop.xlane.xlu0 %6236
    %v6238 = vsel %vm2262, %v6193, -inf
    %6239 = vmax.xlane.f32.xlu0 %v6238
    %v6240 = vpop.xlane.xlu0 %6239
    %v6241 = vsel %vm2262, %v6196, -inf
    %6242 = vmax.xlane.f32.xlu0 %v6241
    %v6243 = vpop.xlane.xlu0 %6242
    %v6244 = vsel %vm2262, %v6198, -inf
    %6245 = vmax.xlane.f32.xlu0 %v6244
    %v6246 = vpop.xlane.xlu0 %6245
    %v6247 = vsel %vm2262, %v6201, -inf
    %6248 = vmax.xlane.f32.xlu0 %v6247
    %v6249 = vpop.xlane.xlu0 %6248
    %v6250 = vsel %vm2262, %v6203, -inf
    %6251 = vmax.xlane.f32.xlu0 %v6250
    %v6252 = vpop.xlane.xlu0 %6251
    %v6253 = vsub.f32 %v6132, %v6207
    %v6254 = vsub.f32 %v6134, %v6210
    %v6255 = vsub.f32 %v6137, %v6213
    %v6256 = vsub.f32 %v6139, %v6216
    %v6257 = vsub.f32 %v6142, %v6219
    %v6258 = vsub.f32 %v6144, %v6222
    %v6259 = vsub.f32 %v6147, %v6225
    %v6260 = vsub.f32 %v6149, %v6228
    %v6261 = vsub.f32 %v6186, %v6231
    %v6262 = vsub.f32 %v6188, %v6234
    %v6263 = vsub.f32 %v6191, %v6237
    %v6264 = vsub.f32 %v6193, %v6240
    %v6265 = vsub.f32 %v6196, %v6243
    %v6266 = vsub.f32 %v6198, %v6246
    %v6267 = vsub.f32 %v6201, %v6249
    %v6268 = vsub.f32 %v6203, %v6252
    %v6269 = vmul.f32 %v6253, 1.442695
    %v6270 = vpow.pop %v6269
    %v6271 = vmul.f32 %v6254, 1.442695
    %v6272 = vpow.pop %v6271
    %v6273 = vmul.f32 %v6255, 1.442695
    %v6274 = vpow.pop %v6273
    %v6275 = vmul.f32 %v6256, 1.442695
    %v6276 = vpow.pop %v6275
    %v6277 = vmul.f32 %v6257, 1.442695
    %v6278 = vpow.pop %v6277
    %v6279 = vmul.f32 %v6258, 1.442695
    %v6280 = vpow.pop %v6279
    %v6281 = vmul.f32 %v6259, 1.442695
    %v6282 = vpow.pop %v6281
    %v6283 = vmul.f32 %v6260, 1.442695
    %v6284 = vpow.pop %v6283
    %v6285 = vmul.f32 %v6261, 1.442695
    %v6286 = vpow.pop %v6285
    %v6287 = vmul.f32 %v6262, 1.442695
    %v6288 = vpow.pop %v6287
    %v6289 = vmul.f32 %v6263, 1.442695
    %v6290 = vpow.pop %v6289
    %v6291 = vmul.f32 %v6264, 1.442695
    %v6292 = vpow.pop %v6291
    %v6293 = vmul.f32 %v6265, 1.442695
    %v6294 = vpow.pop %v6293
    %v6295 = vmul.f32 %v6266, 1.442695
    %v6296 = vpow.pop %v6295
    %v6297 = vmul.f32 %v6267, 1.442695
    %v6298 = vpow.pop %v6297
    %v6299 = vmul.f32 %v6268, 1.442695
    %v6300 = vpow.pop %v6299
    %v6301 = vsel %vm2262, %v6270, 0.0
    %6302 = vadd.xlane.f32.xlu0 %v6301
    %v6303 = vpop.xlane.xlu0 %6302
    %v6304 = vsel %vm2262, %v6272, 0.0
    %6305 = vadd.xlane.f32.xlu0 %v6304
    %v6306 = vpop.xlane.xlu0 %6305
    %v6307 = vsel %vm2262, %v6274, 0.0
    %6308 = vadd.xlane.f32.xlu0 %v6307
    %v6309 = vpop.xlane.xlu0 %6308
    %v6310 = vsel %vm2262, %v6276, 0.0
    %6311 = vadd.xlane.f32.xlu0 %v6310
    %v6312 = vpop.xlane.xlu0 %6311
    %v6313 = vsel %vm2262, %v6278, 0.0
    %6314 = vadd.xlane.f32.xlu0 %v6313
    %v6315 = vpop.xlane.xlu0 %6314
    %v6316 = vsel %vm2262, %v6280, 0.0
    %6317 = vadd.xlane.f32.xlu0 %v6316
    %v6318 = vpop.xlane.xlu0 %6317
    %v6319 = vsel %vm2262, %v6282, 0.0
    %6320 = vadd.xlane.f32.xlu0 %v6319
    %v6321 = vpop.xlane.xlu0 %6320
    %v6322 = vsel %vm2262, %v6284, 0.0
    %6323 = vadd.xlane.f32.xlu0 %v6322
    %v6324 = vpop.xlane.xlu0 %6323
    %v6325 = vsel %vm2262, %v6286, 0.0
    %6326 = vadd.xlane.f32.xlu0 %v6325
    %v6327 = vpop.xlane.xlu0 %6326
    %v6328 = vsel %vm2262, %v6288, 0.0
    %6329 = vadd.xlane.f32.xlu0 %v6328
    %v6330 = vpop.xlane.xlu0 %6329
    %v6331 = vsel %vm2262, %v6290, 0.0
    %6332 = vadd.xlane.f32.xlu0 %v6331
    %v6333 = vpop.xlane.xlu0 %6332
    %v6334 = vsel %vm2262, %v6292, 0.0
    %6335 = vadd.xlane.f32.xlu0 %v6334
    %v6336 = vpop.xlane.xlu0 %6335
    %v6337 = vsel %vm2262, %v6294, 0.0
    %6338 = vadd.xlane.f32.xlu0 %v6337
    %v6339 = vpop.xlane.xlu0 %6338
    %v6340 = vsel %vm2262, %v6296, 0.0
    %6341 = vadd.xlane.f32.xlu0 %v6340
    %v6342 = vpop.xlane.xlu0 %6341
    %v6343 = vsel %vm2262, %v6298, 0.0
    %6344 = vadd.xlane.f32.xlu0 %v6343
    %v6345 = vpop.xlane.xlu0 %6344
    %v6346 = vsel %vm2262, %v6300, 0.0
    %6347 = vadd.xlane.f32.xlu0 %v6346
    %v6348 = vpop.xlane.xlu0 %6347
    %v6349 = vrcp.pop %v6303
    %v6350 = vrcp.pop %v6306
    %v6351 = vrcp.pop %v6309
    %v6352 = vrcp.pop %v6312
    %v6353 = vrcp.pop %v6315
    %v6354 = vrcp.pop %v6318
    %v6355 = vrcp.pop %v6321
    %v6356 = vrcp.pop %v6324
    %v6357 = vrcp.pop %v6327
    %v6358 = vrcp.pop %v6330
    %v6359 = vrcp.pop %v6333
    %v6360 = vrcp.pop %v6336
    %v6361 = vrcp.pop %v6339
    %v6362 = vrcp.pop %v6342
    %v6363 = vrcp.pop %v6345
    %v6364 = vrcp.pop %v6348
    %v6365 = vmul.f32 %v6270, %v6349
    %v6366 = vmul.f32 %v6272, %v6350
    %v6367 = vmul.f32 %v6274, %v6351
    %v6368 = vmul.f32 %v6276, %v6352
    %v6369 = vmul.f32 %v6278, %v6353
    %v6370 = vmul.f32 %v6280, %v6354
    %v6371 = vmul.f32 %v6282, %v6355
    %v6372 = vmul.f32 %v6284, %v6356
    %v6373 = vmul.f32 %v6286, %v6357
    %v6374 = vmul.f32 %v6288, %v6358
    %v6375 = vmul.f32 %v6290, %v6359
    %v6376 = vmul.f32 %v6292, %v6360
    %v6377 = vmul.f32 %v6294, %v6361
    %v6378 = vmul.f32 %v6296, %v6362
    %v6379 = vmul.f32 %v6298, %v6363
    %v6380 = vmul.f32 %v6300, %v6364
    %v6381 = vpack.c.bf16 %v6365, %v6365
    %v6382 = vpack.c.bf16 %v6366, %v6366
    %v6383 = vpack.c.bf16 %v6367, %v6367
    %v6384 = vpack.c.bf16 %v6368, %v6368
    %v6385 = vpack.c.bf16 %v6369, %v6369
    %v6386 = vpack.c.bf16 %v6370, %v6370
    %v6387 = vpack.c.bf16 %v6371, %v6371
    %v6388 = vpack.c.bf16 %v6372, %v6372
    %v6389 = vpack.c.bf16 %v6373, %v6373
    %v6390 = vpack.c.bf16 %v6374, %v6374
    %v6391 = vpack.c.bf16 %v6375, %v6375
    %v6392 = vpack.c.bf16 %v6376, %v6376
    %v6393 = vpack.c.bf16 %v6377, %v6377
    %v6394 = vpack.c.bf16 %v6378, %v6378
    %v6395 = vpack.c.bf16 %v6379, %v6379
    %v6396 = vpack.c.bf16 %v6380, %v6380
    %v6405 = vunpack.c.l.b16 %v6381
    %v6406 = vunpack.c.l.b16 %v6382
    %v6407 = vunpack.c.l.b16 %v6383
    %v6408 = vunpack.c.l.b16 %v6384
    %v6409 = vunpack.c.l.b16 %v6385
    %v6410 = vunpack.c.l.b16 %v6386
    %v6411 = vunpack.c.l.b16 %v6387
    %v6412 = vunpack.c.l.b16 %v6388
    %v6413 = vpack.c.b16 %v6406, %v6405
    %v6414 = vpack.c.b16 %v6408, %v6407
    %v6415 = vpack.c.b16 %v6410, %v6409
    %v6416 = vpack.c.b16 %v6412, %v6411
    %6417 = vrot.lane.b32.xlu0 %v5981, 80
    %v6418 = vpop.permute.xlu0 %6417
    %v6420 = vsel %vm2262, %v6413, 0
    %v6423 = vsel %vm2262, %v6414, 0
    %v6426 = vsel %vm2262, %v6415, 0
    %v6429 = vsel %vm2262, %v6416, 0
    %v6432 = vsel %vm2295, %v6418, 0
    %6434 = vmatpush.bf16.msra.mxu0 0
    %6435 = vmatpush.bf16.msra.mxu0 0
    %6436 = vmatpush.bf16.msra.mxu0 0
    %6437 = vmatpush.bf16.msra.mxu0 0
    %6438 = vmatpush.bf16.msra.mxu0 0
    %6439 = vmatpush.bf16.msra.mxu0 0
    %6440 = vmatpush.bf16.msra.mxu0 0
    %6441 = vmatpush.bf16.msra.mxu0 %v6432
    %6442 = vmatmul.bf16.gmra.mxu0 %v6420
    %v6443 = vpop.f32.mrf.mxu0
    %v6444 = vadd.f32 0.0, %v6443
    %v6445 = vpop.f32.mrf.mxu0
    %v6446 = vadd.f32 0.0, %v6445
    %6447 = vmatmul.bf16.gmra.mxu0 %v6423
    %v6448 = vpop.f32.mrf.mxu0
    %v6449 = vadd.f32 0.0, %v6448
    %v6450 = vpop.f32.mrf.mxu0
    %v6451 = vadd.f32 0.0, %v6450
    %6452 = vmatmul.bf16.gmra.mxu0 %v6426
    %v6453 = vpop.f32.mrf.mxu0
    %v6454 = vadd.f32 0.0, %v6453
    %v6455 = vpop.f32.mrf.mxu0
    %v6456 = vadd.f32 0.0, %v6455
    %6457 = vmatmul.bf16.gmra.mxu0 %v6429
    %v6458 = vpop.f32.mrf.mxu0
    %v6459 = vadd.f32 0.0, %v6458
    %v6460 = vpop.f32.mrf.mxu0
    %v6461 = vadd.f32 0.0, %v6460
    %6462 = vdwg.mxu0
    %v6471 = vunpack.c.l.b16 %v6389
    %v6472 = vunpack.c.l.b16 %v6390
    %v6473 = vunpack.c.l.b16 %v6391
    %v6474 = vunpack.c.l.b16 %v6392
    %v6475 = vunpack.c.l.b16 %v6393
    %v6476 = vunpack.c.l.b16 %v6394
    %v6477 = vunpack.c.l.b16 %v6395
    %v6478 = vunpack.c.l.b16 %v6396
    %v6479 = vpack.c.b16 %v6472, %v6471
    %v6480 = vpack.c.b16 %v6474, %v6473
    %v6481 = vpack.c.b16 %v6476, %v6475
    %v6482 = vpack.c.b16 %v6478, %v6477
    %6483 = vrot.lane.b32.xlu0 %v6050, 80
    %v6484 = vpop.permute.xlu0 %6483
    %v6486 = vsel %vm2262, %v6479, 0
    %v6489 = vsel %vm2262, %v6480, 0
    %v6492 = vsel %vm2262, %v6481, 0
    %v6495 = vsel %vm2262, %v6482, 0
    %v6498 = vsel %vm2295, %v6484, 0
    %6500 = vmatpush.bf16.msra.mxu0 0
    %6501 = vmatpush.bf16.msra.mxu0 0
    %6502 = vmatpush.bf16.msra.mxu0 0
    %6503 = vmatpush.bf16.msra.mxu0 0
    %6504 = vmatpush.bf16.msra.mxu0 0
    %6505 = vmatpush.bf16.msra.mxu0 0
    %6506 = vmatpush.bf16.msra.mxu0 0
    %6507 = vmatpush.bf16.msra.mxu0 %v6498
    %6508 = vmatmul.bf16.gmra.mxu0 %v6486
    %v6509 = vpop.f32.mrf.mxu0
    %v6510 = vadd.f32 0.0, %v6509
    %v6511 = vpop.f32.mrf.mxu0
    %v6512 = vadd.f32 0.0, %v6511
    %6513 = vmatmul.bf16.gmra.mxu0 %v6489
    %v6514 = vpop.f32.mrf.mxu0
    %v6515 = vadd.f32 0.0, %v6514
    %v6516 = vpop.f32.mrf.mxu0
    %v6517 = vadd.f32 0.0, %v6516
    %6518 = vmatmul.bf16.gmra.mxu0 %v6492
    %v6519 = vpop.f32.mrf.mxu0
    %v6520 = vadd.f32 0.0, %v6519
    %v6521 = vpop.f32.mrf.mxu0
    %v6522 = vadd.f32 0.0, %v6521
    %6523 = vmatmul.bf16.gmra.mxu0 %v6495
    %v6524 = vpop.f32.mrf.mxu0
    %v6525 = vadd.f32 0.0, %v6524
    %v6526 = vpop.f32.mrf.mxu0
    %v6527 = vadd.f32 0.0, %v6526
    %6528 = vdwg.mxu0
    %6545 = vrot.lane.b32.xlu0 %v6444, 16
    %v6546 = vpop.permute.xlu0 %6545
    %6547 = vrot.lane.b32.xlu0 %v6446, 16
    %v6548 = vpop.permute.xlu0 %6547
    %6549 = vrot.lane.b32.xlu0 %v6449, 16
    %v6550 = vpop.permute.xlu0 %6549
    %6551 = vrot.lane.b32.xlu0 %v6451, 16
    %v6552 = vpop.permute.xlu0 %6551
    %6553 = vrot.lane.b32.xlu0 %v6454, 16
    %v6554 = vpop.permute.xlu0 %6553
    %6555 = vrot.lane.b32.xlu0 %v6456, 16
    %v6556 = vpop.permute.xlu0 %6555
    %6557 = vrot.lane.b32.xlu0 %v6459, 16
    %v6558 = vpop.permute.xlu0 %6557
    %6559 = vrot.lane.b32.xlu0 %v6461, 16
    %v6560 = vpop.permute.xlu0 %6559
    %6561 = vrot.lane.b32.xlu0 %v6510, 16
    %v6562 = vpop.permute.xlu0 %6561
    %6563 = vrot.lane.b32.xlu0 %v6512, 16
    %v6564 = vpop.permute.xlu0 %6563
    %6565 = vrot.lane.b32.xlu0 %v6515, 16
    %v6566 = vpop.permute.xlu0 %6565
    %6567 = vrot.lane.b32.xlu0 %v6517, 16
    %v6568 = vpop.permute.xlu0 %6567
    %6569 = vrot.lane.b32.xlu0 %v6520, 16
    %v6570 = vpop.permute.xlu0 %6569
    %6571 = vrot.lane.b32.xlu0 %v6522, 16
    %v6572 = vpop.permute.xlu0 %6571
    %6573 = vrot.lane.b32.xlu0 %v6525, 16
    %v6574 = vpop.permute.xlu0 %6573
    %6575 = vrot.lane.b32.xlu0 %v6527, 16
    %v6576 = vpop.permute.xlu0 %6575
    %v6593 = vsel %vm291, %v6009, %v6546
    %v6594 = vsel %vm291, %v6011, %v6548
    %v6595 = vsel %vm291, %v6014, %v6550
    %v6596 = vsel %vm291, %v6016, %v6552
    %v6597 = vsel %vm291, %v6019, %v6554
    %v6598 = vsel %vm291, %v6021, %v6556
    %v6599 = vsel %vm291, %v6024, %v6558
    %v6600 = vsel %vm291, %v6026, %v6560
    %v6601 = vsel %vm291, %v6078, %v6562
    %v6602 = vsel %vm291, %v6080, %v6564
    %v6603 = vsel %vm291, %v6083, %v6566
    %v6604 = vsel %vm291, %v6085, %v6568
    %v6605 = vsel %vm291, %v6088, %v6570
    %v6606 = vsel %vm291, %v6090, %v6572
    %v6607 = vsel %vm291, %v6093, %v6574
    %v6608 = vsel %vm291, %v6095, %v6576
    %s6609 = scalar_lea.vmem %s7, 48
    %v6610 = vld [vmem:[%s6609] sm:$0xf]
    %v6611 = vld [vmem:[%s6609 + $0x4] sm:$0xf]
    %v6612 = vld [vmem:[%s6609 + $0x8] sm:$0xf]
    %v6613 = vld [vmem:[%s6609 + $0xc] sm:$0xf]
    %v6614 = vpack.c.bf16 %v6594, %v6593
    %v6615 = vpack.c.bf16 %v6596, %v6595
    %v6616 = vpack.c.bf16 %v6598, %v6597
    %v6617 = vpack.c.bf16 %v6600, %v6599
    %v6618 = vpack.c.bf16 %v6602, %v6601
    %v6619 = vpack.c.bf16 %v6604, %v6603
    %v6620 = vpack.c.bf16 %v6606, %v6605
    %v6621 = vpack.c.bf16 %v6608, %v6607
    %v6626 = vunpack.c.l.b16 %v6610
    %v6627 = vunpack.c.l.b16 %v6611
    %v6628 = vunpack.c.l.b16 %v6612
    %v6629 = vunpack.c.l.b16 %v6613
    %v6630 = vpack.c.b16 %v6627, %v6626
    %v6631 = vpack.c.b16 %v6629, %v6628
    %v6635 = vsel %vm877, %v6614, 0
    %v6638 = vsel %vm877, %v6615, 0
    %v6641 = vsel %vm877, %v6616, 0
    %v6644 = vsel %vm877, %v6617, 0
    %v6647 = vsel %vm877, %v6618, 0
    %v6650 = vsel %vm877, %v6619, 0
    %v6653 = vsel %vm877, %v6620, 0
    %v6656 = vsel %vm877, %v6621, 0
    %6658 = vmatpush.bf16.msra.mxu0 0
    %6659 = vmatpush.bf16.msra.mxu0 0
    %6660 = vmatpush.bf16.msra.mxu0 0
    %6661 = vmatpush.bf16.msra.mxu0 0
    %6662 = vmatpush.bf16.msra.mxu0 0
    %6663 = vmatpush.bf16.msra.mxu0 0
    %6664 = vmatpush.bf16.msra.mxu0 %v6631
    %6665 = vmatpush.bf16.msra.mxu0 %v6630
    %6666 = vmatmul.bf16.gmra.mxu0 %v6635
    %v6667 = vpop.f32.mrf.mxu0
    %v6668 = vadd.f32 0.0, %v6667
    %v6669 = vpop.f32.mrf.mxu0
    %v6670 = vadd.f32 0.0, %v6669
    %6671 = vmatmul.bf16.gmra.mxu0 %v6638
    %v6672 = vpop.f32.mrf.mxu0
    %v6673 = vadd.f32 0.0, %v6672
    %v6674 = vpop.f32.mrf.mxu0
    %v6675 = vadd.f32 0.0, %v6674
    %6676 = vmatmul.bf16.gmra.mxu0 %v6641
    %v6677 = vpop.f32.mrf.mxu0
    %v6678 = vadd.f32 0.0, %v6677
    %v6679 = vpop.f32.mrf.mxu0
    %v6680 = vadd.f32 0.0, %v6679
    %6681 = vmatmul.bf16.gmra.mxu0 %v6644
    %v6682 = vpop.f32.mrf.mxu0
    %v6683 = vadd.f32 0.0, %v6682
    %v6684 = vpop.f32.mrf.mxu0
    %v6685 = vadd.f32 0.0, %v6684
    %6686 = vmatmul.bf16.gmra.mxu0 %v6647
    %v6687 = vpop.f32.mrf.mxu0
    %v6688 = vadd.f32 0.0, %v6687
    %v6689 = vpop.f32.mrf.mxu0
    %v6690 = vadd.f32 0.0, %v6689
    %6691 = vmatmul.bf16.gmra.mxu0 %v6650
    %v6692 = vpop.f32.mrf.mxu0
    %v6693 = vadd.f32 0.0, %v6692
    %v6694 = vpop.f32.mrf.mxu0
    %v6695 = vadd.f32 0.0, %v6694
    %6696 = vmatmul.bf16.gmra.mxu0 %v6653
    %v6697 = vpop.f32.mrf.mxu0
    %v6698 = vadd.f32 0.0, %v6697
    %v6699 = vpop.f32.mrf.mxu0
    %v6700 = vadd.f32 0.0, %v6699
    %6701 = vmatmul.bf16.gmra.mxu0 %v6656
    %v6702 = vpop.f32.mrf.mxu0
    %v6703 = vadd.f32 0.0, %v6702
    %v6704 = vpop.f32.mrf.mxu0
    %v6705 = vadd.f32 0.0, %v6704
    %6706 = vdwg.mxu0
    %v6707 = vadd.f32 %v4988, %v6668
    %v6708 = vadd.f32 %v4989, %v6670
    %v6709 = vadd.f32 %v4990, %v6673
    %v6710 = vadd.f32 %v4991, %v6675
    %v6711 = vadd.f32 %v4992, %v6678
    %v6712 = vadd.f32 %v4993, %v6680
    %v6713 = vadd.f32 %v4994, %v6683
    %v6714 = vadd.f32 %v4995, %v6685
    %v6715 = vadd.f32 %v4996, %v6688
    %v6716 = vadd.f32 %v4997, %v6690
    %v6717 = vadd.f32 %v4998, %v6693
    %v6718 = vadd.f32 %v4999, %v6695
    %v6719 = vadd.f32 %v5000, %v6698
    %v6720 = vadd.f32 %v5001, %v6700
    %v6721 = vadd.f32 %v5002, %v6703
    %v6722 = vadd.f32 %v5003, %v6705
    %s6723 = scalar_lea.vmem [#allocation11], 3
    %v6724 = vld [vmem:[%s6723] sm:$0x1]
    %v6725 = vsel %vm877, %v6707, 0.0
    %6726 = vadd.xlane.f32.xlu0 %v6725
    %v6727 = vpop.xlane.xlu0 %6726
    %v6728 = vsel %vm877, %v6708, 0.0
    %6729 = vadd.xlane.f32.xlu0 %v6728
    %v6730 = vpop.xlane.xlu0 %6729
    %v6731 = vsel %vm877, %v6709, 0.0
    %6732 = vadd.xlane.f32.xlu0 %v6731
    %v6733 = vpop.xlane.xlu0 %6732
    %v6734 = vsel %vm877, %v6710, 0.0
    %6735 = vadd.xlane.f32.xlu0 %v6734
    %v6736 = vpop.xlane.xlu0 %6735
    %v6737 = vsel %vm877, %v6711, 0.0
    %6738 = vadd.xlane.f32.xlu0 %v6737
    %v6739 = vpop.xlane.xlu0 %6738
    %v6740 = vsel %vm877, %v6712, 0.0
    %6741 = vadd.xlane.f32.xlu0 %v6740
    %v6742 = vpop.xlane.xlu0 %6741
    %v6743 = vsel %vm877, %v6713, 0.0
    %6744 = vadd.xlane.f32.xlu0 %v6743
    %v6745 = vpop.xlane.xlu0 %6744
    %v6746 = vsel %vm877, %v6714, 0.0
    %6747 = vadd.xlane.f32.xlu0 %v6746
    %v6748 = vpop.xlane.xlu0 %6747
    %v6749 = vsel %vm877, %v6715, 0.0
    %6750 = vadd.xlane.f32.xlu0 %v6749
    %v6751 = vpop.xlane.xlu0 %6750
    %v6752 = vsel %vm877, %v6716, 0.0
    %6753 = vadd.xlane.f32.xlu0 %v6752
    %v6754 = vpop.xlane.xlu0 %6753
    %v6755 = vsel %vm877, %v6717, 0.0
    %6756 = vadd.xlane.f32.xlu0 %v6755
    %v6757 = vpop.xlane.xlu0 %6756
    %v6758 = vsel %vm877, %v6718, 0.0
    %6759 = vadd.xlane.f32.xlu0 %v6758
    %v6760 = vpop.xlane.xlu0 %6759
    %v6761 = vsel %vm877, %v6719, 0.0
    %6762 = vadd.xlane.f32.xlu0 %v6761
    %v6763 = vpop.xlane.xlu0 %6762
    %v6764 = vsel %vm877, %v6720, 0.0
    %6765 = vadd.xlane.f32.xlu0 %v6764
    %v6766 = vpop.xlane.xlu0 %6765
    %v6767 = vsel %vm877, %v6721, 0.0
    %6768 = vadd.xlane.f32.xlu0 %v6767
    %v6769 = vpop.xlane.xlu0 %6768
    %v6770 = vsel %vm877, %v6722, 0.0
    %6771 = vadd.xlane.f32.xlu0 %v6770
    %v6772 = vpop.xlane.xlu0 %6771
    %v6773 = vmul.f32 %v6727, %v890
    %v6774 = vmul.f32 %v6730, %v890
    %v6775 = vmul.f32 %v6733, %v890
    %v6776 = vmul.f32 %v6736, %v890
    %v6777 = vmul.f32 %v6739, %v890
    %v6778 = vmul.f32 %v6742, %v890
    %v6779 = vmul.f32 %v6745, %v890
    %v6780 = vmul.f32 %v6748, %v890
    %v6781 = vmul.f32 %v6751, %v890
    %v6782 = vmul.f32 %v6754, %v890
    %v6783 = vmul.f32 %v6757, %v890
    %v6784 = vmul.f32 %v6760, %v890
    %v6785 = vmul.f32 %v6763, %v890
    %v6786 = vmul.f32 %v6766, %v890
    %v6787 = vmul.f32 %v6769, %v890
    %v6788 = vmul.f32 %v6772, %v890
    %v6789 = vsub.f32 %v6707, %v6773
    %v6790 = vsub.f32 %v6708, %v6774
    %v6791 = vsub.f32 %v6709, %v6775
    %v6792 = vsub.f32 %v6710, %v6776
    %v6793 = vsub.f32 %v6711, %v6777
    %v6794 = vsub.f32 %v6712, %v6778
    %v6795 = vsub.f32 %v6713, %v6779
    %v6796 = vsub.f32 %v6714, %v6780
    %v6797 = vsub.f32 %v6715, %v6781
    %v6798 = vsub.f32 %v6716, %v6782
    %v6799 = vsub.f32 %v6717, %v6783
    %v6800 = vsub.f32 %v6718, %v6784
    %v6801 = vsub.f32 %v6719, %v6785
    %v6802 = vsub.f32 %v6720, %v6786
    %v6803 = vsub.f32 %v6721, %v6787
    %v6804 = vsub.f32 %v6722, %v6788
    %v6805 = vmul.f32 %v6789, %v6789
    %v6806 = vmul.f32 %v6790, %v6790
    %v6807 = vmul.f32 %v6791, %v6791
    %v6808 = vmul.f32 %v6792, %v6792
    %v6809 = vmul.f32 %v6793, %v6793
    %v6810 = vmul.f32 %v6794, %v6794
    %v6811 = vmul.f32 %v6795, %v6795
    %v6812 = vmul.f32 %v6796, %v6796
    %v6813 = vmul.f32 %v6797, %v6797
    %v6814 = vmul.f32 %v6798, %v6798
    %v6815 = vmul.f32 %v6799, %v6799
    %v6816 = vmul.f32 %v6800, %v6800
    %v6817 = vmul.f32 %v6801, %v6801
    %v6818 = vmul.f32 %v6802, %v6802
    %v6819 = vmul.f32 %v6803, %v6803
    %v6820 = vmul.f32 %v6804, %v6804
    %v6821 = vsel %vm877, %v6805, 0.0
    %6822 = vadd.xlane.f32.xlu0 %v6821
    %v6823 = vpop.xlane.xlu0 %6822
    %v6824 = vsel %vm877, %v6806, 0.0
    %6825 = vadd.xlane.f32.xlu0 %v6824
    %v6826 = vpop.xlane.xlu0 %6825
    %v6827 = vsel %vm877, %v6807, 0.0
    %6828 = vadd.xlane.f32.xlu0 %v6827
    %v6829 = vpop.xlane.xlu0 %6828
    %v6830 = vsel %vm877, %v6808, 0.0
    %6831 = vadd.xlane.f32.xlu0 %v6830
    %v6832 = vpop.xlane.xlu0 %6831
    %v6833 = vsel %vm877, %v6809, 0.0
    %6834 = vadd.xlane.f32.xlu0 %v6833
    %v6835 = vpop.xlane.xlu0 %6834
    %v6836 = vsel %vm877, %v6810, 0.0
    %6837 = vadd.xlane.f32.xlu0 %v6836
    %v6838 = vpop.xlane.xlu0 %6837
    %v6839 = vsel %vm877, %v6811, 0.0
    %6840 = vadd.xlane.f32.xlu0 %v6839
    %v6841 = vpop.xlane.xlu0 %6840
    %v6842 = vsel %vm877, %v6812, 0.0
    %6843 = vadd.xlane.f32.xlu0 %v6842
    %v6844 = vpop.xlane.xlu0 %6843
    %v6845 = vsel %vm877, %v6813, 0.0
    %6846 = vadd.xlane.f32.xlu0 %v6845
    %v6847 = vpop.xlane.xlu0 %6846
    %v6848 = vsel %vm877, %v6814, 0.0
    %6849 = vadd.xlane.f32.xlu0 %v6848
    %v6850 = vpop.xlane.xlu0 %6849
    %v6851 = vsel %vm877, %v6815, 0.0
    %6852 = vadd.xlane.f32.xlu0 %v6851
    %v6853 = vpop.xlane.xlu0 %6852
    %v6854 = vsel %vm877, %v6816, 0.0
    %6855 = vadd.xlane.f32.xlu0 %v6854
    %v6856 = vpop.xlane.xlu0 %6855
    %v6857 = vsel %vm877, %v6817, 0.0
    %6858 = vadd.xlane.f32.xlu0 %v6857
    %v6859 = vpop.xlane.xlu0 %6858
    %v6860 = vsel %vm877, %v6818, 0.0
    %6861 = vadd.xlane.f32.xlu0 %v6860
    %v6862 = vpop.xlane.xlu0 %6861
    %v6863 = vsel %vm877, %v6819, 0.0
    %6864 = vadd.xlane.f32.xlu0 %v6863
    %v6865 = vpop.xlane.xlu0 %6864
    %v6866 = vsel %vm877, %v6820, 0.0
    %6867 = vadd.xlane.f32.xlu0 %v6866
    %v6868 = vpop.xlane.xlu0 %6867
    %v6869 = vmul.f32 %v6823, %v890
    %v6870 = vmul.f32 %v6826, %v890
    %v6871 = vmul.f32 %v6829, %v890
    %v6872 = vmul.f32 %v6832, %v890
    %v6873 = vmul.f32 %v6835, %v890
    %v6874 = vmul.f32 %v6838, %v890
    %v6875 = vmul.f32 %v6841, %v890
    %v6876 = vmul.f32 %v6844, %v890
    %v6877 = vmul.f32 %v6847, %v890
    %v6878 = vmul.f32 %v6850, %v890
    %v6879 = vmul.f32 %v6853, %v890
    %v6880 = vmul.f32 %v6856, %v890
    %v6881 = vmul.f32 %v6859, %v890
    %v6882 = vmul.f32 %v6862, %v890
    %v6883 = vmul.f32 %v6865, %v890
    %v6884 = vmul.f32 %v6868, %v890
    %v6885 = vadd.f32 %v6869, 1e-05
    %v6886 = vadd.f32 %v6870, 1e-05
    %v6887 = vadd.f32 %v6871, 1e-05
    %v6888 = vadd.f32 %v6872, 1e-05
    %v6889 = vadd.f32 %v6873, 1e-05
    %v6890 = vadd.f32 %v6874, 1e-05
    %v6891 = vadd.f32 %v6875, 1e-05
    %v6892 = vadd.f32 %v6876, 1e-05
    %v6893 = vadd.f32 %v6877, 1e-05
    %v6894 = vadd.f32 %v6878, 1e-05
    %v6895 = vadd.f32 %v6879, 1e-05
    %v6896 = vadd.f32 %v6880, 1e-05
    %v6897 = vadd.f32 %v6881, 1e-05
    %v6898 = vadd.f32 %v6882, 1e-05
    %v6899 = vadd.f32 %v6883, 1e-05
    %v6900 = vadd.f32 %v6884, 1e-05
    %v6901 = vrsqrt.pop %v6885
    %v6902 = vmul.f32 %v6901, %v6885
    %v6903 = vmul.f32 %v6902, %v6901
    %v6904 = vmul.f32 0.5, %v6903
    %v6905 = vsub.f32 1.5, %v6904
    %v6906 = vmul.f32 %v6901, %v6905
    %vm6907 = vweird.f32 %v6885
    %vm6908 = vweird.f32 %v6901
    %vm6909 = vmor %vm6907, %vm6908
    %v6910 = vsel %vm6909, %v6901, %v6906
    %v6911 = vrsqrt.pop %v6886
    %v6912 = vmul.f32 %v6911, %v6886
    %v6913 = vmul.f32 %v6912, %v6911
    %v6914 = vmul.f32 0.5, %v6913
    %v6915 = vsub.f32 1.5, %v6914
    %v6916 = vmul.f32 %v6911, %v6915
    %vm6917 = vweird.f32 %v6886
    %vm6918 = vweird.f32 %v6911
    %vm6919 = vmor %vm6917, %vm6918
    %v6920 = vsel %vm6919, %v6911, %v6916
    %v6921 = vrsqrt.pop %v6887
    %v6922 = vmul.f32 %v6921, %v6887
    %v6923 = vmul.f32 %v6922, %v6921
    %v6924 = vmul.f32 0.5, %v6923
    %v6925 = vsub.f32 1.5, %v6924
    %v6926 = vmul.f32 %v6921, %v6925
    %vm6927 = vweird.f32 %v6887
    %vm6928 = vweird.f32 %v6921
    %vm6929 = vmor %vm6927, %vm6928
    %v6930 = vsel %vm6929, %v6921, %v6926
    %v6931 = vrsqrt.pop %v6888
    %v6932 = vmul.f32 %v6931, %v6888
    %v6933 = vmul.f32 %v6932, %v6931
    %v6934 = vmul.f32 0.5, %v6933
    %v6935 = vsub.f32 1.5, %v6934
    %v6936 = vmul.f32 %v6931, %v6935
    %vm6937 = vweird.f32 %v6888
    %vm6938 = vweird.f32 %v6931
    %vm6939 = vmor %vm6937, %vm6938
    %v6940 = vsel %vm6939, %v6931, %v6936
    %v6941 = vrsqrt.pop %v6889
    %v6942 = vmul.f32 %v6941, %v6889
    %v6943 = vmul.f32 %v6942, %v6941
    %v6944 = vmul.f32 0.5, %v6943
    %v6945 = vsub.f32 1.5, %v6944
    %v6946 = vmul.f32 %v6941, %v6945
    %vm6947 = vweird.f32 %v6889
    %vm6948 = vweird.f32 %v6941
    %vm6949 = vmor %vm6947, %vm6948
    %v6950 = vsel %vm6949, %v6941, %v6946
    %v6951 = vrsqrt.pop %v6890
    %v6952 = vmul.f32 %v6951, %v6890
    %v6953 = vmul.f32 %v6952, %v6951
    %v6954 = vmul.f32 0.5, %v6953
    %v6955 = vsub.f32 1.5, %v6954
    %v6956 = vmul.f32 %v6951, %v6955
    %vm6957 = vweird.f32 %v6890
    %vm6958 = vweird.f32 %v6951
    %vm6959 = vmor %vm6957, %vm6958
    %v6960 = vsel %vm6959, %v6951, %v6956
    %v6961 = vrsqrt.pop %v6891
    %v6962 = vmul.f32 %v6961, %v6891
    %v6963 = vmul.f32 %v6962, %v6961
    %v6964 = vmul.f32 0.5, %v6963
    %v6965 = vsub.f32 1.5, %v6964
    %v6966 = vmul.f32 %v6961, %v6965
    %vm6967 = vweird.f32 %v6891
    %vm6968 = vweird.f32 %v6961
    %vm6969 = vmor %vm6967, %vm6968
    %v6970 = vsel %vm6969, %v6961, %v6966
    %v6971 = vrsqrt.pop %v6892
    %v6972 = vmul.f32 %v6971, %v6892
    %v6973 = vmul.f32 %v6972, %v6971
    %v6974 = vmul.f32 0.5, %v6973
    %v6975 = vsub.f32 1.5, %v6974
    %v6976 = vmul.f32 %v6971, %v6975
    %vm6977 = vweird.f32 %v6892
    %vm6978 = vweird.f32 %v6971
    %vm6979 = vmor %vm6977, %vm6978
    %v6980 = vsel %vm6979, %v6971, %v6976
    %v6981 = vrsqrt.pop %v6893
    %v6982 = vmul.f32 %v6981, %v6893
    %v6983 = vmul.f32 %v6982, %v6981
    %v6984 = vmul.f32 0.5, %v6983
    %v6985 = vsub.f32 1.5, %v6984
    %v6986 = vmul.f32 %v6981, %v6985
    %vm6987 = vweird.f32 %v6893
    %vm6988 = vweird.f32 %v6981
    %vm6989 = vmor %vm6987, %vm6988
    %v6990 = vsel %vm6989, %v6981, %v6986
    %v6991 = vrsqrt.pop %v6894
    %v6992 = vmul.f32 %v6991, %v6894
    %v6993 = vmul.f32 %v6992, %v6991
    %v6994 = vmul.f32 0.5, %v6993
    %v6995 = vsub.f32 1.5, %v6994
    %v6996 = vmul.f32 %v6991, %v6995
    %vm6997 = vweird.f32 %v6894
    %vm6998 = vweird.f32 %v6991
    %vm6999 = vmor %vm6997, %vm6998
    %v7000 = vsel %vm6999, %v6991, %v6996
    %v7001 = vrsqrt.pop %v6895
    %v7002 = vmul.f32 %v7001, %v6895
    %v7003 = vmul.f32 %v7002, %v7001
    %v7004 = vmul.f32 0.5, %v7003
    %v7005 = vsub.f32 1.5, %v7004
    %v7006 = vmul.f32 %v7001, %v7005
    %vm7007 = vweird.f32 %v6895
    %vm7008 = vweird.f32 %v7001
    %vm7009 = vmor %vm7007, %vm7008
    %v7010 = vsel %vm7009, %v7001, %v7006
    %v7011 = vrsqrt.pop %v6896
    %v7012 = vmul.f32 %v7011, %v6896
    %v7013 = vmul.f32 %v7012, %v7011
    %v7014 = vmul.f32 0.5, %v7013
    %v7015 = vsub.f32 1.5, %v7014
    %v7016 = vmul.f32 %v7011, %v7015
    %vm7017 = vweird.f32 %v6896
    %vm7018 = vweird.f32 %v7011
    %vm7019 = vmor %vm7017, %vm7018
    %v7020 = vsel %vm7019, %v7011, %v7016
    %v7021 = vrsqrt.pop %v6897
    %v7022 = vmul.f32 %v7021, %v6897
    %v7023 = vmul.f32 %v7022, %v7021
    %v7024 = vmul.f32 0.5, %v7023
    %v7025 = vsub.f32 1.5, %v7024
    %v7026 = vmul.f32 %v7021, %v7025
    %vm7027 = vweird.f32 %v6897
    %vm7028 = vweird.f32 %v7021
    %vm7029 = vmor %vm7027, %vm7028
    %v7030 = vsel %vm7029, %v7021, %v7026
    %v7031 = vrsqrt.pop %v6898
    %v7032 = vmul.f32 %v7031, %v6898
    %v7033 = vmul.f32 %v7032, %v7031
    %v7034 = vmul.f32 0.5, %v7033
    %v7035 = vsub.f32 1.5, %v7034
    %v7036 = vmul.f32 %v7031, %v7035
    %vm7037 = vweird.f32 %v6898
    %vm7038 = vweird.f32 %v7031
    %vm7039 = vmor %vm7037, %vm7038
    %v7040 = vsel %vm7039, %v7031, %v7036
    %v7041 = vrsqrt.pop %v6899
    %v7042 = vmul.f32 %v7041, %v6899
    %v7043 = vmul.f32 %v7042, %v7041
    %v7044 = vmul.f32 0.5, %v7043
    %v7045 = vsub.f32 1.5, %v7044
    %v7046 = vmul.f32 %v7041, %v7045
    %vm7047 = vweird.f32 %v6899
    %vm7048 = vweird.f32 %v7041
    %vm7049 = vmor %vm7047, %vm7048
    %v7050 = vsel %vm7049, %v7041, %v7046
    %v7051 = vrsqrt.pop %v6900
    %v7052 = vmul.f32 %v7051, %v6900
    %v7053 = vmul.f32 %v7052, %v7051
    %v7054 = vmul.f32 0.5, %v7053
    %v7055 = vsub.f32 1.5, %v7054
    %v7056 = vmul.f32 %v7051, %v7055
    %vm7057 = vweird.f32 %v6900
    %vm7058 = vweird.f32 %v7051
    %vm7059 = vmor %vm7057, %vm7058
    %v7060 = vsel %vm7059, %v7051, %v7056
    %v7061 = vmul.f32 %v6789, %v6910
    %v7062 = vmul.f32 %v6790, %v6920
    %v7063 = vmul.f32 %v6791, %v6930
    %v7064 = vmul.f32 %v6792, %v6940
    %v7065 = vmul.f32 %v6793, %v6950
    %v7066 = vmul.f32 %v6794, %v6960
    %v7067 = vmul.f32 %v6795, %v6970
    %v7068 = vmul.f32 %v6796, %v6980
    %v7069 = vmul.f32 %v6797, %v6990
    %v7070 = vmul.f32 %v6798, %v7000
    %v7071 = vmul.f32 %v6799, %v7010
    %v7072 = vmul.f32 %v6800, %v7020
    %v7073 = vmul.f32 %v6801, %v7030
    %v7074 = vmul.f32 %v6802, %v7040
    %v7075 = vmul.f32 %v6803, %v7050
    %v7076 = vmul.f32 %v6804, %v7060
    %v7078 = vperm.slane %v6724, 0
    %v7080 = vmul.f32 %v7061, %v7078
    %v7081 = vmul.f32 %v7062, %v7078
    %v7082 = vmul.f32 %v7063, %v7078
    %v7083 = vmul.f32 %v7064, %v7078
    %v7084 = vmul.f32 %v7065, %v7078
    %v7085 = vmul.f32 %v7066, %v7078
    %v7086 = vmul.f32 %v7067, %v7078
    %v7087 = vmul.f32 %v7068, %v7078
    %v7088 = vmul.f32 %v7069, %v7078
    %v7089 = vmul.f32 %v7070, %v7078
    %v7090 = vmul.f32 %v7071, %v7078
    %v7091 = vmul.f32 %v7072, %v7078
    %v7092 = vmul.f32 %v7073, %v7078
    %v7093 = vmul.f32 %v7074, %v7078
    %v7094 = vmul.f32 %v7075, %v7078
    %v7095 = vmul.f32 %v7076, %v7078
    %v7097 = vrot.slane %v344, 1
    %v7099 = vadd.f32 %v344, 1.0
    %v7100 = vadd.f32 %v7097, 1.0
    %v7103 = vperm.slane %v7099, 0
    %v7104 = vperm.slane %v7100, 0
    %v7107 = vmul.f32 %v7080, %v7103
    %v7108 = vmul.f32 %v7081, %v7103
    %v7109 = vmul.f32 %v7082, %v7103
    %v7110 = vmul.f32 %v7083, %v7103
    %v7111 = vmul.f32 %v7084, %v7103
    %v7112 = vmul.f32 %v7085, %v7103
    %v7113 = vmul.f32 %v7086, %v7103
    %v7114 = vmul.f32 %v7087, %v7103
    %v7115 = vmul.f32 %v7088, %v7104
    %v7116 = vmul.f32 %v7089, %v7104
    %v7117 = vmul.f32 %v7090, %v7104
    %v7118 = vmul.f32 %v7091, %v7104
    %v7119 = vmul.f32 %v7092, %v7104
    %v7120 = vmul.f32 %v7093, %v7104
    %v7121 = vmul.f32 %v7094, %v7104
    %v7122 = vmul.f32 %v7095, %v7104
    %v7123 = vperm.slane %v344, 0
    %v7124 = vperm.slane %v7097, 0
    %7125 = vrot.lane.b32.xlu0 %v7123, 96
    %v7126 = vpop.permute.xlu0 %7125
    %7127 = vrot.lane.b32.xlu0 %v7124, 96
    %v7128 = vpop.permute.xlu0 %7127
    %v7131 = vadd.f32 %v7107, %v7126
    %v7132 = vadd.f32 %v7108, %v7126
    %v7133 = vadd.f32 %v7109, %v7126
    %v7134 = vadd.f32 %v7110, %v7126
    %v7135 = vadd.f32 %v7111, %v7126
    %v7136 = vadd.f32 %v7112, %v7126
    %v7137 = vadd.f32 %v7113, %v7126
    %v7138 = vadd.f32 %v7114, %v7126
    %v7139 = vadd.f32 %v7115, %v7128
    %v7140 = vadd.f32 %v7116, %v7128
    %v7141 = vadd.f32 %v7117, %v7128
    %v7142 = vadd.f32 %v7118, %v7128
    %v7143 = vadd.f32 %v7119, %v7128
    %v7144 = vadd.f32 %v7120, %v7128
    %v7145 = vadd.f32 %v7121, %v7128
    %v7146 = vadd.f32 %v7122, %v7128
    %s7147 = scalar_lea.vmem %s9, 48
    %v7148 = vld [vmem:[%s7147] sm:$0xf]
    %v7149 = vld [vmem:[%s7147 + $0x4] sm:$0xf]
    %v7150 = vld [vmem:[%s7147 + $0x8] sm:$0xf]
    %v7151 = vld [vmem:[%s7147 + $0xc] sm:$0xf]
    %v7152 = vpack.c.bf16 %v7132, %v7131
    %v7153 = vpack.c.bf16 %v7134, %v7133
    %v7154 = vpack.c.bf16 %v7136, %v7135
    %v7155 = vpack.c.bf16 %v7138, %v7137
    %v7156 = vpack.c.bf16 %v7140, %v7139
    %v7157 = vpack.c.bf16 %v7142, %v7141
    %v7158 = vpack.c.bf16 %v7144, %v7143
    %v7159 = vpack.c.bf16 %v7146, %v7145
    %s7160 = scalar_lea.vmem [#allocation13], 3
    %v7161 = vld [vmem:[%s7160] sm:$0x1]
    %v7163 = vperm.slane %v7161, 0
    %v7169 = vunpack.c.l.b16 %v7148
    %v7170 = vunpack.c.l.b16 %v7149
    %v7171 = vunpack.c.l.b16 %v7150
    %v7172 = vunpack.c.l.b16 %v7151
    %v7173 = vpack.c.b16 %v7170, %v7169
    %v7174 = vpack.c.b16 %v7172, %v7171
    %v7178 = vsel %vm877, %v7152, 0
    %v7181 = vsel %vm877, %v7153, 0
    %v7184 = vsel %vm877, %v7154, 0
    %v7187 = vsel %vm877, %v7155, 0
    %v7190 = vsel %vm877, %v7156, 0
    %v7193 = vsel %vm877, %v7157, 0
    %v7196 = vsel %vm877, %v7158, 0
    %v7199 = vsel %vm877, %v7159, 0
    %7201 = vmatpush.bf16.msra.mxu0 0
    %7202 = vmatpush.bf16.msra.mxu0 0
    %7203 = vmatpush.bf16.msra.mxu0 0
    %7204 = vmatpush.bf16.msra.mxu0 0
    %7205 = vmatpush.bf16.msra.mxu0 0
    %7206 = vmatpush.bf16.msra.mxu0 0
    %7207 = vmatpush.bf16.msra.mxu0 %v7174
    %7208 = vmatpush.bf16.msra.mxu0 %v7173
    %7209 = vmatmul.bf16.gmra.mxu0 %v7178
    %v7210 = vpop.f32.mrf.mxu0
    %v7211 = vadd.f32 %v7163, %v7210
    %v7212 = vpop.f32.mrf.mxu0
    %v7213 = vadd.f32 %v7163, %v7212
    %7214 = vmatmul.bf16.gmra.mxu0 %v7181
    %v7215 = vpop.f32.mrf.mxu0
    %v7216 = vadd.f32 %v7163, %v7215
    %v7217 = vpop.f32.mrf.mxu0
    %v7218 = vadd.f32 %v7163, %v7217
    %7219 = vmatmul.bf16.gmra.mxu0 %v7184
    %v7220 = vpop.f32.mrf.mxu0
    %v7221 = vadd.f32 %v7163, %v7220
    %v7222 = vpop.f32.mrf.mxu0
    %v7223 = vadd.f32 %v7163, %v7222
    %7224 = vmatmul.bf16.gmra.mxu0 %v7187
    %v7225 = vpop.f32.mrf.mxu0
    %v7226 = vadd.f32 %v7163, %v7225
    %v7227 = vpop.f32.mrf.mxu0
    %v7228 = vadd.f32 %v7163, %v7227
    %7229 = vmatmul.bf16.gmra.mxu0 %v7190
    %v7230 = vpop.f32.mrf.mxu0
    %v7231 = vadd.f32 %v7163, %v7230
    %v7232 = vpop.f32.mrf.mxu0
    %v7233 = vadd.f32 %v7163, %v7232
    %7234 = vmatmul.bf16.gmra.mxu0 %v7193
    %v7235 = vpop.f32.mrf.mxu0
    %v7236 = vadd.f32 %v7163, %v7235
    %v7237 = vpop.f32.mrf.mxu0
    %v7238 = vadd.f32 %v7163, %v7237
    %7239 = vmatmul.bf16.gmra.mxu0 %v7196
    %v7240 = vpop.f32.mrf.mxu0
    %v7241 = vadd.f32 %v7163, %v7240
    %v7242 = vpop.f32.mrf.mxu0
    %v7243 = vadd.f32 %v7163, %v7242
    %7244 = vmatmul.bf16.gmra.mxu0 %v7199
    %v7245 = vpop.f32.mrf.mxu0
    %v7246 = vadd.f32 %v7163, %v7245
    %v7247 = vpop.f32.mrf.mxu0
    %v7248 = vadd.f32 %v7163, %v7247
    %7249 = vdwg.mxu0
    %v7250 = vmul.f32 %v7211, %v7211
    %v7251 = vmul.f32 %v7213, %v7213
    %v7252 = vmul.f32 %v7216, %v7216
    %v7253 = vmul.f32 %v7218, %v7218
    %v7254 = vmul.f32 %v7221, %v7221
    %v7255 = vmul.f32 %v7223, %v7223
    %v7256 = vmul.f32 %v7226, %v7226
    %v7257 = vmul.f32 %v7228, %v7228
    %v7258 = vmul.f32 %v7231, %v7231
    %v7259 = vmul.f32 %v7233, %v7233
    %v7260 = vmul.f32 %v7236, %v7236
    %v7261 = vmul.f32 %v7238, %v7238
    %v7262 = vmul.f32 %v7241, %v7241
    %v7263 = vmul.f32 %v7243, %v7243
    %v7264 = vmul.f32 %v7246, %v7246
    %v7265 = vmul.f32 %v7248, %v7248
    %v7266 = vmul.f32 %v7211, %v7250
    %v7267 = vmul.f32 %v7213, %v7251
    %v7268 = vmul.f32 %v7216, %v7252
    %v7269 = vmul.f32 %v7218, %v7253
    %v7270 = vmul.f32 %v7221, %v7254
    %v7271 = vmul.f32 %v7223, %v7255
    %v7272 = vmul.f32 %v7226, %v7256
    %v7273 = vmul.f32 %v7228, %v7257
    %v7274 = vmul.f32 %v7231, %v7258
    %v7275 = vmul.f32 %v7233, %v7259
    %v7276 = vmul.f32 %v7236, %v7260
    %v7277 = vmul.f32 %v7238, %v7261
    %v7278 = vmul.f32 %v7241, %v7262
    %v7279 = vmul.f32 %v7243, %v7263
    %v7280 = vmul.f32 %v7246, %v7264
    %v7281 = vmul.f32 %v7248, %v7265
    %v7282 = vmul.f32 %v7266, 0.044715
    %v7283 = vmul.f32 %v7267, 0.044715
    %v7284 = vmul.f32 %v7268, 0.044715
    %v7285 = vmul.f32 %v7269, 0.044715
    %v7286 = vmul.f32 %v7270, 0.044715
    %v7287 = vmul.f32 %v7271, 0.044715
    %v7288 = vmul.f32 %v7272, 0.044715
    %v7289 = vmul.f32 %v7273, 0.044715
    %v7290 = vmul.f32 %v7274, 0.044715
    %v7291 = vmul.f32 %v7275, 0.044715
    %v7292 = vmul.f32 %v7276, 0.044715
    %v7293 = vmul.f32 %v7277, 0.044715
    %v7294 = vmul.f32 %v7278, 0.044715
    %v7295 = vmul.f32 %v7279, 0.044715
    %v7296 = vmul.f32 %v7280, 0.044715
    %v7297 = vmul.f32 %v7281, 0.044715
    %v7298 = vadd.f32 %v7211, %v7282
    %v7299 = vadd.f32 %v7213, %v7283
    %v7300 = vadd.f32 %v7216, %v7284
    %v7301 = vadd.f32 %v7218, %v7285
    %v7302 = vadd.f32 %v7221, %v7286
    %v7303 = vadd.f32 %v7223, %v7287
    %v7304 = vadd.f32 %v7226, %v7288
    %v7305 = vadd.f32 %v7228, %v7289
    %v7306 = vadd.f32 %v7231, %v7290
    %v7307 = vadd.f32 %v7233, %v7291
    %v7308 = vadd.f32 %v7236, %v7292
    %v7309 = vadd.f32 %v7238, %v7293
    %v7310 = vadd.f32 %v7241, %v7294
    %v7311 = vadd.f32 %v7243, %v7295
    %v7312 = vadd.f32 %v7246, %v7296
    %v7313 = vadd.f32 %v7248, %v7297
    %v7314 = vmul.f32 %v7298, 0.7978846
    %v7315 = vmul.f32 %v7299, 0.7978846
    %v7316 = vmul.f32 %v7300, 0.7978846
    %v7317 = vmul.f32 %v7301, 0.7978846
    %v7318 = vmul.f32 %v7302, 0.7978846
    %v7319 = vmul.f32 %v7303, 0.7978846
    %v7320 = vmul.f32 %v7304, 0.7978846
    %v7321 = vmul.f32 %v7305, 0.7978846
    %v7322 = vmul.f32 %v7306, 0.7978846
    %v7323 = vmul.f32 %v7307, 0.7978846
    %v7324 = vmul.f32 %v7308, 0.7978846
    %v7325 = vmul.f32 %v7309, 0.7978846
    %v7326 = vmul.f32 %v7310, 0.7978846
    %v7327 = vmul.f32 %v7311, 0.7978846
    %v7328 = vmul.f32 %v7312, 0.7978846
    %v7329 = vmul.f32 %v7313, 0.7978846
    %v7330 = vtanh.pop %v7314
    %v7331 = vtanh.pop %v7315
    %v7332 = vtanh.pop %v7316
    %v7333 = vtanh.pop %v7317
    %v7334 = vtanh.pop %v7318
    %v7335 = vtanh.pop %v7319
    %v7336 = vtanh.pop %v7320
    %v7337 = vtanh.pop %v7321
    %v7338 = vtanh.pop %v7322
    %v7339 = vtanh.pop %v7323
    %v7340 = vtanh.pop %v7324
    %v7341 = vtanh.pop %v7325
    %v7342 = vtanh.pop %v7326
    %v7343 = vtanh.pop %v7327
    %v7344 = vtanh.pop %v7328
    %v7345 = vtanh.pop %v7329
    %v7346 = vadd.f32 %v7330, 1.0
    %v7347 = vadd.f32 %v7331, 1.0
    %v7348 = vadd.f32 %v7332, 1.0
    %v7349 = vadd.f32 %v7333, 1.0
    %v7350 = vadd.f32 %v7334, 1.0
    %v7351 = vadd.f32 %v7335, 1.0
    %v7352 = vadd.f32 %v7336, 1.0
    %v7353 = vadd.f32 %v7337, 1.0
    %v7354 = vadd.f32 %v7338, 1.0
    %v7355 = vadd.f32 %v7339, 1.0
    %v7356 = vadd.f32 %v7340, 1.0
    %v7357 = vadd.f32 %v7341, 1.0
    %v7358 = vadd.f32 %v7342, 1.0
    %v7359 = vadd.f32 %v7343, 1.0
    %v7360 = vadd.f32 %v7344, 1.0
    %v7361 = vadd.f32 %v7345, 1.0
    %v7362 = vmul.f32 %v7346, 0.5
    %v7363 = vmul.f32 %v7347, 0.5
    %v7364 = vmul.f32 %v7348, 0.5
    %v7365 = vmul.f32 %v7349, 0.5
    %v7366 = vmul.f32 %v7350, 0.5
    %v7367 = vmul.f32 %v7351, 0.5
    %v7368 = vmul.f32 %v7352, 0.5
    %v7369 = vmul.f32 %v7353, 0.5
    %v7370 = vmul.f32 %v7354, 0.5
    %v7371 = vmul.f32 %v7355, 0.5
    %v7372 = vmul.f32 %v7356, 0.5
    %v7373 = vmul.f32 %v7357, 0.5
    %v7374 = vmul.f32 %v7358, 0.5
    %v7375 = vmul.f32 %v7359, 0.5
    %v7376 = vmul.f32 %v7360, 0.5
    %v7377 = vmul.f32 %v7361, 0.5
    %v7378 = vmul.f32 %v7211, %v7362
    %v7379 = vmul.f32 %v7213, %v7363
    %v7380 = vmul.f32 %v7216, %v7364
    %v7381 = vmul.f32 %v7218, %v7365
    %v7382 = vmul.f32 %v7221, %v7366
    %v7383 = vmul.f32 %v7223, %v7367
    %v7384 = vmul.f32 %v7226, %v7368
    %v7385 = vmul.f32 %v7228, %v7369
    %v7386 = vmul.f32 %v7231, %v7370
    %v7387 = vmul.f32 %v7233, %v7371
    %v7388 = vmul.f32 %v7236, %v7372
    %v7389 = vmul.f32 %v7238, %v7373
    %v7390 = vmul.f32 %v7241, %v7374
    %v7391 = vmul.f32 %v7243, %v7375
    %v7392 = vmul.f32 %v7246, %v7376
    %v7393 = vmul.f32 %v7248, %v7377
    %s7394 = scalar_lea.vmem [#allocation14], 192
    %v7395 = vld [vmem:[%s7394] sm:$0xf]
    %v7396 = vld [vmem:[%s7394 + $0x4] sm:$0xf]
    %v7397 = vld [vmem:[%s7394 + $0x8] sm:$0xf]
    %v7398 = vld [vmem:[%s7394 + $0xc] sm:$0xf]
    %v7399 = vld [vmem:[%s7394 + $0x10] sm:$0xf]
    %v7400 = vld [vmem:[%s7394 + $0x14] sm:$0xf]
    %v7401 = vld [vmem:[%s7394 + $0x18] sm:$0xf]
    %v7402 = vld [vmem:[%s7394 + $0x1c] sm:$0xf]
    %v7403 = vld [vmem:[%s7394 + $0x20] sm:$0xf]
    %v7404 = vld [vmem:[%s7394 + $0x24] sm:$0xf]
    %v7405 = vld [vmem:[%s7394 + $0x28] sm:$0xf]
    %v7406 = vld [vmem:[%s7394 + $0x2c] sm:$0xf]
    %v7407 = vld [vmem:[%s7394 + $0x30] sm:$0xf]
    %v7408 = vld [vmem:[%s7394 + $0x34] sm:$0xf]
    %v7409 = vld [vmem:[%s7394 + $0x38] sm:$0xf]
    %v7410 = vld [vmem:[%s7394 + $0x3c] sm:$0xf]
    %v7411 = vpack.c.bf16 %v7379, %v7378
    %v7412 = vpack.c.bf16 %v7381, %v7380
    %v7413 = vpack.c.bf16 %v7383, %v7382
    %v7414 = vpack.c.bf16 %v7385, %v7384
    %v7415 = vpack.c.bf16 %v7387, %v7386
    %v7416 = vpack.c.bf16 %v7389, %v7388
    %v7417 = vpack.c.bf16 %v7391, %v7390
    %v7418 = vpack.c.bf16 %v7393, %v7392
    %v7435 = vunpack.c.l.b16 %v7395
    %v7436 = vunpack.c.l.b16 %v7396
    %v7437 = vunpack.c.l.b16 %v7397
    %v7438 = vunpack.c.l.b16 %v7398
    %v7439 = vunpack.c.l.b16 %v7399
    %v7440 = vunpack.c.l.b16 %v7400
    %v7441 = vunpack.c.l.b16 %v7401
    %v7442 = vunpack.c.l.b16 %v7402
    %v7443 = vunpack.c.l.b16 %v7403
    %v7444 = vunpack.c.l.b16 %v7404
    %v7445 = vunpack.c.l.b16 %v7405
    %v7446 = vunpack.c.l.b16 %v7406
    %v7447 = vunpack.c.l.b16 %v7407
    %v7448 = vunpack.c.l.b16 %v7408
    %v7449 = vunpack.c.l.b16 %v7409
    %v7450 = vunpack.c.l.b16 %v7410
    %v7451 = vpack.c.b16 %v7436, %v7435
    %v7452 = vpack.c.b16 %v7438, %v7437
    %v7453 = vpack.c.b16 %v7440, %v7439
    %v7454 = vpack.c.b16 %v7442, %v7441
    %v7455 = vpack.c.b16 %v7444, %v7443
    %v7456 = vpack.c.b16 %v7446, %v7445
    %v7457 = vpack.c.b16 %v7448, %v7447
    %v7458 = vpack.c.b16 %v7450, %v7449
    %7467 = vmatpush.bf16.msra.mxu0 %v7458
    %7468 = vmatpush.bf16.msra.mxu0 %v7457
    %7469 = vmatpush.bf16.msra.mxu0 %v7456
    %7470 = vmatpush.bf16.msra.mxu0 %v7455
    %7471 = vmatpush.bf16.msra.mxu0 %v7454
    %7472 = vmatpush.bf16.msra.mxu0 %v7453
    %7473 = vmatpush.bf16.msra.mxu0 %v7452
    %7474 = vmatpush.bf16.msra.mxu0 %v7451
    %7475 = vmatmul.bf16.gmra.mxu0 %v7411
    %v7476 = vpop.f32.mrf.mxu0
    %v7477 = vadd.f32 0.0, %v7476
    %v7478 = vpop.f32.mrf.mxu0
    %v7479 = vadd.f32 0.0, %v7478
    %7480 = vmatmul.bf16.gmra.mxu0 %v7412
    %v7481 = vpop.f32.mrf.mxu0
    %v7482 = vadd.f32 0.0, %v7481
    %v7483 = vpop.f32.mrf.mxu0
    %v7484 = vadd.f32 0.0, %v7483
    %7485 = vmatmul.bf16.gmra.mxu0 %v7413
    %v7486 = vpop.f32.mrf.mxu0
    %v7487 = vadd.f32 0.0, %v7486
    %v7488 = vpop.f32.mrf.mxu0
    %v7489 = vadd.f32 0.0, %v7488
    %7490 = vmatmul.bf16.gmra.mxu0 %v7414
    %v7491 = vpop.f32.mrf.mxu0
    %v7492 = vadd.f32 0.0, %v7491
    %v7493 = vpop.f32.mrf.mxu0
    %v7494 = vadd.f32 0.0, %v7493
    %7495 = vmatmul.bf16.gmra.mxu0 %v7415
    %v7496 = vpop.f32.mrf.mxu0
    %v7497 = vadd.f32 0.0, %v7496
    %v7498 = vpop.f32.mrf.mxu0
    %v7499 = vadd.f32 0.0, %v7498
    %7500 = vmatmul.bf16.gmra.mxu0 %v7416
    %v7501 = vpop.f32.mrf.mxu0
    %v7502 = vadd.f32 0.0, %v7501
    %v7503 = vpop.f32.mrf.mxu0
    %v7504 = vadd.f32 0.0, %v7503
    %7505 = vmatmul.bf16.gmra.mxu0 %v7417
    %v7506 = vpop.f32.mrf.mxu0
    %v7507 = vadd.f32 0.0, %v7506
    %v7508 = vpop.f32.mrf.mxu0
    %v7509 = vadd.f32 0.0, %v7508
    %7510 = vmatmul.bf16.gmra.mxu0 %v7418
    %v7511 = vpop.f32.mrf.mxu0
    %v7512 = vadd.f32 0.0, %v7511
    %v7513 = vpop.f32.mrf.mxu0
    %v7514 = vadd.f32 0.0, %v7513
    %7515 = vdwg.mxu0
    %v7516 = vadd.f32 %v6707, %v7477
    %v7517 = vadd.f32 %v6708, %v7479
    %v7518 = vadd.f32 %v6709, %v7482
    %v7519 = vadd.f32 %v6710, %v7484
    %v7520 = vadd.f32 %v6711, %v7487
    %v7521 = vadd.f32 %v6712, %v7489
    %v7522 = vadd.f32 %v6713, %v7492
    %v7523 = vadd.f32 %v6714, %v7494
    %v7524 = vadd.f32 %v6715, %v7497
    %v7525 = vadd.f32 %v6716, %v7499
    %v7526 = vadd.f32 %v6717, %v7502
    %v7527 = vadd.f32 %v6718, %v7504
    %v7528 = vadd.f32 %v6719, %v7507
    %v7529 = vadd.f32 %v6720, %v7509
    %v7530 = vadd.f32 %v6721, %v7512
    %v7531 = vadd.f32 %v6722, %v7514
    %s7532 = scalar_lea.vmem %s12, 3
    %v7533 = vld [vmem:[%s7532] sm:$0x1]
    %v7535 = vperm.slane %v7533, 0
    %v7537 = vadd.f32 %v7516, %v7535
    %v7538 = vadd.f32 %v7517, %v7535
    %v7539 = vadd.f32 %v7518, %v7535
    %v7540 = vadd.f32 %v7519, %v7535
    %v7541 = vadd.f32 %v7520, %v7535
    %v7542 = vadd.f32 %v7521, %v7535
    %v7543 = vadd.f32 %v7522, %v7535
    %v7544 = vadd.f32 %v7523, %v7535
    %v7545 = vadd.f32 %v7524, %v7535
    %v7546 = vadd.f32 %v7525, %v7535
    %v7547 = vadd.f32 %v7526, %v7535
    %v7548 = vadd.f32 %v7527, %v7535
    %v7549 = vadd.f32 %v7528, %v7535
    %v7550 = vadd.f32 %v7529, %v7535
    %v7551 = vadd.f32 %v7530, %v7535
    %v7552 = vadd.f32 %v7531, %v7535
    %v7553 = vld [vmem:[%s17] sm:$0x1]
    %v7554 = vsel %vm877, %v7537, 0.0
    %7555 = vadd.xlane.f32.xlu0 %v7554
    %v7556 = vpop.xlane.xlu0 %7555
    %v7557 = vsel %vm877, %v7538, 0.0
    %7558 = vadd.xlane.f32.xlu0 %v7557
    %v7559 = vpop.xlane.xlu0 %7558
    %v7560 = vsel %vm877, %v7539, 0.0
    %7561 = vadd.xlane.f32.xlu0 %v7560
    %v7562 = vpop.xlane.xlu0 %7561
    %v7563 = vsel %vm877, %v7540, 0.0
    %7564 = vadd.xlane.f32.xlu0 %v7563
    %v7565 = vpop.xlane.xlu0 %7564
    %v7566 = vsel %vm877, %v7541, 0.0
    %7567 = vadd.xlane.f32.xlu0 %v7566
    %v7568 = vpop.xlane.xlu0 %7567
    %v7569 = vsel %vm877, %v7542, 0.0
    %7570 = vadd.xlane.f32.xlu0 %v7569
    %v7571 = vpop.xlane.xlu0 %7570
    %v7572 = vsel %vm877, %v7543, 0.0
    %7573 = vadd.xlane.f32.xlu0 %v7572
    %v7574 = vpop.xlane.xlu0 %7573
    %v7575 = vsel %vm877, %v7544, 0.0
    %7576 = vadd.xlane.f32.xlu0 %v7575
    %v7577 = vpop.xlane.xlu0 %7576
    %v7578 = vsel %vm877, %v7545, 0.0
    %7579 = vadd.xlane.f32.xlu0 %v7578
    %v7580 = vpop.xlane.xlu0 %7579
    %v7581 = vsel %vm877, %v7546, 0.0
    %7582 = vadd.xlane.f32.xlu0 %v7581
    %v7583 = vpop.xlane.xlu0 %7582
    %v7584 = vsel %vm877, %v7547, 0.0
    %7585 = vadd.xlane.f32.xlu0 %v7584
    %v7586 = vpop.xlane.xlu0 %7585
    %v7587 = vsel %vm877, %v7548, 0.0
    %7588 = vadd.xlane.f32.xlu0 %v7587
    %v7589 = vpop.xlane.xlu0 %7588
    %v7590 = vsel %vm877, %v7549, 0.0
    %7591 = vadd.xlane.f32.xlu0 %v7590
    %v7592 = vpop.xlane.xlu0 %7591
    %v7593 = vsel %vm877, %v7550, 0.0
    %7594 = vadd.xlane.f32.xlu0 %v7593
    %v7595 = vpop.xlane.xlu0 %7594
    %v7596 = vsel %vm877, %v7551, 0.0
    %7597 = vadd.xlane.f32.xlu0 %v7596
    %v7598 = vpop.xlane.xlu0 %7597
    %v7599 = vsel %vm877, %v7552, 0.0
    %7600 = vadd.xlane.f32.xlu0 %v7599
    %v7601 = vpop.xlane.xlu0 %7600
    %v7602 = vmul.f32 %v7556, %v890
    %v7603 = vmul.f32 %v7559, %v890
    %v7604 = vmul.f32 %v7562, %v890
    %v7605 = vmul.f32 %v7565, %v890
    %v7606 = vmul.f32 %v7568, %v890
    %v7607 = vmul.f32 %v7571, %v890
    %v7608 = vmul.f32 %v7574, %v890
    %v7609 = vmul.f32 %v7577, %v890
    %v7610 = vmul.f32 %v7580, %v890
    %v7611 = vmul.f32 %v7583, %v890
    %v7612 = vmul.f32 %v7586, %v890
    %v7613 = vmul.f32 %v7589, %v890
    %v7614 = vmul.f32 %v7592, %v890
    %v7615 = vmul.f32 %v7595, %v890
    %v7616 = vmul.f32 %v7598, %v890
    %v7617 = vmul.f32 %v7601, %v890
    %v7618 = vsub.f32 %v7537, %v7602
    %v7619 = vsub.f32 %v7538, %v7603
    %v7620 = vsub.f32 %v7539, %v7604
    %v7621 = vsub.f32 %v7540, %v7605
    %v7622 = vsub.f32 %v7541, %v7606
    %v7623 = vsub.f32 %v7542, %v7607
    %v7624 = vsub.f32 %v7543, %v7608
    %v7625 = vsub.f32 %v7544, %v7609
    %v7626 = vsub.f32 %v7545, %v7610
    %v7627 = vsub.f32 %v7546, %v7611
    %v7628 = vsub.f32 %v7547, %v7612
    %v7629 = vsub.f32 %v7548, %v7613
    %v7630 = vsub.f32 %v7549, %v7614
    %v7631 = vsub.f32 %v7550, %v7615
    %v7632 = vsub.f32 %v7551, %v7616
    %v7633 = vsub.f32 %v7552, %v7617
    %v7634 = vmul.f32 %v7618, %v7618
    %v7635 = vmul.f32 %v7619, %v7619
    %v7636 = vmul.f32 %v7620, %v7620
    %v7637 = vmul.f32 %v7621, %v7621
    %v7638 = vmul.f32 %v7622, %v7622
    %v7639 = vmul.f32 %v7623, %v7623
    %v7640 = vmul.f32 %v7624, %v7624
    %v7641 = vmul.f32 %v7625, %v7625
    %v7642 = vmul.f32 %v7626, %v7626
    %v7643 = vmul.f32 %v7627, %v7627
    %v7644 = vmul.f32 %v7628, %v7628
    %v7645 = vmul.f32 %v7629, %v7629
    %v7646 = vmul.f32 %v7630, %v7630
    %v7647 = vmul.f32 %v7631, %v7631
    %v7648 = vmul.f32 %v7632, %v7632
    %v7649 = vmul.f32 %v7633, %v7633
    %v7650 = vsel %vm877, %v7634, 0.0
    %7651 = vadd.xlane.f32.xlu0 %v7650
    %v7652 = vpop.xlane.xlu0 %7651
    %v7653 = vsel %vm877, %v7635, 0.0
    %7654 = vadd.xlane.f32.xlu0 %v7653
    %v7655 = vpop.xlane.xlu0 %7654
    %v7656 = vsel %vm877, %v7636, 0.0
    %7657 = vadd.xlane.f32.xlu0 %v7656
    %v7658 = vpop.xlane.xlu0 %7657
    %v7659 = vsel %vm877, %v7637, 0.0
    %7660 = vadd.xlane.f32.xlu0 %v7659
    %v7661 = vpop.xlane.xlu0 %7660
    %v7662 = vsel %vm877, %v7638, 0.0
    %7663 = vadd.xlane.f32.xlu0 %v7662
    %v7664 = vpop.xlane.xlu0 %7663
    %v7665 = vsel %vm877, %v7639, 0.0
    %7666 = vadd.xlane.f32.xlu0 %v7665
    %v7667 = vpop.xlane.xlu0 %7666
    %v7668 = vsel %vm877, %v7640, 0.0
    %7669 = vadd.xlane.f32.xlu0 %v7668
    %v7670 = vpop.xlane.xlu0 %7669
    %v7671 = vsel %vm877, %v7641, 0.0
    %7672 = vadd.xlane.f32.xlu0 %v7671
    %v7673 = vpop.xlane.xlu0 %7672
    %v7674 = vsel %vm877, %v7642, 0.0
    %7675 = vadd.xlane.f32.xlu0 %v7674
    %v7676 = vpop.xlane.xlu0 %7675
    %v7677 = vsel %vm877, %v7643, 0.0
    %7678 = vadd.xlane.f32.xlu0 %v7677
    %v7679 = vpop.xlane.xlu0 %7678
    %v7680 = vsel %vm877, %v7644, 0.0
    %7681 = vadd.xlane.f32.xlu0 %v7680
    %v7682 = vpop.xlane.xlu0 %7681
    %v7683 = vsel %vm877, %v7645, 0.0
    %7684 = vadd.xlane.f32.xlu0 %v7683
    %v7685 = vpop.xlane.xlu0 %7684
    %v7686 = vsel %vm877, %v7646, 0.0
    %7687 = vadd.xlane.f32.xlu0 %v7686
    %v7688 = vpop.xlane.xlu0 %7687
    %v7689 = vsel %vm877, %v7647, 0.0
    %7690 = vadd.xlane.f32.xlu0 %v7689
    %v7691 = vpop.xlane.xlu0 %7690
    %v7692 = vsel %vm877, %v7648, 0.0
    %7693 = vadd.xlane.f32.xlu0 %v7692
    %v7694 = vpop.xlane.xlu0 %7693
    %v7695 = vsel %vm877, %v7649, 0.0
    %7696 = vadd.xlane.f32.xlu0 %v7695
    %v7697 = vpop.xlane.xlu0 %7696
    %v7698 = vmul.f32 %v7652, %v890
    %v7699 = vmul.f32 %v7655, %v890
    %v7700 = vmul.f32 %v7658, %v890
    %v7701 = vmul.f32 %v7661, %v890
    %v7702 = vmul.f32 %v7664, %v890
    %v7703 = vmul.f32 %v7667, %v890
    %v7704 = vmul.f32 %v7670, %v890
    %v7705 = vmul.f32 %v7673, %v890
    %v7706 = vmul.f32 %v7676, %v890
    %v7707 = vmul.f32 %v7679, %v890
    %v7708 = vmul.f32 %v7682, %v890
    %v7709 = vmul.f32 %v7685, %v890
    %v7710 = vmul.f32 %v7688, %v890
    %v7711 = vmul.f32 %v7691, %v890
    %v7712 = vmul.f32 %v7694, %v890
    %v7713 = vmul.f32 %v7697, %v890
    %v7714 = vadd.f32 %v7698, 1e-05
    %v7715 = vadd.f32 %v7699, 1e-05
    %v7716 = vadd.f32 %v7700, 1e-05
    %v7717 = vadd.f32 %v7701, 1e-05
    %v7718 = vadd.f32 %v7702, 1e-05
    %v7719 = vadd.f32 %v7703, 1e-05
    %v7720 = vadd.f32 %v7704, 1e-05
    %v7721 = vadd.f32 %v7705, 1e-05
    %v7722 = vadd.f32 %v7706, 1e-05
    %v7723 = vadd.f32 %v7707, 1e-05
    %v7724 = vadd.f32 %v7708, 1e-05
    %v7725 = vadd.f32 %v7709, 1e-05
    %v7726 = vadd.f32 %v7710, 1e-05
    %v7727 = vadd.f32 %v7711, 1e-05
    %v7728 = vadd.f32 %v7712, 1e-05
    %v7729 = vadd.f32 %v7713, 1e-05
    %v7730 = vrsqrt.pop %v7714
    %v7731 = vmul.f32 %v7730, %v7714
    %v7732 = vmul.f32 %v7731, %v7730
    %v7733 = vmul.f32 0.5, %v7732
    %v7734 = vsub.f32 1.5, %v7733
    %v7735 = vmul.f32 %v7730, %v7734
    %vm7736 = vweird.f32 %v7714
    %vm7737 = vweird.f32 %v7730
    %vm7738 = vmor %vm7736, %vm7737
    %v7739 = vsel %vm7738, %v7730, %v7735
    %v7740 = vrsqrt.pop %v7715
    %v7741 = vmul.f32 %v7740, %v7715
    %v7742 = vmul.f32 %v7741, %v7740
    %v7743 = vmul.f32 0.5, %v7742
    %v7744 = vsub.f32 1.5, %v7743
    %v7745 = vmul.f32 %v7740, %v7744
    %vm7746 = vweird.f32 %v7715
    %vm7747 = vweird.f32 %v7740
    %vm7748 = vmor %vm7746, %vm7747
    %v7749 = vsel %vm7748, %v7740, %v7745
    %v7750 = vrsqrt.pop %v7716
    %v7751 = vmul.f32 %v7750, %v7716
    %v7752 = vmul.f32 %v7751, %v7750
    %v7753 = vmul.f32 0.5, %v7752
    %v7754 = vsub.f32 1.5, %v7753
    %v7755 = vmul.f32 %v7750, %v7754
    %vm7756 = vweird.f32 %v7716
    %vm7757 = vweird.f32 %v7750
    %vm7758 = vmor %vm7756, %vm7757
    %v7759 = vsel %vm7758, %v7750, %v7755
    %v7760 = vrsqrt.pop %v7717
    %v7761 = vmul.f32 %v7760, %v7717
    %v7762 = vmul.f32 %v7761, %v7760
    %v7763 = vmul.f32 0.5, %v7762
    %v7764 = vsub.f32 1.5, %v7763
    %v7765 = vmul.f32 %v7760, %v7764
    %vm7766 = vweird.f32 %v7717
    %vm7767 = vweird.f32 %v7760
    %vm7768 = vmor %vm7766, %vm7767
    %v7769 = vsel %vm7768, %v7760, %v7765
    %v7770 = vrsqrt.pop %v7718
    %v7771 = vmul.f32 %v7770, %v7718
    %v7772 = vmul.f32 %v7771, %v7770
    %v7773 = vmul.f32 0.5, %v7772
    %v7774 = vsub.f32 1.5, %v7773
    %v7775 = vmul.f32 %v7770, %v7774
    %vm7776 = vweird.f32 %v7718
    %vm7777 = vweird.f32 %v7770
    %vm7778 = vmor %vm7776, %vm7777
    %v7779 = vsel %vm7778, %v7770, %v7775
    %v7780 = vrsqrt.pop %v7719
    %v7781 = vmul.f32 %v7780, %v7719
    %v7782 = vmul.f32 %v7781, %v7780
    %v7783 = vmul.f32 0.5, %v7782
    %v7784 = vsub.f32 1.5, %v7783
    %v7785 = vmul.f32 %v7780, %v7784
    %vm7786 = vweird.f32 %v7719
    %vm7787 = vweird.f32 %v7780
    %vm7788 = vmor %vm7786, %vm7787
    %v7789 = vsel %vm7788, %v7780, %v7785
    %v7790 = vrsqrt.pop %v7720
    %v7791 = vmul.f32 %v7790, %v7720
    %v7792 = vmul.f32 %v7791, %v7790
    %v7793 = vmul.f32 0.5, %v7792
    %v7794 = vsub.f32 1.5, %v7793
    %v7795 = vmul.f32 %v7790, %v7794
    %vm7796 = vweird.f32 %v7720
    %vm7797 = vweird.f32 %v7790
    %vm7798 = vmor %vm7796, %vm7797
    %v7799 = vsel %vm7798, %v7790, %v7795
    %v7800 = vrsqrt.pop %v7721
    %v7801 = vmul.f32 %v7800, %v7721
    %v7802 = vmul.f32 %v7801, %v7800
    %v7803 = vmul.f32 0.5, %v7802
    %v7804 = vsub.f32 1.5, %v7803
    %v7805 = vmul.f32 %v7800, %v7804
    %vm7806 = vweird.f32 %v7721
    %vm7807 = vweird.f32 %v7800
    %vm7808 = vmor %vm7806, %vm7807
    %v7809 = vsel %vm7808, %v7800, %v7805
    %v7810 = vrsqrt.pop %v7722
    %v7811 = vmul.f32 %v7810, %v7722
    %v7812 = vmul.f32 %v7811, %v7810
    %v7813 = vmul.f32 0.5, %v7812
    %v7814 = vsub.f32 1.5, %v7813
    %v7815 = vmul.f32 %v7810, %v7814
    %vm7816 = vweird.f32 %v7722
    %vm7817 = vweird.f32 %v7810
    %vm7818 = vmor %vm7816, %vm7817
    %v7819 = vsel %vm7818, %v7810, %v7815
    %v7820 = vrsqrt.pop %v7723
    %v7821 = vmul.f32 %v7820, %v7723
    %v7822 = vmul.f32 %v7821, %v7820
    %v7823 = vmul.f32 0.5, %v7822
    %v7824 = vsub.f32 1.5, %v7823
    %v7825 = vmul.f32 %v7820, %v7824
    %vm7826 = vweird.f32 %v7723
    %vm7827 = vweird.f32 %v7820
    %vm7828 = vmor %vm7826, %vm7827
    %v7829 = vsel %vm7828, %v7820, %v7825
    %v7830 = vrsqrt.pop %v7724
    %v7831 = vmul.f32 %v7830, %v7724
    %v7832 = vmul.f32 %v7831, %v7830
    %v7833 = vmul.f32 0.5, %v7832
    %v7834 = vsub.f32 1.5, %v7833
    %v7835 = vmul.f32 %v7830, %v7834
    %vm7836 = vweird.f32 %v7724
    %vm7837 = vweird.f32 %v7830
    %vm7838 = vmor %vm7836, %vm7837
    %v7839 = vsel %vm7838, %v7830, %v7835
    %v7840 = vrsqrt.pop %v7725
    %v7841 = vmul.f32 %v7840, %v7725
    %v7842 = vmul.f32 %v7841, %v7840
    %v7843 = vmul.f32 0.5, %v7842
    %v7844 = vsub.f32 1.5, %v7843
    %v7845 = vmul.f32 %v7840, %v7844
    %vm7846 = vweird.f32 %v7725
    %vm7847 = vweird.f32 %v7840
    %vm7848 = vmor %vm7846, %vm7847
    %v7849 = vsel %vm7848, %v7840, %v7845
    %v7850 = vrsqrt.pop %v7726
    %v7851 = vmul.f32 %v7850, %v7726
    %v7852 = vmul.f32 %v7851, %v7850
    %v7853 = vmul.f32 0.5, %v7852
    %v7854 = vsub.f32 1.5, %v7853
    %v7855 = vmul.f32 %v7850, %v7854
    %vm7856 = vweird.f32 %v7726
    %vm7857 = vweird.f32 %v7850
    %vm7858 = vmor %vm7856, %vm7857
    %v7859 = vsel %vm7858, %v7850, %v7855
    %v7860 = vrsqrt.pop %v7727
    %v7861 = vmul.f32 %v7860, %v7727
    %v7862 = vmul.f32 %v7861, %v7860
    %v7863 = vmul.f32 0.5, %v7862
    %v7864 = vsub.f32 1.5, %v7863
    %v7865 = vmul.f32 %v7860, %v7864
    %vm7866 = vweird.f32 %v7727
    %vm7867 = vweird.f32 %v7860
    %vm7868 = vmor %vm7866, %vm7867
    %v7869 = vsel %vm7868, %v7860, %v7865
    %v7870 = vrsqrt.pop %v7728
    %v7871 = vmul.f32 %v7870, %v7728
    %v7872 = vmul.f32 %v7871, %v7870
    %v7873 = vmul.f32 0.5, %v7872
    %v7874 = vsub.f32 1.5, %v7873
    %v7875 = vmul.f32 %v7870, %v7874
    %vm7876 = vweird.f32 %v7728
    %vm7877 = vweird.f32 %v7870
    %vm7878 = vmor %vm7876, %vm7877
    %v7879 = vsel %vm7878, %v7870, %v7875
    %v7880 = vrsqrt.pop %v7729
    %v7881 = vmul.f32 %v7880, %v7729
    %v7882 = vmul.f32 %v7881, %v7880
    %v7883 = vmul.f32 0.5, %v7882
    %v7884 = vsub.f32 1.5, %v7883
    %v7885 = vmul.f32 %v7880, %v7884
    %vm7886 = vweird.f32 %v7729
    %vm7887 = vweird.f32 %v7880
    %vm7888 = vmor %vm7886, %vm7887
    %v7889 = vsel %vm7888, %v7880, %v7885
    %v7890 = vmul.f32 %v7618, %v7739
    %v7891 = vmul.f32 %v7619, %v7749
    %v7892 = vmul.f32 %v7620, %v7759
    %v7893 = vmul.f32 %v7621, %v7769
    %v7894 = vmul.f32 %v7622, %v7779
    %v7895 = vmul.f32 %v7623, %v7789
    %v7896 = vmul.f32 %v7624, %v7799
    %v7897 = vmul.f32 %v7625, %v7809
    %v7898 = vmul.f32 %v7626, %v7819
    %v7899 = vmul.f32 %v7627, %v7829
    %v7900 = vmul.f32 %v7628, %v7839
    %v7901 = vmul.f32 %v7629, %v7849
    %v7902 = vmul.f32 %v7630, %v7859
    %v7903 = vmul.f32 %v7631, %v7869
    %v7904 = vmul.f32 %v7632, %v7879
    %v7905 = vmul.f32 %v7633, %v7889
    %v7907 = vperm.slane %v7553, 0
    %v7909 = vmul.f32 %v7890, %v7907
    %v7910 = vmul.f32 %v7891, %v7907
    %v7911 = vmul.f32 %v7892, %v7907
    %v7912 = vmul.f32 %v7893, %v7907
    %v7913 = vmul.f32 %v7894, %v7907
    %v7914 = vmul.f32 %v7895, %v7907
    %v7915 = vmul.f32 %v7896, %v7907
    %v7916 = vmul.f32 %v7897, %v7907
    %v7917 = vmul.f32 %v7898, %v7907
    %v7918 = vmul.f32 %v7899, %v7907
    %v7919 = vmul.f32 %v7900, %v7907
    %v7920 = vmul.f32 %v7901, %v7907
    %v7921 = vmul.f32 %v7902, %v7907
    %v7922 = vmul.f32 %v7903, %v7907
    %v7923 = vmul.f32 %v7904, %v7907
    %v7924 = vmul.f32 %v7905, %v7907
    %7925 = vst.msk [vmem:[%s18] sm:$0xff] %vm877, %v7909
    %7926 = vst.msk [vmem:[%s18 + $0x8] sm:$0xff] %vm877, %v7910
    %7927 = vst.msk [vmem:[%s18 + $0x10] sm:$0xff] %vm877, %v7911
    %7928 = vst.msk [vmem:[%s18 + $0x18] sm:$0xff] %vm877, %v7912
    %7929 = vst.msk [vmem:[%s18 + $0x20] sm:$0xff] %vm877, %v7913
    %7930 = vst.msk [vmem:[%s18 + $0x28] sm:$0xff] %vm877, %v7914
    %7931 = vst.msk [vmem:[%s18 + $0x30] sm:$0xff] %vm877, %v7915
    %7932 = vst.msk [vmem:[%s18 + $0x38] sm:$0xff] %vm877, %v7916
    %7933 = vst.msk [vmem:[%s18 + $0x40] sm:$0xff] %vm877, %v7917
    %7934 = vst.msk [vmem:[%s18 + $0x48] sm:$0xff] %vm877, %v7918
    %7935 = vst.msk [vmem:[%s18 + $0x50] sm:$0xff] %vm877, %v7919
    %7936 = vst.msk [vmem:[%s18 + $0x58] sm:$0xff] %vm877, %v7920
    %7937 = vst.msk [vmem:[%s18 + $0x60] sm:$0xff] %vm877, %v7921
    %7938 = vst.msk [vmem:[%s18 + $0x68] sm:$0xff] %vm877, %v7922
    %7939 = vst.msk [vmem:[%s18 + $0x70] sm:$0xff] %vm877, %v7923
    %7940 = vst.msk [vmem:[%s18 + $0x78] sm:$0xff] %vm877, %v7924
    %s7941 = scalar_lea.vmem %s17, 1
    %v7942 = vld [vmem:[%s7941] sm:$0x1]
    %v7944 = vperm.slane %v7942, 0
    %v7946 = vmul.f32 %v5421, %v7944
    %v7947 = vmul.f32 %v5422, %v7944
    %7948 = vst.msk [vmem:[#allocation19] sm:$0xff] %vm877, %v7946
    %7949 = vst.msk [vmem:[#allocation19 + $0x8] sm:$0xff] %vm877, %v7947
    // Predicated region
    $region114: #{forward.1} parent=1 // pred_check
      _
    $region115: #{forward.1} parent=1 // pred_check_branch
      %7951 = sbr.rel (0) target = $region117
    $region116: #{forward.1} parent=1 // pred_region
      _
    $region117: #{forward.1} parent=1 // pred_fallthru
      _
    // Predicated region
    $region118: #{forward.1} parent=1 // pred_check
      _
    $region119: #{forward.1} parent=1 // pred_check_branch
      %7953 = sbr.rel (0) target = $region121
    $region120: #{forward.1} parent=1 // pred_region
      %7955 = vsyncadd [#allocation4], 0
      %s7956 = sshll.u32 [#allocation19], 4
      %s7957 = int_to_ptr.vmem [resolvable:$true] %s7956
      %s7958 = sshll.u32 %s19, 4
      %s7959 = int_to_ptr.hbm [resolvable:$true] %s7958
      %7964 = dma.vmem_to_hbm [thread:$0]  %s7957, 256, %s7959, [#allocation4], 128, 128, 8
    $region121: #{forward.1} parent=1 // pred_fallthru
      _
    // Predicated region
    $region122: #{forward.1} parent=1 // pred_check
      _
    $region123: #{forward.1} parent=1 // pred_check_branch
      %7966 = sbr.rel (0) target = $region125
    $region124: #{forward.1} parent=1 // pred_region
      _
    $region125: #{forward.1} parent=1 // pred_fallthru
      _
    // Predicated region
    $region126: #{forward.1} parent=1 // pred_check
      _
    $region127: #{forward.1} parent=1 // pred_check_branch
      %7968 = sbr.rel (0) target = $region129
    $region128: #{forward.1} parent=1 // pred_region
      %7970 = dma.done [#allocation4], 256
    $region129: #{forward.1} parent=1 // pred_fallthru
      _
    %7971 = vsyncpa [#allocation3], 1
    %7972 = vsyncpa [#allocation6], 1
    %7973 = vsyncpa [#allocation9], 1
    %7974 = vsyncpa [#allocation12], 1
    %7975 = vsyncpa [#allocation15], 1
    %7976 = vsyncpa [#allocation18], 1
    %7977 = vsyncpa [#allocation4], 1

</llo_original>
